<compile_context>
chip_gen: v7x
topology: tpu7x:2x2x1
jax: 0.10.0
libtpu: 0.0.40
codegen_flags: <defaults>
</compile_context>

<pallas_src>
import functools

import jax
import jax.numpy as jnp
from jax import lax
from jax.experimental import pallas as pl
from jax.experimental.pallas import tpu as pltpu


# ------------------------------------------------------------- fused kernel
def _decoder_kernel(x_ref, wih_ref, whh_ref, b_ref,
                    wfc_ref, bfc_ref, wfr_ref, bfin_ref,
                    enc_ref, wfe_ref, out_ref, hid_ref, *, T, F):
    # ---------------- LSTM (batch folded into lanes, weights pre-packed) ----
    # Hoisted input projection + bias for ALL time steps: one MXU matmul.
    xg = (jnp.dot(x_ref[...], wih_ref[...],
                  preferred_element_type=jnp.float32) + b_ref[...])   # (T, 4F)
    whh = whh_ref[...]                                                # (F, 4F)
    h = jnp.zeros((1, F), jnp.float32)
    c = jnp.zeros((1, F), jnp.float32)
    # TODO(synk): switch to lax.fori_loop carrying (h, c) if T grows beyond ~64
    # (full unroll is right at T=8 but would bloat code size for long seqs).
    for t in range(T):                                   # fully unrolled, static
        gates = xg[t:t + 1, :] + jnp.dot(h, whh,
                                         preferred_element_type=jnp.float32)
        # One sigmoid over all 4 gate blocks, one tanh for the cell gate.
        sig = jax.nn.sigmoid(gates)                      # (1, 4F)
        g_g = jnp.tanh(gates[:, 2 * F:3 * F])            # cell gate ("g")
        c = sig[:, F:2 * F] * c + sig[:, 0:F] * g_g      # f*c + i*g
        h = sig[:, 3 * F:4 * F] * jnp.tanh(c)            # o*tanh(c)
        hid_ref[t:t + 1, :] = h                          # VMEM scratch row t
    hidden = hid_ref[...]                                # (T, F) == view(T, -1)

    # ------------- rnn_fc + final_layer (concat folded into w_final split) --
    rnn = (jnp.dot(hidden, wfc_ref[...],
                   preferred_element_type=jnp.float32) + bfc_ref[...])    # (T, R)
    out = (lax.dot_general(rnn, wfr_ref[...],
                           dimension_numbers=(((1,), (1,)), ((), ())),
                           preferred_element_type=jnp.float32)
           + bfin_ref[...])                                               # (T, C)
    # enc contribution: cast the resident f32 tile to bf16 in-kernel (VPU pass)
    # and contract against the pre-cast bf16 w_final[:, :E] with f32 accum.
    enc_b = enc_ref[...].astype(jnp.bfloat16)
    out = out + lax.dot_general(enc_b, wfe_ref[...],
                                dimension_numbers=(((1,), (1,)), ((), ())),
                                preferred_element_type=jnp.float32)
    # Single (T, C) store at the very end.
    out_ref[...] = out


# ------------------------------------------------- one-time weight packing
def prepare_params(params, num_features):
    """Hoisted out of the per-call path: run ONCE at init."""
    B = num_features
    w_ih, w_hh = params["w_ih"], params["w_hh"]
    H4, I = w_ih.shape
    H = H4 // 4
    F = B * H
    w_fc = params["w_fc"]
    R = w_fc.shape[0]
    w_final = params["w_final"]
    C, EF = w_final.shape
    E = EF - R

    def block_expand(w):
        # w: (4H, D) PyTorch layout, rows gate-major [i|f|g|o].
        # Returns (B*D, 4*B*H) block-diagonal matrix with gate-major columns:
        #   out[b*D + d, g*B*H + b*H + h] = w[g*H + h, d]
        _, D = w.shape
        w4 = w.reshape(4, H, D)                              # [g, h, d]
        eye = jnp.eye(B, dtype=w.dtype)                      # [b, b']
        big = jnp.einsum("bc,ghd->bdgch", eye, w4)           # (B, D, 4, B, H)
        return big.reshape(B * D, 4 * F)

    b_all = (params["b_ih"] + params["b_hh"]).reshape(4, 1, H)
    bias_big = jnp.broadcast_to(b_all, (4, B, H)).reshape(1, 4 * F)

    return {
        "wih_big": block_expand(w_ih),                       # (B*I, 4F) f32
        "whh_big": block_expand(w_hh),                       # (F,   4F) f32
        "bias_big": bias_big,                                # (1,   4F) f32
        "wfc_t": w_fc.T,                                     # (F, R)    f32
        "b_fc": params["b_fc"].reshape(1, R),                # (1, R)
        "wfr": w_final[:, E:],                               # (C, R)    f32
        "wfe_bf16": w_final[:, :E].astype(jnp.bfloat16),     # (C, E)    bf16
        "b_final": params["b_final"].reshape(1, C),          # (1, C)
    }


# -------------------------------------------------------------- full forward
def lstm22k_decoder_forward(prep, enc_out, dec_inp):
    T, B, I = dec_inp.shape
    F, R = prep["wfc_t"].shape
    C, E = prep["wfe_bf16"].shape

    # Only per-call prep: flatten dec_inp (T, B, I) -> (T, B*I); ~2 KB.
    x_flat = dec_inp.reshape(T, B * I)

    kernel = functools.partial(_decoder_kernel, T=T, F=F)
    # All blocks are full-array and resident in VMEM (<~4 MB total incl.
    # double-buffering -- comfortably under v5e's 16 MiB / v6e,v7x's 32 MiB
    # default scoped VMEM).  grid=(1,): a single invocation.
    # TODO(synk): if T / class_n grow, add a "parallel" grid axis over T tiles
    # (not E) so v7x's two TensorCores get independent output rows, and set
    # vmem_limit_bytes explicitly for v5e.
    return pl.pallas_call(
        kernel,
        out_shape=jax.ShapeDtypeStruct((T, C), jnp.float32),
        grid_spec=pltpu.PrefetchScalarGridSpec(
            num_scalar_prefetch=0,
            grid=(1,),
            in_specs=[
                pl.BlockSpec((T, B * I), lambda i: (0, 0)),      # x_flat
                pl.BlockSpec((B * I, 4 * F), lambda i: (0, 0)),  # wih_big
                pl.BlockSpec((F, 4 * F), lambda i: (0, 0)),      # whh_big
                pl.BlockSpec((1, 4 * F), lambda i: (0, 0)),      # bias_big
                pl.BlockSpec((F, R), lambda i: (0, 0)),          # w_fc^T
                pl.BlockSpec((1, R), lambda i: (0, 0)),          # b_fc
                pl.BlockSpec((C, R), lambda i: (0, 0)),          # w_final[:, E:]
                pl.BlockSpec((1, C), lambda i: (0, 0)),          # b_final
                pl.BlockSpec((T, E), lambda i: (0, 0)),          # enc_out (f32)
                pl.BlockSpec((C, E), lambda i: (0, 0)),          # w_final[:, :E] bf16
            ],
            out_specs=pl.BlockSpec((T, C), lambda i: (0, 0)),
            scratch_shapes=[pltpu.VMEM((T, F), jnp.float32)],    # hidden rows
        ),
        compiler_params=pltpu.CompilerParams(
            dimension_semantics=("arbitrary",)),
    )(x_flat, prep["wih_big"], prep["whh_big"], prep["bias_big"],
      prep["wfc_t"], prep["b_fc"], prep["wfr"], prep["b_final"],
      enc_out, prep["wfe_bf16"])


# --------------------------------------------------------- pure-JAX reference
def _lstm_ref(params, dec_inp):
    H = params["w_hh"].shape[1]

    def step(carry, x_t):
        h, c = carry
        gates = (x_t @ params["w_ih"].T + params["b_ih"]
                 + h @ params["w_hh"].T + params["b_hh"])
        i, f, g, o = jnp.split(gates, 4, axis=-1)
        c = jax.nn.sigmoid(f) * c + jax.nn.sigmoid(i) * jnp.tanh(g)
        h = jax.nn.sigmoid(o) * jnp.tanh(c)
        return (h, c), h

    T, B, _ = dec_inp.shape
    init = (jnp.zeros((B, H), jnp.float32), jnp.zeros((B, H), jnp.float32))
    _, h_seq = lax.scan(step, init, dec_inp)
    return h_seq.reshape(T, -1)


def reference_forward(params, enc_out, dec_inp, bf16_head=False):
    hidden = _lstm_ref(params, dec_inp)
    hidden = hidden @ params["w_fc"].T + params["b_fc"]
    if bf16_head:
        # Mirror the kernel's bf16 rounding of the streamed head operands.
        E = enc_out.shape[1]
        enc_q = enc_out.astype(jnp.bfloat16).astype(jnp.float32)
        wfe_q = params["w_final"][:, :E].astype(jnp.bfloat16).astype(jnp.float32)
        wfr = params["w_final"][:, E:]
        return enc_q @ wfe_q.T + hidden @ wfr.T + params["b_final"]
    concat = jnp.concatenate([enc_out, hidden], axis=1)
    return concat @ params["w_final"].T + params["b_final"]


# --------------------------------------------------------------------- setup
def init_params(key, max_len, embedding_dim, num_features, class_n):
    ks = jax.random.split(key, 8)
    H, I = embedding_dim, max_len
    F_in = num_features * embedding_dim
    s_lstm = 1.0 / jnp.sqrt(H)
    s_fc = 1.0 / jnp.sqrt(F_in)
    s_fin = 1.0 / jnp.sqrt(22841.0)
    u = lambda k, shape, s: jax.random.uniform(k, shape, jnp.float32, -s, s)
    return {
        "w_ih": u(ks[0], (4 * H, I), s_lstm),
        "w_hh": u(ks[1], (4 * H, H), s_lstm),
        "b_ih": u(ks[2], (4 * H,), s_lstm),
        "b_hh": u(ks[3], (4 * H,), s_lstm),
        "w_fc": u(ks[4], (1000, F_in), s_fc),
        "b_fc": u(ks[5], (1000,), s_fc),
        "w_final": u(ks[6], (class_n, 22841), s_fin),
        "b_final": u(ks[7], (class_n,), s_fin),
    }


if __name__ == "__main__":
    # Shapes consistent with the module: max_len=16 (LSTM input size),
    # embedding_dim=8, num_features=4 (LSTM "batch"), class_n=16, seq_len T=8.
    # final_layer fixes the concat width at 22841 => enc_out has 21841 features.
    max_len, embedding_dim, num_features, class_n = 16, 8, 4, 16
    T = 8
    enc_feat = 22841 - 1000

    key = jax.random.PRNGKey(0)
    k_p, k_enc, k_dec = jax.random.split(key, 3)
    params = init_params(k_p, max_len, embedding_dim, num_features, class_n)

    enc_out = jax.random.normal(k_enc, (T, enc_feat), jnp.float32)
    dec_inp = jax.random.normal(k_dec, (T, num_features, max_len), jnp.float32)

    # One-time weight packing (hoisted out of the jitted per-call path).
    prep = jax.block_until_ready(prepare_params(params, num_features))

    # TODO(synk): training-mode stochastic dropout mask (pltpu.prng_*) not
    # implemented; forward matches the module in eval mode.
    fwd = jax.jit(lstm22k_decoder_forward)
    out = jax.block_until_ready(fwd(prep, enc_out, dec_inp))
    assert out.shape == (T, class_n), out.shape

    # Tight check vs a reference using the same bf16 rounding of the streamed
    # head operands (verifies the kernel math itself).
    ref_q = jax.block_until_ready(
        reference_forward(params, enc_out, dec_inp, bf16_head=True))
    assert jnp.allclose(out, ref_q, rtol=1e-3, atol=1e-3), \
        float(jnp.max(jnp.abs(out - ref_q)))

    # Loose check vs the pure-f32 reference (bf16 streaming of enc/w_final
    # trades a few 1e-3 of absolute error for lower head bandwidth).
    ref = jax.block_until_ready(reference_forward(params, enc_out, dec_inp))
    assert jnp.allclose(out, ref, rtol=2e-2, atol=2e-2), \
        float(jnp.max(jnp.abs(out - ref)))

    print("KERNEL_OK")
</pallas_src>

<mosaic_0001>
module attributes {stable_mosaic.version = 11 : i64} {
  func.func @_decoder_kernel(%arg0: i32, %arg1: memref<8x64xf32, #tpu.memory_space<vmem>>, %arg2: memref<64x128xf32, #tpu.memory_space<vmem>>, %arg3: memref<32x128xf32, #tpu.memory_space<vmem>>, %arg4: memref<1x128xf32, #tpu.memory_space<vmem>>, %arg5: memref<32x1000xf32, #tpu.memory_space<vmem>>, %arg6: memref<1x1000xf32, #tpu.memory_space<vmem>>, %arg7: memref<16x1000xf32, #tpu.memory_space<vmem>>, %arg8: memref<1x16xf32, #tpu.memory_space<vmem>>, %arg9: memref<8x21841xf32, #tpu.memory_space<vmem>>, %arg10: memref<16x21841xbf16, #tpu.memory_space<vmem>>, %arg11: memref<8x16xf32, #tpu.memory_space<vmem>>, %arg12: memref<8x32xf32, #tpu.memory_space<vmem>>) attributes {dimension_semantics = [#tpu.dimension_semantics<arbitrary>], iteration_bounds = array<i64: 1>, scalar_prefetch = 0 : i64, scratch_operands = 1 : i64, tpu.core_type = #tpu.core_type<tc>, window_params = [{pipeline_mode = #tpu.pipeline_mode<synchronous>, transform_indices = @transform_0, window_bounds = array<i64: 8, 64>}, {pipeline_mode = #tpu.pipeline_mode<synchronous>, transform_indices = @transform_1, window_bounds = array<i64: 64, 128>}, {pipeline_mode = #tpu.pipeline_mode<synchronous>, transform_indices = @transform_2, window_bounds = array<i64: 32, 128>}, {pipeline_mode = #tpu.pipeline_mode<synchronous>, transform_indices = @transform_3, window_bounds = array<i64: 1, 128>}, {pipeline_mode = #tpu.pipeline_mode<synchronous>, transform_indices = @transform_4, window_bounds = array<i64: 32, 1000>}, {pipeline_mode = #tpu.pipeline_mode<synchronous>, transform_indices = @transform_5, window_bounds = array<i64: 1, 1000>}, {pipeline_mode = #tpu.pipeline_mode<synchronous>, transform_indices = @transform_6, window_bounds = array<i64: 16, 1000>}, {pipeline_mode = #tpu.pipeline_mode<synchronous>, transform_indices = @transform_7, window_bounds = array<i64: 1, 16>}, {pipeline_mode = #tpu.pipeline_mode<synchronous>, transform_indices = @transform_8, window_bounds = array<i64: 8, 21841>}, {pipeline_mode = #tpu.pipeline_mode<synchronous>, transform_indices = @transform_9, window_bounds = array<i64: 16, 21841>}, {pipeline_mode = #tpu.pipeline_mode<synchronous>, transform_indices = @transform_10, window_bounds = array<i64: 8, 16>}]} {
    %c0 = arith.constant 0 : index
    %c0_0 = arith.constant 0 : index
    %0 = vector.load %arg1[%c0, %c0_0] : memref<8x64xf32, #tpu.memory_space<vmem>>, vector<8x64xf32>
    %c0_1 = arith.constant 0 : index
    %c0_2 = arith.constant 0 : index
    %1 = vector.load %arg2[%c0_1, %c0_2] : memref<64x128xf32, #tpu.memory_space<vmem>>, vector<64x128xf32>
    %cst = arith.constant dense<0.000000e+00> : vector<8x128xf32>
    %2 = tpu.matmul %0, %1, %cst {dimension_numbers = #tpu.dot_dimension_numbers<[1], [0], [0], [1], [0, 0, 1, 1], [], []>} : vector<8x64xf32>, vector<64x128xf32>, vector<8x128xf32> -> vector<8x128xf32>
    %c0_3 = arith.constant 0 : index
    %c0_4 = arith.constant 0 : index
    %3 = vector.load %arg4[%c0_3, %c0_4] : memref<1x128xf32, #tpu.memory_space<vmem>>, vector<1x128xf32>
    %4 = vector.broadcast %3 : vector<1x128xf32> to vector<8x128xf32>
    %5 = arith.addf %2, %4 : vector<8x128xf32>
    %c0_5 = arith.constant 0 : index
    %c0_6 = arith.constant 0 : index
    %6 = vector.load %arg3[%c0_5, %c0_6] : memref<32x128xf32, #tpu.memory_space<vmem>>, vector<32x128xf32>
    %cst_7 = arith.constant 0.000000e+00 : f32
    %7 = vector.broadcast %cst_7 : f32 to vector<1x32xf32>
    %cst_8 = arith.constant 0.000000e+00 : f32
    %8 = vector.broadcast %cst_8 : f32 to vector<1x32xf32>
    %9 = vector.extract_strided_slice %5 {offsets = [0, 0], sizes = [1, 128], strides = [1, 1]} : vector<8x128xf32> to vector<1x128xf32>
    %cst_9 = arith.constant dense<0.000000e+00> : vector<1x128xf32>
    %10 = tpu.matmul %7, %6, %cst_9 {dimension_numbers = #tpu.dot_dimension_numbers<[1], [0], [0], [1], [0, 0, 1, 1], [], []>} : vector<1x32xf32>, vector<32x128xf32>, vector<1x128xf32> -> vector<1x128xf32>
    %11 = arith.addf %9, %10 : vector<1x128xf32>
    %12 = arith.negf %11 : vector<1x128xf32>
    %13 = math.exp %12 : vector<1x128xf32>
    %cst_10 = arith.constant 1.000000e+00 : f32
    %14 = vector.broadcast %cst_10 : f32 to vector<1x128xf32>
    %15 = arith.addf %14, %13 : vector<1x128xf32>
    %16 = arith.divf %14, %15 : vector<1x128xf32>
    %17 = vector.extract_strided_slice %11 {offsets = [0, 64], sizes = [1, 32], strides = [1, 1]} : vector<1x128xf32> to vector<1x32xf32>
    %18 = math.tanh %17 : vector<1x32xf32>
    %19 = vector.extract_strided_slice %16 {offsets = [0, 32], sizes = [1, 32], strides = [1, 1]} : vector<1x128xf32> to vector<1x32xf32>
    %20 = arith.mulf %19, %8 : vector<1x32xf32>
    %21 = vector.extract_strided_slice %16 {offsets = [0, 0], sizes = [1, 32], strides = [1, 1]} : vector<1x128xf32> to vector<1x32xf32>
    %22 = arith.mulf %21, %18 : vector<1x32xf32>
    %23 = arith.addf %20, %22 : vector<1x32xf32>
    %24 = vector.extract_strided_slice %16 {offsets = [0, 96], sizes = [1, 32], strides = [1, 1]} : vector<1x128xf32> to vector<1x32xf32>
    %25 = math.tanh %23 : vector<1x32xf32>
    %26 = arith.mulf %24, %25 : vector<1x32xf32>
    %c0_11 = arith.constant 0 : index
    %c0_12 = arith.constant 0 : index
    %27 = vector.load %arg12[%c0_11, %c0_12] : memref<8x32xf32, #tpu.memory_space<vmem>>, vector<1x32xf32>
    tpu.vector_store %arg12[%c0_11, %c0_12], %26 {strides = array<i32>} : memref<8x32xf32, #tpu.memory_space<vmem>>, vector<1x32xf32>,
    %28 = vector.extract_strided_slice %5 {offsets = [1, 0], sizes = [1, 128], strides = [1, 1]} : vector<8x128xf32> to vector<1x128xf32>
    %cst_13 = arith.constant dense<0.000000e+00> : vector<1x128xf32>
    %29 = tpu.matmul %26, %6, %cst_13 {dimension_numbers = #tpu.dot_dimension_numbers<[1], [0], [0], [1], [0, 0, 1, 1], [], []>} : vector<1x32xf32>, vector<32x128xf32>, vector<1x128xf32> -> vector<1x128xf32>
    %30 = arith.addf %28, %29 : vector<1x128xf32>
    %31 = arith.negf %30 : vector<1x128xf32>
    %32 = math.exp %31 : vector<1x128xf32>
    %cst_14 = arith.constant 1.000000e+00 : f32
    %33 = vector.broadcast %cst_14 : f32 to vector<1x128xf32>
    %34 = arith.addf %33, %32 : vector<1x128xf32>
    %35 = arith.divf %33, %34 : vector<1x128xf32>
    %36 = vector.extract_strided_slice %30 {offsets = [0, 64], sizes = [1, 32], strides = [1, 1]} : vector<1x128xf32> to vector<1x32xf32>
    %37 = math.tanh %36 : vector<1x32xf32>
    %38 = vector.extract_strided_slice %35 {offsets = [0, 32], sizes = [1, 32], strides = [1, 1]} : vector<1x128xf32> to vector<1x32xf32>
    %39 = arith.mulf %38, %23 : vector<1x32xf32>
    %40 = vector.extract_strided_slice %35 {offsets = [0, 0], sizes = [1, 32], strides = [1, 1]} : vector<1x128xf32> to vector<1x32xf32>
    %41 = arith.mulf %40, %37 : vector<1x32xf32>
    %42 = arith.addf %39, %41 : vector<1x32xf32>
    %43 = vector.extract_strided_slice %35 {offsets = [0, 96], sizes = [1, 32], strides = [1, 1]} : vector<1x128xf32> to vector<1x32xf32>
    %44 = math.tanh %42 : vector<1x32xf32>
    %45 = arith.mulf %43, %44 : vector<1x32xf32>
    %c1 = arith.constant 1 : index
    %c0_15 = arith.constant 0 : index
    %46 = vector.load %arg12[%c1, %c0_15] : memref<8x32xf32, #tpu.memory_space<vmem>>, vector<1x32xf32>
    tpu.vector_store %arg12[%c1, %c0_15], %45 {strides = array<i32>} : memref<8x32xf32, #tpu.memory_space<vmem>>, vector<1x32xf32>,
    %47 = vector.extract_strided_slice %5 {offsets = [2, 0], sizes = [1, 128], strides = [1, 1]} : vector<8x128xf32> to vector<1x128xf32>
    %cst_16 = arith.constant dense<0.000000e+00> : vector<1x128xf32>
    %48 = tpu.matmul %45, %6, %cst_16 {dimension_numbers = #tpu.dot_dimension_numbers<[1], [0], [0], [1], [0, 0, 1, 1], [], []>} : vector<1x32xf32>, vector<32x128xf32>, vector<1x128xf32> -> vector<1x128xf32>
    %49 = arith.addf %47, %48 : vector<1x128xf32>
    %50 = arith.negf %49 : vector<1x128xf32>
    %51 = math.exp %50 : vector<1x128xf32>
    %cst_17 = arith.constant 1.000000e+00 : f32
    %52 = vector.broadcast %cst_17 : f32 to vector<1x128xf32>
    %53 = arith.addf %52, %51 : vector<1x128xf32>
    %54 = arith.divf %52, %53 : vector<1x128xf32>
    %55 = vector.extract_strided_slice %49 {offsets = [0, 64], sizes = [1, 32], strides = [1, 1]} : vector<1x128xf32> to vector<1x32xf32>
    %56 = math.tanh %55 : vector<1x32xf32>
    %57 = vector.extract_strided_slice %54 {offsets = [0, 32], sizes = [1, 32], strides = [1, 1]} : vector<1x128xf32> to vector<1x32xf32>
    %58 = arith.mulf %57, %42 : vector<1x32xf32>
    %59 = vector.extract_strided_slice %54 {offsets = [0, 0], sizes = [1, 32], strides = [1, 1]} : vector<1x128xf32> to vector<1x32xf32>
    %60 = arith.mulf %59, %56 : vector<1x32xf32>
    %61 = arith.addf %58, %60 : vector<1x32xf32>
    %62 = vector.extract_strided_slice %54 {offsets = [0, 96], sizes = [1, 32], strides = [1, 1]} : vector<1x128xf32> to vector<1x32xf32>
    %63 = math.tanh %61 : vector<1x32xf32>
    %64 = arith.mulf %62, %63 : vector<1x32xf32>
    %c2 = arith.constant 2 : index
    %c0_18 = arith.constant 0 : index
    %65 = vector.load %arg12[%c2, %c0_18] : memref<8x32xf32, #tpu.memory_space<vmem>>, vector<1x32xf32>
    tpu.vector_store %arg12[%c2, %c0_18], %64 {strides = array<i32>} : memref<8x32xf32, #tpu.memory_space<vmem>>, vector<1x32xf32>,
    %66 = vector.extract_strided_slice %5 {offsets = [3, 0], sizes = [1, 128], strides = [1, 1]} : vector<8x128xf32> to vector<1x128xf32>
    %cst_19 = arith.constant dense<0.000000e+00> : vector<1x128xf32>
    %67 = tpu.matmul %64, %6, %cst_19 {dimension_numbers = #tpu.dot_dimension_numbers<[1], [0], [0], [1], [0, 0, 1, 1], [], []>} : vector<1x32xf32>, vector<32x128xf32>, vector<1x128xf32> -> vector<1x128xf32>
    %68 = arith.addf %66, %67 : vector<1x128xf32>
    %69 = arith.negf %68 : vector<1x128xf32>
    %70 = math.exp %69 : vector<1x128xf32>
    %cst_20 = arith.constant 1.000000e+00 : f32
    %71 = vector.broadcast %cst_20 : f32 to vector<1x128xf32>
    %72 = arith.addf %71, %70 : vector<1x128xf32>
    %73 = arith.divf %71, %72 : vector<1x128xf32>
    %74 = vector.extract_strided_slice %68 {offsets = [0, 64], sizes = [1, 32], strides = [1, 1]} : vector<1x128xf32> to vector<1x32xf32>
    %75 = math.tanh %74 : vector<1x32xf32>
    %76 = vector.extract_strided_slice %73 {offsets = [0, 32], sizes = [1, 32], strides = [1, 1]} : vector<1x128xf32> to vector<1x32xf32>
    %77 = arith.mulf %76, %61 : vector<1x32xf32>
    %78 = vector.extract_strided_slice %73 {offsets = [0, 0], sizes = [1, 32], strides = [1, 1]} : vector<1x128xf32> to vector<1x32xf32>
    %79 = arith.mulf %78, %75 : vector<1x32xf32>
    %80 = arith.addf %77, %79 : vector<1x32xf32>
    %81 = vector.extract_strided_slice %73 {offsets = [0, 96], sizes = [1, 32], strides = [1, 1]} : vector<1x128xf32> to vector<1x32xf32>
    %82 = math.tanh %80 : vector<1x32xf32>
    %83 = arith.mulf %81, %82 : vector<1x32xf32>
    %c3 = arith.constant 3 : index
    %c0_21 = arith.constant 0 : index
    %84 = vector.load %arg12[%c3, %c0_21] : memref<8x32xf32, #tpu.memory_space<vmem>>, vector<1x32xf32>
    tpu.vector_store %arg12[%c3, %c0_21], %83 {strides = array<i32>} : memref<8x32xf32, #tpu.memory_space<vmem>>, vector<1x32xf32>,
    %85 = vector.extract_strided_slice %5 {offsets = [4, 0], sizes = [1, 128], strides = [1, 1]} : vector<8x128xf32> to vector<1x128xf32>
    %cst_22 = arith.constant dense<0.000000e+00> : vector<1x128xf32>
    %86 = tpu.matmul %83, %6, %cst_22 {dimension_numbers = #tpu.dot_dimension_numbers<[1], [0], [0], [1], [0, 0, 1, 1], [], []>} : vector<1x32xf32>, vector<32x128xf32>, vector<1x128xf32> -> vector<1x128xf32>
    %87 = arith.addf %85, %86 : vector<1x128xf32>
    %88 = arith.negf %87 : vector<1x128xf32>
    %89 = math.exp %88 : vector<1x128xf32>
    %cst_23 = arith.constant 1.000000e+00 : f32
    %90 = vector.broadcast %cst_23 : f32 to vector<1x128xf32>
    %91 = arith.addf %90, %89 : vector<1x128xf32>
    %92 = arith.divf %90, %91 : vector<1x128xf32>
    %93 = vector.extract_strided_slice %87 {offsets = [0, 64], sizes = [1, 32], strides = [1, 1]} : vector<1x128xf32> to vector<1x32xf32>
    %94 = math.tanh %93 : vector<1x32xf32>
    %95 = vector.extract_strided_slice %92 {offsets = [0, 32], sizes = [1, 32], strides = [1, 1]} : vector<1x128xf32> to vector<1x32xf32>
    %96 = arith.mulf %95, %80 : vector<1x32xf32>
    %97 = vector.extract_strided_slice %92 {offsets = [0, 0], sizes = [1, 32], strides = [1, 1]} : vector<1x128xf32> to vector<1x32xf32>
    %98 = arith.mulf %97, %94 : vector<1x32xf32>
    %99 = arith.addf %96, %98 : vector<1x32xf32>
    %100 = vector.extract_strided_slice %92 {offsets = [0, 96], sizes = [1, 32], strides = [1, 1]} : vector<1x128xf32> to vector<1x32xf32>
    %101 = math.tanh %99 : vector<1x32xf32>
    %102 = arith.mulf %100, %101 : vector<1x32xf32>
    %c4 = arith.constant 4 : index
    %c0_24 = arith.constant 0 : index
    %103 = vector.load %arg12[%c4, %c0_24] : memref<8x32xf32, #tpu.memory_space<vmem>>, vector<1x32xf32>
    tpu.vector_store %arg12[%c4, %c0_24], %102 {strides = array<i32>} : memref<8x32xf32, #tpu.memory_space<vmem>>, vector<1x32xf32>,
    %104 = vector.extract_strided_slice %5 {offsets = [5, 0], sizes = [1, 128], strides = [1, 1]} : vector<8x128xf32> to vector<1x128xf32>
    %cst_25 = arith.constant dense<0.000000e+00> : vector<1x128xf32>
    %105 = tpu.matmul %102, %6, %cst_25 {dimension_numbers = #tpu.dot_dimension_numbers<[1], [0], [0], [1], [0, 0, 1, 1], [], []>} : vector<1x32xf32>, vector<32x128xf32>, vector<1x128xf32> -> vector<1x128xf32>
    %106 = arith.addf %104, %105 : vector<1x128xf32>
    %107 = arith.negf %106 : vector<1x128xf32>
    %108 = math.exp %107 : vector<1x128xf32>
    %cst_26 = arith.constant 1.000000e+00 : f32
    %109 = vector.broadcast %cst_26 : f32 to vector<1x128xf32>
    %110 = arith.addf %109, %108 : vector<1x128xf32>
    %111 = arith.divf %109, %110 : vector<1x128xf32>
    %112 = vector.extract_strided_slice %106 {offsets = [0, 64], sizes = [1, 32], strides = [1, 1]} : vector<1x128xf32> to vector<1x32xf32>
    %113 = math.tanh %112 : vector<1x32xf32>
    %114 = vector.extract_strided_slice %111 {offsets = [0, 32], sizes = [1, 32], strides = [1, 1]} : vector<1x128xf32> to vector<1x32xf32>
    %115 = arith.mulf %114, %99 : vector<1x32xf32>
    %116 = vector.extract_strided_slice %111 {offsets = [0, 0], sizes = [1, 32], strides = [1, 1]} : vector<1x128xf32> to vector<1x32xf32>
    %117 = arith.mulf %116, %113 : vector<1x32xf32>
    %118 = arith.addf %115, %117 : vector<1x32xf32>
    %119 = vector.extract_strided_slice %111 {offsets = [0, 96], sizes = [1, 32], strides = [1, 1]} : vector<1x128xf32> to vector<1x32xf32>
    %120 = math.tanh %118 : vector<1x32xf32>
    %121 = arith.mulf %119, %120 : vector<1x32xf32>
    %c5 = arith.constant 5 : index
    %c0_27 = arith.constant 0 : index
    %122 = vector.load %arg12[%c5, %c0_27] : memref<8x32xf32, #tpu.memory_space<vmem>>, vector<1x32xf32>
    tpu.vector_store %arg12[%c5, %c0_27], %121 {strides = array<i32>} : memref<8x32xf32, #tpu.memory_space<vmem>>, vector<1x32xf32>,
    %123 = vector.extract_strided_slice %5 {offsets = [6, 0], sizes = [1, 128], strides = [1, 1]} : vector<8x128xf32> to vector<1x128xf32>
    %cst_28 = arith.constant dense<0.000000e+00> : vector<1x128xf32>
    %124 = tpu.matmul %121, %6, %cst_28 {dimension_numbers = #tpu.dot_dimension_numbers<[1], [0], [0], [1], [0, 0, 1, 1], [], []>} : vector<1x32xf32>, vector<32x128xf32>, vector<1x128xf32> -> vector<1x128xf32>
    %125 = arith.addf %123, %124 : vector<1x128xf32>
    %126 = arith.negf %125 : vector<1x128xf32>
    %127 = math.exp %126 : vector<1x128xf32>
    %cst_29 = arith.constant 1.000000e+00 : f32
    %128 = vector.broadcast %cst_29 : f32 to vector<1x128xf32>
    %129 = arith.addf %128, %127 : vector<1x128xf32>
    %130 = arith.divf %128, %129 : vector<1x128xf32>
    %131 = vector.extract_strided_slice %125 {offsets = [0, 64], sizes = [1, 32], strides = [1, 1]} : vector<1x128xf32> to vector<1x32xf32>
    %132 = math.tanh %131 : vector<1x32xf32>
    %133 = vector.extract_strided_slice %130 {offsets = [0, 32], sizes = [1, 32], strides = [1, 1]} : vector<1x128xf32> to vector<1x32xf32>
    %134 = arith.mulf %133, %118 : vector<1x32xf32>
    %135 = vector.extract_strided_slice %130 {offsets = [0, 0], sizes = [1, 32], strides = [1, 1]} : vector<1x128xf32> to vector<1x32xf32>
    %136 = arith.mulf %135, %132 : vector<1x32xf32>
    %137 = arith.addf %134, %136 : vector<1x32xf32>
    %138 = vector.extract_strided_slice %130 {offsets = [0, 96], sizes = [1, 32], strides = [1, 1]} : vector<1x128xf32> to vector<1x32xf32>
    %139 = math.tanh %137 : vector<1x32xf32>
    %140 = arith.mulf %138, %139 : vector<1x32xf32>
    %c6 = arith.constant 6 : index
    %c0_30 = arith.constant 0 : index
    %141 = vector.load %arg12[%c6, %c0_30] : memref<8x32xf32, #tpu.memory_space<vmem>>, vector<1x32xf32>
    tpu.vector_store %arg12[%c6, %c0_30], %140 {strides = array<i32>} : memref<8x32xf32, #tpu.memory_space<vmem>>, vector<1x32xf32>,
    %142 = vector.extract_strided_slice %5 {offsets = [7, 0], sizes = [1, 128], strides = [1, 1]} : vector<8x128xf32> to vector<1x128xf32>
    %cst_31 = arith.constant dense<0.000000e+00> : vector<1x128xf32>
    %143 = tpu.matmul %140, %6, %cst_31 {dimension_numbers = #tpu.dot_dimension_numbers<[1], [0], [0], [1], [0, 0, 1, 1], [], []>} : vector<1x32xf32>, vector<32x128xf32>, vector<1x128xf32> -> vector<1x128xf32>
    %144 = arith.addf %142, %143 : vector<1x128xf32>
    %145 = arith.negf %144 : vector<1x128xf32>
    %146 = math.exp %145 : vector<1x128xf32>
    %cst_32 = arith.constant 1.000000e+00 : f32
    %147 = vector.broadcast %cst_32 : f32 to vector<1x128xf32>
    %148 = arith.addf %147, %146 : vector<1x128xf32>
    %149 = arith.divf %147, %148 : vector<1x128xf32>
    %150 = vector.extract_strided_slice %144 {offsets = [0, 64], sizes = [1, 32], strides = [1, 1]} : vector<1x128xf32> to vector<1x32xf32>
    %151 = math.tanh %150 : vector<1x32xf32>
    %152 = vector.extract_strided_slice %149 {offsets = [0, 32], sizes = [1, 32], strides = [1, 1]} : vector<1x128xf32> to vector<1x32xf32>
    %153 = arith.mulf %152, %137 : vector<1x32xf32>
    %154 = vector.extract_strided_slice %149 {offsets = [0, 0], sizes = [1, 32], strides = [1, 1]} : vector<1x128xf32> to vector<1x32xf32>
    %155 = arith.mulf %154, %151 : vector<1x32xf32>
    %156 = arith.addf %153, %155 : vector<1x32xf32>
    %157 = vector.extract_strided_slice %149 {offsets = [0, 96], sizes = [1, 32], strides = [1, 1]} : vector<1x128xf32> to vector<1x32xf32>
    %158 = math.tanh %156 : vector<1x32xf32>
    %159 = arith.mulf %157, %158 : vector<1x32xf32>
    %c7 = arith.constant 7 : index
    %c0_33 = arith.constant 0 : index
    %160 = vector.load %arg12[%c7, %c0_33] : memref<8x32xf32, #tpu.memory_space<vmem>>, vector<1x32xf32>
    tpu.vector_store %arg12[%c7, %c0_33], %159 {strides = array<i32>} : memref<8x32xf32, #tpu.memory_space<vmem>>, vector<1x32xf32>,
    %c0_34 = arith.constant 0 : index
    %c0_35 = arith.constant 0 : index
    %161 = vector.load %arg12[%c0_34, %c0_35] : memref<8x32xf32, #tpu.memory_space<vmem>>, vector<8x32xf32>
    %c0_36 = arith.constant 0 : index
    %c0_37 = arith.constant 0 : index
    %162 = vector.load %arg5[%c0_36, %c0_37] : memref<32x1000xf32, #tpu.memory_space<vmem>>, vector<32x1000xf32>
    %cst_38 = arith.constant dense<0.000000e+00> : vector<8x1000xf32>
    %163 = tpu.matmul %161, %162, %cst_38 {dimension_numbers = #tpu.dot_dimension_numbers<[1], [0], [0], [1], [0, 0, 1, 1], [], []>} : vector<8x32xf32>, vector<32x1000xf32>, vector<8x1000xf32> -> vector<8x1000xf32>
    %c0_39 = arith.constant 0 : index
    %c0_40 = arith.constant 0 : index
    %164 = vector.load %arg6[%c0_39, %c0_40] : memref<1x1000xf32, #tpu.memory_space<vmem>>, vector<1x1000xf32>
    %165 = vector.broadcast %164 : vector<1x1000xf32> to vector<8x1000xf32>
    %166 = arith.addf %163, %165 : vector<8x1000xf32>
    %c0_41 = arith.constant 0 : index
    %c0_42 = arith.constant 0 : index
    %167 = vector.load %arg7[%c0_41, %c0_42] : memref<16x1000xf32, #tpu.memory_space<vmem>>, vector<16x1000xf32>
    %cst_43 = arith.constant dense<0.000000e+00> : vector<8x16xf32>
    %168 = tpu.matmul %166, %167, %cst_43 {dimension_numbers = #tpu.dot_dimension_numbers<[1], [1], [0], [0], [0, 0, 1, 0], [], []>} : vector<8x1000xf32>, vector<16x1000xf32>, vector<8x16xf32> -> vector<8x16xf32>
    %c0_44 = arith.constant 0 : index
    %c0_45 = arith.constant 0 : index
    %169 = vector.load %arg8[%c0_44, %c0_45] : memref<1x16xf32, #tpu.memory_space<vmem>>, vector<1x16xf32>
    %170 = vector.broadcast %169 : vector<1x16xf32> to vector<8x16xf32>
    %171 = arith.addf %168, %170 : vector<8x16xf32>
    %c0_46 = arith.constant 0 : index
    %c0_47 = arith.constant 0 : index
    %172 = vector.load %arg9[%c0_46, %c0_47] : memref<8x21841xf32, #tpu.memory_space<vmem>>, vector<8x21841xf32>
    %173 = arith.truncf %172 : vector<8x21841xf32> to vector<8x21841xbf16>
    %c0_48 = arith.constant 0 : index
    %c0_49 = arith.constant 0 : index
    %174 = vector.load %arg10[%c0_48, %c0_49] : memref<16x21841xbf16, #tpu.memory_space<vmem>>, vector<16x21841xbf16>
    %cst_50 = arith.constant dense<0.000000e+00> : vector<8x16xf32>
    %175 = tpu.matmul %173, %174, %cst_50 {dimension_numbers = #tpu.dot_dimension_numbers<[1], [1], [0], [0], [0, 0, 1, 0], [], []>} : vector<8x21841xbf16>, vector<16x21841xbf16>, vector<8x16xf32> -> vector<8x16xf32>
    %176 = arith.addf %171, %175 : vector<8x16xf32>
    %c0_51 = arith.constant 0 : index
    %c0_52 = arith.constant 0 : index
    %177 = vector.load %arg11[%c0_51, %c0_52] : memref<8x16xf32, #tpu.memory_space<vmem>>, vector<8x16xf32>
    tpu.vector_store %arg11[%c0_51, %c0_52], %176 {strides = array<i32>} : memref<8x16xf32, #tpu.memory_space<vmem>>, vector<8x16xf32>,
    return
  }
  func.func @transform_0(%arg0: i32) -> (i32, i32) {
    %c0_i32 = arith.constant 0 : i32
    %c0_i32_0 = arith.constant 0 : i32
    %c0_i32_1 = arith.constant 0 : i32
    return %c0_i32, %c0_i32_0 : i32, i32
  }
  func.func @transform_1(%arg0: i32) -> (i32, i32) {
    %c0_i32 = arith.constant 0 : i32
    %c0_i32_0 = arith.constant 0 : i32
    %c0_i32_1 = arith.constant 0 : i32
    return %c0_i32, %c0_i32_0 : i32, i32
  }
  func.func @transform_2(%arg0: i32) -> (i32, i32) {
    %c0_i32 = arith.constant 0 : i32
    %c0_i32_0 = arith.constant 0 : i32
    %c0_i32_1 = arith.constant 0 : i32
    return %c0_i32, %c0_i32_0 : i32, i32
  }
  func.func @transform_3(%arg0: i32) -> (i32, i32) {
    %c0_i32 = arith.constant 0 : i32
    %c0_i32_0 = arith.constant 0 : i32
    %c0_i32_1 = arith.constant 0 : i32
    return %c0_i32, %c0_i32_0 : i32, i32
  }
  func.func @transform_4(%arg0: i32) -> (i32, i32) {
    %c0_i32 = arith.constant 0 : i32
    %c0_i32_0 = arith.constant 0 : i32
    %c0_i32_1 = arith.constant 0 : i32
    return %c0_i32, %c0_i32_0 : i32, i32
  }
  func.func @transform_5(%arg0: i32) -> (i32, i32) {
    %c0_i32 = arith.constant 0 : i32
    %c0_i32_0 = arith.constant 0 : i32
    %c0_i32_1 = arith.constant 0 : i32
    return %c0_i32, %c0_i32_0 : i32, i32
  }
  func.func @transform_6(%arg0: i32) -> (i32, i32) {
    %c0_i32 = arith.constant 0 : i32
    %c0_i32_0 = arith.constant 0 : i32
    %c0_i32_1 = arith.constant 0 : i32
    return %c0_i32, %c0_i32_0 : i32, i32
  }
  func.func @transform_7(%arg0: i32) -> (i32, i32) {
    %c0_i32 = arith.constant 0 : i32
    %c0_i32_0 = arith.constant 0 : i32
    %c0_i32_1 = arith.constant 0 : i32
    return %c0_i32, %c0_i32_0 : i32, i32
  }
  func.func @transform_8(%arg0: i32) -> (i32, i32) {
    %c0_i32 = arith.constant 0 : i32
    %c0_i32_0 = arith.constant 0 : i32
    %c0_i32_1 = arith.constant 0 : i32
    return %c0_i32, %c0_i32_0 : i32, i32
  }
  func.func @transform_9(%arg0: i32) -> (i32, i32) {
    %c0_i32 = arith.constant 0 : i32
    %c0_i32_0 = arith.constant 0 : i32
    %c0_i32_1 = arith.constant 0 : i32
    return %c0_i32, %c0_i32_0 : i32, i32
  }
  func.func @transform_10(%arg0: i32) -> (i32, i32) {
    %c0_i32 = arith.constant 0 : i32
    %c0_i32_0 = arith.constant 0 : i32
    %c0_i32_1 = arith.constant 0 : i32
    return %c0_i32, %c0_i32_0 : i32, i32
  }
}

</mosaic_0001>

<llo_original>
// kernel: lstm22k_decoder_forward.1
$region0: #{lstm22k_decoder_forward.1}
  #allocation0 [shape = 'u32[]', space=smem, size = 0x4, offset = 0x4, fixed_abs, tag = 'smem constant byte address 0x4 - core index']
  #allocation1 [shape = 'u32[144,128]{1,0:T(1,128)}', space=vmem, size = 0x12000, scoped, tag = 'internal scratch']
  #allocation2 [shape = 'f32[8,32]{1,0:T(8,128)}', space=vmem, size = 0x1000, scoped, tag = 'scratch operand']
  %s0 = inlined_call_operand.vmem [shape: f32[8,64], index: 0, kind: input, shape index: {}]
  %s1 = inlined_call_operand.vmem [shape: f32[64,128], index: 1, kind: input, shape index: {}]
  %s2 = inlined_call_operand.hbm [shape: f32[32,128], index: 2, kind: input, shape index: {}]
  %s3 = inlined_call_operand.vmem [shape: f32[1,128], index: 3, kind: input, shape index: {}]
  %s4 = inlined_call_operand.hbm [shape: f32[32,1000], index: 4, kind: input, shape index: {}]
  %s5 = inlined_call_operand.hbm [shape: f32[1,1000], index: 5, kind: input, shape index: {}]
  %s6 = inlined_call_operand.hbm [shape: f32[16,1000], index: 6, kind: input, shape index: {}]
  %s7 = inlined_call_operand.vmem [shape: f32[1,16], index: 7, kind: input, shape index: {}]
  %s8 = inlined_call_operand.hbm [shape: f32[8,21841], index: 8, kind: input, shape index: {}]
  %s9 = inlined_call_operand.hbm [shape: bf16[16,21841], index: 9, kind: input, shape index: {}]
  %s10 = inlined_call_operand.hbm [shape: f32[8,16], index: 10, kind: output, shape index: {}]
  %s11 = sld [smem:[#allocation0]]
  $region74: #{lstm22k_decoder_forward.1} parent=0
    _
  %s13 = ssub.s32 1, %s11
  %s14 = scalar_select 0, %s13, %s11
  $region1: #{lstm22k_decoder_forward.1} parent=0
    #allocation3 [shape = 'u8[16384]{0}', space=vmem, size = 0x4000, scoped, tag = 'input window, operand 2, single buffered']
    #allocation4 [shape = 's32[1]{0}', space=sflag, size = 0x4, scoped, tag = 'scoped memory for lstm22k_decoder_forward.1']
    #allocation5 [shape = 's32[1]{0}', space=sflag, size = 0x4, scoped, tag = 'scoped memory for lstm22k_decoder_forward.1']
    #allocation6 [shape = 'u8[131072]{0}', space=vmem, size = 0x20000, scoped, tag = 'input window, operand 4, single buffered']
    #allocation7 [shape = 's32[1]{0}', space=sflag, size = 0x4, scoped, tag = 'scoped memory for lstm22k_decoder_forward.1']
    #allocation8 [shape = 'u8[4096]{0}', space=vmem, size = 0x1000, scoped, tag = 'input window, operand 5, single buffered']
    #allocation9 [shape = 'u8[65536]{0}', space=vmem, size = 0x10000, scoped, tag = 'input window, operand 6, single buffered']
    #allocation10 [shape = 's32[1]{0}', space=sflag, size = 0x4, scoped, tag = 'scoped memory for lstm22k_decoder_forward.1']
    #allocation11 [shape = 'u8[700416]{0}', space=vmem, size = 0xab000, scoped, tag = 'input window, operand 8, single buffered']
    #allocation12 [shape = 'u8[700416]{0}', space=vmem, size = 0xab000, scoped, tag = 'input window, operand 9, single buffered']
    #allocation13 [shape = 's32[1]{0}', space=sflag, size = 0x4, scoped, tag = 'scoped memory for lstm22k_decoder_forward.1']
    #allocation14 [shape = 'u8[4096]{0}', space=vmem, size = 0x1000, scoped, tag = 'output window, operand 0, single buffered']
    %15 = vsyncpa [#allocation4], 0
    %16 = vsyncpa [#allocation7], 0
    %17 = vsyncpa [#allocation10], 0
    %18 = vsyncpa [#allocation13], 0
    %19 = vsyncpa [#allocation5], 0
    // Predicated region
    $region2: #{lstm22k_decoder_forward.1} parent=1 // pred_check
      _
    $region3: #{lstm22k_decoder_forward.1} parent=1 // pred_check_branch
      %21 = sbr.rel (0) target = $region5
    $region4: #{lstm22k_decoder_forward.1} parent=1 // pred_region
      _
    $region5: #{lstm22k_decoder_forward.1} parent=1 // pred_fallthru
      _
    // Predicated region
    $region6: #{lstm22k_decoder_forward.1} parent=1 // pred_check
      _
    $region7: #{lstm22k_decoder_forward.1} parent=1 // pred_check_branch
      %23 = sbr.rel (0) target = $region9
    $region8: #{lstm22k_decoder_forward.1} parent=1 // pred_region
      _
    $region9: #{lstm22k_decoder_forward.1} parent=1 // pred_fallthru
      _
    // Predicated region
    $region10: #{lstm22k_decoder_forward.1} parent=1 // pred_check
      _
    $region11: #{lstm22k_decoder_forward.1} parent=1 // pred_check_branch
      %25 = sbr.rel (0) target = $region13
    $region12: #{lstm22k_decoder_forward.1} parent=1 // pred_region
      %s27 = ssub.s32 512, 512
      %28 = vsyncadd [#allocation4], %s27
      %s29 = sshll.u32 [#allocation3], 4
      %s30 = int_to_ptr.vmem [resolvable:$true] %s29
      %35 = dma.hbm_to_vmem [thread:$0]  %s2, 512, %s30, [#allocation4], 128, 128, 8
    $region13: #{lstm22k_decoder_forward.1} parent=1 // pred_fallthru
      _
    // Predicated region
    $region14: #{lstm22k_decoder_forward.1} parent=1 // pred_check
      _
    $region15: #{lstm22k_decoder_forward.1} parent=1 // pred_check_branch
      %37 = sbr.rel (0) target = $region17
    $region16: #{lstm22k_decoder_forward.1} parent=1 // pred_region
      _
    $region17: #{lstm22k_decoder_forward.1} parent=1 // pred_fallthru
      _
    // Predicated region
    $region18: #{lstm22k_decoder_forward.1} parent=1 // pred_check
      _
    $region19: #{lstm22k_decoder_forward.1} parent=1 // pred_check_branch
      %39 = sbr.rel (0) target = $region21
    $region20: #{lstm22k_decoder_forward.1} parent=1 // pred_region
      %s41 = ssub.s32 4096, 4096
      %42 = vsyncadd [#allocation7], %s41
      %s43 = sshll.u32 [#allocation6], 4
      %s44 = int_to_ptr.vmem [resolvable:$true] %s43
      %49 = dma.hbm_to_vmem [thread:$0]  %s4, 4096, %s44, [#allocation7], 1024, 1024, 64
    $region21: #{lstm22k_decoder_forward.1} parent=1 // pred_fallthru
      _
    // Predicated region
    $region22: #{lstm22k_decoder_forward.1} parent=1 // pred_check
      _
    $region23: #{lstm22k_decoder_forward.1} parent=1 // pred_check_branch
      %51 = sbr.rel (0) target = $region25
    $region24: #{lstm22k_decoder_forward.1} parent=1 // pred_region
      %s53 = ssub.s32 128, 128
      %54 = vsyncadd [#allocation7], %s53
      %s56 = sshll.u32 [#allocation8], 4
      %s57 = int_to_ptr.vmem [resolvable:$true] %s56
      %59 = dma.hbm_to_vmem [thread:$0]  %s5, 128, %s57, [#allocation7]
    $region25: #{lstm22k_decoder_forward.1} parent=1 // pred_fallthru
      _
    // Predicated region
    $region26: #{lstm22k_decoder_forward.1} parent=1 // pred_check
      _
    $region27: #{lstm22k_decoder_forward.1} parent=1 // pred_check_branch
      %61 = sbr.rel (0) target = $region29
    $region28: #{lstm22k_decoder_forward.1} parent=1 // pred_region
      %s63 = ssub.s32 2048, 2048
      %64 = vsyncadd [#allocation10], %s63
      %s65 = sshll.u32 [#allocation9], 4
      %s66 = int_to_ptr.vmem [resolvable:$true] %s65
      %71 = dma.hbm_to_vmem [thread:$0]  %s6, 2048, %s66, [#allocation10], 1024, 1024, 64
    $region29: #{lstm22k_decoder_forward.1} parent=1 // pred_fallthru
      _
    // Predicated region
    $region30: #{lstm22k_decoder_forward.1} parent=1 // pred_check
      _
    $region31: #{lstm22k_decoder_forward.1} parent=1 // pred_check_branch
      %73 = sbr.rel (0) target = $region33
    $region32: #{lstm22k_decoder_forward.1} parent=1 // pred_region
      _
    $region33: #{lstm22k_decoder_forward.1} parent=1 // pred_fallthru
      _
    // Predicated region
    $region34: #{lstm22k_decoder_forward.1} parent=1 // pred_check
      _
    $region35: #{lstm22k_decoder_forward.1} parent=1 // pred_check_branch
      %75 = sbr.rel (0) target = $region37
    $region36: #{lstm22k_decoder_forward.1} parent=1 // pred_region
      %s77 = ssub.s32 21888, 21888
      %78 = vsyncadd [#allocation10], %s77
      %s80 = sshll.u32 [#allocation11], 4
      %s81 = int_to_ptr.vmem [resolvable:$true] %s80
      %83 = dma.hbm_to_vmem [thread:$0]  %s8, 21888, %s81, [#allocation10]
    $region37: #{lstm22k_decoder_forward.1} parent=1 // pred_fallthru
      _
    // Predicated region
    $region38: #{lstm22k_decoder_forward.1} parent=1 // pred_check
      _
    $region39: #{lstm22k_decoder_forward.1} parent=1 // pred_check_branch
      %85 = sbr.rel (0) target = $region41
    $region40: #{lstm22k_decoder_forward.1} parent=1 // pred_region
      %s87 = ssub.s32 21888, 21888
      %88 = vsyncadd [#allocation13], %s87
      %s89 = sshll.u32 [#allocation12], 4
      %s90 = int_to_ptr.vmem [resolvable:$true] %s89
      %95 = dma.hbm_to_vmem [thread:$0]  %s9, 21888, %s90, [#allocation13], 10944, 10944, 684
    $region41: #{lstm22k_decoder_forward.1} parent=1 // pred_fallthru
      _
    // Predicated region
    $region42: #{lstm22k_decoder_forward.1} parent=1 // pred_check
      _
    $region43: #{lstm22k_decoder_forward.1} parent=1 // pred_check_branch
      %97 = sbr.rel (0) target = $region45
    $region44: #{lstm22k_decoder_forward.1} parent=1 // pred_region
      %98 = dma.done [#allocation4], 512
    $region45: #{lstm22k_decoder_forward.1} parent=1 // pred_fallthru
      _
    // Predicated region
    $region46: #{lstm22k_decoder_forward.1} parent=1 // pred_check
      _
    $region47: #{lstm22k_decoder_forward.1} parent=1 // pred_check_branch
      %100 = sbr.rel (0) target = $region49
    $region48: #{lstm22k_decoder_forward.1} parent=1 // pred_region
      %101 = dma.done [#allocation7], 4096
    $region49: #{lstm22k_decoder_forward.1} parent=1 // pred_fallthru
      _
    // Predicated region
    $region50: #{lstm22k_decoder_forward.1} parent=1 // pred_check
      _
    $region51: #{lstm22k_decoder_forward.1} parent=1 // pred_check_branch
      %103 = sbr.rel (0) target = $region53
    $region52: #{lstm22k_decoder_forward.1} parent=1 // pred_region
      %104 = dma.done [#allocation7], 128
    $region53: #{lstm22k_decoder_forward.1} parent=1 // pred_fallthru
      _
    // Predicated region
    $region54: #{lstm22k_decoder_forward.1} parent=1 // pred_check
      _
    $region55: #{lstm22k_decoder_forward.1} parent=1 // pred_check_branch
      %106 = sbr.rel (0) target = $region57
    $region56: #{lstm22k_decoder_forward.1} parent=1 // pred_region
      %107 = dma.done [#allocation10], 2048
    $region57: #{lstm22k_decoder_forward.1} parent=1 // pred_fallthru
      _
    // Predicated region
    $region58: #{lstm22k_decoder_forward.1} parent=1 // pred_check
      _
    $region59: #{lstm22k_decoder_forward.1} parent=1 // pred_check_branch
      %109 = sbr.rel (0) target = $region61
    $region60: #{lstm22k_decoder_forward.1} parent=1 // pred_region
      %110 = dma.done [#allocation10], 21888
    $region61: #{lstm22k_decoder_forward.1} parent=1 // pred_fallthru
      _
    // Predicated region
    $region62: #{lstm22k_decoder_forward.1} parent=1 // pred_check
      _
    $region63: #{lstm22k_decoder_forward.1} parent=1 // pred_check_branch
      %112 = sbr.rel (0) target = $region65
    $region64: #{lstm22k_decoder_forward.1} parent=1 // pred_region
      %113 = dma.done [#allocation13], 21888
    $region65: #{lstm22k_decoder_forward.1} parent=1 // pred_fallthru
      _
    %v115 = vld [vmem:[%s0] sm:$0xff]
    %v116 = vld [vmem:[%s1] sm:$0xff]
    %v117 = vld [vmem:[%s1 + $0x8] sm:$0xff]
    %v118 = vld [vmem:[%s1 + $0x10] sm:$0xff]
    %v119 = vld [vmem:[%s1 + $0x18] sm:$0xff]
    %v120 = vld [vmem:[%s1 + $0x20] sm:$0xff]
    %v121 = vld [vmem:[%s1 + $0x28] sm:$0xff]
    %v122 = vld [vmem:[%s1 + $0x30] sm:$0xff]
    %v123 = vld [vmem:[%s1 + $0x38] sm:$0xff]
    %v124 = vld [vmem:[%s3] sm:$0x1]
    %v126 = vlaneseq
    %v127 = vshrl.u32 %v126, 7
    %v128 = vsub.s32 0, %v127
    %v129 = vrot.slane %v124, %v128
    %vm131 = vcmask 523264
    %v133 = vsel %vm131, %v115, 0
    %135 = vmatprep.subr.mxu0 0.0
    %136 = vmatpush1.msra.mxu0 %v116
    %137 = vmatprep.subr.mxu0 0.0
    %138 = vmatpush1.msra.mxu0 %v117
    %139 = vmatprep.subr.mxu0 0.0
    %140 = vmatpush1.msra.mxu0 %v118
    %141 = vmatprep.subr.mxu0 0.0
    %142 = vmatpush1.msra.mxu0 %v119
    %143 = vmatprep.subr.mxu0 0.0
    %144 = vmatpush1.msra.mxu0 %v120
    %145 = vmatprep.subr.mxu0 0.0
    %146 = vmatpush1.msra.mxu0 %v121
    %147 = vmatprep.subr.mxu0 0.0
    %148 = vmatpush1.msra.mxu0 %v122
    %149 = vmatprep.subr.mxu0 0.0
    %150 = vmatpush1.msra.mxu0 %v123
    %151 = vmatprep.subr.mxu0 0.0
    %152 = vmatpush1.msra.mxu0 0.0
    %153 = vmatprep.subr.mxu0 0.0
    %154 = vmatpush1.msra.mxu0 0.0
    %155 = vmatprep.subr.mxu0 0.0
    %156 = vmatpush1.msra.mxu0 0.0
    %157 = vmatprep.subr.mxu0 0.0
    %158 = vmatpush1.msra.mxu0 0.0
    %159 = vmatprep.subr.mxu0 0.0
    %160 = vmatpush1.msra.mxu0 0.0
    %161 = vmatprep.subr.mxu0 0.0
    %162 = vmatpush1.msra.mxu0 0.0
    %163 = vmatprep.subr.mxu0 0.0
    %164 = vmatpush1.msra.mxu0 0.0
    %165 = vmatprep.subr.mxu0 0.0
    %166 = vmatpush1.msra.mxu0 0.0
    %167 = vmatprep.subr.mxu0 0.0
    %168 = vmatpush1.msra.mxu0 0.0
    %169 = vmatprep.subr.mxu0 0.0
    %170 = vmatpush1.msra.mxu0 0.0
    %171 = vmatprep.subr.mxu0 0.0
    %172 = vmatpush1.msra.mxu0 0.0
    %173 = vmatprep.subr.mxu0 0.0
    %174 = vmatpush1.msra.mxu0 0.0
    %175 = vmatprep.subr.mxu0 0.0
    %176 = vmatpush1.msra.mxu0 0.0
    %177 = vmatprep.subr.mxu0 0.0
    %178 = vmatpush1.msra.mxu0 0.0
    %179 = vmatprep.subr.mxu0 0.0
    %180 = vmatpush1.msra.mxu0 0.0
    %181 = vmatprep.subr.mxu0 0.0
    %182 = vmatpush1.msra.mxu0 0.0
    %183 = vmatprep.subr.mxu0 0.0
    %184 = vmatpush1.msra.mxu0 0.0
    %185 = vmatprep.subr.mxu0 0.0
    %186 = vmatpush1.msra.mxu0 0.0
    %187 = vmatprep.subr.mxu0 0.0
    %188 = vmatpush1.msra.mxu0 0.0
    %189 = vmatprep.subr.mxu0 0.0
    %190 = vmatpush1.msra.mxu0 0.0
    %191 = vmatprep.subr.mxu0 0.0
    %192 = vmatpush1.msra.mxu0 0.0
    %193 = vmatprep.subr.mxu0 0.0
    %194 = vmatpush1.msra.mxu0 0.0
    %195 = vmatprep.subr.mxu0 0.0
    %196 = vmatpush1.msra.mxu0 0.0
    %197 = vmatprep.subr.mxu0 0.0
    %198 = vmatpush1.msra.mxu0 0.0
    %199 = vmatprep.mubr.f32.mxu0 0.0
    %200 = vmatmul.mubr.f32.gmra.mrb[0].mxu0 %v133
    %v201 = vpop.f32.mrb[0].mxu0
    %v202 = vadd.f32 %v129, %v201
    %v203 = vpop.f32.mrb[0].mxu0
    %204 = vdwg.mxu0
    %v205 = vld [vmem:[#allocation3] sm:$0xff]
    %v206 = vld [vmem:[#allocation3 + $0x8] sm:$0xff]
    %v207 = vld [vmem:[#allocation3 + $0x10] sm:$0xff]
    %v208 = vld [vmem:[#allocation3 + $0x18] sm:$0xff]
    %vm209 = vcmask 261120
    %v211 = vsel %vm209, 0.0, 0
    %213 = vmatprep.subr.mxu0 0.0
    %214 = vmatpush1.msra.mxu0 %v205
    %215 = vmatprep.subr.mxu0 0.0
    %216 = vmatpush1.msra.mxu0 %v206
    %217 = vmatprep.subr.mxu0 0.0
    %218 = vmatpush1.msra.mxu0 %v207
    %219 = vmatprep.subr.mxu0 0.0
    %220 = vmatpush1.msra.mxu0 %v208
    %221 = vmatprep.subr.mxu0 0.0
    %222 = vmatpush1.msra.mxu0 0.0
    %223 = vmatprep.subr.mxu0 0.0
    %224 = vmatpush1.msra.mxu0 0.0
    %225 = vmatprep.subr.mxu0 0.0
    %226 = vmatpush1.msra.mxu0 0.0
    %227 = vmatprep.subr.mxu0 0.0
    %228 = vmatpush1.msra.mxu0 0.0
    %229 = vmatprep.subr.mxu0 0.0
    %230 = vmatpush1.msra.mxu0 0.0
    %231 = vmatprep.subr.mxu0 0.0
    %232 = vmatpush1.msra.mxu0 0.0
    %233 = vmatprep.subr.mxu0 0.0
    %234 = vmatpush1.msra.mxu0 0.0
    %235 = vmatprep.subr.mxu0 0.0
    %236 = vmatpush1.msra.mxu0 0.0
    %237 = vmatprep.subr.mxu0 0.0
    %238 = vmatpush1.msra.mxu0 0.0
    %239 = vmatprep.subr.mxu0 0.0
    %240 = vmatpush1.msra.mxu0 0.0
    %241 = vmatprep.subr.mxu0 0.0
    %242 = vmatpush1.msra.mxu0 0.0
    %243 = vmatprep.subr.mxu0 0.0
    %244 = vmatpush1.msra.mxu0 0.0
    %245 = vmatprep.subr.mxu0 0.0
    %246 = vmatpush1.msra.mxu0 0.0
    %247 = vmatprep.subr.mxu0 0.0
    %248 = vmatpush1.msra.mxu0 0.0
    %249 = vmatprep.subr.mxu0 0.0
    %250 = vmatpush1.msra.mxu0 0.0
    %251 = vmatprep.subr.mxu0 0.0
    %252 = vmatpush1.msra.mxu0 0.0
    %253 = vmatprep.subr.mxu0 0.0
    %254 = vmatpush1.msra.mxu0 0.0
    %255 = vmatprep.subr.mxu0 0.0
    %256 = vmatpush1.msra.mxu0 0.0
    %257 = vmatprep.subr.mxu0 0.0
    %258 = vmatpush1.msra.mxu0 0.0
    %259 = vmatprep.subr.mxu0 0.0
    %260 = vmatpush1.msra.mxu0 0.0
    %261 = vmatprep.subr.mxu0 0.0
    %262 = vmatpush1.msra.mxu0 0.0
    %263 = vmatprep.subr.mxu0 0.0
    %264 = vmatpush1.msra.mxu0 0.0
    %265 = vmatprep.subr.mxu0 0.0
    %266 = vmatpush1.msra.mxu0 0.0
    %267 = vmatprep.subr.mxu0 0.0
    %268 = vmatpush1.msra.mxu0 0.0
    %269 = vmatprep.subr.mxu0 0.0
    %270 = vmatpush1.msra.mxu0 0.0
    %271 = vmatprep.subr.mxu0 0.0
    %272 = vmatpush1.msra.mxu0 0.0
    %273 = vmatprep.subr.mxu0 0.0
    %274 = vmatpush1.msra.mxu0 0.0
    %275 = vmatprep.subr.mxu0 0.0
    %276 = vmatpush1.msra.mxu0 0.0
    %277 = vmatprep.mubr.f32.mxu0 0.0
    %278 = vmatmul.mubr.f32.gmra.mrb[0].mxu0 %v211
    %v279 = vpop.f32.mrb[0].mxu0
    %v280 = vadd.f32 0.0, %v279
    %v281 = vpop.f32.mrb[0].mxu0
    %282 = vdwg.mxu0
    %v283 = vadd.f32 %v202, %v280
    %v284 = vxor.u32 %v283, 2147483648
    %v285 = vmul.f32 %v284, 1.442695
    %v286 = vpow.pop %v285
    %v287 = vadd.f32 %v286, 1.0
    %v288 = vrcp.pop %v287
    %v289 = vmul.f32 1.0, %v288
    %v290 = vtanh.pop %v283
    %v291 = vmul.f32 %v289, 0.0
    %293 = vrot.lane.b32.xlu0 %v290, 64
    %v294 = vpop.permute.xlu0 %293
    %v296 = vmul.f32 %v289, %v294
    %298 = vrot.lane.b32.xlu0 %v296, 32
    %v299 = vpop.permute.xlu0 %298
    %v301 = vadd.f32 %v291, %v299
    %v302 = vtanh.pop %v301
    %304 = vrot.lane.b32.xlu0 %v302, 64
    %v305 = vpop.permute.xlu0 %304
    %v307 = vmul.f32 %v289, %v305
    %309 = vrot.lane.b32.xlu0 %v307, 32
    %v310 = vpop.permute.xlu0 %309
    %vm312 = vcmask 253952
    %313 = vst.msk [vmem:[#allocation2] sm:$0x1] %vm312, %v310
    %v314 = vsel %vm209, %v310, 0
    %316 = vmatprep.subr.mxu0 0.0
    %317 = vmatpush1.msra.mxu0 %v205
    %318 = vmatprep.subr.mxu0 0.0
    %319 = vmatpush1.msra.mxu0 %v206
    %320 = vmatprep.subr.mxu0 0.0
    %321 = vmatpush1.msra.mxu0 %v207
    %322 = vmatprep.subr.mxu0 0.0
    %323 = vmatpush1.msra.mxu0 %v208
    %324 = vmatprep.subr.mxu0 0.0
    %325 = vmatpush1.msra.mxu0 0.0
    %326 = vmatprep.subr.mxu0 0.0
    %327 = vmatpush1.msra.mxu0 0.0
    %328 = vmatprep.subr.mxu0 0.0
    %329 = vmatpush1.msra.mxu0 0.0
    %330 = vmatprep.subr.mxu0 0.0
    %331 = vmatpush1.msra.mxu0 0.0
    %332 = vmatprep.subr.mxu0 0.0
    %333 = vmatpush1.msra.mxu0 0.0
    %334 = vmatprep.subr.mxu0 0.0
    %335 = vmatpush1.msra.mxu0 0.0
    %336 = vmatprep.subr.mxu0 0.0
    %337 = vmatpush1.msra.mxu0 0.0
    %338 = vmatprep.subr.mxu0 0.0
    %339 = vmatpush1.msra.mxu0 0.0
    %340 = vmatprep.subr.mxu0 0.0
    %341 = vmatpush1.msra.mxu0 0.0
    %342 = vmatprep.subr.mxu0 0.0
    %343 = vmatpush1.msra.mxu0 0.0
    %344 = vmatprep.subr.mxu0 0.0
    %345 = vmatpush1.msra.mxu0 0.0
    %346 = vmatprep.subr.mxu0 0.0
    %347 = vmatpush1.msra.mxu0 0.0
    %348 = vmatprep.subr.mxu0 0.0
    %349 = vmatpush1.msra.mxu0 0.0
    %350 = vmatprep.subr.mxu0 0.0
    %351 = vmatpush1.msra.mxu0 0.0
    %352 = vmatprep.subr.mxu0 0.0
    %353 = vmatpush1.msra.mxu0 0.0
    %354 = vmatprep.subr.mxu0 0.0
    %355 = vmatpush1.msra.mxu0 0.0
    %356 = vmatprep.subr.mxu0 0.0
    %357 = vmatpush1.msra.mxu0 0.0
    %358 = vmatprep.subr.mxu0 0.0
    %359 = vmatpush1.msra.mxu0 0.0
    %360 = vmatprep.subr.mxu0 0.0
    %361 = vmatpush1.msra.mxu0 0.0
    %362 = vmatprep.subr.mxu0 0.0
    %363 = vmatpush1.msra.mxu0 0.0
    %364 = vmatprep.subr.mxu0 0.0
    %365 = vmatpush1.msra.mxu0 0.0
    %366 = vmatprep.subr.mxu0 0.0
    %367 = vmatpush1.msra.mxu0 0.0
    %368 = vmatprep.subr.mxu0 0.0
    %369 = vmatpush1.msra.mxu0 0.0
    %370 = vmatprep.subr.mxu0 0.0
    %371 = vmatpush1.msra.mxu0 0.0
    %372 = vmatprep.subr.mxu0 0.0
    %373 = vmatpush1.msra.mxu0 0.0
    %374 = vmatprep.subr.mxu0 0.0
    %375 = vmatpush1.msra.mxu0 0.0
    %376 = vmatprep.subr.mxu0 0.0
    %377 = vmatpush1.msra.mxu0 0.0
    %378 = vmatprep.subr.mxu0 0.0
    %379 = vmatpush1.msra.mxu0 0.0
    %380 = vmatprep.mubr.f32.mxu0 0.0
    %381 = vmatmul.mubr.f32.gmra.mrb[0].mxu0 %v314
    %v382 = vpop.f32.mrb[0].mxu0
    %v383 = vadd.f32 0.0, %v382
    %v384 = vpop.f32.mrb[0].mxu0
    %385 = vdwg.mxu0
    %v387 = vrot.slane %v383, 7
    %v389 = vadd.f32 %v202, %v387
    %v390 = vxor.u32 %v389, 2147483648
    %v391 = vmul.f32 %v390, 1.442695
    %v392 = vpow.pop %v391
    %v393 = vadd.f32 %v392, 1.0
    %v394 = vrcp.pop %v393
    %v395 = vmul.f32 1.0, %v394
    %v396 = vtanh.pop %v389
    %v398 = vrot.slane %v301, 7
    %v400 = vmul.f32 %v395, %v398
    %402 = vrot.lane.b32.xlu0 %v396, 64
    %v403 = vpop.permute.xlu0 %402
    %v405 = vmul.f32 %v395, %v403
    %407 = vrot.lane.b32.xlu0 %v405, 32
    %v408 = vpop.permute.xlu0 %407
    %v410 = vadd.f32 %v400, %v408
    %v411 = vtanh.pop %v410
    %413 = vrot.lane.b32.xlu0 %v411, 64
    %v414 = vpop.permute.xlu0 %413
    %v416 = vmul.f32 %v395, %v414
    %418 = vrot.lane.b32.xlu0 %v416, 32
    %v419 = vpop.permute.xlu0 %418
    %vm421 = vcmask 254977
    %422 = vst.msk [vmem:[#allocation2] sm:$0x2] %vm421, %v419
    %v423 = vrot.slane %v416, 1
    %424 = vrot.lane.b32.xlu0 %v423, 32
    %v425 = vpop.permute.xlu0 %424
    %v426 = vsel %vm209, %v425, 0
    %428 = vmatprep.subr.mxu0 0.0
    %429 = vmatpush1.msra.mxu0 %v205
    %430 = vmatprep.subr.mxu0 0.0
    %431 = vmatpush1.msra.mxu0 %v206
    %432 = vmatprep.subr.mxu0 0.0
    %433 = vmatpush1.msra.mxu0 %v207
    %434 = vmatprep.subr.mxu0 0.0
    %435 = vmatpush1.msra.mxu0 %v208
    %436 = vmatprep.subr.mxu0 0.0
    %437 = vmatpush1.msra.mxu0 0.0
    %438 = vmatprep.subr.mxu0 0.0
    %439 = vmatpush1.msra.mxu0 0.0
    %440 = vmatprep.subr.mxu0 0.0
    %441 = vmatpush1.msra.mxu0 0.0
    %442 = vmatprep.subr.mxu0 0.0
    %443 = vmatpush1.msra.mxu0 0.0
    %444 = vmatprep.subr.mxu0 0.0
    %445 = vmatpush1.msra.mxu0 0.0
    %446 = vmatprep.subr.mxu0 0.0
    %447 = vmatpush1.msra.mxu0 0.0
    %448 = vmatprep.subr.mxu0 0.0
    %449 = vmatpush1.msra.mxu0 0.0
    %450 = vmatprep.subr.mxu0 0.0
    %451 = vmatpush1.msra.mxu0 0.0
    %452 = vmatprep.subr.mxu0 0.0
    %453 = vmatpush1.msra.mxu0 0.0
    %454 = vmatprep.subr.mxu0 0.0
    %455 = vmatpush1.msra.mxu0 0.0
    %456 = vmatprep.subr.mxu0 0.0
    %457 = vmatpush1.msra.mxu0 0.0
    %458 = vmatprep.subr.mxu0 0.0
    %459 = vmatpush1.msra.mxu0 0.0
    %460 = vmatprep.subr.mxu0 0.0
    %461 = vmatpush1.msra.mxu0 0.0
    %462 = vmatprep.subr.mxu0 0.0
    %463 = vmatpush1.msra.mxu0 0.0
    %464 = vmatprep.subr.mxu0 0.0
    %465 = vmatpush1.msra.mxu0 0.0
    %466 = vmatprep.subr.mxu0 0.0
    %467 = vmatpush1.msra.mxu0 0.0
    %468 = vmatprep.subr.mxu0 0.0
    %469 = vmatpush1.msra.mxu0 0.0
    %470 = vmatprep.subr.mxu0 0.0
    %471 = vmatpush1.msra.mxu0 0.0
    %472 = vmatprep.subr.mxu0 0.0
    %473 = vmatpush1.msra.mxu0 0.0
    %474 = vmatprep.subr.mxu0 0.0
    %475 = vmatpush1.msra.mxu0 0.0
    %476 = vmatprep.subr.mxu0 0.0
    %477 = vmatpush1.msra.mxu0 0.0
    %478 = vmatprep.subr.mxu0 0.0
    %479 = vmatpush1.msra.mxu0 0.0
    %480 = vmatprep.subr.mxu0 0.0
    %481 = vmatpush1.msra.mxu0 0.0
    %482 = vmatprep.subr.mxu0 0.0
    %483 = vmatpush1.msra.mxu0 0.0
    %484 = vmatprep.subr.mxu0 0.0
    %485 = vmatpush1.msra.mxu0 0.0
    %486 = vmatprep.subr.mxu0 0.0
    %487 = vmatpush1.msra.mxu0 0.0
    %488 = vmatprep.subr.mxu0 0.0
    %489 = vmatpush1.msra.mxu0 0.0
    %490 = vmatprep.subr.mxu0 0.0
    %491 = vmatpush1.msra.mxu0 0.0
    %492 = vmatprep.mubr.f32.mxu0 0.0
    %493 = vmatmul.mubr.f32.gmra.mrb[0].mxu0 %v426
    %v494 = vpop.f32.mrb[0].mxu0
    %v495 = vadd.f32 0.0, %v494
    %v496 = vpop.f32.mrb[0].mxu0
    %497 = vdwg.mxu0
    %v499 = vrot.slane %v495, 6
    %v501 = vadd.f32 %v202, %v499
    %v502 = vxor.u32 %v501, 2147483648
    %v503 = vmul.f32 %v502, 1.442695
    %v504 = vpow.pop %v503
    %v505 = vadd.f32 %v504, 1.0
    %v506 = vrcp.pop %v505
    %v507 = vmul.f32 1.0, %v506
    %v508 = vtanh.pop %v501
    %v510 = vrot.slane %v410, 7
    %v512 = vmul.f32 %v507, %v510
    %514 = vrot.lane.b32.xlu0 %v508, 64
    %v515 = vpop.permute.xlu0 %514
    %v517 = vmul.f32 %v507, %v515
    %519 = vrot.lane.b32.xlu0 %v517, 32
    %v520 = vpop.permute.xlu0 %519
    %v522 = vadd.f32 %v512, %v520
    %v523 = vtanh.pop %v522
    %525 = vrot.lane.b32.xlu0 %v523, 64
    %v526 = vpop.permute.xlu0 %525
    %v528 = vmul.f32 %v507, %v526
    %530 = vrot.lane.b32.xlu0 %v528, 32
    %v531 = vpop.permute.xlu0 %530
    %vm533 = vcmask 256002
    %534 = vst.msk [vmem:[#allocation2] sm:$0x4] %vm533, %v531
    %v535 = vrot.slane %v528, 2
    %536 = vrot.lane.b32.xlu0 %v535, 32
    %v537 = vpop.permute.xlu0 %536
    %v538 = vsel %vm209, %v537, 0
    %540 = vmatprep.subr.mxu0 0.0
    %541 = vmatpush1.msra.mxu0 %v205
    %542 = vmatprep.subr.mxu0 0.0
    %543 = vmatpush1.msra.mxu0 %v206
    %544 = vmatprep.subr.mxu0 0.0
    %545 = vmatpush1.msra.mxu0 %v207
    %546 = vmatprep.subr.mxu0 0.0
    %547 = vmatpush1.msra.mxu0 %v208
    %548 = vmatprep.subr.mxu0 0.0
    %549 = vmatpush1.msra.mxu0 0.0
    %550 = vmatprep.subr.mxu0 0.0
    %551 = vmatpush1.msra.mxu0 0.0
    %552 = vmatprep.subr.mxu0 0.0
    %553 = vmatpush1.msra.mxu0 0.0
    %554 = vmatprep.subr.mxu0 0.0
    %555 = vmatpush1.msra.mxu0 0.0
    %556 = vmatprep.subr.mxu0 0.0
    %557 = vmatpush1.msra.mxu0 0.0
    %558 = vmatprep.subr.mxu0 0.0
    %559 = vmatpush1.msra.mxu0 0.0
    %560 = vmatprep.subr.mxu0 0.0
    %561 = vmatpush1.msra.mxu0 0.0
    %562 = vmatprep.subr.mxu0 0.0
    %563 = vmatpush1.msra.mxu0 0.0
    %564 = vmatprep.subr.mxu0 0.0
    %565 = vmatpush1.msra.mxu0 0.0
    %566 = vmatprep.subr.mxu0 0.0
    %567 = vmatpush1.msra.mxu0 0.0
    %568 = vmatprep.subr.mxu0 0.0
    %569 = vmatpush1.msra.mxu0 0.0
    %570 = vmatprep.subr.mxu0 0.0
    %571 = vmatpush1.msra.mxu0 0.0
    %572 = vmatprep.subr.mxu0 0.0
    %573 = vmatpush1.msra.mxu0 0.0
    %574 = vmatprep.subr.mxu0 0.0
    %575 = vmatpush1.msra.mxu0 0.0
    %576 = vmatprep.subr.mxu0 0.0
    %577 = vmatpush1.msra.mxu0 0.0
    %578 = vmatprep.subr.mxu0 0.0
    %579 = vmatpush1.msra.mxu0 0.0
    %580 = vmatprep.subr.mxu0 0.0
    %581 = vmatpush1.msra.mxu0 0.0
    %582 = vmatprep.subr.mxu0 0.0
    %583 = vmatpush1.msra.mxu0 0.0
    %584 = vmatprep.subr.mxu0 0.0
    %585 = vmatpush1.msra.mxu0 0.0
    %586 = vmatprep.subr.mxu0 0.0
    %587 = vmatpush1.msra.mxu0 0.0
    %588 = vmatprep.subr.mxu0 0.0
    %589 = vmatpush1.msra.mxu0 0.0
    %590 = vmatprep.subr.mxu0 0.0
    %591 = vmatpush1.msra.mxu0 0.0
    %592 = vmatprep.subr.mxu0 0.0
    %593 = vmatpush1.msra.mxu0 0.0
    %594 = vmatprep.subr.mxu0 0.0
    %595 = vmatpush1.msra.mxu0 0.0
    %596 = vmatprep.subr.mxu0 0.0
    %597 = vmatpush1.msra.mxu0 0.0
    %598 = vmatprep.subr.mxu0 0.0
    %599 = vmatpush1.msra.mxu0 0.0
    %600 = vmatprep.subr.mxu0 0.0
    %601 = vmatpush1.msra.mxu0 0.0
    %602 = vmatprep.subr.mxu0 0.0
    %603 = vmatpush1.msra.mxu0 0.0
    %604 = vmatprep.mubr.f32.mxu0 0.0
    %605 = vmatmul.mubr.f32.gmra.mrb[0].mxu0 %v538
    %v606 = vpop.f32.mrb[0].mxu0
    %v607 = vadd.f32 0.0, %v606
    %v608 = vpop.f32.mrb[0].mxu0
    %609 = vdwg.mxu0
    %v611 = vrot.slane %v607, 5
    %v613 = vadd.f32 %v202, %v611
    %v614 = vxor.u32 %v613, 2147483648
    %v615 = vmul.f32 %v614, 1.442695
    %v616 = vpow.pop %v615
    %v617 = vadd.f32 %v616, 1.0
    %v618 = vrcp.pop %v617
    %v619 = vmul.f32 1.0, %v618
    %v620 = vtanh.pop %v613
    %v622 = vrot.slane %v522, 7
    %v624 = vmul.f32 %v619, %v622
    %626 = vrot.lane.b32.xlu0 %v620, 64
    %v627 = vpop.permute.xlu0 %626
    %v629 = vmul.f32 %v619, %v627
    %631 = vrot.lane.b32.xlu0 %v629, 32
    %v632 = vpop.permute.xlu0 %631
    %v634 = vadd.f32 %v624, %v632
    %v635 = vtanh.pop %v634
    %637 = vrot.lane.b32.xlu0 %v635, 64
    %v638 = vpop.permute.xlu0 %637
    %v640 = vmul.f32 %v619, %v638
    %642 = vrot.lane.b32.xlu0 %v640, 32
    %v643 = vpop.permute.xlu0 %642
    %vm645 = vcmask 257027
    %646 = vst.msk [vmem:[#allocation2] sm:$0x8] %vm645, %v643
    %v647 = vrot.slane %v640, 3
    %648 = vrot.lane.b32.xlu0 %v647, 32
    %v649 = vpop.permute.xlu0 %648
    %v650 = vsel %vm209, %v649, 0
    %652 = vmatprep.subr.mxu0 0.0
    %653 = vmatpush1.msra.mxu0 %v205
    %654 = vmatprep.subr.mxu0 0.0
    %655 = vmatpush1.msra.mxu0 %v206
    %656 = vmatprep.subr.mxu0 0.0
    %657 = vmatpush1.msra.mxu0 %v207
    %658 = vmatprep.subr.mxu0 0.0
    %659 = vmatpush1.msra.mxu0 %v208
    %660 = vmatprep.subr.mxu0 0.0
    %661 = vmatpush1.msra.mxu0 0.0
    %662 = vmatprep.subr.mxu0 0.0
    %663 = vmatpush1.msra.mxu0 0.0
    %664 = vmatprep.subr.mxu0 0.0
    %665 = vmatpush1.msra.mxu0 0.0
    %666 = vmatprep.subr.mxu0 0.0
    %667 = vmatpush1.msra.mxu0 0.0
    %668 = vmatprep.subr.mxu0 0.0
    %669 = vmatpush1.msra.mxu0 0.0
    %670 = vmatprep.subr.mxu0 0.0
    %671 = vmatpush1.msra.mxu0 0.0
    %672 = vmatprep.subr.mxu0 0.0
    %673 = vmatpush1.msra.mxu0 0.0
    %674 = vmatprep.subr.mxu0 0.0
    %675 = vmatpush1.msra.mxu0 0.0
    %676 = vmatprep.subr.mxu0 0.0
    %677 = vmatpush1.msra.mxu0 0.0
    %678 = vmatprep.subr.mxu0 0.0
    %679 = vmatpush1.msra.mxu0 0.0
    %680 = vmatprep.subr.mxu0 0.0
    %681 = vmatpush1.msra.mxu0 0.0
    %682 = vmatprep.subr.mxu0 0.0
    %683 = vmatpush1.msra.mxu0 0.0
    %684 = vmatprep.subr.mxu0 0.0
    %685 = vmatpush1.msra.mxu0 0.0
    %686 = vmatprep.subr.mxu0 0.0
    %687 = vmatpush1.msra.mxu0 0.0
    %688 = vmatprep.subr.mxu0 0.0
    %689 = vmatpush1.msra.mxu0 0.0
    %690 = vmatprep.subr.mxu0 0.0
    %691 = vmatpush1.msra.mxu0 0.0
    %692 = vmatprep.subr.mxu0 0.0
    %693 = vmatpush1.msra.mxu0 0.0
    %694 = vmatprep.subr.mxu0 0.0
    %695 = vmatpush1.msra.mxu0 0.0
    %696 = vmatprep.subr.mxu0 0.0
    %697 = vmatpush1.msra.mxu0 0.0
    %698 = vmatprep.subr.mxu0 0.0
    %699 = vmatpush1.msra.mxu0 0.0
    %700 = vmatprep.subr.mxu0 0.0
    %701 = vmatpush1.msra.mxu0 0.0
    %702 = vmatprep.subr.mxu0 0.0
    %703 = vmatpush1.msra.mxu0 0.0
    %704 = vmatprep.subr.mxu0 0.0
    %705 = vmatpush1.msra.mxu0 0.0
    %706 = vmatprep.subr.mxu0 0.0
    %707 = vmatpush1.msra.mxu0 0.0
    %708 = vmatprep.subr.mxu0 0.0
    %709 = vmatpush1.msra.mxu0 0.0
    %710 = vmatprep.subr.mxu0 0.0
    %711 = vmatpush1.msra.mxu0 0.0
    %712 = vmatprep.subr.mxu0 0.0
    %713 = vmatpush1.msra.mxu0 0.0
    %714 = vmatprep.subr.mxu0 0.0
    %715 = vmatpush1.msra.mxu0 0.0
    %716 = vmatprep.mubr.f32.mxu0 0.0
    %717 = vmatmul.mubr.f32.gmra.mrb[0].mxu0 %v650
    %v718 = vpop.f32.mrb[0].mxu0
    %v719 = vadd.f32 0.0, %v718
    %v720 = vpop.f32.mrb[0].mxu0
    %721 = vdwg.mxu0
    %v723 = vrot.slane %v719, 4
    %v725 = vadd.f32 %v202, %v723
    %v726 = vxor.u32 %v725, 2147483648
    %v727 = vmul.f32 %v726, 1.442695
    %v728 = vpow.pop %v727
    %v729 = vadd.f32 %v728, 1.0
    %v730 = vrcp.pop %v729
    %v731 = vmul.f32 1.0, %v730
    %v732 = vtanh.pop %v725
    %v734 = vrot.slane %v634, 7
    %v736 = vmul.f32 %v731, %v734
    %738 = vrot.lane.b32.xlu0 %v732, 64
    %v739 = vpop.permute.xlu0 %738
    %v741 = vmul.f32 %v731, %v739
    %743 = vrot.lane.b32.xlu0 %v741, 32
    %v744 = vpop.permute.xlu0 %743
    %v746 = vadd.f32 %v736, %v744
    %v747 = vtanh.pop %v746
    %749 = vrot.lane.b32.xlu0 %v747, 64
    %v750 = vpop.permute.xlu0 %749
    %v752 = vmul.f32 %v731, %v750
    %754 = vrot.lane.b32.xlu0 %v752, 32
    %v755 = vpop.permute.xlu0 %754
    %vm757 = vcmask 258052
    %758 = vst.msk [vmem:[#allocation2] sm:$0x10] %vm757, %v755
    %v759 = vrot.slane %v752, 4
    %760 = vrot.lane.b32.xlu0 %v759, 32
    %v761 = vpop.permute.xlu0 %760
    %v762 = vsel %vm209, %v761, 0
    %764 = vmatprep.subr.mxu0 0.0
    %765 = vmatpush1.msra.mxu0 %v205
    %766 = vmatprep.subr.mxu0 0.0
    %767 = vmatpush1.msra.mxu0 %v206
    %768 = vmatprep.subr.mxu0 0.0
    %769 = vmatpush1.msra.mxu0 %v207
    %770 = vmatprep.subr.mxu0 0.0
    %771 = vmatpush1.msra.mxu0 %v208
    %772 = vmatprep.subr.mxu0 0.0
    %773 = vmatpush1.msra.mxu0 0.0
    %774 = vmatprep.subr.mxu0 0.0
    %775 = vmatpush1.msra.mxu0 0.0
    %776 = vmatprep.subr.mxu0 0.0
    %777 = vmatpush1.msra.mxu0 0.0
    %778 = vmatprep.subr.mxu0 0.0
    %779 = vmatpush1.msra.mxu0 0.0
    %780 = vmatprep.subr.mxu0 0.0
    %781 = vmatpush1.msra.mxu0 0.0
    %782 = vmatprep.subr.mxu0 0.0
    %783 = vmatpush1.msra.mxu0 0.0
    %784 = vmatprep.subr.mxu0 0.0
    %785 = vmatpush1.msra.mxu0 0.0
    %786 = vmatprep.subr.mxu0 0.0
    %787 = vmatpush1.msra.mxu0 0.0
    %788 = vmatprep.subr.mxu0 0.0
    %789 = vmatpush1.msra.mxu0 0.0
    %790 = vmatprep.subr.mxu0 0.0
    %791 = vmatpush1.msra.mxu0 0.0
    %792 = vmatprep.subr.mxu0 0.0
    %793 = vmatpush1.msra.mxu0 0.0
    %794 = vmatprep.subr.mxu0 0.0
    %795 = vmatpush1.msra.mxu0 0.0
    %796 = vmatprep.subr.mxu0 0.0
    %797 = vmatpush1.msra.mxu0 0.0
    %798 = vmatprep.subr.mxu0 0.0
    %799 = vmatpush1.msra.mxu0 0.0
    %800 = vmatprep.subr.mxu0 0.0
    %801 = vmatpush1.msra.mxu0 0.0
    %802 = vmatprep.subr.mxu0 0.0
    %803 = vmatpush1.msra.mxu0 0.0
    %804 = vmatprep.subr.mxu0 0.0
    %805 = vmatpush1.msra.mxu0 0.0
    %806 = vmatprep.subr.mxu0 0.0
    %807 = vmatpush1.msra.mxu0 0.0
    %808 = vmatprep.subr.mxu0 0.0
    %809 = vmatpush1.msra.mxu0 0.0
    %810 = vmatprep.subr.mxu0 0.0
    %811 = vmatpush1.msra.mxu0 0.0
    %812 = vmatprep.subr.mxu0 0.0
    %813 = vmatpush1.msra.mxu0 0.0
    %814 = vmatprep.subr.mxu0 0.0
    %815 = vmatpush1.msra.mxu0 0.0
    %816 = vmatprep.subr.mxu0 0.0
    %817 = vmatpush1.msra.mxu0 0.0
    %818 = vmatprep.subr.mxu0 0.0
    %819 = vmatpush1.msra.mxu0 0.0
    %820 = vmatprep.subr.mxu0 0.0
    %821 = vmatpush1.msra.mxu0 0.0
    %822 = vmatprep.subr.mxu0 0.0
    %823 = vmatpush1.msra.mxu0 0.0
    %824 = vmatprep.subr.mxu0 0.0
    %825 = vmatpush1.msra.mxu0 0.0
    %826 = vmatprep.subr.mxu0 0.0
    %827 = vmatpush1.msra.mxu0 0.0
    %828 = vmatprep.mubr.f32.mxu0 0.0
    %829 = vmatmul.mubr.f32.gmra.mrb[0].mxu0 %v762
    %v830 = vpop.f32.mrb[0].mxu0
    %v831 = vadd.f32 0.0, %v830
    %v832 = vpop.f32.mrb[0].mxu0
    %833 = vdwg.mxu0
    %v835 = vrot.slane %v831, 3
    %v837 = vadd.f32 %v202, %v835
    %v838 = vxor.u32 %v837, 2147483648
    %v839 = vmul.f32 %v838, 1.442695
    %v840 = vpow.pop %v839
    %v841 = vadd.f32 %v840, 1.0
    %v842 = vrcp.pop %v841
    %v843 = vmul.f32 1.0, %v842
    %v844 = vtanh.pop %v837
    %v846 = vrot.slane %v746, 7
    %v848 = vmul.f32 %v843, %v846
    %850 = vrot.lane.b32.xlu0 %v844, 64
    %v851 = vpop.permute.xlu0 %850
    %v853 = vmul.f32 %v843, %v851
    %855 = vrot.lane.b32.xlu0 %v853, 32
    %v856 = vpop.permute.xlu0 %855
    %v858 = vadd.f32 %v848, %v856
    %v859 = vtanh.pop %v858
    %861 = vrot.lane.b32.xlu0 %v859, 64
    %v862 = vpop.permute.xlu0 %861
    %v864 = vmul.f32 %v843, %v862
    %866 = vrot.lane.b32.xlu0 %v864, 32
    %v867 = vpop.permute.xlu0 %866
    %vm869 = vcmask 259077
    %870 = vst.msk [vmem:[#allocation2] sm:$0x20] %vm869, %v867
    %v871 = vrot.slane %v864, 5
    %872 = vrot.lane.b32.xlu0 %v871, 32
    %v873 = vpop.permute.xlu0 %872
    %v874 = vsel %vm209, %v873, 0
    %876 = vmatprep.subr.mxu0 0.0
    %877 = vmatpush1.msra.mxu0 %v205
    %878 = vmatprep.subr.mxu0 0.0
    %879 = vmatpush1.msra.mxu0 %v206
    %880 = vmatprep.subr.mxu0 0.0
    %881 = vmatpush1.msra.mxu0 %v207
    %882 = vmatprep.subr.mxu0 0.0
    %883 = vmatpush1.msra.mxu0 %v208
    %884 = vmatprep.subr.mxu0 0.0
    %885 = vmatpush1.msra.mxu0 0.0
    %886 = vmatprep.subr.mxu0 0.0
    %887 = vmatpush1.msra.mxu0 0.0
    %888 = vmatprep.subr.mxu0 0.0
    %889 = vmatpush1.msra.mxu0 0.0
    %890 = vmatprep.subr.mxu0 0.0
    %891 = vmatpush1.msra.mxu0 0.0
    %892 = vmatprep.subr.mxu0 0.0
    %893 = vmatpush1.msra.mxu0 0.0
    %894 = vmatprep.subr.mxu0 0.0
    %895 = vmatpush1.msra.mxu0 0.0
    %896 = vmatprep.subr.mxu0 0.0
    %897 = vmatpush1.msra.mxu0 0.0
    %898 = vmatprep.subr.mxu0 0.0
    %899 = vmatpush1.msra.mxu0 0.0
    %900 = vmatprep.subr.mxu0 0.0
    %901 = vmatpush1.msra.mxu0 0.0
    %902 = vmatprep.subr.mxu0 0.0
    %903 = vmatpush1.msra.mxu0 0.0
    %904 = vmatprep.subr.mxu0 0.0
    %905 = vmatpush1.msra.mxu0 0.0
    %906 = vmatprep.subr.mxu0 0.0
    %907 = vmatpush1.msra.mxu0 0.0
    %908 = vmatprep.subr.mxu0 0.0
    %909 = vmatpush1.msra.mxu0 0.0
    %910 = vmatprep.subr.mxu0 0.0
    %911 = vmatpush1.msra.mxu0 0.0
    %912 = vmatprep.subr.mxu0 0.0
    %913 = vmatpush1.msra.mxu0 0.0
    %914 = vmatprep.subr.mxu0 0.0
    %915 = vmatpush1.msra.mxu0 0.0
    %916 = vmatprep.subr.mxu0 0.0
    %917 = vmatpush1.msra.mxu0 0.0
    %918 = vmatprep.subr.mxu0 0.0
    %919 = vmatpush1.msra.mxu0 0.0
    %920 = vmatprep.subr.mxu0 0.0
    %921 = vmatpush1.msra.mxu0 0.0
    %922 = vmatprep.subr.mxu0 0.0
    %923 = vmatpush1.msra.mxu0 0.0
    %924 = vmatprep.subr.mxu0 0.0
    %925 = vmatpush1.msra.mxu0 0.0
    %926 = vmatprep.subr.mxu0 0.0
    %927 = vmatpush1.msra.mxu0 0.0
    %928 = vmatprep.subr.mxu0 0.0
    %929 = vmatpush1.msra.mxu0 0.0
    %930 = vmatprep.subr.mxu0 0.0
    %931 = vmatpush1.msra.mxu0 0.0
    %932 = vmatprep.subr.mxu0 0.0
    %933 = vmatpush1.msra.mxu0 0.0
    %934 = vmatprep.subr.mxu0 0.0
    %935 = vmatpush1.msra.mxu0 0.0
    %936 = vmatprep.subr.mxu0 0.0
    %937 = vmatpush1.msra.mxu0 0.0
    %938 = vmatprep.subr.mxu0 0.0
    %939 = vmatpush1.msra.mxu0 0.0
    %940 = vmatprep.mubr.f32.mxu0 0.0
    %941 = vmatmul.mubr.f32.gmra.mrb[0].mxu0 %v874
    %v942 = vpop.f32.mrb[0].mxu0
    %v943 = vadd.f32 0.0, %v942
    %v944 = vpop.f32.mrb[0].mxu0
    %945 = vdwg.mxu0
    %v947 = vrot.slane %v943, 2
    %v949 = vadd.f32 %v202, %v947
    %v950 = vxor.u32 %v949, 2147483648
    %v951 = vmul.f32 %v950, 1.442695
    %v952 = vpow.pop %v951
    %v953 = vadd.f32 %v952, 1.0
    %v954 = vrcp.pop %v953
    %v955 = vmul.f32 1.0, %v954
    %v956 = vtanh.pop %v949
    %v958 = vrot.slane %v858, 7
    %v960 = vmul.f32 %v955, %v958
    %962 = vrot.lane.b32.xlu0 %v956, 64
    %v963 = vpop.permute.xlu0 %962
    %v965 = vmul.f32 %v955, %v963
    %967 = vrot.lane.b32.xlu0 %v965, 32
    %v968 = vpop.permute.xlu0 %967
    %v970 = vadd.f32 %v960, %v968
    %v971 = vtanh.pop %v970
    %973 = vrot.lane.b32.xlu0 %v971, 64
    %v974 = vpop.permute.xlu0 %973
    %v976 = vmul.f32 %v955, %v974
    %978 = vrot.lane.b32.xlu0 %v976, 32
    %v979 = vpop.permute.xlu0 %978
    %vm981 = vcmask 260102
    %982 = vst.msk [vmem:[#allocation2] sm:$0x40] %vm981, %v979
    %v983 = vrot.slane %v976, 6
    %984 = vrot.lane.b32.xlu0 %v983, 32
    %v985 = vpop.permute.xlu0 %984
    %v986 = vsel %vm209, %v985, 0
    %988 = vmatprep.subr.mxu0 0.0
    %989 = vmatpush1.msra.mxu0 %v205
    %990 = vmatprep.subr.mxu0 0.0
    %991 = vmatpush1.msra.mxu0 %v206
    %992 = vmatprep.subr.mxu0 0.0
    %993 = vmatpush1.msra.mxu0 %v207
    %994 = vmatprep.subr.mxu0 0.0
    %995 = vmatpush1.msra.mxu0 %v208
    %996 = vmatprep.subr.mxu0 0.0
    %997 = vmatpush1.msra.mxu0 0.0
    %998 = vmatprep.subr.mxu0 0.0
    %999 = vmatpush1.msra.mxu0 0.0
    %1000 = vmatprep.subr.mxu0 0.0
    %1001 = vmatpush1.msra.mxu0 0.0
    %1002 = vmatprep.subr.mxu0 0.0
    %1003 = vmatpush1.msra.mxu0 0.0
    %1004 = vmatprep.subr.mxu0 0.0
    %1005 = vmatpush1.msra.mxu0 0.0
    %1006 = vmatprep.subr.mxu0 0.0
    %1007 = vmatpush1.msra.mxu0 0.0
    %1008 = vmatprep.subr.mxu0 0.0
    %1009 = vmatpush1.msra.mxu0 0.0
    %1010 = vmatprep.subr.mxu0 0.0
    %1011 = vmatpush1.msra.mxu0 0.0
    %1012 = vmatprep.subr.mxu0 0.0
    %1013 = vmatpush1.msra.mxu0 0.0
    %1014 = vmatprep.subr.mxu0 0.0
    %1015 = vmatpush1.msra.mxu0 0.0
    %1016 = vmatprep.subr.mxu0 0.0
    %1017 = vmatpush1.msra.mxu0 0.0
    %1018 = vmatprep.subr.mxu0 0.0
    %1019 = vmatpush1.msra.mxu0 0.0
    %1020 = vmatprep.subr.mxu0 0.0
    %1021 = vmatpush1.msra.mxu0 0.0
    %1022 = vmatprep.subr.mxu0 0.0
    %1023 = vmatpush1.msra.mxu0 0.0
    %1024 = vmatprep.subr.mxu0 0.0
    %1025 = vmatpush1.msra.mxu0 0.0
    %1026 = vmatprep.subr.mxu0 0.0
    %1027 = vmatpush1.msra.mxu0 0.0
    %1028 = vmatprep.subr.mxu0 0.0
    %1029 = vmatpush1.msra.mxu0 0.0
    %1030 = vmatprep.subr.mxu0 0.0
    %1031 = vmatpush1.msra.mxu0 0.0
    %1032 = vmatprep.subr.mxu0 0.0
    %1033 = vmatpush1.msra.mxu0 0.0
    %1034 = vmatprep.subr.mxu0 0.0
    %1035 = vmatpush1.msra.mxu0 0.0
    %1036 = vmatprep.subr.mxu0 0.0
    %1037 = vmatpush1.msra.mxu0 0.0
    %1038 = vmatprep.subr.mxu0 0.0
    %1039 = vmatpush1.msra.mxu0 0.0
    %1040 = vmatprep.subr.mxu0 0.0
    %1041 = vmatpush1.msra.mxu0 0.0
    %1042 = vmatprep.subr.mxu0 0.0
    %1043 = vmatpush1.msra.mxu0 0.0
    %1044 = vmatprep.subr.mxu0 0.0
    %1045 = vmatpush1.msra.mxu0 0.0
    %1046 = vmatprep.subr.mxu0 0.0
    %1047 = vmatpush1.msra.mxu0 0.0
    %1048 = vmatprep.subr.mxu0 0.0
    %1049 = vmatpush1.msra.mxu0 0.0
    %1050 = vmatprep.subr.mxu0 0.0
    %1051 = vmatpush1.msra.mxu0 0.0
    %1052 = vmatprep.mubr.f32.mxu0 0.0
    %1053 = vmatmul.mubr.f32.gmra.mrb[0].mxu0 %v986
    %v1054 = vpop.f32.mrb[0].mxu0
    %v1055 = vadd.f32 0.0, %v1054
    %v1056 = vpop.f32.mrb[0].mxu0
    %1057 = vdwg.mxu0
    %v1059 = vrot.slane %v1055, 1
    %v1061 = vadd.f32 %v202, %v1059
    %v1062 = vxor.u32 %v1061, 2147483648
    %v1063 = vmul.f32 %v1062, 1.442695
    %v1064 = vpow.pop %v1063
    %v1065 = vadd.f32 %v1064, 1.0
    %v1066 = vrcp.pop %v1065
    %v1067 = vmul.f32 1.0, %v1066
    %v1068 = vtanh.pop %v1061
    %v1070 = vrot.slane %v970, 7
    %v1072 = vmul.f32 %v1067, %v1070
    %1074 = vrot.lane.b32.xlu0 %v1068, 64
    %v1075 = vpop.permute.xlu0 %1074
    %v1077 = vmul.f32 %v1067, %v1075
    %1079 = vrot.lane.b32.xlu0 %v1077, 32
    %v1080 = vpop.permute.xlu0 %1079
    %v1082 = vadd.f32 %v1072, %v1080
    %v1083 = vtanh.pop %v1082
    %1085 = vrot.lane.b32.xlu0 %v1083, 64
    %v1086 = vpop.permute.xlu0 %1085
    %v1088 = vmul.f32 %v1067, %v1086
    %1090 = vrot.lane.b32.xlu0 %v1088, 32
    %v1091 = vpop.permute.xlu0 %1090
    %vm1093 = vcmask 261127
    %1094 = vst.msk [vmem:[#allocation2] sm:$0x80] %vm1093, %v1091
    %v1095 = vld [vmem:[#allocation2] sm:$0xff]
    %v1096 = vld [vmem:[#allocation6] sm:$0xff]
    %v1097 = vld [vmem:[#allocation6 + $0x8] sm:$0xff]
    %v1098 = vld [vmem:[#allocation6 + $0x10] sm:$0xff]
    %v1099 = vld [vmem:[#allocation6 + $0x18] sm:$0xff]
    %v1100 = vld [vmem:[#allocation6 + $0x20] sm:$0xff]
    %v1101 = vld [vmem:[#allocation6 + $0x28] sm:$0xff]
    %v1102 = vld [vmem:[#allocation6 + $0x30] sm:$0xff]
    %v1103 = vld [vmem:[#allocation6 + $0x38] sm:$0xff]
    %v1104 = vld [vmem:[#allocation6 + $0x40] sm:$0xff]
    %v1105 = vld [vmem:[#allocation6 + $0x48] sm:$0xff]
    %v1106 = vld [vmem:[#allocation6 + $0x50] sm:$0xff]
    %v1107 = vld [vmem:[#allocation6 + $0x58] sm:$0xff]
    %v1108 = vld [vmem:[#allocation6 + $0x60] sm:$0xff]
    %v1109 = vld [vmem:[#allocation6 + $0x68] sm:$0xff]
    %v1110 = vld [vmem:[#allocation6 + $0x70] sm:$0xff]
    %v1111 = vld [vmem:[#allocation6 + $0x78] sm:$0xff]
    %v1112 = vld [vmem:[#allocation6 + $0x80] sm:$0xff]
    %v1113 = vld [vmem:[#allocation6 + $0x88] sm:$0xff]
    %v1114 = vld [vmem:[#allocation6 + $0x90] sm:$0xff]
    %v1115 = vld [vmem:[#allocation6 + $0x98] sm:$0xff]
    %v1116 = vld [vmem:[#allocation6 + $0xa0] sm:$0xff]
    %v1117 = vld [vmem:[#allocation6 + $0xa8] sm:$0xff]
    %v1118 = vld [vmem:[#allocation6 + $0xb0] sm:$0xff]
    %v1119 = vld [vmem:[#allocation6 + $0xb8] sm:$0xff]
    %v1120 = vld [vmem:[#allocation6 + $0xc0] sm:$0xff]
    %v1121 = vld [vmem:[#allocation6 + $0xc8] sm:$0xff]
    %v1122 = vld [vmem:[#allocation6 + $0xd0] sm:$0xff]
    %v1123 = vld [vmem:[#allocation6 + $0xd8] sm:$0xff]
    %v1124 = vld [vmem:[#allocation6 + $0xe0] sm:$0xff]
    %v1125 = vld [vmem:[#allocation6 + $0xe8] sm:$0xff]
    %v1126 = vld [vmem:[#allocation6 + $0xf0] sm:$0xff]
    %v1127 = vld [vmem:[#allocation6 + $0xf8] sm:$0xff]
    %v1128 = vld [vmem:[#allocation8] sm:$0xff]
    %v1130 = vlaneseq
    %v1131 = vshrl.u32 %v1130, 7
    %v1132 = vsub.s32 0, %v1131
    %v1133 = vrot.slane %v1128, %v1132
    %v1134 = vlaneseq
    %v1135 = vshrl.u32 %v1134, 7
    %v1136 = vsub.s32 1, %v1135
    %v1137 = vrot.slane %v1128, %v1136
    %v1138 = vlaneseq
    %v1139 = vshrl.u32 %v1138, 7
    %v1140 = vsub.s32 2, %v1139
    %v1141 = vrot.slane %v1128, %v1140
    %v1142 = vlaneseq
    %v1143 = vshrl.u32 %v1142, 7
    %v1144 = vsub.s32 3, %v1143
    %v1145 = vrot.slane %v1128, %v1144
    %v1146 = vlaneseq
    %v1147 = vshrl.u32 %v1146, 7
    %v1148 = vsub.s32 4, %v1147
    %v1149 = vrot.slane %v1128, %v1148
    %v1150 = vlaneseq
    %v1151 = vshrl.u32 %v1150, 7
    %v1152 = vsub.s32 5, %v1151
    %v1153 = vrot.slane %v1128, %v1152
    %v1154 = vlaneseq
    %v1155 = vshrl.u32 %v1154, 7
    %v1156 = vsub.s32 6, %v1155
    %v1157 = vrot.slane %v1128, %v1156
    %v1158 = vlaneseq
    %v1159 = vshrl.u32 %v1158, 7
    %v1160 = vsub.s32 7, %v1159
    %v1161 = vrot.slane %v1128, %v1160
    %v1171 = vsel %vm209, %v1095, 0
    %1173 = vmatprep.subr.mxu0 %v1097
    %1174 = vmatpush1.msra.mxu0 %v1096
    %1175 = vmatprep.subr.mxu0 %v1105
    %1176 = vmatpush1.msra.mxu0 %v1104
    %1177 = vmatprep.subr.mxu0 %v1113
    %1178 = vmatpush1.msra.mxu0 %v1112
    %1179 = vmatprep.subr.mxu0 %v1121
    %1180 = vmatpush1.msra.mxu0 %v1120
    %1181 = vmatprep.subr.mxu0 0.0
    %1182 = vmatpush1.msra.mxu0 0.0
    %1183 = vmatprep.subr.mxu0 0.0
    %1184 = vmatpush1.msra.mxu0 0.0
    %1185 = vmatprep.subr.mxu0 0.0
    %1186 = vmatpush1.msra.mxu0 0.0
    %1187 = vmatprep.subr.mxu0 0.0
    %1188 = vmatpush1.msra.mxu0 0.0
    %1189 = vmatprep.subr.mxu0 0.0
    %1190 = vmatpush1.msra.mxu0 0.0
    %1191 = vmatprep.subr.mxu0 0.0
    %1192 = vmatpush1.msra.mxu0 0.0
    %1193 = vmatprep.subr.mxu0 0.0
    %1194 = vmatpush1.msra.mxu0 0.0
    %1195 = vmatprep.subr.mxu0 0.0
    %1196 = vmatpush1.msra.mxu0 0.0
    %1197 = vmatprep.subr.mxu0 0.0
    %1198 = vmatpush1.msra.mxu0 0.0
    %1199 = vmatprep.subr.mxu0 0.0
    %1200 = vmatpush1.msra.mxu0 0.0
    %1201 = vmatprep.subr.mxu0 0.0
    %1202 = vmatpush1.msra.mxu0 0.0
    %1203 = vmatprep.subr.mxu0 0.0
    %1204 = vmatpush1.msra.mxu0 0.0
    %1205 = vmatprep.subr.mxu0 0.0
    %1206 = vmatpush1.msra.mxu0 0.0
    %1207 = vmatprep.subr.mxu0 0.0
    %1208 = vmatpush1.msra.mxu0 0.0
    %1209 = vmatprep.subr.mxu0 0.0
    %1210 = vmatpush1.msra.mxu0 0.0
    %1211 = vmatprep.subr.mxu0 0.0
    %1212 = vmatpush1.msra.mxu0 0.0
    %1213 = vmatprep.subr.mxu0 0.0
    %1214 = vmatpush1.msra.mxu0 0.0
    %1215 = vmatprep.subr.mxu0 0.0
    %1216 = vmatpush1.msra.mxu0 0.0
    %1217 = vmatprep.subr.mxu0 0.0
    %1218 = vmatpush1.msra.mxu0 0.0
    %1219 = vmatprep.subr.mxu0 0.0
    %1220 = vmatpush1.msra.mxu0 0.0
    %1221 = vmatprep.subr.mxu0 0.0
    %1222 = vmatpush1.msra.mxu0 0.0
    %1223 = vmatprep.subr.mxu0 0.0
    %1224 = vmatpush1.msra.mxu0 0.0
    %1225 = vmatprep.subr.mxu0 0.0
    %1226 = vmatpush1.msra.mxu0 0.0
    %1227 = vmatprep.subr.mxu0 0.0
    %1228 = vmatpush1.msra.mxu0 0.0
    %1229 = vmatprep.subr.mxu0 0.0
    %1230 = vmatpush1.msra.mxu0 0.0
    %1231 = vmatprep.subr.mxu0 0.0
    %1232 = vmatpush1.msra.mxu0 0.0
    %1233 = vmatprep.subr.mxu0 0.0
    %1234 = vmatpush1.msra.mxu0 0.0
    %1235 = vmatprep.subr.mxu0 0.0
    %1236 = vmatpush1.msra.mxu0 0.0
    %1237 = vmatprep.mubr.f32.mxu0 0.0
    %1238 = vmatmul.mubr.f32.gmra.mrb[0].mxu0 %v1171
    %v1239 = vpop.f32.mrb[0].mxu0
    %v1240 = vadd.f32 %v1133, %v1239
    %v1241 = vpop.f32.mrb[0].mxu0
    %v1242 = vadd.f32 %v1137, %v1241
    %1243 = vdwg.mxu0
    %1244 = vmatprep.subr.mxu0 %v1099
    %1245 = vmatpush1.msra.mxu0 %v1098
    %1246 = vmatprep.subr.mxu0 %v1107
    %1247 = vmatpush1.msra.mxu0 %v1106
    %1248 = vmatprep.subr.mxu0 %v1115
    %1249 = vmatpush1.msra.mxu0 %v1114
    %1250 = vmatprep.subr.mxu0 %v1123
    %1251 = vmatpush1.msra.mxu0 %v1122
    %1252 = vmatprep.subr.mxu0 0.0
    %1253 = vmatpush1.msra.mxu0 0.0
    %1254 = vmatprep.subr.mxu0 0.0
    %1255 = vmatpush1.msra.mxu0 0.0
    %1256 = vmatprep.subr.mxu0 0.0
    %1257 = vmatpush1.msra.mxu0 0.0
    %1258 = vmatprep.subr.mxu0 0.0
    %1259 = vmatpush1.msra.mxu0 0.0
    %1260 = vmatprep.subr.mxu0 0.0
    %1261 = vmatpush1.msra.mxu0 0.0
    %1262 = vmatprep.subr.mxu0 0.0
    %1263 = vmatpush1.msra.mxu0 0.0
    %1264 = vmatprep.subr.mxu0 0.0
    %1265 = vmatpush1.msra.mxu0 0.0
    %1266 = vmatprep.subr.mxu0 0.0
    %1267 = vmatpush1.msra.mxu0 0.0
    %1268 = vmatprep.subr.mxu0 0.0
    %1269 = vmatpush1.msra.mxu0 0.0
    %1270 = vmatprep.subr.mxu0 0.0
    %1271 = vmatpush1.msra.mxu0 0.0
    %1272 = vmatprep.subr.mxu0 0.0
    %1273 = vmatpush1.msra.mxu0 0.0
    %1274 = vmatprep.subr.mxu0 0.0
    %1275 = vmatpush1.msra.mxu0 0.0
    %1276 = vmatprep.subr.mxu0 0.0
    %1277 = vmatpush1.msra.mxu0 0.0
    %1278 = vmatprep.subr.mxu0 0.0
    %1279 = vmatpush1.msra.mxu0 0.0
    %1280 = vmatprep.subr.mxu0 0.0
    %1281 = vmatpush1.msra.mxu0 0.0
    %1282 = vmatprep.subr.mxu0 0.0
    %1283 = vmatpush1.msra.mxu0 0.0
    %1284 = vmatprep.subr.mxu0 0.0
    %1285 = vmatpush1.msra.mxu0 0.0
    %1286 = vmatprep.subr.mxu0 0.0
    %1287 = vmatpush1.msra.mxu0 0.0
    %1288 = vmatprep.subr.mxu0 0.0
    %1289 = vmatpush1.msra.mxu0 0.0
    %1290 = vmatprep.subr.mxu0 0.0
    %1291 = vmatpush1.msra.mxu0 0.0
    %1292 = vmatprep.subr.mxu0 0.0
    %1293 = vmatpush1.msra.mxu0 0.0
    %1294 = vmatprep.subr.mxu0 0.0
    %1295 = vmatpush1.msra.mxu0 0.0
    %1296 = vmatprep.subr.mxu0 0.0
    %1297 = vmatpush1.msra.mxu0 0.0
    %1298 = vmatprep.subr.mxu0 0.0
    %1299 = vmatpush1.msra.mxu0 0.0
    %1300 = vmatprep.subr.mxu0 0.0
    %1301 = vmatpush1.msra.mxu0 0.0
    %1302 = vmatprep.subr.mxu0 0.0
    %1303 = vmatpush1.msra.mxu0 0.0
    %1304 = vmatprep.subr.mxu0 0.0
    %1305 = vmatpush1.msra.mxu0 0.0
    %1306 = vmatprep.subr.mxu0 0.0
    %1307 = vmatpush1.msra.mxu0 0.0
    %1308 = vmatprep.mubr.f32.mxu0 0.0
    %1309 = vmatmul.mubr.f32.gmra.mrb[0].mxu0 %v1171
    %v1310 = vpop.f32.mrb[0].mxu0
    %v1311 = vadd.f32 %v1141, %v1310
    %v1312 = vpop.f32.mrb[0].mxu0
    %v1313 = vadd.f32 %v1145, %v1312
    %1314 = vdwg.mxu0
    %1315 = vmatprep.subr.mxu0 %v1101
    %1316 = vmatpush1.msra.mxu0 %v1100
    %1317 = vmatprep.subr.mxu0 %v1109
    %1318 = vmatpush1.msra.mxu0 %v1108
    %1319 = vmatprep.subr.mxu0 %v1117
    %1320 = vmatpush1.msra.mxu0 %v1116
    %1321 = vmatprep.subr.mxu0 %v1125
    %1322 = vmatpush1.msra.mxu0 %v1124
    %1323 = vmatprep.subr.mxu0 0.0
    %1324 = vmatpush1.msra.mxu0 0.0
    %1325 = vmatprep.subr.mxu0 0.0
    %1326 = vmatpush1.msra.mxu0 0.0
    %1327 = vmatprep.subr.mxu0 0.0
    %1328 = vmatpush1.msra.mxu0 0.0
    %1329 = vmatprep.subr.mxu0 0.0
    %1330 = vmatpush1.msra.mxu0 0.0
    %1331 = vmatprep.subr.mxu0 0.0
    %1332 = vmatpush1.msra.mxu0 0.0
    %1333 = vmatprep.subr.mxu0 0.0
    %1334 = vmatpush1.msra.mxu0 0.0
    %1335 = vmatprep.subr.mxu0 0.0
    %1336 = vmatpush1.msra.mxu0 0.0
    %1337 = vmatprep.subr.mxu0 0.0
    %1338 = vmatpush1.msra.mxu0 0.0
    %1339 = vmatprep.subr.mxu0 0.0
    %1340 = vmatpush1.msra.mxu0 0.0
    %1341 = vmatprep.subr.mxu0 0.0
    %1342 = vmatpush1.msra.mxu0 0.0
    %1343 = vmatprep.subr.mxu0 0.0
    %1344 = vmatpush1.msra.mxu0 0.0
    %1345 = vmatprep.subr.mxu0 0.0
    %1346 = vmatpush1.msra.mxu0 0.0
    %1347 = vmatprep.subr.mxu0 0.0
    %1348 = vmatpush1.msra.mxu0 0.0
    %1349 = vmatprep.subr.mxu0 0.0
    %1350 = vmatpush1.msra.mxu0 0.0
    %1351 = vmatprep.subr.mxu0 0.0
    %1352 = vmatpush1.msra.mxu0 0.0
    %1353 = vmatprep.subr.mxu0 0.0
    %1354 = vmatpush1.msra.mxu0 0.0
    %1355 = vmatprep.subr.mxu0 0.0
    %1356 = vmatpush1.msra.mxu0 0.0
    %1357 = vmatprep.subr.mxu0 0.0
    %1358 = vmatpush1.msra.mxu0 0.0
    %1359 = vmatprep.subr.mxu0 0.0
    %1360 = vmatpush1.msra.mxu0 0.0
    %1361 = vmatprep.subr.mxu0 0.0
    %1362 = vmatpush1.msra.mxu0 0.0
    %1363 = vmatprep.subr.mxu0 0.0
    %1364 = vmatpush1.msra.mxu0 0.0
    %1365 = vmatprep.subr.mxu0 0.0
    %1366 = vmatpush1.msra.mxu0 0.0
    %1367 = vmatprep.subr.mxu0 0.0
    %1368 = vmatpush1.msra.mxu0 0.0
    %1369 = vmatprep.subr.mxu0 0.0
    %1370 = vmatpush1.msra.mxu0 0.0
    %1371 = vmatprep.subr.mxu0 0.0
    %1372 = vmatpush1.msra.mxu0 0.0
    %1373 = vmatprep.subr.mxu0 0.0
    %1374 = vmatpush1.msra.mxu0 0.0
    %1375 = vmatprep.subr.mxu0 0.0
    %1376 = vmatpush1.msra.mxu0 0.0
    %1377 = vmatprep.subr.mxu0 0.0
    %1378 = vmatpush1.msra.mxu0 0.0
    %1379 = vmatprep.mubr.f32.mxu0 0.0
    %1380 = vmatmul.mubr.f32.gmra.mrb[0].mxu0 %v1171
    %v1381 = vpop.f32.mrb[0].mxu0
    %v1382 = vadd.f32 %v1149, %v1381
    %v1383 = vpop.f32.mrb[0].mxu0
    %v1384 = vadd.f32 %v1153, %v1383
    %1385 = vdwg.mxu0
    %1386 = vmatprep.subr.mxu0 %v1103
    %1387 = vmatpush1.msra.mxu0 %v1102
    %1388 = vmatprep.subr.mxu0 %v1111
    %1389 = vmatpush1.msra.mxu0 %v1110
    %1390 = vmatprep.subr.mxu0 %v1119
    %1391 = vmatpush1.msra.mxu0 %v1118
    %1392 = vmatprep.subr.mxu0 %v1127
    %1393 = vmatpush1.msra.mxu0 %v1126
    %1394 = vmatprep.subr.mxu0 0.0
    %1395 = vmatpush1.msra.mxu0 0.0
    %1396 = vmatprep.subr.mxu0 0.0
    %1397 = vmatpush1.msra.mxu0 0.0
    %1398 = vmatprep.subr.mxu0 0.0
    %1399 = vmatpush1.msra.mxu0 0.0
    %1400 = vmatprep.subr.mxu0 0.0
    %1401 = vmatpush1.msra.mxu0 0.0
    %1402 = vmatprep.subr.mxu0 0.0
    %1403 = vmatpush1.msra.mxu0 0.0
    %1404 = vmatprep.subr.mxu0 0.0
    %1405 = vmatpush1.msra.mxu0 0.0
    %1406 = vmatprep.subr.mxu0 0.0
    %1407 = vmatpush1.msra.mxu0 0.0
    %1408 = vmatprep.subr.mxu0 0.0
    %1409 = vmatpush1.msra.mxu0 0.0
    %1410 = vmatprep.subr.mxu0 0.0
    %1411 = vmatpush1.msra.mxu0 0.0
    %1412 = vmatprep.subr.mxu0 0.0
    %1413 = vmatpush1.msra.mxu0 0.0
    %1414 = vmatprep.subr.mxu0 0.0
    %1415 = vmatpush1.msra.mxu0 0.0
    %1416 = vmatprep.subr.mxu0 0.0
    %1417 = vmatpush1.msra.mxu0 0.0
    %1418 = vmatprep.subr.mxu0 0.0
    %1419 = vmatpush1.msra.mxu0 0.0
    %1420 = vmatprep.subr.mxu0 0.0
    %1421 = vmatpush1.msra.mxu0 0.0
    %1422 = vmatprep.subr.mxu0 0.0
    %1423 = vmatpush1.msra.mxu0 0.0
    %1424 = vmatprep.subr.mxu0 0.0
    %1425 = vmatpush1.msra.mxu0 0.0
    %1426 = vmatprep.subr.mxu0 0.0
    %1427 = vmatpush1.msra.mxu0 0.0
    %1428 = vmatprep.subr.mxu0 0.0
    %1429 = vmatpush1.msra.mxu0 0.0
    %1430 = vmatprep.subr.mxu0 0.0
    %1431 = vmatpush1.msra.mxu0 0.0
    %1432 = vmatprep.subr.mxu0 0.0
    %1433 = vmatpush1.msra.mxu0 0.0
    %1434 = vmatprep.subr.mxu0 0.0
    %1435 = vmatpush1.msra.mxu0 0.0
    %1436 = vmatprep.subr.mxu0 0.0
    %1437 = vmatpush1.msra.mxu0 0.0
    %1438 = vmatprep.subr.mxu0 0.0
    %1439 = vmatpush1.msra.mxu0 0.0
    %1440 = vmatprep.subr.mxu0 0.0
    %1441 = vmatpush1.msra.mxu0 0.0
    %1442 = vmatprep.subr.mxu0 0.0
    %1443 = vmatpush1.msra.mxu0 0.0
    %1444 = vmatprep.subr.mxu0 0.0
    %1445 = vmatpush1.msra.mxu0 0.0
    %1446 = vmatprep.subr.mxu0 0.0
    %1447 = vmatpush1.msra.mxu0 0.0
    %1448 = vmatprep.subr.mxu0 0.0
    %1449 = vmatpush1.msra.mxu0 0.0
    %1450 = vmatprep.mubr.f32.mxu0 0.0
    %1451 = vmatmul.mubr.f32.gmra.mrb[0].mxu0 %v1171
    %v1452 = vpop.f32.mrb[0].mxu0
    %v1453 = vadd.f32 %v1157, %v1452
    %v1454 = vpop.f32.mrb[0].mxu0
    %v1455 = vadd.f32 %v1161, %v1454
    %1456 = vdwg.mxu0
    %v1457 = vld [vmem:[#allocation9] sm:$0xff]
    %v1458 = vld [vmem:[#allocation9 + $0x8] sm:$0xff]
    %v1459 = vld [vmem:[#allocation9 + $0x10] sm:$0xff]
    %v1460 = vld [vmem:[#allocation9 + $0x18] sm:$0xff]
    %v1461 = vld [vmem:[#allocation9 + $0x20] sm:$0xff]
    %v1462 = vld [vmem:[#allocation9 + $0x28] sm:$0xff]
    %v1463 = vld [vmem:[#allocation9 + $0x30] sm:$0xff]
    %v1464 = vld [vmem:[#allocation9 + $0x38] sm:$0xff]
    %v1465 = vld [vmem:[#allocation9 + $0x40] sm:$0xff]
    %v1466 = vld [vmem:[#allocation9 + $0x48] sm:$0xff]
    %v1467 = vld [vmem:[#allocation9 + $0x50] sm:$0xff]
    %v1468 = vld [vmem:[#allocation9 + $0x58] sm:$0xff]
    %v1469 = vld [vmem:[#allocation9 + $0x60] sm:$0xff]
    %v1470 = vld [vmem:[#allocation9 + $0x68] sm:$0xff]
    %v1471 = vld [vmem:[#allocation9 + $0x70] sm:$0xff]
    %v1472 = vld [vmem:[#allocation9 + $0x78] sm:$0xff]
    %v1473 = vld [vmem:[%s7] sm:$0x1]
    %v1475 = vlaneseq
    %v1476 = vshrl.u32 %v1475, 7
    %v1477 = vsub.s32 0, %v1476
    %v1478 = vrot.slane %v1473, %v1477
    %vm1480 = vcmask 850944
    %v1482 = vsel %vm1480, %v1455, 0
    %v1485 = vsel %vm1480, %v1464, 0
    %v1488 = vsel %vm1480, %v1472, 0
    %1490 = vmatprep.subr.mxu0 %v1458
    %1491 = vmatpush1.xpose.msra.mxu0 %v1457
    %1492 = vmatprep.subr.mxu0 %v1466
    %1493 = vmatpush1.xpose.msra.mxu0 %v1465
    %1494 = vmatprep.subr.mxu0 0.0
    %1495 = vmatpush1.xpose.msra.mxu0 0.0
    %1496 = vmatprep.subr.mxu0 0.0
    %1497 = vmatpush1.xpose.msra.mxu0 0.0
    %1498 = vmatprep.subr.mxu0 0.0
    %1499 = vmatpush1.xpose.msra.mxu0 0.0
    %1500 = vmatprep.subr.mxu0 0.0
    %1501 = vmatpush1.xpose.msra.mxu0 0.0
    %1502 = vmatprep.subr.mxu0 0.0
    %1503 = vmatpush1.xpose.msra.mxu0 0.0
    %1504 = vmatprep.subr.mxu0 0.0
    %1505 = vmatpush1.xpose.msra.mxu0 0.0
    %1506 = vmatprep.subr.mxu0 0.0
    %1507 = vmatpush1.xpose.msra.mxu0 0.0
    %1508 = vmatprep.subr.mxu0 0.0
    %1509 = vmatpush1.xpose.msra.mxu0 0.0
    %1510 = vmatprep.subr.mxu0 0.0
    %1511 = vmatpush1.xpose.msra.mxu0 0.0
    %1512 = vmatprep.subr.mxu0 0.0
    %1513 = vmatpush1.xpose.msra.mxu0 0.0
    %1514 = vmatprep.subr.mxu0 0.0
    %1515 = vmatpush1.xpose.msra.mxu0 0.0
    %1516 = vmatprep.subr.mxu0 0.0
    %1517 = vmatpush1.xpose.msra.mxu0 0.0
    %1518 = vmatprep.subr.mxu0 0.0
    %1519 = vmatpush1.xpose.msra.mxu0 0.0
    %1520 = vmatprep.subr.mxu0 0.0
    %1521 = vmatpush1.xpose.msra.mxu0 0.0
    %1522 = vmatprep.subr.mxu0 0.0
    %1523 = vmatpush1.xpose.msra.mxu0 0.0
    %1524 = vmatprep.subr.mxu0 0.0
    %1525 = vmatpush1.xpose.msra.mxu0 0.0
    %1526 = vmatprep.subr.mxu0 0.0
    %1527 = vmatpush1.xpose.msra.mxu0 0.0
    %1528 = vmatprep.subr.mxu0 0.0
    %1529 = vmatpush1.xpose.msra.mxu0 0.0
    %1530 = vmatprep.subr.mxu0 0.0
    %1531 = vmatpush1.xpose.msra.mxu0 0.0
    %1532 = vmatprep.subr.mxu0 0.0
    %1533 = vmatpush1.xpose.msra.mxu0 0.0
    %1534 = vmatprep.subr.mxu0 0.0
    %1535 = vmatpush1.xpose.msra.mxu0 0.0
    %1536 = vmatprep.subr.mxu0 0.0
    %1537 = vmatpush1.xpose.msra.mxu0 0.0
    %1538 = vmatprep.subr.mxu0 0.0
    %1539 = vmatpush1.xpose.msra.mxu0 0.0
    %1540 = vmatprep.subr.mxu0 0.0
    %1541 = vmatpush1.xpose.msra.mxu0 0.0
    %1542 = vmatprep.subr.mxu0 0.0
    %1543 = vmatpush1.xpose.msra.mxu0 0.0
    %1544 = vmatprep.subr.mxu0 0.0
    %1545 = vmatpush1.xpose.msra.mxu0 0.0
    %1546 = vmatprep.subr.mxu0 0.0
    %1547 = vmatpush1.xpose.msra.mxu0 0.0
    %1548 = vmatprep.subr.mxu0 0.0
    %1549 = vmatpush1.xpose.msra.mxu0 0.0
    %1550 = vmatprep.subr.mxu0 0.0
    %1551 = vmatpush1.xpose.msra.mxu0 0.0
    %1552 = vmatprep.subr.mxu0 0.0
    %1553 = vmatpush1.xpose.msra.mxu0 0.0
    %1554 = vmatprep.mubr.f32.mxu0 %v1242
    %1555 = vmatmul.mubr.f32.gmra.mrb[0].mxu0 %v1240
    %v1556 = vpop.f32.mrb[0].mxu0
    %v1557 = vadd.f32 %v1478, %v1556
    %v1558 = vpop.f32.mrb[0].mxu0
    %1559 = vdwg.mxu0
    %1560 = vmatprep.subr.mxu0 %v1460
    %1561 = vmatpush1.xpose.msra.mxu0 %v1459
    %1562 = vmatprep.subr.mxu0 %v1468
    %1563 = vmatpush1.xpose.msra.mxu0 %v1467
    %1564 = vmatprep.subr.mxu0 0.0
    %1565 = vmatpush1.xpose.msra.mxu0 0.0
    %1566 = vmatprep.subr.mxu0 0.0
    %1567 = vmatpush1.xpose.msra.mxu0 0.0
    %1568 = vmatprep.subr.mxu0 0.0
    %1569 = vmatpush1.xpose.msra.mxu0 0.0
    %1570 = vmatprep.subr.mxu0 0.0
    %1571 = vmatpush1.xpose.msra.mxu0 0.0
    %1572 = vmatprep.subr.mxu0 0.0
    %1573 = vmatpush1.xpose.msra.mxu0 0.0
    %1574 = vmatprep.subr.mxu0 0.0
    %1575 = vmatpush1.xpose.msra.mxu0 0.0
    %1576 = vmatprep.subr.mxu0 0.0
    %1577 = vmatpush1.xpose.msra.mxu0 0.0
    %1578 = vmatprep.subr.mxu0 0.0
    %1579 = vmatpush1.xpose.msra.mxu0 0.0
    %1580 = vmatprep.subr.mxu0 0.0
    %1581 = vmatpush1.xpose.msra.mxu0 0.0
    %1582 = vmatprep.subr.mxu0 0.0
    %1583 = vmatpush1.xpose.msra.mxu0 0.0
    %1584 = vmatprep.subr.mxu0 0.0
    %1585 = vmatpush1.xpose.msra.mxu0 0.0
    %1586 = vmatprep.subr.mxu0 0.0
    %1587 = vmatpush1.xpose.msra.mxu0 0.0
    %1588 = vmatprep.subr.mxu0 0.0
    %1589 = vmatpush1.xpose.msra.mxu0 0.0
    %1590 = vmatprep.subr.mxu0 0.0
    %1591 = vmatpush1.xpose.msra.mxu0 0.0
    %1592 = vmatprep.subr.mxu0 0.0
    %1593 = vmatpush1.xpose.msra.mxu0 0.0
    %1594 = vmatprep.subr.mxu0 0.0
    %1595 = vmatpush1.xpose.msra.mxu0 0.0
    %1596 = vmatprep.subr.mxu0 0.0
    %1597 = vmatpush1.xpose.msra.mxu0 0.0
    %1598 = vmatprep.subr.mxu0 0.0
    %1599 = vmatpush1.xpose.msra.mxu0 0.0
    %1600 = vmatprep.subr.mxu0 0.0
    %1601 = vmatpush1.xpose.msra.mxu0 0.0
    %1602 = vmatprep.subr.mxu0 0.0
    %1603 = vmatpush1.xpose.msra.mxu0 0.0
    %1604 = vmatprep.subr.mxu0 0.0
    %1605 = vmatpush1.xpose.msra.mxu0 0.0
    %1606 = vmatprep.subr.mxu0 0.0
    %1607 = vmatpush1.xpose.msra.mxu0 0.0
    %1608 = vmatprep.subr.mxu0 0.0
    %1609 = vmatpush1.xpose.msra.mxu0 0.0
    %1610 = vmatprep.subr.mxu0 0.0
    %1611 = vmatpush1.xpose.msra.mxu0 0.0
    %1612 = vmatprep.subr.mxu0 0.0
    %1613 = vmatpush1.xpose.msra.mxu0 0.0
    %1614 = vmatprep.subr.mxu0 0.0
    %1615 = vmatpush1.xpose.msra.mxu0 0.0
    %1616 = vmatprep.subr.mxu0 0.0
    %1617 = vmatpush1.xpose.msra.mxu0 0.0
    %1618 = vmatprep.subr.mxu0 0.0
    %1619 = vmatpush1.xpose.msra.mxu0 0.0
    %1620 = vmatprep.subr.mxu0 0.0
    %1621 = vmatpush1.xpose.msra.mxu0 0.0
    %1622 = vmatprep.subr.mxu0 0.0
    %1623 = vmatpush1.xpose.msra.mxu0 0.0
    %1624 = vmatprep.mubr.f32.mxu0 %v1313
    %1625 = vmatmul.mubr.f32.gmra.mrb[0].mxu0 %v1311
    %v1626 = vpop.f32.mrb[0].mxu0
    %v1627 = vadd.f32 %v1557, %v1626
    %v1628 = vpop.f32.mrb[0].mxu0
    %1629 = vdwg.mxu0
    %1630 = vmatprep.subr.mxu0 %v1462
    %1631 = vmatpush1.xpose.msra.mxu0 %v1461
    %1632 = vmatprep.subr.mxu0 %v1470
    %1633 = vmatpush1.xpose.msra.mxu0 %v1469
    %1634 = vmatprep.subr.mxu0 0.0
    %1635 = vmatpush1.xpose.msra.mxu0 0.0
    %1636 = vmatprep.subr.mxu0 0.0
    %1637 = vmatpush1.xpose.msra.mxu0 0.0
    %1638 = vmatprep.subr.mxu0 0.0
    %1639 = vmatpush1.xpose.msra.mxu0 0.0
    %1640 = vmatprep.subr.mxu0 0.0
    %1641 = vmatpush1.xpose.msra.mxu0 0.0
    %1642 = vmatprep.subr.mxu0 0.0
    %1643 = vmatpush1.xpose.msra.mxu0 0.0
    %1644 = vmatprep.subr.mxu0 0.0
    %1645 = vmatpush1.xpose.msra.mxu0 0.0
    %1646 = vmatprep.subr.mxu0 0.0
    %1647 = vmatpush1.xpose.msra.mxu0 0.0
    %1648 = vmatprep.subr.mxu0 0.0
    %1649 = vmatpush1.xpose.msra.mxu0 0.0
    %1650 = vmatprep.subr.mxu0 0.0
    %1651 = vmatpush1.xpose.msra.mxu0 0.0
    %1652 = vmatprep.subr.mxu0 0.0
    %1653 = vmatpush1.xpose.msra.mxu0 0.0
    %1654 = vmatprep.subr.mxu0 0.0
    %1655 = vmatpush1.xpose.msra.mxu0 0.0
    %1656 = vmatprep.subr.mxu0 0.0
    %1657 = vmatpush1.xpose.msra.mxu0 0.0
    %1658 = vmatprep.subr.mxu0 0.0
    %1659 = vmatpush1.xpose.msra.mxu0 0.0
    %1660 = vmatprep.subr.mxu0 0.0
    %1661 = vmatpush1.xpose.msra.mxu0 0.0
    %1662 = vmatprep.subr.mxu0 0.0
    %1663 = vmatpush1.xpose.msra.mxu0 0.0
    %1664 = vmatprep.subr.mxu0 0.0
    %1665 = vmatpush1.xpose.msra.mxu0 0.0
    %1666 = vmatprep.subr.mxu0 0.0
    %1667 = vmatpush1.xpose.msra.mxu0 0.0
    %1668 = vmatprep.subr.mxu0 0.0
    %1669 = vmatpush1.xpose.msra.mxu0 0.0
    %1670 = vmatprep.subr.mxu0 0.0
    %1671 = vmatpush1.xpose.msra.mxu0 0.0
    %1672 = vmatprep.subr.mxu0 0.0
    %1673 = vmatpush1.xpose.msra.mxu0 0.0
    %1674 = vmatprep.subr.mxu0 0.0
    %1675 = vmatpush1.xpose.msra.mxu0 0.0
    %1676 = vmatprep.subr.mxu0 0.0
    %1677 = vmatpush1.xpose.msra.mxu0 0.0
    %1678 = vmatprep.subr.mxu0 0.0
    %1679 = vmatpush1.xpose.msra.mxu0 0.0
    %1680 = vmatprep.subr.mxu0 0.0
    %1681 = vmatpush1.xpose.msra.mxu0 0.0
    %1682 = vmatprep.subr.mxu0 0.0
    %1683 = vmatpush1.xpose.msra.mxu0 0.0
    %1684 = vmatprep.subr.mxu0 0.0
    %1685 = vmatpush1.xpose.msra.mxu0 0.0
    %1686 = vmatprep.subr.mxu0 0.0
    %1687 = vmatpush1.xpose.msra.mxu0 0.0
    %1688 = vmatprep.subr.mxu0 0.0
    %1689 = vmatpush1.xpose.msra.mxu0 0.0
    %1690 = vmatprep.subr.mxu0 0.0
    %1691 = vmatpush1.xpose.msra.mxu0 0.0
    %1692 = vmatprep.subr.mxu0 0.0
    %1693 = vmatpush1.xpose.msra.mxu0 0.0
    %1694 = vmatprep.mubr.f32.mxu0 %v1384
    %1695 = vmatmul.mubr.f32.gmra.mrb[0].mxu0 %v1382
    %v1696 = vpop.f32.mrb[0].mxu0
    %v1697 = vadd.f32 %v1627, %v1696
    %v1698 = vpop.f32.mrb[0].mxu0
    %1699 = vdwg.mxu0
    %1700 = vmatprep.subr.mxu0 %v1485
    %1701 = vmatpush1.xpose.msra.mxu0 %v1463
    %1702 = vmatprep.subr.mxu0 %v1488
    %1703 = vmatpush1.xpose.msra.mxu0 %v1471
    %1704 = vmatprep.subr.mxu0 0.0
    %1705 = vmatpush1.xpose.msra.mxu0 0.0
    %1706 = vmatprep.subr.mxu0 0.0
    %1707 = vmatpush1.xpose.msra.mxu0 0.0
    %1708 = vmatprep.subr.mxu0 0.0
    %1709 = vmatpush1.xpose.msra.mxu0 0.0
    %1710 = vmatprep.subr.mxu0 0.0
    %1711 = vmatpush1.xpose.msra.mxu0 0.0
    %1712 = vmatprep.subr.mxu0 0.0
    %1713 = vmatpush1.xpose.msra.mxu0 0.0
    %1714 = vmatprep.subr.mxu0 0.0
    %1715 = vmatpush1.xpose.msra.mxu0 0.0
    %1716 = vmatprep.subr.mxu0 0.0
    %1717 = vmatpush1.xpose.msra.mxu0 0.0
    %1718 = vmatprep.subr.mxu0 0.0
    %1719 = vmatpush1.xpose.msra.mxu0 0.0
    %1720 = vmatprep.subr.mxu0 0.0
    %1721 = vmatpush1.xpose.msra.mxu0 0.0
    %1722 = vmatprep.subr.mxu0 0.0
    %1723 = vmatpush1.xpose.msra.mxu0 0.0
    %1724 = vmatprep.subr.mxu0 0.0
    %1725 = vmatpush1.xpose.msra.mxu0 0.0
    %1726 = vmatprep.subr.mxu0 0.0
    %1727 = vmatpush1.xpose.msra.mxu0 0.0
    %1728 = vmatprep.subr.mxu0 0.0
    %1729 = vmatpush1.xpose.msra.mxu0 0.0
    %1730 = vmatprep.subr.mxu0 0.0
    %1731 = vmatpush1.xpose.msra.mxu0 0.0
    %1732 = vmatprep.subr.mxu0 0.0
    %1733 = vmatpush1.xpose.msra.mxu0 0.0
    %1734 = vmatprep.subr.mxu0 0.0
    %1735 = vmatpush1.xpose.msra.mxu0 0.0
    %1736 = vmatprep.subr.mxu0 0.0
    %1737 = vmatpush1.xpose.msra.mxu0 0.0
    %1738 = vmatprep.subr.mxu0 0.0
    %1739 = vmatpush1.xpose.msra.mxu0 0.0
    %1740 = vmatprep.subr.mxu0 0.0
    %1741 = vmatpush1.xpose.msra.mxu0 0.0
    %1742 = vmatprep.subr.mxu0 0.0
    %1743 = vmatpush1.xpose.msra.mxu0 0.0
    %1744 = vmatprep.subr.mxu0 0.0
    %1745 = vmatpush1.xpose.msra.mxu0 0.0
    %1746 = vmatprep.subr.mxu0 0.0
    %1747 = vmatpush1.xpose.msra.mxu0 0.0
    %1748 = vmatprep.subr.mxu0 0.0
    %1749 = vmatpush1.xpose.msra.mxu0 0.0
    %1750 = vmatprep.subr.mxu0 0.0
    %1751 = vmatpush1.xpose.msra.mxu0 0.0
    %1752 = vmatprep.subr.mxu0 0.0
    %1753 = vmatpush1.xpose.msra.mxu0 0.0
    %1754 = vmatprep.subr.mxu0 0.0
    %1755 = vmatpush1.xpose.msra.mxu0 0.0
    %1756 = vmatprep.subr.mxu0 0.0
    %1757 = vmatpush1.xpose.msra.mxu0 0.0
    %1758 = vmatprep.subr.mxu0 0.0
    %1759 = vmatpush1.xpose.msra.mxu0 0.0
    %1760 = vmatprep.subr.mxu0 0.0
    %1761 = vmatpush1.xpose.msra.mxu0 0.0
    %1762 = vmatprep.subr.mxu0 0.0
    %1763 = vmatpush1.xpose.msra.mxu0 0.0
    %1764 = vmatprep.mubr.f32.mxu0 %v1482
    %1765 = vmatmul.mubr.f32.gmra.mrb[0].mxu0 %v1453
    %v1766 = vpop.f32.mrb[0].mxu0
    %v1767 = vadd.f32 %v1697, %v1766
    %v1768 = vpop.f32.mrb[0].mxu0
    %1769 = vdwg.mxu0
    %v1770 = vld [vmem:[#allocation11] sm:$0xff]
    %v1771 = vld [vmem:[#allocation11 + $0x8] sm:$0xff]
    %v1772 = vld [vmem:[#allocation11 + $0x10] sm:$0xff]
    %v1773 = vld [vmem:[#allocation11 + $0x18] sm:$0xff]
    %v1774 = vld [vmem:[#allocation11 + $0x20] sm:$0xff]
    %v1775 = vld [vmem:[#allocation11 + $0x28] sm:$0xff]
    %v1776 = vld [vmem:[#allocation11 + $0x30] sm:$0xff]
    %v1777 = vld [vmem:[#allocation11 + $0x38] sm:$0xff]
    %v1778 = vld [vmem:[#allocation11 + $0x40] sm:$0xff]
    %v1779 = vld [vmem:[#allocation11 + $0x48] sm:$0xff]
    %v1780 = vld [vmem:[#allocation11 + $0x50] sm:$0xff]
    %v1781 = vld [vmem:[#allocation11 + $0x58] sm:$0xff]
    %v1782 = vld [vmem:[#allocation11 + $0x60] sm:$0xff]
    %v1783 = vld [vmem:[#allocation11 + $0x68] sm:$0xff]
    %v1784 = vld [vmem:[#allocation11 + $0x70] sm:$0xff]
    %v1785 = vld [vmem:[#allocation11 + $0x78] sm:$0xff]
    %v1786 = vld [vmem:[#allocation11 + $0x80] sm:$0xff]
    %v1787 = vld [vmem:[#allocation11 + $0x88] sm:$0xff]
    %v1788 = vld [vmem:[#allocation11 + $0x90] sm:$0xff]
    %v1789 = vld [vmem:[#allocation11 + $0x98] sm:$0xff]
    %v1790 = vld [vmem:[#allocation11 + $0xa0] sm:$0xff]
    %v1791 = vld [vmem:[#allocation11 + $0xa8] sm:$0xff]
    %v1792 = vld [vmem:[#allocation11 + $0xb0] sm:$0xff]
    %v1793 = vld [vmem:[#allocation11 + $0xb8] sm:$0xff]
    %v1794 = vld [vmem:[#allocation11 + $0xc0] sm:$0xff]
    %v1795 = vld [vmem:[#allocation11 + $0xc8] sm:$0xff]
    %v1796 = vld [vmem:[#allocation11 + $0xd0] sm:$0xff]
    %v1797 = vld [vmem:[#allocation11 + $0xd8] sm:$0xff]
    %v1798 = vld [vmem:[#allocation11 + $0xe0] sm:$0xff]
    %v1799 = vld [vmem:[#allocation11 + $0xe8] sm:$0xff]
    %v1800 = vld [vmem:[#allocation11 + $0xf0] sm:$0xff]
    %v1801 = vld [vmem:[#allocation11 + $0xf8] sm:$0xff]
    %v1802 = vld [vmem:[#allocation11 + $0x100] sm:$0xff]
    %v1803 = vld [vmem:[#allocation11 + $0x108] sm:$0xff]
    %v1804 = vld [vmem:[#allocation11 + $0x110] sm:$0xff]
    %v1805 = vld [vmem:[#allocation11 + $0x118] sm:$0xff]
    %v1806 = vld [vmem:[#allocation11 + $0x120] sm:$0xff]
    %v1807 = vld [vmem:[#allocation11 + $0x128] sm:$0xff]
    %v1808 = vld [vmem:[#allocation11 + $0x130] sm:$0xff]
    %v1809 = vld [vmem:[#allocation11 + $0x138] sm:$0xff]
    %v1810 = vld [vmem:[#allocation11 + $0x140] sm:$0xff]
    %v1811 = vld [vmem:[#allocation11 + $0x148] sm:$0xff]
    %v1812 = vld [vmem:[#allocation11 + $0x150] sm:$0xff]
    %v1813 = vld [vmem:[#allocation11 + $0x158] sm:$0xff]
    %v1814 = vld [vmem:[#allocation11 + $0x160] sm:$0xff]
    %v1815 = vld [vmem:[#allocation11 + $0x168] sm:$0xff]
    %v1816 = vld [vmem:[#allocation11 + $0x170] sm:$0xff]
    %v1817 = vld [vmem:[#allocation11 + $0x178] sm:$0xff]
    %v1818 = vld [vmem:[#allocation11 + $0x180] sm:$0xff]
    %v1819 = vld [vmem:[#allocation11 + $0x188] sm:$0xff]
    %v1820 = vld [vmem:[#allocation11 + $0x190] sm:$0xff]
    %v1821 = vld [vmem:[#allocation11 + $0x198] sm:$0xff]
    %v1822 = vld [vmem:[#allocation11 + $0x1a0] sm:$0xff]
    %v1823 = vld [vmem:[#allocation11 + $0x1a8] sm:$0xff]
    %v1824 = vld [vmem:[#allocation11 + $0x1b0] sm:$0xff]
    %v1825 = vld [vmem:[#allocation11 + $0x1b8] sm:$0xff]
    %v1826 = vld [vmem:[#allocation11 + $0x1c0] sm:$0xff]
    %v1827 = vld [vmem:[#allocation11 + $0x1c8] sm:$0xff]
    %v1828 = vld [vmem:[#allocation11 + $0x1d0] sm:$0xff]
    %v1829 = vld [vmem:[#allocation11 + $0x1d8] sm:$0xff]
    %v1830 = vld [vmem:[#allocation11 + $0x1e0] sm:$0xff]
    %v1831 = vld [vmem:[#allocation11 + $0x1e8] sm:$0xff]
    %v1832 = vld [vmem:[#allocation11 + $0x1f0] sm:$0xff]
    %v1833 = vld [vmem:[#allocation11 + $0x1f8] sm:$0xff]
    %v1834 = vld [vmem:[#allocation11 + $0x200] sm:$0xff]
    %v1835 = vld [vmem:[#allocation11 + $0x208] sm:$0xff]
    %v1836 = vld [vmem:[#allocation11 + $0x210] sm:$0xff]
    %v1837 = vld [vmem:[#allocation11 + $0x218] sm:$0xff]
    %v1838 = vld [vmem:[#allocation11 + $0x220] sm:$0xff]
    %v1839 = vld [vmem:[#allocation11 + $0x228] sm:$0xff]
    %v1840 = vld [vmem:[#allocation11 + $0x230] sm:$0xff]
    %v1841 = vld [vmem:[#allocation11 + $0x238] sm:$0xff]
    %v1842 = vld [vmem:[#allocation11 + $0x240] sm:$0xff]
    %v1843 = vld [vmem:[#allocation11 + $0x248] sm:$0xff]
    %v1844 = vld [vmem:[#allocation11 + $0x250] sm:$0xff]
    %v1845 = vld [vmem:[#allocation11 + $0x258] sm:$0xff]
    %v1846 = vld [vmem:[#allocation11 + $0x260] sm:$0xff]
    %v1847 = vld [vmem:[#allocation11 + $0x268] sm:$0xff]
    %v1848 = vld [vmem:[#allocation11 + $0x270] sm:$0xff]
    %v1849 = vld [vmem:[#allocation11 + $0x278] sm:$0xff]
    %v1850 = vld [vmem:[#allocation11 + $0x280] sm:$0xff]
    %v1851 = vld [vmem:[#allocation11 + $0x288] sm:$0xff]
    %v1852 = vld [vmem:[#allocation11 + $0x290] sm:$0xff]
    %v1853 = vld [vmem:[#allocation11 + $0x298] sm:$0xff]
    %v1854 = vld [vmem:[#allocation11 + $0x2a0] sm:$0xff]
    %v1855 = vld [vmem:[#allocation11 + $0x2a8] sm:$0xff]
    %v1856 = vld [vmem:[#allocation11 + $0x2b0] sm:$0xff]
    %v1857 = vld [vmem:[#allocation11 + $0x2b8] sm:$0xff]
    %v1858 = vld [vmem:[#allocation11 + $0x2c0] sm:$0xff]
    %v1859 = vld [vmem:[#allocation11 + $0x2c8] sm:$0xff]
    %v1860 = vld [vmem:[#allocation11 + $0x2d0] sm:$0xff]
    %v1861 = vld [vmem:[#allocation11 + $0x2d8] sm:$0xff]
    %v1862 = vld [vmem:[#allocation11 + $0x2e0] sm:$0xff]
    %v1863 = vld [vmem:[#allocation11 + $0x2e8] sm:$0xff]
    %v1864 = vld [vmem:[#allocation11 + $0x2f0] sm:$0xff]
    %v1865 = vld [vmem:[#allocation11 + $0x2f8] sm:$0xff]
    %v1866 = vld [vmem:[#allocation11 + $0x300] sm:$0xff]
    %v1867 = vld [vmem:[#allocation11 + $0x308] sm:$0xff]
    %v1868 = vld [vmem:[#allocation11 + $0x310] sm:$0xff]
    %v1869 = vld [vmem:[#allocation11 + $0x318] sm:$0xff]
    %v1870 = vld [vmem:[#allocation11 + $0x320] sm:$0xff]
    %v1871 = vld [vmem:[#allocation11 + $0x328] sm:$0xff]
    %v1872 = vld [vmem:[#allocation11 + $0x330] sm:$0xff]
    %v1873 = vld [vmem:[#allocation11 + $0x338] sm:$0xff]
    %v1874 = vld [vmem:[#allocation11 + $0x340] sm:$0xff]
    %v1875 = vld [vmem:[#allocation11 + $0x348] sm:$0xff]
    %v1876 = vld [vmem:[#allocation11 + $0x350] sm:$0xff]
    %v1877 = vld [vmem:[#allocation11 + $0x358] sm:$0xff]
    %v1878 = vld [vmem:[#allocation11 + $0x360] sm:$0xff]
    %v1879 = vld [vmem:[#allocation11 + $0x368] sm:$0xff]
    %v1880 = vld [vmem:[#allocation11 + $0x370] sm:$0xff]
    %v1881 = vld [vmem:[#allocation11 + $0x378] sm:$0xff]
    %v1882 = vld [vmem:[#allocation11 + $0x380] sm:$0xff]
    %v1883 = vld [vmem:[#allocation11 + $0x388] sm:$0xff]
    %v1884 = vld [vmem:[#allocation11 + $0x390] sm:$0xff]
    %v1885 = vld [vmem:[#allocation11 + $0x398] sm:$0xff]
    %v1886 = vld [vmem:[#allocation11 + $0x3a0] sm:$0xff]
    %v1887 = vld [vmem:[#allocation11 + $0x3a8] sm:$0xff]
    %v1888 = vld [vmem:[#allocation11 + $0x3b0] sm:$0xff]
    %v1889 = vld [vmem:[#allocation11 + $0x3b8] sm:$0xff]
    %v1890 = vld [vmem:[#allocation11 + $0x3c0] sm:$0xff]
    %v1891 = vld [vmem:[#allocation11 + $0x3c8] sm:$0xff]
    %v1892 = vld [vmem:[#allocation11 + $0x3d0] sm:$0xff]
    %v1893 = vld [vmem:[#allocation11 + $0x3d8] sm:$0xff]
    %v1894 = vld [vmem:[#allocation11 + $0x3e0] sm:$0xff]
    %v1895 = vld [vmem:[#allocation11 + $0x3e8] sm:$0xff]
    %v1896 = vld [vmem:[#allocation11 + $0x3f0] sm:$0xff]
    %v1897 = vld [vmem:[#allocation11 + $0x3f8] sm:$0xff]
    %v1898 = vld [vmem:[#allocation11 + $0x400] sm:$0xff]
    %v1899 = vld [vmem:[#allocation11 + $0x408] sm:$0xff]
    %v1900 = vld [vmem:[#allocation11 + $0x410] sm:$0xff]
    %v1901 = vld [vmem:[#allocation11 + $0x418] sm:$0xff]
    %v1902 = vld [vmem:[#allocation11 + $0x420] sm:$0xff]
    %v1903 = vld [vmem:[#allocation11 + $0x428] sm:$0xff]
    %v1904 = vld [vmem:[#allocation11 + $0x430] sm:$0xff]
    %v1905 = vld [vmem:[#allocation11 + $0x438] sm:$0xff]
    %v1906 = vld [vmem:[#allocation11 + $0x440] sm:$0xff]
    %v1907 = vld [vmem:[#allocation11 + $0x448] sm:$0xff]
    %v1908 = vld [vmem:[#allocation11 + $0x450] sm:$0xff]
    %v1909 = vld [vmem:[#allocation11 + $0x458] sm:$0xff]
    %v1910 = vld [vmem:[#allocation11 + $0x460] sm:$0xff]
    %v1911 = vld [vmem:[#allocation11 + $0x468] sm:$0xff]
    %v1912 = vld [vmem:[#allocation11 + $0x470] sm:$0xff]
    %v1913 = vld [vmem:[#allocation11 + $0x478] sm:$0xff]
    %v1914 = vld [vmem:[#allocation11 + $0x480] sm:$0xff]
    %v1915 = vld [vmem:[#allocation11 + $0x488] sm:$0xff]
    %v1916 = vld [vmem:[#allocation11 + $0x490] sm:$0xff]
    %v1917 = vld [vmem:[#allocation11 + $0x498] sm:$0xff]
    %v1918 = vld [vmem:[#allocation11 + $0x4a0] sm:$0xff]
    %v1919 = vld [vmem:[#allocation11 + $0x4a8] sm:$0xff]
    %v1920 = vld [vmem:[#allocation11 + $0x4b0] sm:$0xff]
    %v1921 = vld [vmem:[#allocation11 + $0x4b8] sm:$0xff]
    %v1922 = vld [vmem:[#allocation11 + $0x4c0] sm:$0xff]
    %v1923 = vld [vmem:[#allocation11 + $0x4c8] sm:$0xff]
    %v1924 = vld [vmem:[#allocation11 + $0x4d0] sm:$0xff]
    %v1925 = vld [vmem:[#allocation11 + $0x4d8] sm:$0xff]
    %v1926 = vld [vmem:[#allocation11 + $0x4e0] sm:$0xff]
    %v1927 = vld [vmem:[#allocation11 + $0x4e8] sm:$0xff]
    %v1928 = vld [vmem:[#allocation11 + $0x4f0] sm:$0xff]
    %v1929 = vld [vmem:[#allocation11 + $0x4f8] sm:$0xff]
    %v1930 = vld [vmem:[#allocation11 + $0x500] sm:$0xff]
    %v1931 = vld [vmem:[#allocation11 + $0x508] sm:$0xff]
    %v1932 = vld [vmem:[#allocation11 + $0x510] sm:$0xff]
    %v1933 = vld [vmem:[#allocation11 + $0x518] sm:$0xff]
    %v1934 = vld [vmem:[#allocation11 + $0x520] sm:$0xff]
    %v1935 = vld [vmem:[#allocation11 + $0x528] sm:$0xff]
    %v1936 = vld [vmem:[#allocation11 + $0x530] sm:$0xff]
    %v1937 = vld [vmem:[#allocation11 + $0x538] sm:$0xff]
    %v1938 = vld [vmem:[#allocation11 + $0x540] sm:$0xff]
    %v1939 = vld [vmem:[#allocation11 + $0x548] sm:$0xff]
    %v1940 = vld [vmem:[#allocation11 + $0x550] sm:$0xff]
    %v1941 = vpack.c.bf16 %v1770, %v1770
    %v1942 = vpack.c.bf16 %v1771, %v1771
    %v1943 = vpack.c.bf16 %v1772, %v1772
    %v1944 = vpack.c.bf16 %v1773, %v1773
    %v1945 = vpack.c.bf16 %v1774, %v1774
    %v1946 = vpack.c.bf16 %v1775, %v1775
    %v1947 = vpack.c.bf16 %v1776, %v1776
    %v1948 = vpack.c.bf16 %v1777, %v1777
    %v1949 = vpack.c.bf16 %v1778, %v1778
    %v1950 = vpack.c.bf16 %v1779, %v1779
    %v1951 = vpack.c.bf16 %v1780, %v1780
    %v1952 = vpack.c.bf16 %v1781, %v1781
    %v1953 = vpack.c.bf16 %v1782, %v1782
    %v1954 = vpack.c.bf16 %v1783, %v1783
    %v1955 = vpack.c.bf16 %v1784, %v1784
    %v1956 = vpack.c.bf16 %v1785, %v1785
    %v1957 = vpack.c.bf16 %v1786, %v1786
    %v1958 = vpack.c.bf16 %v1787, %v1787
    %v1959 = vpack.c.bf16 %v1788, %v1788
    %v1960 = vpack.c.bf16 %v1789, %v1789
    %v1961 = vpack.c.bf16 %v1790, %v1790
    %v1962 = vpack.c.bf16 %v1791, %v1791
    %v1963 = vpack.c.bf16 %v1792, %v1792
    %v1964 = vpack.c.bf16 %v1793, %v1793
    %v1965 = vpack.c.bf16 %v1794, %v1794
    %v1966 = vpack.c.bf16 %v1795, %v1795
    %v1967 = vpack.c.bf16 %v1796, %v1796
    %v1968 = vpack.c.bf16 %v1797, %v1797
    %v1969 = vpack.c.bf16 %v1798, %v1798
    %v1970 = vpack.c.bf16 %v1799, %v1799
    %v1971 = vpack.c.bf16 %v1800, %v1800
    %v1972 = vpack.c.bf16 %v1801, %v1801
    %v1973 = vpack.c.bf16 %v1802, %v1802
    %v1974 = vpack.c.bf16 %v1803, %v1803
    %v1975 = vpack.c.bf16 %v1804, %v1804
    %v1976 = vpack.c.bf16 %v1805, %v1805
    %v1977 = vpack.c.bf16 %v1806, %v1806
    %v1978 = vpack.c.bf16 %v1807, %v1807
    %v1979 = vpack.c.bf16 %v1808, %v1808
    %v1980 = vpack.c.bf16 %v1809, %v1809
    %v1981 = vpack.c.bf16 %v1810, %v1810
    %v1982 = vpack.c.bf16 %v1811, %v1811
    %v1983 = vpack.c.bf16 %v1812, %v1812
    %v1984 = vpack.c.bf16 %v1813, %v1813
    %v1985 = vpack.c.bf16 %v1814, %v1814
    %v1986 = vpack.c.bf16 %v1815, %v1815
    %v1987 = vpack.c.bf16 %v1816, %v1816
    %v1988 = vpack.c.bf16 %v1817, %v1817
    %v1989 = vpack.c.bf16 %v1818, %v1818
    %v1990 = vpack.c.bf16 %v1819, %v1819
    %v1991 = vpack.c.bf16 %v1820, %v1820
    %v1992 = vpack.c.bf16 %v1821, %v1821
    %v1993 = vpack.c.bf16 %v1822, %v1822
    %v1994 = vpack.c.bf16 %v1823, %v1823
    %v1995 = vpack.c.bf16 %v1824, %v1824
    %v1996 = vpack.c.bf16 %v1825, %v1825
    %v1997 = vpack.c.bf16 %v1826, %v1826
    %v1998 = vpack.c.bf16 %v1827, %v1827
    %v1999 = vpack.c.bf16 %v1828, %v1828
    %v2000 = vpack.c.bf16 %v1829, %v1829
    %v2001 = vpack.c.bf16 %v1830, %v1830
    %v2002 = vpack.c.bf16 %v1831, %v1831
    %v2003 = vpack.c.bf16 %v1832, %v1832
    %v2004 = vpack.c.bf16 %v1833, %v1833
    %v2005 = vpack.c.bf16 %v1834, %v1834
    %v2006 = vpack.c.bf16 %v1835, %v1835
    %v2007 = vpack.c.bf16 %v1836, %v1836
    %v2008 = vpack.c.bf16 %v1837, %v1837
    %v2009 = vpack.c.bf16 %v1838, %v1838
    %v2010 = vpack.c.bf16 %v1839, %v1839
    %v2011 = vpack.c.bf16 %v1840, %v1840
    %v2012 = vpack.c.bf16 %v1841, %v1841
    %v2013 = vpack.c.bf16 %v1842, %v1842
    %v2014 = vpack.c.bf16 %v1843, %v1843
    %v2015 = vpack.c.bf16 %v1844, %v1844
    %v2016 = vpack.c.bf16 %v1845, %v1845
    %v2017 = vpack.c.bf16 %v1846, %v1846
    %v2018 = vpack.c.bf16 %v1847, %v1847
    %v2019 = vpack.c.bf16 %v1848, %v1848
    %v2020 = vpack.c.bf16 %v1849, %v1849
    %v2021 = vpack.c.bf16 %v1850, %v1850
    %v2022 = vpack.c.bf16 %v1851, %v1851
    %v2023 = vpack.c.bf16 %v1852, %v1852
    %v2024 = vpack.c.bf16 %v1853, %v1853
    %v2025 = vpack.c.bf16 %v1854, %v1854
    %v2026 = vpack.c.bf16 %v1855, %v1855
    %v2027 = vpack.c.bf16 %v1856, %v1856
    %v2028 = vpack.c.bf16 %v1857, %v1857
    %v2029 = vpack.c.bf16 %v1858, %v1858
    %v2030 = vpack.c.bf16 %v1859, %v1859
    %v2031 = vpack.c.bf16 %v1860, %v1860
    %v2032 = vpack.c.bf16 %v1861, %v1861
    %v2033 = vpack.c.bf16 %v1862, %v1862
    %v2034 = vpack.c.bf16 %v1863, %v1863
    %v2035 = vpack.c.bf16 %v1864, %v1864
    %v2036 = vpack.c.bf16 %v1865, %v1865
    %v2037 = vpack.c.bf16 %v1866, %v1866
    %v2038 = vpack.c.bf16 %v1867, %v1867
    %v2039 = vpack.c.bf16 %v1868, %v1868
    %v2040 = vpack.c.bf16 %v1869, %v1869
    %v2041 = vpack.c.bf16 %v1870, %v1870
    %v2042 = vpack.c.bf16 %v1871, %v1871
    %v2043 = vpack.c.bf16 %v1872, %v1872
    %v2044 = vpack.c.bf16 %v1873, %v1873
    %v2045 = vpack.c.bf16 %v1874, %v1874
    %v2046 = vpack.c.bf16 %v1875, %v1875
    %v2047 = vpack.c.bf16 %v1876, %v1876
    %v2048 = vpack.c.bf16 %v1877, %v1877
    %v2049 = vpack.c.bf16 %v1878, %v1878
    %v2050 = vpack.c.bf16 %v1879, %v1879
    %v2051 = vpack.c.bf16 %v1880, %v1880
    %v2052 = vpack.c.bf16 %v1881, %v1881
    %v2053 = vpack.c.bf16 %v1882, %v1882
    %v2054 = vpack.c.bf16 %v1883, %v1883
    %v2055 = vpack.c.bf16 %v1884, %v1884
    %v2056 = vpack.c.bf16 %v1885, %v1885
    %v2057 = vpack.c.bf16 %v1886, %v1886
    %v2058 = vpack.c.bf16 %v1887, %v1887
    %v2059 = vpack.c.bf16 %v1888, %v1888
    %v2060 = vpack.c.bf16 %v1889, %v1889
    %v2061 = vpack.c.bf16 %v1890, %v1890
    %v2062 = vpack.c.bf16 %v1891, %v1891
    %v2063 = vpack.c.bf16 %v1892, %v1892
    %v2064 = vpack.c.bf16 %v1893, %v1893
    %v2065 = vpack.c.bf16 %v1894, %v1894
    %v2066 = vpack.c.bf16 %v1895, %v1895
    %v2067 = vpack.c.bf16 %v1896, %v1896
    %v2068 = vpack.c.bf16 %v1897, %v1897
    %v2069 = vpack.c.bf16 %v1898, %v1898
    %v2070 = vpack.c.bf16 %v1899, %v1899
    %v2071 = vpack.c.bf16 %v1900, %v1900
    %v2072 = vpack.c.bf16 %v1901, %v1901
    %v2073 = vpack.c.bf16 %v1902, %v1902
    %v2074 = vpack.c.bf16 %v1903, %v1903
    %v2075 = vpack.c.bf16 %v1904, %v1904
    %v2076 = vpack.c.bf16 %v1905, %v1905
    %v2077 = vpack.c.bf16 %v1906, %v1906
    %v2078 = vpack.c.bf16 %v1907, %v1907
    %v2079 = vpack.c.bf16 %v1908, %v1908
    %v2080 = vpack.c.bf16 %v1909, %v1909
    %v2081 = vpack.c.bf16 %v1910, %v1910
    %v2082 = vpack.c.bf16 %v1911, %v1911
    %v2083 = vpack.c.bf16 %v1912, %v1912
    %v2084 = vpack.c.bf16 %v1913, %v1913
    %v2085 = vpack.c.bf16 %v1914, %v1914
    %v2086 = vpack.c.bf16 %v1915, %v1915
    %v2087 = vpack.c.bf16 %v1916, %v1916
    %v2088 = vpack.c.bf16 %v1917, %v1917
    %v2089 = vpack.c.bf16 %v1918, %v1918
    %v2090 = vpack.c.bf16 %v1919, %v1919
    %v2091 = vpack.c.bf16 %v1920, %v1920
    %v2092 = vpack.c.bf16 %v1921, %v1921
    %v2093 = vpack.c.bf16 %v1922, %v1922
    %v2094 = vpack.c.bf16 %v1923, %v1923
    %v2095 = vpack.c.bf16 %v1924, %v1924
    %v2096 = vpack.c.bf16 %v1925, %v1925
    %v2097 = vpack.c.bf16 %v1926, %v1926
    %v2098 = vpack.c.bf16 %v1927, %v1927
    %v2099 = vpack.c.bf16 %v1928, %v1928
    %v2100 = vpack.c.bf16 %v1929, %v1929
    %v2101 = vpack.c.bf16 %v1930, %v1930
    %v2102 = vpack.c.bf16 %v1931, %v1931
    %v2103 = vpack.c.bf16 %v1932, %v1932
    %v2104 = vpack.c.bf16 %v1933, %v1933
    %v2105 = vpack.c.bf16 %v1934, %v1934
    %v2106 = vpack.c.bf16 %v1935, %v1935
    %v2107 = vpack.c.bf16 %v1936, %v1936
    %v2108 = vpack.c.bf16 %v1937, %v1937
    %v2109 = vpack.c.bf16 %v1938, %v1938
    %v2110 = vpack.c.bf16 %v1939, %v1939
    %v2111 = vpack.c.bf16 %v1940, %v1940
    %v2112 = vld [vmem:[#allocation12] sm:$0xff]
    %v2113 = vld [vmem:[#allocation12 + $0x8] sm:$0xff]
    %v2114 = vld [vmem:[#allocation12 + $0x10] sm:$0xff]
    %v2115 = vld [vmem:[#allocation12 + $0x18] sm:$0xff]
    %v2116 = vld [vmem:[#allocation12 + $0x20] sm:$0xff]
    %v2117 = vld [vmem:[#allocation12 + $0x28] sm:$0xff]
    %v2118 = vld [vmem:[#allocation12 + $0x30] sm:$0xff]
    %v2119 = vld [vmem:[#allocation12 + $0x38] sm:$0xff]
    %v2120 = vld [vmem:[#allocation12 + $0x40] sm:$0xff]
    %v2121 = vld [vmem:[#allocation12 + $0x48] sm:$0xff]
    %v2122 = vld [vmem:[#allocation12 + $0x50] sm:$0xff]
    %v2123 = vld [vmem:[#allocation12 + $0x58] sm:$0xff]
    %v2124 = vld [vmem:[#allocation12 + $0x60] sm:$0xff]
    %v2125 = vld [vmem:[#allocation12 + $0x68] sm:$0xff]
    %v2126 = vld [vmem:[#allocation12 + $0x70] sm:$0xff]
    %v2127 = vld [vmem:[#allocation12 + $0x78] sm:$0xff]
    %v2128 = vld [vmem:[#allocation12 + $0x80] sm:$0xff]
    %v2129 = vld [vmem:[#allocation12 + $0x88] sm:$0xff]
    %v2130 = vld [vmem:[#allocation12 + $0x90] sm:$0xff]
    %v2131 = vld [vmem:[#allocation12 + $0x98] sm:$0xff]
    %v2132 = vld [vmem:[#allocation12 + $0xa0] sm:$0xff]
    %v2133 = vld [vmem:[#allocation12 + $0xa8] sm:$0xff]
    %v2134 = vld [vmem:[#allocation12 + $0xb0] sm:$0xff]
    %v2135 = vld [vmem:[#allocation12 + $0xb8] sm:$0xff]
    %v2136 = vld [vmem:[#allocation12 + $0xc0] sm:$0xff]
    %v2137 = vld [vmem:[#allocation12 + $0xc8] sm:$0xff]
    %v2138 = vld [vmem:[#allocation12 + $0xd0] sm:$0xff]
    %v2139 = vld [vmem:[#allocation12 + $0xd8] sm:$0xff]
    %v2140 = vld [vmem:[#allocation12 + $0xe0] sm:$0xff]
    %v2141 = vld [vmem:[#allocation12 + $0xe8] sm:$0xff]
    %v2142 = vld [vmem:[#allocation12 + $0xf0] sm:$0xff]
    %v2143 = vld [vmem:[#allocation12 + $0xf8] sm:$0xff]
    %v2144 = vld [vmem:[#allocation12 + $0x100] sm:$0xff]
    %v2145 = vld [vmem:[#allocation12 + $0x108] sm:$0xff]
    %v2146 = vld [vmem:[#allocation12 + $0x110] sm:$0xff]
    %v2147 = vld [vmem:[#allocation12 + $0x118] sm:$0xff]
    %v2148 = vld [vmem:[#allocation12 + $0x120] sm:$0xff]
    %v2149 = vld [vmem:[#allocation12 + $0x128] sm:$0xff]
    %v2150 = vld [vmem:[#allocation12 + $0x130] sm:$0xff]
    %v2151 = vld [vmem:[#allocation12 + $0x138] sm:$0xff]
    %v2152 = vld [vmem:[#allocation12 + $0x140] sm:$0xff]
    %v2153 = vld [vmem:[#allocation12 + $0x148] sm:$0xff]
    %v2154 = vld [vmem:[#allocation12 + $0x150] sm:$0xff]
    %v2155 = vld [vmem:[#allocation12 + $0x158] sm:$0xff]
    %v2156 = vld [vmem:[#allocation12 + $0x160] sm:$0xff]
    %v2157 = vld [vmem:[#allocation12 + $0x168] sm:$0xff]
    %v2158 = vld [vmem:[#allocation12 + $0x170] sm:$0xff]
    %v2159 = vld [vmem:[#allocation12 + $0x178] sm:$0xff]
    %v2160 = vld [vmem:[#allocation12 + $0x180] sm:$0xff]
    %v2161 = vld [vmem:[#allocation12 + $0x188] sm:$0xff]
    %v2162 = vld [vmem:[#allocation12 + $0x190] sm:$0xff]
    %v2163 = vld [vmem:[#allocation12 + $0x198] sm:$0xff]
    %v2164 = vld [vmem:[#allocation12 + $0x1a0] sm:$0xff]
    %v2165 = vld [vmem:[#allocation12 + $0x1a8] sm:$0xff]
    %v2166 = vld [vmem:[#allocation12 + $0x1b0] sm:$0xff]
    %v2167 = vld [vmem:[#allocation12 + $0x1b8] sm:$0xff]
    %v2168 = vld [vmem:[#allocation12 + $0x1c0] sm:$0xff]
    %v2169 = vld [vmem:[#allocation12 + $0x1c8] sm:$0xff]
    %v2170 = vld [vmem:[#allocation12 + $0x1d0] sm:$0xff]
    %v2171 = vld [vmem:[#allocation12 + $0x1d8] sm:$0xff]
    %v2172 = vld [vmem:[#allocation12 + $0x1e0] sm:$0xff]
    %v2173 = vld [vmem:[#allocation12 + $0x1e8] sm:$0xff]
    %v2174 = vld [vmem:[#allocation12 + $0x1f0] sm:$0xff]
    %v2175 = vld [vmem:[#allocation12 + $0x1f8] sm:$0xff]
    %v2176 = vld [vmem:[#allocation12 + $0x200] sm:$0xff]
    %v2177 = vld [vmem:[#allocation12 + $0x208] sm:$0xff]
    %v2178 = vld [vmem:[#allocation12 + $0x210] sm:$0xff]
    %v2179 = vld [vmem:[#allocation12 + $0x218] sm:$0xff]
    %v2180 = vld [vmem:[#allocation12 + $0x220] sm:$0xff]
    %v2181 = vld [vmem:[#allocation12 + $0x228] sm:$0xff]
    %v2182 = vld [vmem:[#allocation12 + $0x230] sm:$0xff]
    %v2183 = vld [vmem:[#allocation12 + $0x238] sm:$0xff]
    %v2184 = vld [vmem:[#allocation12 + $0x240] sm:$0xff]
    %v2185 = vld [vmem:[#allocation12 + $0x248] sm:$0xff]
    %v2186 = vld [vmem:[#allocation12 + $0x250] sm:$0xff]
    %v2187 = vld [vmem:[#allocation12 + $0x258] sm:$0xff]
    %v2188 = vld [vmem:[#allocation12 + $0x260] sm:$0xff]
    %v2189 = vld [vmem:[#allocation12 + $0x268] sm:$0xff]
    %v2190 = vld [vmem:[#allocation12 + $0x270] sm:$0xff]
    %v2191 = vld [vmem:[#allocation12 + $0x278] sm:$0xff]
    %v2192 = vld [vmem:[#allocation12 + $0x280] sm:$0xff]
    %v2193 = vld [vmem:[#allocation12 + $0x288] sm:$0xff]
    %v2194 = vld [vmem:[#allocation12 + $0x290] sm:$0xff]
    %v2195 = vld [vmem:[#allocation12 + $0x298] sm:$0xff]
    %v2196 = vld [vmem:[#allocation12 + $0x2a0] sm:$0xff]
    %v2197 = vld [vmem:[#allocation12 + $0x2a8] sm:$0xf]
    %v2198 = vld [vmem:[#allocation12 + $0x2ac] sm:$0xff]
    %v2199 = vld [vmem:[#allocation12 + $0x2b4] sm:$0xff]
    %v2200 = vld [vmem:[#allocation12 + $0x2bc] sm:$0xff]
    %v2201 = vld [vmem:[#allocation12 + $0x2c4] sm:$0xff]
    %v2202 = vld [vmem:[#allocation12 + $0x2cc] sm:$0xff]
    %v2203 = vld [vmem:[#allocation12 + $0x2d4] sm:$0xff]
    %v2204 = vld [vmem:[#allocation12 + $0x2dc] sm:$0xff]
    %v2205 = vld [vmem:[#allocation12 + $0x2e4] sm:$0xff]
    %v2206 = vld [vmem:[#allocation12 + $0x2ec] sm:$0xff]
    %v2207 = vld [vmem:[#allocation12 + $0x2f4] sm:$0xff]
    %v2208 = vld [vmem:[#allocation12 + $0x2fc] sm:$0xff]
    %v2209 = vld [vmem:[#allocation12 + $0x304] sm:$0xff]
    %v2210 = vld [vmem:[#allocation12 + $0x30c] sm:$0xff]
    %v2211 = vld [vmem:[#allocation12 + $0x314] sm:$0xff]
    %v2212 = vld [vmem:[#allocation12 + $0x31c] sm:$0xff]
    %v2213 = vld [vmem:[#allocation12 + $0x324] sm:$0xff]
    %v2214 = vld [vmem:[#allocation12 + $0x32c] sm:$0xff]
    %v2215 = vld [vmem:[#allocation12 + $0x334] sm:$0xff]
    %v2216 = vld [vmem:[#allocation12 + $0x33c] sm:$0xff]
    %v2217 = vld [vmem:[#allocation12 + $0x344] sm:$0xff]
    %v2218 = vld [vmem:[#allocation12 + $0x34c] sm:$0xff]
    %v2219 = vld [vmem:[#allocation12 + $0x354] sm:$0xff]
    %v2220 = vld [vmem:[#allocation12 + $0x35c] sm:$0xff]
    %v2221 = vld [vmem:[#allocation12 + $0x364] sm:$0xff]
    %v2222 = vld [vmem:[#allocation12 + $0x36c] sm:$0xff]
    %v2223 = vld [vmem:[#allocation12 + $0x374] sm:$0xff]
    %v2224 = vld [vmem:[#allocation12 + $0x37c] sm:$0xff]
    %v2225 = vld [vmem:[#allocation12 + $0x384] sm:$0xff]
    %v2226 = vld [vmem:[#allocation12 + $0x38c] sm:$0xff]
    %v2227 = vld [vmem:[#allocation12 + $0x394] sm:$0xff]
    %v2228 = vld [vmem:[#allocation12 + $0x39c] sm:$0xff]
    %v2229 = vld [vmem:[#allocation12 + $0x3a4] sm:$0xff]
    %v2230 = vld [vmem:[#allocation12 + $0x3ac] sm:$0xff]
    %v2231 = vld [vmem:[#allocation12 + $0x3b4] sm:$0xff]
    %v2232 = vld [vmem:[#allocation12 + $0x3bc] sm:$0xff]
    %v2233 = vld [vmem:[#allocation12 + $0x3c4] sm:$0xff]
    %v2234 = vld [vmem:[#allocation12 + $0x3cc] sm:$0xff]
    %v2235 = vld [vmem:[#allocation12 + $0x3d4] sm:$0xff]
    %v2236 = vld [vmem:[#allocation12 + $0x3dc] sm:$0xff]
    %v2237 = vld [vmem:[#allocation12 + $0x3e4] sm:$0xff]
    %v2238 = vld [vmem:[#allocation12 + $0x3ec] sm:$0xff]
    %v2239 = vld [vmem:[#allocation12 + $0x3f4] sm:$0xff]
    %v2240 = vld [vmem:[#allocation12 + $0x3fc] sm:$0xff]
    %v2241 = vld [vmem:[#allocation12 + $0x404] sm:$0xff]
    %v2242 = vld [vmem:[#allocation12 + $0x40c] sm:$0xff]
    %v2243 = vld [vmem:[#allocation12 + $0x414] sm:$0xff]
    %v2244 = vld [vmem:[#allocation12 + $0x41c] sm:$0xff]
    %v2245 = vld [vmem:[#allocation12 + $0x424] sm:$0xff]
    %v2246 = vld [vmem:[#allocation12 + $0x42c] sm:$0xff]
    %v2247 = vld [vmem:[#allocation12 + $0x434] sm:$0xff]
    %v2248 = vld [vmem:[#allocation12 + $0x43c] sm:$0xff]
    %v2249 = vld [vmem:[#allocation12 + $0x444] sm:$0xff]
    %v2250 = vld [vmem:[#allocation12 + $0x44c] sm:$0xff]
    %v2251 = vld [vmem:[#allocation12 + $0x454] sm:$0xff]
    %v2252 = vld [vmem:[#allocation12 + $0x45c] sm:$0xff]
    %v2253 = vld [vmem:[#allocation12 + $0x464] sm:$0xff]
    %v2254 = vld [vmem:[#allocation12 + $0x46c] sm:$0xff]
    %v2255 = vld [vmem:[#allocation12 + $0x474] sm:$0xff]
    %v2256 = vld [vmem:[#allocation12 + $0x47c] sm:$0xff]
    %v2257 = vld [vmem:[#allocation12 + $0x484] sm:$0xff]
    %v2258 = vld [vmem:[#allocation12 + $0x48c] sm:$0xff]
    %v2259 = vld [vmem:[#allocation12 + $0x494] sm:$0xff]
    %v2260 = vld [vmem:[#allocation12 + $0x49c] sm:$0xff]
    %v2261 = vld [vmem:[#allocation12 + $0x4a4] sm:$0xff]
    %v2262 = vld [vmem:[#allocation12 + $0x4ac] sm:$0xff]
    %v2263 = vld [vmem:[#allocation12 + $0x4b4] sm:$0xff]
    %v2264 = vld [vmem:[#allocation12 + $0x4bc] sm:$0xff]
    %v2265 = vld [vmem:[#allocation12 + $0x4c4] sm:$0xff]
    %v2266 = vld [vmem:[#allocation12 + $0x4cc] sm:$0xff]
    %v2267 = vld [vmem:[#allocation12 + $0x4d4] sm:$0xff]
    %v2268 = vld [vmem:[#allocation12 + $0x4dc] sm:$0xff]
    %v2269 = vld [vmem:[#allocation12 + $0x4e4] sm:$0xff]
    %v2270 = vld [vmem:[#allocation12 + $0x4ec] sm:$0xff]
    %v2271 = vld [vmem:[#allocation12 + $0x4f4] sm:$0xff]
    %v2272 = vld [vmem:[#allocation12 + $0x4fc] sm:$0xff]
    %v2273 = vld [vmem:[#allocation12 + $0x504] sm:$0xff]
    %v2274 = vld [vmem:[#allocation12 + $0x50c] sm:$0xff]
    %v2275 = vld [vmem:[#allocation12 + $0x514] sm:$0xff]
    %v2276 = vld [vmem:[#allocation12 + $0x51c] sm:$0xff]
    %v2277 = vld [vmem:[#allocation12 + $0x524] sm:$0xff]
    %v2278 = vld [vmem:[#allocation12 + $0x52c] sm:$0xff]
    %v2279 = vld [vmem:[#allocation12 + $0x534] sm:$0xff]
    %v2280 = vld [vmem:[#allocation12 + $0x53c] sm:$0xff]
    %v2281 = vld [vmem:[#allocation12 + $0x544] sm:$0xff]
    %v2282 = vld [vmem:[#allocation12 + $0x54c] sm:$0xff]
    %v2283 = vld [vmem:[#allocation12 + $0x554] sm:$0xf]
    %v2456 = vunpack.c.l.b16 %v2112
    %v2457 = vunpack.c.h.b16 %v2112
    %v2458 = vunpack.c.l.b16 %v2113
    %v2459 = vunpack.c.h.b16 %v2113
    %v2460 = vunpack.c.l.b16 %v2114
    %v2461 = vunpack.c.h.b16 %v2114
    %v2462 = vunpack.c.l.b16 %v2115
    %v2463 = vunpack.c.h.b16 %v2115
    %v2464 = vunpack.c.l.b16 %v2116
    %v2465 = vunpack.c.h.b16 %v2116
    %v2466 = vunpack.c.l.b16 %v2117
    %v2467 = vunpack.c.h.b16 %v2117
    %v2468 = vunpack.c.l.b16 %v2118
    %v2469 = vunpack.c.h.b16 %v2118
    %v2470 = vunpack.c.l.b16 %v2119
    %v2471 = vunpack.c.h.b16 %v2119
    %v2472 = vunpack.c.l.b16 %v2120
    %v2473 = vunpack.c.h.b16 %v2120
    %v2474 = vunpack.c.l.b16 %v2121
    %v2475 = vunpack.c.h.b16 %v2121
    %v2476 = vunpack.c.l.b16 %v2122
    %v2477 = vunpack.c.h.b16 %v2122
    %v2478 = vunpack.c.l.b16 %v2123
    %v2479 = vunpack.c.h.b16 %v2123
    %v2480 = vunpack.c.l.b16 %v2124
    %v2481 = vunpack.c.h.b16 %v2124
    %v2482 = vunpack.c.l.b16 %v2125
    %v2483 = vunpack.c.h.b16 %v2125
    %v2484 = vunpack.c.l.b16 %v2126
    %v2485 = vunpack.c.h.b16 %v2126
    %v2486 = vunpack.c.l.b16 %v2127
    %v2487 = vunpack.c.h.b16 %v2127
    %v2488 = vunpack.c.l.b16 %v2128
    %v2489 = vunpack.c.h.b16 %v2128
    %v2490 = vunpack.c.l.b16 %v2129
    %v2491 = vunpack.c.h.b16 %v2129
    %v2492 = vunpack.c.l.b16 %v2130
    %v2493 = vunpack.c.h.b16 %v2130
    %v2494 = vunpack.c.l.b16 %v2131
    %v2495 = vunpack.c.h.b16 %v2131
    %v2496 = vunpack.c.l.b16 %v2132
    %v2497 = vunpack.c.h.b16 %v2132
    %v2498 = vunpack.c.l.b16 %v2133
    %v2499 = vunpack.c.h.b16 %v2133
    %v2500 = vunpack.c.l.b16 %v2134
    %v2501 = vunpack.c.h.b16 %v2134
    %v2502 = vunpack.c.l.b16 %v2135
    %v2503 = vunpack.c.h.b16 %v2135
    %v2504 = vunpack.c.l.b16 %v2136
    %v2505 = vunpack.c.h.b16 %v2136
    %v2506 = vunpack.c.l.b16 %v2137
    %v2507 = vunpack.c.h.b16 %v2137
    %v2508 = vunpack.c.l.b16 %v2138
    %v2509 = vunpack.c.h.b16 %v2138
    %v2510 = vunpack.c.l.b16 %v2139
    %v2511 = vunpack.c.h.b16 %v2139
    %v2512 = vunpack.c.l.b16 %v2140
    %v2513 = vunpack.c.h.b16 %v2140
    %v2514 = vunpack.c.l.b16 %v2141
    %v2515 = vunpack.c.h.b16 %v2141
    %v2516 = vunpack.c.l.b16 %v2142
    %v2517 = vunpack.c.h.b16 %v2142
    %v2518 = vunpack.c.l.b16 %v2143
    %v2519 = vunpack.c.h.b16 %v2143
    %v2520 = vunpack.c.l.b16 %v2144
    %v2521 = vunpack.c.h.b16 %v2144
    %v2522 = vunpack.c.l.b16 %v2145
    %v2523 = vunpack.c.h.b16 %v2145
    %v2524 = vunpack.c.l.b16 %v2146
    %v2525 = vunpack.c.h.b16 %v2146
    %v2526 = vunpack.c.l.b16 %v2147
    %v2527 = vunpack.c.h.b16 %v2147
    %v2528 = vunpack.c.l.b16 %v2148
    %v2529 = vunpack.c.h.b16 %v2148
    %v2530 = vunpack.c.l.b16 %v2149
    %v2531 = vunpack.c.h.b16 %v2149
    %v2532 = vunpack.c.l.b16 %v2150
    %v2533 = vunpack.c.h.b16 %v2150
    %v2534 = vunpack.c.l.b16 %v2151
    %v2535 = vunpack.c.h.b16 %v2151
    %v2536 = vunpack.c.l.b16 %v2152
    %v2537 = vunpack.c.h.b16 %v2152
    %v2538 = vunpack.c.l.b16 %v2153
    %v2539 = vunpack.c.h.b16 %v2153
    %v2540 = vunpack.c.l.b16 %v2154
    %v2541 = vunpack.c.h.b16 %v2154
    %v2542 = vunpack.c.l.b16 %v2155
    %v2543 = vunpack.c.h.b16 %v2155
    %v2544 = vunpack.c.l.b16 %v2156
    %v2545 = vunpack.c.h.b16 %v2156
    %v2546 = vunpack.c.l.b16 %v2157
    %v2547 = vunpack.c.h.b16 %v2157
    %v2548 = vunpack.c.l.b16 %v2158
    %v2549 = vunpack.c.h.b16 %v2158
    %v2550 = vunpack.c.l.b16 %v2159
    %v2551 = vunpack.c.h.b16 %v2159
    %v2552 = vunpack.c.l.b16 %v2160
    %v2553 = vunpack.c.h.b16 %v2160
    %v2554 = vunpack.c.l.b16 %v2161
    %v2555 = vunpack.c.h.b16 %v2161
    %v2556 = vunpack.c.l.b16 %v2162
    %v2557 = vunpack.c.h.b16 %v2162
    %v2558 = vunpack.c.l.b16 %v2163
    %v2559 = vunpack.c.h.b16 %v2163
    %v2560 = vunpack.c.l.b16 %v2164
    %v2561 = vunpack.c.h.b16 %v2164
    %v2562 = vunpack.c.l.b16 %v2165
    %v2563 = vunpack.c.h.b16 %v2165
    %v2564 = vunpack.c.l.b16 %v2166
    %v2565 = vunpack.c.h.b16 %v2166
    %v2566 = vunpack.c.l.b16 %v2167
    %v2567 = vunpack.c.h.b16 %v2167
    %v2568 = vunpack.c.l.b16 %v2168
    %v2569 = vunpack.c.h.b16 %v2168
    %v2570 = vunpack.c.l.b16 %v2169
    %v2571 = vunpack.c.h.b16 %v2169
    %v2572 = vunpack.c.l.b16 %v2170
    %v2573 = vunpack.c.h.b16 %v2170
    %v2574 = vunpack.c.l.b16 %v2171
    %v2575 = vunpack.c.h.b16 %v2171
    %v2576 = vunpack.c.l.b16 %v2172
    %v2577 = vunpack.c.h.b16 %v2172
    %v2578 = vunpack.c.l.b16 %v2173
    %v2579 = vunpack.c.h.b16 %v2173
    %v2580 = vunpack.c.l.b16 %v2174
    %v2581 = vunpack.c.h.b16 %v2174
    %v2582 = vunpack.c.l.b16 %v2175
    %v2583 = vunpack.c.h.b16 %v2175
    %v2584 = vunpack.c.l.b16 %v2176
    %v2585 = vunpack.c.h.b16 %v2176
    %v2586 = vunpack.c.l.b16 %v2177
    %v2587 = vunpack.c.h.b16 %v2177
    %v2588 = vunpack.c.l.b16 %v2178
    %v2589 = vunpack.c.h.b16 %v2178
    %v2590 = vunpack.c.l.b16 %v2179
    %v2591 = vunpack.c.h.b16 %v2179
    %v2592 = vunpack.c.l.b16 %v2180
    %v2593 = vunpack.c.h.b16 %v2180
    %v2594 = vunpack.c.l.b16 %v2181
    %v2595 = vunpack.c.h.b16 %v2181
    %v2596 = vunpack.c.l.b16 %v2182
    %v2597 = vunpack.c.h.b16 %v2182
    %v2598 = vunpack.c.l.b16 %v2183
    %v2599 = vunpack.c.h.b16 %v2183
    %v2600 = vunpack.c.l.b16 %v2184
    %v2601 = vunpack.c.h.b16 %v2184
    %v2602 = vunpack.c.l.b16 %v2185
    %v2603 = vunpack.c.h.b16 %v2185
    %v2604 = vunpack.c.l.b16 %v2186
    %v2605 = vunpack.c.h.b16 %v2186
    %v2606 = vunpack.c.l.b16 %v2187
    %v2607 = vunpack.c.h.b16 %v2187
    %v2608 = vunpack.c.l.b16 %v2188
    %v2609 = vunpack.c.h.b16 %v2188
    %v2610 = vunpack.c.l.b16 %v2189
    %v2611 = vunpack.c.h.b16 %v2189
    %v2612 = vunpack.c.l.b16 %v2190
    %v2613 = vunpack.c.h.b16 %v2190
    %v2614 = vunpack.c.l.b16 %v2191
    %v2615 = vunpack.c.h.b16 %v2191
    %v2616 = vunpack.c.l.b16 %v2192
    %v2617 = vunpack.c.h.b16 %v2192
    %v2618 = vunpack.c.l.b16 %v2193
    %v2619 = vunpack.c.h.b16 %v2193
    %v2620 = vunpack.c.l.b16 %v2194
    %v2621 = vunpack.c.h.b16 %v2194
    %v2622 = vunpack.c.l.b16 %v2195
    %v2623 = vunpack.c.h.b16 %v2195
    %v2624 = vunpack.c.l.b16 %v2196
    %v2625 = vunpack.c.h.b16 %v2196
    %v2626 = vunpack.c.l.b16 %v2197
    %v2627 = vunpack.c.l.b16 %v2198
    %v2628 = vunpack.c.h.b16 %v2198
    %v2629 = vunpack.c.l.b16 %v2199
    %v2630 = vunpack.c.h.b16 %v2199
    %v2631 = vunpack.c.l.b16 %v2200
    %v2632 = vunpack.c.h.b16 %v2200
    %v2633 = vunpack.c.l.b16 %v2201
    %v2634 = vunpack.c.h.b16 %v2201
    %v2635 = vunpack.c.l.b16 %v2202
    %v2636 = vunpack.c.h.b16 %v2202
    %v2637 = vunpack.c.l.b16 %v2203
    %v2638 = vunpack.c.h.b16 %v2203
    %v2639 = vunpack.c.l.b16 %v2204
    %v2640 = vunpack.c.h.b16 %v2204
    %v2641 = vunpack.c.l.b16 %v2205
    %v2642 = vunpack.c.h.b16 %v2205
    %v2643 = vunpack.c.l.b16 %v2206
    %v2644 = vunpack.c.h.b16 %v2206
    %v2645 = vunpack.c.l.b16 %v2207
    %v2646 = vunpack.c.h.b16 %v2207
    %v2647 = vunpack.c.l.b16 %v2208
    %v2648 = vunpack.c.h.b16 %v2208
    %v2649 = vunpack.c.l.b16 %v2209
    %v2650 = vunpack.c.h.b16 %v2209
    %v2651 = vunpack.c.l.b16 %v2210
    %v2652 = vunpack.c.h.b16 %v2210
    %v2653 = vunpack.c.l.b16 %v2211
    %v2654 = vunpack.c.h.b16 %v2211
    %v2655 = vunpack.c.l.b16 %v2212
    %v2656 = vunpack.c.h.b16 %v2212
    %v2657 = vunpack.c.l.b16 %v2213
    %v2658 = vunpack.c.h.b16 %v2213
    %v2659 = vunpack.c.l.b16 %v2214
    %v2660 = vunpack.c.h.b16 %v2214
    %v2661 = vunpack.c.l.b16 %v2215
    %v2662 = vunpack.c.h.b16 %v2215
    %v2663 = vunpack.c.l.b16 %v2216
    %v2664 = vunpack.c.h.b16 %v2216
    %v2665 = vunpack.c.l.b16 %v2217
    %v2666 = vunpack.c.h.b16 %v2217
    %v2667 = vunpack.c.l.b16 %v2218
    %v2668 = vunpack.c.h.b16 %v2218
    %v2669 = vunpack.c.l.b16 %v2219
    %v2670 = vunpack.c.h.b16 %v2219
    %v2671 = vunpack.c.l.b16 %v2220
    %v2672 = vunpack.c.h.b16 %v2220
    %v2673 = vunpack.c.l.b16 %v2221
    %v2674 = vunpack.c.h.b16 %v2221
    %v2675 = vunpack.c.l.b16 %v2222
    %v2676 = vunpack.c.h.b16 %v2222
    %v2677 = vunpack.c.l.b16 %v2223
    %v2678 = vunpack.c.h.b16 %v2223
    %v2679 = vunpack.c.l.b16 %v2224
    %v2680 = vunpack.c.h.b16 %v2224
    %v2681 = vunpack.c.l.b16 %v2225
    %v2682 = vunpack.c.h.b16 %v2225
    %v2683 = vunpack.c.l.b16 %v2226
    %v2684 = vunpack.c.h.b16 %v2226
    %v2685 = vunpack.c.l.b16 %v2227
    %v2686 = vunpack.c.h.b16 %v2227
    %v2687 = vunpack.c.l.b16 %v2228
    %v2688 = vunpack.c.h.b16 %v2228
    %v2689 = vunpack.c.l.b16 %v2229
    %v2690 = vunpack.c.h.b16 %v2229
    %v2691 = vunpack.c.l.b16 %v2230
    %v2692 = vunpack.c.h.b16 %v2230
    %v2693 = vunpack.c.l.b16 %v2231
    %v2694 = vunpack.c.h.b16 %v2231
    %v2695 = vunpack.c.l.b16 %v2232
    %v2696 = vunpack.c.h.b16 %v2232
    %v2697 = vunpack.c.l.b16 %v2233
    %v2698 = vunpack.c.h.b16 %v2233
    %v2699 = vunpack.c.l.b16 %v2234
    %v2700 = vunpack.c.h.b16 %v2234
    %v2701 = vunpack.c.l.b16 %v2235
    %v2702 = vunpack.c.h.b16 %v2235
    %v2703 = vunpack.c.l.b16 %v2236
    %v2704 = vunpack.c.h.b16 %v2236
    %v2705 = vunpack.c.l.b16 %v2237
    %v2706 = vunpack.c.h.b16 %v2237
    %v2707 = vunpack.c.l.b16 %v2238
    %v2708 = vunpack.c.h.b16 %v2238
    %v2709 = vunpack.c.l.b16 %v2239
    %v2710 = vunpack.c.h.b16 %v2239
    %v2711 = vunpack.c.l.b16 %v2240
    %v2712 = vunpack.c.h.b16 %v2240
    %v2713 = vunpack.c.l.b16 %v2241
    %v2714 = vunpack.c.h.b16 %v2241
    %v2715 = vunpack.c.l.b16 %v2242
    %v2716 = vunpack.c.h.b16 %v2242
    %v2717 = vunpack.c.l.b16 %v2243
    %v2718 = vunpack.c.h.b16 %v2243
    %v2719 = vunpack.c.l.b16 %v2244
    %v2720 = vunpack.c.h.b16 %v2244
    %v2721 = vunpack.c.l.b16 %v2245
    %v2722 = vunpack.c.h.b16 %v2245
    %v2723 = vunpack.c.l.b16 %v2246
    %v2724 = vunpack.c.h.b16 %v2246
    %v2725 = vunpack.c.l.b16 %v2247
    %v2726 = vunpack.c.h.b16 %v2247
    %v2727 = vunpack.c.l.b16 %v2248
    %v2728 = vunpack.c.h.b16 %v2248
    %v2729 = vunpack.c.l.b16 %v2249
    %v2730 = vunpack.c.h.b16 %v2249
    %v2731 = vunpack.c.l.b16 %v2250
    %v2732 = vunpack.c.h.b16 %v2250
    %v2733 = vunpack.c.l.b16 %v2251
    %v2734 = vunpack.c.h.b16 %v2251
    %v2735 = vunpack.c.l.b16 %v2252
    %v2736 = vunpack.c.h.b16 %v2252
    %v2737 = vunpack.c.l.b16 %v2253
    %v2738 = vunpack.c.h.b16 %v2253
    %v2739 = vunpack.c.l.b16 %v2254
    %v2740 = vunpack.c.h.b16 %v2254
    %v2741 = vunpack.c.l.b16 %v2255
    %v2742 = vunpack.c.h.b16 %v2255
    %v2743 = vunpack.c.l.b16 %v2256
    %v2744 = vunpack.c.h.b16 %v2256
    %v2745 = vunpack.c.l.b16 %v2257
    %v2746 = vunpack.c.h.b16 %v2257
    %v2747 = vunpack.c.l.b16 %v2258
    %v2748 = vunpack.c.h.b16 %v2258
    %v2749 = vunpack.c.l.b16 %v2259
    %v2750 = vunpack.c.h.b16 %v2259
    %v2751 = vunpack.c.l.b16 %v2260
    %v2752 = vunpack.c.h.b16 %v2260
    %v2753 = vunpack.c.l.b16 %v2261
    %v2754 = vunpack.c.h.b16 %v2261
    %v2755 = vunpack.c.l.b16 %v2262
    %v2756 = vunpack.c.h.b16 %v2262
    %v2757 = vunpack.c.l.b16 %v2263
    %v2758 = vunpack.c.h.b16 %v2263
    %v2759 = vunpack.c.l.b16 %v2264
    %v2760 = vunpack.c.h.b16 %v2264
    %v2761 = vunpack.c.l.b16 %v2265
    %v2762 = vunpack.c.h.b16 %v2265
    %v2763 = vunpack.c.l.b16 %v2266
    %v2764 = vunpack.c.h.b16 %v2266
    %v2765 = vunpack.c.l.b16 %v2267
    %v2766 = vunpack.c.h.b16 %v2267
    %v2767 = vunpack.c.l.b16 %v2268
    %v2768 = vunpack.c.h.b16 %v2268
    %v2769 = vunpack.c.l.b16 %v2269
    %v2770 = vunpack.c.h.b16 %v2269
    %v2771 = vunpack.c.l.b16 %v2270
    %v2772 = vunpack.c.h.b16 %v2270
    %v2773 = vunpack.c.l.b16 %v2271
    %v2774 = vunpack.c.h.b16 %v2271
    %v2775 = vunpack.c.l.b16 %v2272
    %v2776 = vunpack.c.h.b16 %v2272
    %v2777 = vunpack.c.l.b16 %v2273
    %v2778 = vunpack.c.h.b16 %v2273
    %v2779 = vunpack.c.l.b16 %v2274
    %v2780 = vunpack.c.h.b16 %v2274
    %v2781 = vunpack.c.l.b16 %v2275
    %v2782 = vunpack.c.h.b16 %v2275
    %v2783 = vunpack.c.l.b16 %v2276
    %v2784 = vunpack.c.h.b16 %v2276
    %v2785 = vunpack.c.l.b16 %v2277
    %v2786 = vunpack.c.h.b16 %v2277
    %v2787 = vunpack.c.l.b16 %v2278
    %v2788 = vunpack.c.h.b16 %v2278
    %v2789 = vunpack.c.l.b16 %v2279
    %v2790 = vunpack.c.h.b16 %v2279
    %v2791 = vunpack.c.l.b16 %v2280
    %v2792 = vunpack.c.h.b16 %v2280
    %v2793 = vunpack.c.l.b16 %v2281
    %v2794 = vunpack.c.h.b16 %v2281
    %v2795 = vunpack.c.l.b16 %v2282
    %v2796 = vunpack.c.h.b16 %v2282
    %v2797 = vunpack.c.l.b16 %v2283
    %v2798 = vpack.c.b16 %v2627, %v2456
    %v2799 = vpack.c.b16 %v2628, %v2457
    %v2800 = vpack.c.b16 %v2629, %v2458
    %v2801 = vpack.c.b16 %v2630, %v2459
    %v2802 = vpack.c.b16 %v2631, %v2460
    %v2803 = vpack.c.b16 %v2632, %v2461
    %v2804 = vpack.c.b16 %v2633, %v2462
    %v2805 = vpack.c.b16 %v2634, %v2463
    %v2806 = vpack.c.b16 %v2635, %v2464
    %v2807 = vpack.c.b16 %v2636, %v2465
    %v2808 = vpack.c.b16 %v2637, %v2466
    %v2809 = vpack.c.b16 %v2638, %v2467
    %v2810 = vpack.c.b16 %v2639, %v2468
    %v2811 = vpack.c.b16 %v2640, %v2469
    %v2812 = vpack.c.b16 %v2641, %v2470
    %v2813 = vpack.c.b16 %v2642, %v2471
    %v2814 = vpack.c.b16 %v2643, %v2472
    %v2815 = vpack.c.b16 %v2644, %v2473
    %v2816 = vpack.c.b16 %v2645, %v2474
    %v2817 = vpack.c.b16 %v2646, %v2475
    %v2818 = vpack.c.b16 %v2647, %v2476
    %v2819 = vpack.c.b16 %v2648, %v2477
    %v2820 = vpack.c.b16 %v2649, %v2478
    %v2821 = vpack.c.b16 %v2650, %v2479
    %v2822 = vpack.c.b16 %v2651, %v2480
    %v2823 = vpack.c.b16 %v2652, %v2481
    %v2824 = vpack.c.b16 %v2653, %v2482
    %v2825 = vpack.c.b16 %v2654, %v2483
    %v2826 = vpack.c.b16 %v2655, %v2484
    %v2827 = vpack.c.b16 %v2656, %v2485
    %v2828 = vpack.c.b16 %v2657, %v2486
    %v2829 = vpack.c.b16 %v2658, %v2487
    %v2830 = vpack.c.b16 %v2659, %v2488
    %v2831 = vpack.c.b16 %v2660, %v2489
    %v2832 = vpack.c.b16 %v2661, %v2490
    %v2833 = vpack.c.b16 %v2662, %v2491
    %v2834 = vpack.c.b16 %v2663, %v2492
    %v2835 = vpack.c.b16 %v2664, %v2493
    %v2836 = vpack.c.b16 %v2665, %v2494
    %v2837 = vpack.c.b16 %v2666, %v2495
    %v2838 = vpack.c.b16 %v2667, %v2496
    %v2839 = vpack.c.b16 %v2668, %v2497
    %v2840 = vpack.c.b16 %v2669, %v2498
    %v2841 = vpack.c.b16 %v2670, %v2499
    %v2842 = vpack.c.b16 %v2671, %v2500
    %v2843 = vpack.c.b16 %v2672, %v2501
    %v2844 = vpack.c.b16 %v2673, %v2502
    %v2845 = vpack.c.b16 %v2674, %v2503
    %v2846 = vpack.c.b16 %v2675, %v2504
    %v2847 = vpack.c.b16 %v2676, %v2505
    %v2848 = vpack.c.b16 %v2677, %v2506
    %v2849 = vpack.c.b16 %v2678, %v2507
    %v2850 = vpack.c.b16 %v2679, %v2508
    %v2851 = vpack.c.b16 %v2680, %v2509
    %v2852 = vpack.c.b16 %v2681, %v2510
    %v2853 = vpack.c.b16 %v2682, %v2511
    %v2854 = vpack.c.b16 %v2683, %v2512
    %v2855 = vpack.c.b16 %v2684, %v2513
    %v2856 = vpack.c.b16 %v2685, %v2514
    %v2857 = vpack.c.b16 %v2686, %v2515
    %v2858 = vpack.c.b16 %v2687, %v2516
    %v2859 = vpack.c.b16 %v2688, %v2517
    %v2860 = vpack.c.b16 %v2689, %v2518
    %v2861 = vpack.c.b16 %v2690, %v2519
    %v2862 = vpack.c.b16 %v2691, %v2520
    %v2863 = vpack.c.b16 %v2692, %v2521
    %v2864 = vpack.c.b16 %v2693, %v2522
    %v2865 = vpack.c.b16 %v2694, %v2523
    %v2866 = vpack.c.b16 %v2695, %v2524
    %v2867 = vpack.c.b16 %v2696, %v2525
    %v2868 = vpack.c.b16 %v2697, %v2526
    %v2869 = vpack.c.b16 %v2698, %v2527
    %v2870 = vpack.c.b16 %v2699, %v2528
    %v2871 = vpack.c.b16 %v2700, %v2529
    %v2872 = vpack.c.b16 %v2701, %v2530
    %v2873 = vpack.c.b16 %v2702, %v2531
    %v2874 = vpack.c.b16 %v2703, %v2532
    %v2875 = vpack.c.b16 %v2704, %v2533
    %v2876 = vpack.c.b16 %v2705, %v2534
    %v2877 = vpack.c.b16 %v2706, %v2535
    %v2878 = vpack.c.b16 %v2707, %v2536
    %v2879 = vpack.c.b16 %v2708, %v2537
    %v2880 = vpack.c.b16 %v2709, %v2538
    %v2881 = vpack.c.b16 %v2710, %v2539
    %v2882 = vpack.c.b16 %v2711, %v2540
    %v2883 = vpack.c.b16 %v2712, %v2541
    %v2884 = vpack.c.b16 %v2713, %v2542
    %v2885 = vpack.c.b16 %v2714, %v2543
    %v2886 = vpack.c.b16 %v2715, %v2544
    %v2887 = vpack.c.b16 %v2716, %v2545
    %v2888 = vpack.c.b16 %v2717, %v2546
    %v2889 = vpack.c.b16 %v2718, %v2547
    %v2890 = vpack.c.b16 %v2719, %v2548
    %v2891 = vpack.c.b16 %v2720, %v2549
    %v2892 = vpack.c.b16 %v2721, %v2550
    %v2893 = vpack.c.b16 %v2722, %v2551
    %v2894 = vpack.c.b16 %v2723, %v2552
    %v2895 = vpack.c.b16 %v2724, %v2553
    %v2896 = vpack.c.b16 %v2725, %v2554
    %v2897 = vpack.c.b16 %v2726, %v2555
    %v2898 = vpack.c.b16 %v2727, %v2556
    %v2899 = vpack.c.b16 %v2728, %v2557
    %v2900 = vpack.c.b16 %v2729, %v2558
    %v2901 = vpack.c.b16 %v2730, %v2559
    %v2902 = vpack.c.b16 %v2731, %v2560
    %v2903 = vpack.c.b16 %v2732, %v2561
    %v2904 = vpack.c.b16 %v2733, %v2562
    %v2905 = vpack.c.b16 %v2734, %v2563
    %v2906 = vpack.c.b16 %v2735, %v2564
    %v2907 = vpack.c.b16 %v2736, %v2565
    %v2908 = vpack.c.b16 %v2737, %v2566
    %v2909 = vpack.c.b16 %v2738, %v2567
    %v2910 = vpack.c.b16 %v2739, %v2568
    %v2911 = vpack.c.b16 %v2740, %v2569
    %v2912 = vpack.c.b16 %v2741, %v2570
    %v2913 = vpack.c.b16 %v2742, %v2571
    %v2914 = vpack.c.b16 %v2743, %v2572
    %v2915 = vpack.c.b16 %v2744, %v2573
    %v2916 = vpack.c.b16 %v2745, %v2574
    %v2917 = vpack.c.b16 %v2746, %v2575
    %v2918 = vpack.c.b16 %v2747, %v2576
    %v2919 = vpack.c.b16 %v2748, %v2577
    %v2920 = vpack.c.b16 %v2749, %v2578
    %v2921 = vpack.c.b16 %v2750, %v2579
    %v2922 = vpack.c.b16 %v2751, %v2580
    %v2923 = vpack.c.b16 %v2752, %v2581
    %v2924 = vpack.c.b16 %v2753, %v2582
    %v2925 = vpack.c.b16 %v2754, %v2583
    %v2926 = vpack.c.b16 %v2755, %v2584
    %v2927 = vpack.c.b16 %v2756, %v2585
    %v2928 = vpack.c.b16 %v2757, %v2586
    %v2929 = vpack.c.b16 %v2758, %v2587
    %v2930 = vpack.c.b16 %v2759, %v2588
    %v2931 = vpack.c.b16 %v2760, %v2589
    %v2932 = vpack.c.b16 %v2761, %v2590
    %v2933 = vpack.c.b16 %v2762, %v2591
    %v2934 = vpack.c.b16 %v2763, %v2592
    %v2935 = vpack.c.b16 %v2764, %v2593
    %v2936 = vpack.c.b16 %v2765, %v2594
    %v2937 = vpack.c.b16 %v2766, %v2595
    %v2938 = vpack.c.b16 %v2767, %v2596
    %v2939 = vpack.c.b16 %v2768, %v2597
    %v2940 = vpack.c.b16 %v2769, %v2598
    %v2941 = vpack.c.b16 %v2770, %v2599
    %v2942 = vpack.c.b16 %v2771, %v2600
    %v2943 = vpack.c.b16 %v2772, %v2601
    %v2944 = vpack.c.b16 %v2773, %v2602
    %v2945 = vpack.c.b16 %v2774, %v2603
    %v2946 = vpack.c.b16 %v2775, %v2604
    %v2947 = vpack.c.b16 %v2776, %v2605
    %v2948 = vpack.c.b16 %v2777, %v2606
    %v2949 = vpack.c.b16 %v2778, %v2607
    %v2950 = vpack.c.b16 %v2779, %v2608
    %v2951 = vpack.c.b16 %v2780, %v2609
    %v2952 = vpack.c.b16 %v2781, %v2610
    %v2953 = vpack.c.b16 %v2782, %v2611
    %v2954 = vpack.c.b16 %v2783, %v2612
    %v2955 = vpack.c.b16 %v2784, %v2613
    %v2956 = vpack.c.b16 %v2785, %v2614
    %v2957 = vpack.c.b16 %v2786, %v2615
    %v2958 = vpack.c.b16 %v2787, %v2616
    %v2959 = vpack.c.b16 %v2788, %v2617
    %v2960 = vpack.c.b16 %v2789, %v2618
    %v2961 = vpack.c.b16 %v2790, %v2619
    %v2962 = vpack.c.b16 %v2791, %v2620
    %v2963 = vpack.c.b16 %v2792, %v2621
    %v2964 = vpack.c.b16 %v2793, %v2622
    %v2965 = vpack.c.b16 %v2794, %v2623
    %v2966 = vpack.c.b16 %v2795, %v2624
    %v2967 = vpack.c.b16 %v2796, %v2625
    %v2968 = vpack.c.b16 %v2797, %v2626
    %vm3139 = vcmask 662528
    %v3141 = vsel %vm3139, %v2111, 0
    %v3144 = vsel %vm3139, %v2968, 0
    %3146 = vmatprep.subr.bf16.mxu0 %v2799
    %3147 = vmatpush1.bf16.xpose.msra.mxu0 %v2798
    %3148 = vmatprep.subr.bf16.mxu0 0
    %3149 = vmatpush1.bf16.xpose.msra.mxu0 0
    %3150 = vmatprep.subr.bf16.mxu0 0
    %3151 = vmatpush1.bf16.xpose.msra.mxu0 0
    %3152 = vmatprep.subr.bf16.mxu0 0
    %3153 = vmatpush1.bf16.xpose.msra.mxu0 0
    %3154 = vmatprep.subr.bf16.mxu0 0
    %3155 = vmatpush1.bf16.xpose.msra.mxu0 0
    %3156 = vmatprep.subr.bf16.mxu0 0
    %3157 = vmatpush1.bf16.xpose.msra.mxu0 0
    %3158 = vmatprep.subr.bf16.mxu0 0
    %3159 = vmatpush1.bf16.xpose.msra.mxu0 0
    %3160 = vmatprep.subr.bf16.mxu0 0
    %3161 = vmatpush1.bf16.xpose.msra.mxu0 0
    %3162 = vmatprep.subr.bf16.mxu0 0
    %3163 = vmatpush1.bf16.xpose.msra.mxu0 0
    %3164 = vmatprep.subr.bf16.mxu0 0
    %3165 = vmatpush1.bf16.xpose.msra.mxu0 0
    %3166 = vmatprep.subr.bf16.mxu0 0
    %3167 = vmatpush1.bf16.xpose.msra.mxu0 0
    %3168 = vmatprep.subr.bf16.mxu0 0
    %3169 = vmatpush1.bf16.xpose.msra.mxu0 0
    %3170 = vmatprep.subr.bf16.mxu0 0
    %3171 = vmatpush1.bf16.xpose.msra.mxu0 0
    %3172 = vmatprep.subr.bf16.mxu0 0
    %3173 = vmatpush1.bf16.xpose.msra.mxu0 0
    %3174 = vmatprep.subr.bf16.mxu0 0
    %3175 = vmatpush1.bf16.xpose.msra.mxu0 0
    %3176 = vmatprep.subr.bf16.mxu0 0
    %3177 = vmatpush1.bf16.xpose.msra.mxu0 0
    %3178 = vmatprep.mubr.bf16.mxu0 %v1942
    %3179 = vmatmul.mubr.bf16.gmra.mrb[0].mxu0 %v1941
    %v3180 = vpop.f32.mrb[0].mxu0
    %v3181 = vadd.f32 0.0, %v3180
    %v3182 = vpop.f32.mrb[0].mxu0
    %v3183 = vpop.f32.mrb[0].mxu0
    %v3184 = vpop.f32.mrb[0].mxu0
    %3185 = vdwg.mxu0
    %3186 = vmatprep.subr.bf16.mxu0 %v2801
    %3187 = vmatpush1.bf16.xpose.msra.mxu0 %v2800
    %3188 = vmatprep.subr.bf16.mxu0 0
    %3189 = vmatpush1.bf16.xpose.msra.mxu0 0
    %3190 = vmatprep.subr.bf16.mxu0 0
    %3191 = vmatpush1.bf16.xpose.msra.mxu0 0
    %3192 = vmatprep.subr.bf16.mxu0 0
    %3193 = vmatpush1.bf16.xpose.msra.mxu0 0
    %3194 = vmatprep.subr.bf16.mxu0 0
    %3195 = vmatpush1.bf16.xpose.msra.mxu0 0
    %3196 = vmatprep.subr.bf16.mxu0 0
    %3197 = vmatpush1.bf16.xpose.msra.mxu0 0
    %3198 = vmatprep.subr.bf16.mxu0 0
    %3199 = vmatpush1.bf16.xpose.msra.mxu0 0
    %3200 = vmatprep.subr.bf16.mxu0 0
    %3201 = vmatpush1.bf16.xpose.msra.mxu0 0
    %3202 = vmatprep.subr.bf16.mxu0 0
    %3203 = vmatpush1.bf16.xpose.msra.mxu0 0
    %3204 = vmatprep.subr.bf16.mxu0 0
    %3205 = vmatpush1.bf16.xpose.msra.mxu0 0
    %3206 = vmatprep.subr.bf16.mxu0 0
    %3207 = vmatpush1.bf16.xpose.msra.mxu0 0
    %3208 = vmatprep.subr.bf16.mxu0 0
    %3209 = vmatpush1.bf16.xpose.msra.mxu0 0
    %3210 = vmatprep.subr.bf16.mxu0 0
    %3211 = vmatpush1.bf16.xpose.msra.mxu0 0
    %3212 = vmatprep.subr.bf16.mxu0 0
    %3213 = vmatpush1.bf16.xpose.msra.mxu0 0
    %3214 = vmatprep.subr.bf16.mxu0 0
    %3215 = vmatpush1.bf16.xpose.msra.mxu0 0
    %3216 = vmatprep.subr.bf16.mxu0 0
    %3217 = vmatpush1.bf16.xpose.msra.mxu0 0
    %3218 = vmatprep.mubr.bf16.mxu0 %v1944
    %3219 = vmatmul.mubr.bf16.gmra.mrb[0].mxu0 %v1943
    %v3220 = vpop.f32.mrb[0].mxu0
    %v3221 = vadd.f32 %v3181, %v3220
    %v3222 = vpop.f32.mrb[0].mxu0
    %v3223 = vpop.f32.mrb[0].mxu0
    %v3224 = vpop.f32.mrb[0].mxu0
    %3225 = vdwg.mxu0
    %3226 = vmatprep.subr.bf16.mxu0 %v2803
    %3227 = vmatpush1.bf16.xpose.msra.mxu0 %v2802
    %3228 = vmatprep.subr.bf16.mxu0 0
    %3229 = vmatpush1.bf16.xpose.msra.mxu0 0
    %3230 = vmatprep.subr.bf16.mxu0 0
    %3231 = vmatpush1.bf16.xpose.msra.mxu0 0
    %3232 = vmatprep.subr.bf16.mxu0 0
    %3233 = vmatpush1.bf16.xpose.msra.mxu0 0
    %3234 = vmatprep.subr.bf16.mxu0 0
    %3235 = vmatpush1.bf16.xpose.msra.mxu0 0
    %3236 = vmatprep.subr.bf16.mxu0 0
    %3237 = vmatpush1.bf16.xpose.msra.mxu0 0
    %3238 = vmatprep.subr.bf16.mxu0 0
    %3239 = vmatpush1.bf16.xpose.msra.mxu0 0
    %3240 = vmatprep.subr.bf16.mxu0 0
    %3241 = vmatpush1.bf16.xpose.msra.mxu0 0
    %3242 = vmatprep.subr.bf16.mxu0 0
    %3243 = vmatpush1.bf16.xpose.msra.mxu0 0
    %3244 = vmatprep.subr.bf16.mxu0 0
    %3245 = vmatpush1.bf16.xpose.msra.mxu0 0
    %3246 = vmatprep.subr.bf16.mxu0 0
    %3247 = vmatpush1.bf16.xpose.msra.mxu0 0
    %3248 = vmatprep.subr.bf16.mxu0 0
    %3249 = vmatpush1.bf16.xpose.msra.mxu0 0
    %3250 = vmatprep.subr.bf16.mxu0 0
    %3251 = vmatpush1.bf16.xpose.msra.mxu0 0
    %3252 = vmatprep.subr.bf16.mxu0 0
    %3253 = vmatpush1.bf16.xpose.msra.mxu0 0
    %3254 = vmatprep.subr.bf16.mxu0 0
    %3255 = vmatpush1.bf16.xpose.msra.mxu0 0
    %3256 = vmatprep.subr.bf16.mxu0 0
    %3257 = vmatpush1.bf16.xpose.msra.mxu0 0
    %3258 = vmatprep.mubr.bf16.mxu0 %v1946
    %3259 = vmatmul.mubr.bf16.gmra.mrb[0].mxu0 %v1945
    %v3260 = vpop.f32.mrb[0].mxu0
    %v3261 = vadd.f32 %v3221, %v3260
    %v3262 = vpop.f32.mrb[0].mxu0
    %v3263 = vpop.f32.mrb[0].mxu0
    %v3264 = vpop.f32.mrb[0].mxu0
    %3265 = vdwg.mxu0
    %3266 = vmatprep.subr.bf16.mxu0 %v2805
    %3267 = vmatpush1.bf16.xpose.msra.mxu0 %v2804
    %3268 = vmatprep.subr.bf16.mxu0 0
    %3269 = vmatpush1.bf16.xpose.msra.mxu0 0
    %3270 = vmatprep.subr.bf16.mxu0 0
    %3271 = vmatpush1.bf16.xpose.msra.mxu0 0
    %3272 = vmatprep.subr.bf16.mxu0 0
    %3273 = vmatpush1.bf16.xpose.msra.mxu0 0
    %3274 = vmatprep.subr.bf16.mxu0 0
    %3275 = vmatpush1.bf16.xpose.msra.mxu0 0
    %3276 = vmatprep.subr.bf16.mxu0 0
    %3277 = vmatpush1.bf16.xpose.msra.mxu0 0
    %3278 = vmatprep.subr.bf16.mxu0 0
    %3279 = vmatpush1.bf16.xpose.msra.mxu0 0
    %3280 = vmatprep.subr.bf16.mxu0 0
    %3281 = vmatpush1.bf16.xpose.msra.mxu0 0
    %3282 = vmatprep.subr.bf16.mxu0 0
    %3283 = vmatpush1.bf16.xpose.msra.mxu0 0
    %3284 = vmatprep.subr.bf16.mxu0 0
    %3285 = vmatpush1.bf16.xpose.msra.mxu0 0
    %3286 = vmatprep.subr.bf16.mxu0 0
    %3287 = vmatpush1.bf16.xpose.msra.mxu0 0
    %3288 = vmatprep.subr.bf16.mxu0 0
    %3289 = vmatpush1.bf16.xpose.msra.mxu0 0
    %3290 = vmatprep.subr.bf16.mxu0 0
    %3291 = vmatpush1.bf16.xpose.msra.mxu0 0
    %3292 = vmatprep.subr.bf16.mxu0 0
    %3293 = vmatpush1.bf16.xpose.msra.mxu0 0
    %3294 = vmatprep.subr.bf16.mxu0 0
    %3295 = vmatpush1.bf16.xpose.msra.mxu0 0
    %3296 = vmatprep.subr.bf16.mxu0 0
    %3297 = vmatpush1.bf16.xpose.msra.mxu0 0
    %3298 = vmatprep.mubr.bf16.mxu0 %v1948
    %3299 = vmatmul.mubr.bf16.gmra.mrb[0].mxu0 %v1947
    %v3300 = vpop.f32.mrb[0].mxu0
    %v3301 = vadd.f32 %v3261, %v3300
    %v3302 = vpop.f32.mrb[0].mxu0
    %v3303 = vpop.f32.mrb[0].mxu0
    %v3304 = vpop.f32.mrb[0].mxu0
    %3305 = vdwg.mxu0
    %3306 = vmatprep.subr.bf16.mxu0 %v2807
    %3307 = vmatpush1.bf16.xpose.msra.mxu0 %v2806
    %3308 = vmatprep.subr.bf16.mxu0 0
    %3309 = vmatpush1.bf16.xpose.msra.mxu0 0
    %3310 = vmatprep.subr.bf16.mxu0 0
    %3311 = vmatpush1.bf16.xpose.msra.mxu0 0
    %3312 = vmatprep.subr.bf16.mxu0 0
    %3313 = vmatpush1.bf16.xpose.msra.mxu0 0
    %3314 = vmatprep.subr.bf16.mxu0 0
    %3315 = vmatpush1.bf16.xpose.msra.mxu0 0
    %3316 = vmatprep.subr.bf16.mxu0 0
    %3317 = vmatpush1.bf16.xpose.msra.mxu0 0
    %3318 = vmatprep.subr.bf16.mxu0 0
    %3319 = vmatpush1.bf16.xpose.msra.mxu0 0
    %3320 = vmatprep.subr.bf16.mxu0 0
    %3321 = vmatpush1.bf16.xpose.msra.mxu0 0
    %3322 = vmatprep.subr.bf16.mxu0 0
    %3323 = vmatpush1.bf16.xpose.msra.mxu0 0
    %3324 = vmatprep.subr.bf16.mxu0 0
    %3325 = vmatpush1.bf16.xpose.msra.mxu0 0
    %3326 = vmatprep.subr.bf16.mxu0 0
    %3327 = vmatpush1.bf16.xpose.msra.mxu0 0
    %3328 = vmatprep.subr.bf16.mxu0 0
    %3329 = vmatpush1.bf16.xpose.msra.mxu0 0
    %3330 = vmatprep.subr.bf16.mxu0 0
    %3331 = vmatpush1.bf16.xpose.msra.mxu0 0
    %3332 = vmatprep.subr.bf16.mxu0 0
    %3333 = vmatpush1.bf16.xpose.msra.mxu0 0
    %3334 = vmatprep.subr.bf16.mxu0 0
    %3335 = vmatpush1.bf16.xpose.msra.mxu0 0
    %3336 = vmatprep.subr.bf16.mxu0 0
    %3337 = vmatpush1.bf16.xpose.msra.mxu0 0
    %3338 = vmatprep.mubr.bf16.mxu0 %v1950
    %3339 = vmatmul.mubr.bf16.gmra.mrb[0].mxu0 %v1949
    %v3340 = vpop.f32.mrb[0].mxu0
    %v3341 = vadd.f32 %v3301, %v3340
    %v3342 = vpop.f32.mrb[0].mxu0
    %v3343 = vpop.f32.mrb[0].mxu0
    %v3344 = vpop.f32.mrb[0].mxu0
    %3345 = vdwg.mxu0
    %3346 = vmatprep.subr.bf16.mxu0 %v2809
    %3347 = vmatpush1.bf16.xpose.msra.mxu0 %v2808
    %3348 = vmatprep.subr.bf16.mxu0 0
    %3349 = vmatpush1.bf16.xpose.msra.mxu0 0
    %3350 = vmatprep.subr.bf16.mxu0 0
    %3351 = vmatpush1.bf16.xpose.msra.mxu0 0
    %3352 = vmatprep.subr.bf16.mxu0 0
    %3353 = vmatpush1.bf16.xpose.msra.mxu0 0
    %3354 = vmatprep.subr.bf16.mxu0 0
    %3355 = vmatpush1.bf16.xpose.msra.mxu0 0
    %3356 = vmatprep.subr.bf16.mxu0 0
    %3357 = vmatpush1.bf16.xpose.msra.mxu0 0
    %3358 = vmatprep.subr.bf16.mxu0 0
    %3359 = vmatpush1.bf16.xpose.msra.mxu0 0
    %3360 = vmatprep.subr.bf16.mxu0 0
    %3361 = vmatpush1.bf16.xpose.msra.mxu0 0
    %3362 = vmatprep.subr.bf16.mxu0 0
    %3363 = vmatpush1.bf16.xpose.msra.mxu0 0
    %3364 = vmatprep.subr.bf16.mxu0 0
    %3365 = vmatpush1.bf16.xpose.msra.mxu0 0
    %3366 = vmatprep.subr.bf16.mxu0 0
    %3367 = vmatpush1.bf16.xpose.msra.mxu0 0
    %3368 = vmatprep.subr.bf16.mxu0 0
    %3369 = vmatpush1.bf16.xpose.msra.mxu0 0
    %3370 = vmatprep.subr.bf16.mxu0 0
    %3371 = vmatpush1.bf16.xpose.msra.mxu0 0
    %3372 = vmatprep.subr.bf16.mxu0 0
    %3373 = vmatpush1.bf16.xpose.msra.mxu0 0
    %3374 = vmatprep.subr.bf16.mxu0 0
    %3375 = vmatpush1.bf16.xpose.msra.mxu0 0
    %3376 = vmatprep.subr.bf16.mxu0 0
    %3377 = vmatpush1.bf16.xpose.msra.mxu0 0
    %3378 = vmatprep.mubr.bf16.mxu0 %v1952
    %3379 = vmatmul.mubr.bf16.gmra.mrb[0].mxu0 %v1951
    %v3380 = vpop.f32.mrb[0].mxu0
    %v3381 = vadd.f32 %v3341, %v3380
    %v3382 = vpop.f32.mrb[0].mxu0
    %v3383 = vpop.f32.mrb[0].mxu0
    %v3384 = vpop.f32.mrb[0].mxu0
    %3385 = vdwg.mxu0
    %3386 = vmatprep.subr.bf16.mxu0 %v2811
    %3387 = vmatpush1.bf16.xpose.msra.mxu0 %v2810
    %3388 = vmatprep.subr.bf16.mxu0 0
    %3389 = vmatpush1.bf16.xpose.msra.mxu0 0
    %3390 = vmatprep.subr.bf16.mxu0 0
    %3391 = vmatpush1.bf16.xpose.msra.mxu0 0
    %3392 = vmatprep.subr.bf16.mxu0 0
    %3393 = vmatpush1.bf16.xpose.msra.mxu0 0
    %3394 = vmatprep.subr.bf16.mxu0 0
    %3395 = vmatpush1.bf16.xpose.msra.mxu0 0
    %3396 = vmatprep.subr.bf16.mxu0 0
    %3397 = vmatpush1.bf16.xpose.msra.mxu0 0
    %3398 = vmatprep.subr.bf16.mxu0 0
    %3399 = vmatpush1.bf16.xpose.msra.mxu0 0
    %3400 = vmatprep.subr.bf16.mxu0 0
    %3401 = vmatpush1.bf16.xpose.msra.mxu0 0
    %3402 = vmatprep.subr.bf16.mxu0 0
    %3403 = vmatpush1.bf16.xpose.msra.mxu0 0
    %3404 = vmatprep.subr.bf16.mxu0 0
    %3405 = vmatpush1.bf16.xpose.msra.mxu0 0
    %3406 = vmatprep.subr.bf16.mxu0 0
    %3407 = vmatpush1.bf16.xpose.msra.mxu0 0
    %3408 = vmatprep.subr.bf16.mxu0 0
    %3409 = vmatpush1.bf16.xpose.msra.mxu0 0
    %3410 = vmatprep.subr.bf16.mxu0 0
    %3411 = vmatpush1.bf16.xpose.msra.mxu0 0
    %3412 = vmatprep.subr.bf16.mxu0 0
    %3413 = vmatpush1.bf16.xpose.msra.mxu0 0
    %3414 = vmatprep.subr.bf16.mxu0 0
    %3415 = vmatpush1.bf16.xpose.msra.mxu0 0
    %3416 = vmatprep.subr.bf16.mxu0 0
    %3417 = vmatpush1.bf16.xpose.msra.mxu0 0
    %3418 = vmatprep.mubr.bf16.mxu0 %v1954
    %3419 = vmatmul.mubr.bf16.gmra.mrb[0].mxu0 %v1953
    %v3420 = vpop.f32.mrb[0].mxu0
    %v3421 = vadd.f32 %v3381, %v3420
    %v3422 = vpop.f32.mrb[0].mxu0
    %v3423 = vpop.f32.mrb[0].mxu0
    %v3424 = vpop.f32.mrb[0].mxu0
    %3425 = vdwg.mxu0
    %3426 = vmatprep.subr.bf16.mxu0 %v2813
    %3427 = vmatpush1.bf16.xpose.msra.mxu0 %v2812
    %3428 = vmatprep.subr.bf16.mxu0 0
    %3429 = vmatpush1.bf16.xpose.msra.mxu0 0
    %3430 = vmatprep.subr.bf16.mxu0 0
    %3431 = vmatpush1.bf16.xpose.msra.mxu0 0
    %3432 = vmatprep.subr.bf16.mxu0 0
    %3433 = vmatpush1.bf16.xpose.msra.mxu0 0
    %3434 = vmatprep.subr.bf16.mxu0 0
    %3435 = vmatpush1.bf16.xpose.msra.mxu0 0
    %3436 = vmatprep.subr.bf16.mxu0 0
    %3437 = vmatpush1.bf16.xpose.msra.mxu0 0
    %3438 = vmatprep.subr.bf16.mxu0 0
    %3439 = vmatpush1.bf16.xpose.msra.mxu0 0
    %3440 = vmatprep.subr.bf16.mxu0 0
    %3441 = vmatpush1.bf16.xpose.msra.mxu0 0
    %3442 = vmatprep.subr.bf16.mxu0 0
    %3443 = vmatpush1.bf16.xpose.msra.mxu0 0
    %3444 = vmatprep.subr.bf16.mxu0 0
    %3445 = vmatpush1.bf16.xpose.msra.mxu0 0
    %3446 = vmatprep.subr.bf16.mxu0 0
    %3447 = vmatpush1.bf16.xpose.msra.mxu0 0
    %3448 = vmatprep.subr.bf16.mxu0 0
    %3449 = vmatpush1.bf16.xpose.msra.mxu0 0
    %3450 = vmatprep.subr.bf16.mxu0 0
    %3451 = vmatpush1.bf16.xpose.msra.mxu0 0
    %3452 = vmatprep.subr.bf16.mxu0 0
    %3453 = vmatpush1.bf16.xpose.msra.mxu0 0
    %3454 = vmatprep.subr.bf16.mxu0 0
    %3455 = vmatpush1.bf16.xpose.msra.mxu0 0
    %3456 = vmatprep.subr.bf16.mxu0 0
    %3457 = vmatpush1.bf16.xpose.msra.mxu0 0
    %3458 = vmatprep.mubr.bf16.mxu0 %v1956
    %3459 = vmatmul.mubr.bf16.gmra.mrb[0].mxu0 %v1955
    %v3460 = vpop.f32.mrb[0].mxu0
    %v3461 = vadd.f32 %v3421, %v3460
    %v3462 = vpop.f32.mrb[0].mxu0
    %v3463 = vpop.f32.mrb[0].mxu0
    %v3464 = vpop.f32.mrb[0].mxu0
    %3465 = vdwg.mxu0
    %3466 = vmatprep.subr.bf16.mxu0 %v2815
    %3467 = vmatpush1.bf16.xpose.msra.mxu0 %v2814
    %3468 = vmatprep.subr.bf16.mxu0 0
    %3469 = vmatpush1.bf16.xpose.msra.mxu0 0
    %3470 = vmatprep.subr.bf16.mxu0 0
    %3471 = vmatpush1.bf16.xpose.msra.mxu0 0
    %3472 = vmatprep.subr.bf16.mxu0 0
    %3473 = vmatpush1.bf16.xpose.msra.mxu0 0
    %3474 = vmatprep.subr.bf16.mxu0 0
    %3475 = vmatpush1.bf16.xpose.msra.mxu0 0
    %3476 = vmatprep.subr.bf16.mxu0 0
    %3477 = vmatpush1.bf16.xpose.msra.mxu0 0
    %3478 = vmatprep.subr.bf16.mxu0 0
    %3479 = vmatpush1.bf16.xpose.msra.mxu0 0
    %3480 = vmatprep.subr.bf16.mxu0 0
    %3481 = vmatpush1.bf16.xpose.msra.mxu0 0
    %3482 = vmatprep.subr.bf16.mxu0 0
    %3483 = vmatpush1.bf16.xpose.msra.mxu0 0
    %3484 = vmatprep.subr.bf16.mxu0 0
    %3485 = vmatpush1.bf16.xpose.msra.mxu0 0
    %3486 = vmatprep.subr.bf16.mxu0 0
    %3487 = vmatpush1.bf16.xpose.msra.mxu0 0
    %3488 = vmatprep.subr.bf16.mxu0 0
    %3489 = vmatpush1.bf16.xpose.msra.mxu0 0
    %3490 = vmatprep.subr.bf16.mxu0 0
    %3491 = vmatpush1.bf16.xpose.msra.mxu0 0
    %3492 = vmatprep.subr.bf16.mxu0 0
    %3493 = vmatpush1.bf16.xpose.msra.mxu0 0
    %3494 = vmatprep.subr.bf16.mxu0 0
    %3495 = vmatpush1.bf16.xpose.msra.mxu0 0
    %3496 = vmatprep.subr.bf16.mxu0 0
    %3497 = vmatpush1.bf16.xpose.msra.mxu0 0
    %3498 = vmatprep.mubr.bf16.mxu0 %v1958
    %3499 = vmatmul.mubr.bf16.gmra.mrb[0].mxu0 %v1957
    %v3500 = vpop.f32.mrb[0].mxu0
    %v3501 = vadd.f32 %v3461, %v3500
    %v3502 = vpop.f32.mrb[0].mxu0
    %v3503 = vpop.f32.mrb[0].mxu0
    %v3504 = vpop.f32.mrb[0].mxu0
    %3505 = vdwg.mxu0
    %3506 = vmatprep.subr.bf16.mxu0 %v2817
    %3507 = vmatpush1.bf16.xpose.msra.mxu0 %v2816
    %3508 = vmatprep.subr.bf16.mxu0 0
    %3509 = vmatpush1.bf16.xpose.msra.mxu0 0
    %3510 = vmatprep.subr.bf16.mxu0 0
    %3511 = vmatpush1.bf16.xpose.msra.mxu0 0
    %3512 = vmatprep.subr.bf16.mxu0 0
    %3513 = vmatpush1.bf16.xpose.msra.mxu0 0
    %3514 = vmatprep.subr.bf16.mxu0 0
    %3515 = vmatpush1.bf16.xpose.msra.mxu0 0
    %3516 = vmatprep.subr.bf16.mxu0 0
    %3517 = vmatpush1.bf16.xpose.msra.mxu0 0
    %3518 = vmatprep.subr.bf16.mxu0 0
    %3519 = vmatpush1.bf16.xpose.msra.mxu0 0
    %3520 = vmatprep.subr.bf16.mxu0 0
    %3521 = vmatpush1.bf16.xpose.msra.mxu0 0
    %3522 = vmatprep.subr.bf16.mxu0 0
    %3523 = vmatpush1.bf16.xpose.msra.mxu0 0
    %3524 = vmatprep.subr.bf16.mxu0 0
    %3525 = vmatpush1.bf16.xpose.msra.mxu0 0
    %3526 = vmatprep.subr.bf16.mxu0 0
    %3527 = vmatpush1.bf16.xpose.msra.mxu0 0
    %3528 = vmatprep.subr.bf16.mxu0 0
    %3529 = vmatpush1.bf16.xpose.msra.mxu0 0
    %3530 = vmatprep.subr.bf16.mxu0 0
    %3531 = vmatpush1.bf16.xpose.msra.mxu0 0
    %3532 = vmatprep.subr.bf16.mxu0 0
    %3533 = vmatpush1.bf16.xpose.msra.mxu0 0
    %3534 = vmatprep.subr.bf16.mxu0 0
    %3535 = vmatpush1.bf16.xpose.msra.mxu0 0
    %3536 = vmatprep.subr.bf16.mxu0 0
    %3537 = vmatpush1.bf16.xpose.msra.mxu0 0
    %3538 = vmatprep.mubr.bf16.mxu0 %v1960
    %3539 = vmatmul.mubr.bf16.gmra.mrb[0].mxu0 %v1959
    %v3540 = vpop.f32.mrb[0].mxu0
    %v3541 = vadd.f32 %v3501, %v3540
    %v3542 = vpop.f32.mrb[0].mxu0
    %v3543 = vpop.f32.mrb[0].mxu0
    %v3544 = vpop.f32.mrb[0].mxu0
    %3545 = vdwg.mxu0
    %3546 = vmatprep.subr.bf16.mxu0 %v2819
    %3547 = vmatpush1.bf16.xpose.msra.mxu0 %v2818
    %3548 = vmatprep.subr.bf16.mxu0 0
    %3549 = vmatpush1.bf16.xpose.msra.mxu0 0
    %3550 = vmatprep.subr.bf16.mxu0 0
    %3551 = vmatpush1.bf16.xpose.msra.mxu0 0
    %3552 = vmatprep.subr.bf16.mxu0 0
    %3553 = vmatpush1.bf16.xpose.msra.mxu0 0
    %3554 = vmatprep.subr.bf16.mxu0 0
    %3555 = vmatpush1.bf16.xpose.msra.mxu0 0
    %3556 = vmatprep.subr.bf16.mxu0 0
    %3557 = vmatpush1.bf16.xpose.msra.mxu0 0
    %3558 = vmatprep.subr.bf16.mxu0 0
    %3559 = vmatpush1.bf16.xpose.msra.mxu0 0
    %3560 = vmatprep.subr.bf16.mxu0 0
    %3561 = vmatpush1.bf16.xpose.msra.mxu0 0
    %3562 = vmatprep.subr.bf16.mxu0 0
    %3563 = vmatpush1.bf16.xpose.msra.mxu0 0
    %3564 = vmatprep.subr.bf16.mxu0 0
    %3565 = vmatpush1.bf16.xpose.msra.mxu0 0
    %3566 = vmatprep.subr.bf16.mxu0 0
    %3567 = vmatpush1.bf16.xpose.msra.mxu0 0
    %3568 = vmatprep.subr.bf16.mxu0 0
    %3569 = vmatpush1.bf16.xpose.msra.mxu0 0
    %3570 = vmatprep.subr.bf16.mxu0 0
    %3571 = vmatpush1.bf16.xpose.msra.mxu0 0
    %3572 = vmatprep.subr.bf16.mxu0 0
    %3573 = vmatpush1.bf16.xpose.msra.mxu0 0
    %3574 = vmatprep.subr.bf16.mxu0 0
    %3575 = vmatpush1.bf16.xpose.msra.mxu0 0
    %3576 = vmatprep.subr.bf16.mxu0 0
    %3577 = vmatpush1.bf16.xpose.msra.mxu0 0
    %3578 = vmatprep.mubr.bf16.mxu0 %v1962
    %3579 = vmatmul.mubr.bf16.gmra.mrb[0].mxu0 %v1961
    %v3580 = vpop.f32.mrb[0].mxu0
    %v3581 = vadd.f32 %v3541, %v3580
    %v3582 = vpop.f32.mrb[0].mxu0
    %v3583 = vpop.f32.mrb[0].mxu0
    %v3584 = vpop.f32.mrb[0].mxu0
    %3585 = vdwg.mxu0
    %3586 = vmatprep.subr.bf16.mxu0 %v2821
    %3587 = vmatpush1.bf16.xpose.msra.mxu0 %v2820
    %3588 = vmatprep.subr.bf16.mxu0 0
    %3589 = vmatpush1.bf16.xpose.msra.mxu0 0
    %3590 = vmatprep.subr.bf16.mxu0 0
    %3591 = vmatpush1.bf16.xpose.msra.mxu0 0
    %3592 = vmatprep.subr.bf16.mxu0 0
    %3593 = vmatpush1.bf16.xpose.msra.mxu0 0
    %3594 = vmatprep.subr.bf16.mxu0 0
    %3595 = vmatpush1.bf16.xpose.msra.mxu0 0
    %3596 = vmatprep.subr.bf16.mxu0 0
    %3597 = vmatpush1.bf16.xpose.msra.mxu0 0
    %3598 = vmatprep.subr.bf16.mxu0 0
    %3599 = vmatpush1.bf16.xpose.msra.mxu0 0
    %3600 = vmatprep.subr.bf16.mxu0 0
    %3601 = vmatpush1.bf16.xpose.msra.mxu0 0
    %3602 = vmatprep.subr.bf16.mxu0 0
    %3603 = vmatpush1.bf16.xpose.msra.mxu0 0
    %3604 = vmatprep.subr.bf16.mxu0 0
    %3605 = vmatpush1.bf16.xpose.msra.mxu0 0
    %3606 = vmatprep.subr.bf16.mxu0 0
    %3607 = vmatpush1.bf16.xpose.msra.mxu0 0
    %3608 = vmatprep.subr.bf16.mxu0 0
    %3609 = vmatpush1.bf16.xpose.msra.mxu0 0
    %3610 = vmatprep.subr.bf16.mxu0 0
    %3611 = vmatpush1.bf16.xpose.msra.mxu0 0
    %3612 = vmatprep.subr.bf16.mxu0 0
    %3613 = vmatpush1.bf16.xpose.msra.mxu0 0
    %3614 = vmatprep.subr.bf16.mxu0 0
    %3615 = vmatpush1.bf16.xpose.msra.mxu0 0
    %3616 = vmatprep.subr.bf16.mxu0 0
    %3617 = vmatpush1.bf16.xpose.msra.mxu0 0
    %3618 = vmatprep.mubr.bf16.mxu0 %v1964
    %3619 = vmatmul.mubr.bf16.gmra.mrb[0].mxu0 %v1963
    %v3620 = vpop.f32.mrb[0].mxu0
    %v3621 = vadd.f32 %v3581, %v3620
    %v3622 = vpop.f32.mrb[0].mxu0
    %v3623 = vpop.f32.mrb[0].mxu0
    %v3624 = vpop.f32.mrb[0].mxu0
    %3625 = vdwg.mxu0
    %3626 = vmatprep.subr.bf16.mxu0 %v2823
    %3627 = vmatpush1.bf16.xpose.msra.mxu0 %v2822
    %3628 = vmatprep.subr.bf16.mxu0 0
    %3629 = vmatpush1.bf16.xpose.msra.mxu0 0
    %3630 = vmatprep.subr.bf16.mxu0 0
    %3631 = vmatpush1.bf16.xpose.msra.mxu0 0
    %3632 = vmatprep.subr.bf16.mxu0 0
    %3633 = vmatpush1.bf16.xpose.msra.mxu0 0
    %3634 = vmatprep.subr.bf16.mxu0 0
    %3635 = vmatpush1.bf16.xpose.msra.mxu0 0
    %3636 = vmatprep.subr.bf16.mxu0 0
    %3637 = vmatpush1.bf16.xpose.msra.mxu0 0
    %3638 = vmatprep.subr.bf16.mxu0 0
    %3639 = vmatpush1.bf16.xpose.msra.mxu0 0
    %3640 = vmatprep.subr.bf16.mxu0 0
    %3641 = vmatpush1.bf16.xpose.msra.mxu0 0
    %3642 = vmatprep.subr.bf16.mxu0 0
    %3643 = vmatpush1.bf16.xpose.msra.mxu0 0
    %3644 = vmatprep.subr.bf16.mxu0 0
    %3645 = vmatpush1.bf16.xpose.msra.mxu0 0
    %3646 = vmatprep.subr.bf16.mxu0 0
    %3647 = vmatpush1.bf16.xpose.msra.mxu0 0
    %3648 = vmatprep.subr.bf16.mxu0 0
    %3649 = vmatpush1.bf16.xpose.msra.mxu0 0
    %3650 = vmatprep.subr.bf16.mxu0 0
    %3651 = vmatpush1.bf16.xpose.msra.mxu0 0
    %3652 = vmatprep.subr.bf16.mxu0 0
    %3653 = vmatpush1.bf16.xpose.msra.mxu0 0
    %3654 = vmatprep.subr.bf16.mxu0 0
    %3655 = vmatpush1.bf16.xpose.msra.mxu0 0
    %3656 = vmatprep.subr.bf16.mxu0 0
    %3657 = vmatpush1.bf16.xpose.msra.mxu0 0
    %3658 = vmatprep.mubr.bf16.mxu0 %v1966
    %3659 = vmatmul.mubr.bf16.gmra.mrb[0].mxu0 %v1965
    %v3660 = vpop.f32.mrb[0].mxu0
    %v3661 = vadd.f32 %v3621, %v3660
    %v3662 = vpop.f32.mrb[0].mxu0
    %v3663 = vpop.f32.mrb[0].mxu0
    %v3664 = vpop.f32.mrb[0].mxu0
    %3665 = vdwg.mxu0
    %3666 = vmatprep.subr.bf16.mxu0 %v2825
    %3667 = vmatpush1.bf16.xpose.msra.mxu0 %v2824
    %3668 = vmatprep.subr.bf16.mxu0 0
    %3669 = vmatpush1.bf16.xpose.msra.mxu0 0
    %3670 = vmatprep.subr.bf16.mxu0 0
    %3671 = vmatpush1.bf16.xpose.msra.mxu0 0
    %3672 = vmatprep.subr.bf16.mxu0 0
    %3673 = vmatpush1.bf16.xpose.msra.mxu0 0
    %3674 = vmatprep.subr.bf16.mxu0 0
    %3675 = vmatpush1.bf16.xpose.msra.mxu0 0
    %3676 = vmatprep.subr.bf16.mxu0 0
    %3677 = vmatpush1.bf16.xpose.msra.mxu0 0
    %3678 = vmatprep.subr.bf16.mxu0 0
    %3679 = vmatpush1.bf16.xpose.msra.mxu0 0
    %3680 = vmatprep.subr.bf16.mxu0 0
    %3681 = vmatpush1.bf16.xpose.msra.mxu0 0
    %3682 = vmatprep.subr.bf16.mxu0 0
    %3683 = vmatpush1.bf16.xpose.msra.mxu0 0
    %3684 = vmatprep.subr.bf16.mxu0 0
    %3685 = vmatpush1.bf16.xpose.msra.mxu0 0
    %3686 = vmatprep.subr.bf16.mxu0 0
    %3687 = vmatpush1.bf16.xpose.msra.mxu0 0
    %3688 = vmatprep.subr.bf16.mxu0 0
    %3689 = vmatpush1.bf16.xpose.msra.mxu0 0
    %3690 = vmatprep.subr.bf16.mxu0 0
    %3691 = vmatpush1.bf16.xpose.msra.mxu0 0
    %3692 = vmatprep.subr.bf16.mxu0 0
    %3693 = vmatpush1.bf16.xpose.msra.mxu0 0
    %3694 = vmatprep.subr.bf16.mxu0 0
    %3695 = vmatpush1.bf16.xpose.msra.mxu0 0
    %3696 = vmatprep.subr.bf16.mxu0 0
    %3697 = vmatpush1.bf16.xpose.msra.mxu0 0
    %3698 = vmatprep.mubr.bf16.mxu0 %v1968
    %3699 = vmatmul.mubr.bf16.gmra.mrb[0].mxu0 %v1967
    %v3700 = vpop.f32.mrb[0].mxu0
    %v3701 = vadd.f32 %v3661, %v3700
    %v3702 = vpop.f32.mrb[0].mxu0
    %v3703 = vpop.f32.mrb[0].mxu0
    %v3704 = vpop.f32.mrb[0].mxu0
    %3705 = vdwg.mxu0
    %3706 = vmatprep.subr.bf16.mxu0 %v2827
    %3707 = vmatpush1.bf16.xpose.msra.mxu0 %v2826
    %3708 = vmatprep.subr.bf16.mxu0 0
    %3709 = vmatpush1.bf16.xpose.msra.mxu0 0
    %3710 = vmatprep.subr.bf16.mxu0 0
    %3711 = vmatpush1.bf16.xpose.msra.mxu0 0
    %3712 = vmatprep.subr.bf16.mxu0 0
    %3713 = vmatpush1.bf16.xpose.msra.mxu0 0
    %3714 = vmatprep.subr.bf16.mxu0 0
    %3715 = vmatpush1.bf16.xpose.msra.mxu0 0
    %3716 = vmatprep.subr.bf16.mxu0 0
    %3717 = vmatpush1.bf16.xpose.msra.mxu0 0
    %3718 = vmatprep.subr.bf16.mxu0 0
    %3719 = vmatpush1.bf16.xpose.msra.mxu0 0
    %3720 = vmatprep.subr.bf16.mxu0 0
    %3721 = vmatpush1.bf16.xpose.msra.mxu0 0
    %3722 = vmatprep.subr.bf16.mxu0 0
    %3723 = vmatpush1.bf16.xpose.msra.mxu0 0
    %3724 = vmatprep.subr.bf16.mxu0 0
    %3725 = vmatpush1.bf16.xpose.msra.mxu0 0
    %3726 = vmatprep.subr.bf16.mxu0 0
    %3727 = vmatpush1.bf16.xpose.msra.mxu0 0
    %3728 = vmatprep.subr.bf16.mxu0 0
    %3729 = vmatpush1.bf16.xpose.msra.mxu0 0
    %3730 = vmatprep.subr.bf16.mxu0 0
    %3731 = vmatpush1.bf16.xpose.msra.mxu0 0
    %3732 = vmatprep.subr.bf16.mxu0 0
    %3733 = vmatpush1.bf16.xpose.msra.mxu0 0
    %3734 = vmatprep.subr.bf16.mxu0 0
    %3735 = vmatpush1.bf16.xpose.msra.mxu0 0
    %3736 = vmatprep.subr.bf16.mxu0 0
    %3737 = vmatpush1.bf16.xpose.msra.mxu0 0
    %3738 = vmatprep.mubr.bf16.mxu0 %v1970
    %3739 = vmatmul.mubr.bf16.gmra.mrb[0].mxu0 %v1969
    %v3740 = vpop.f32.mrb[0].mxu0
    %v3741 = vadd.f32 %v3701, %v3740
    %v3742 = vpop.f32.mrb[0].mxu0
    %v3743 = vpop.f32.mrb[0].mxu0
    %v3744 = vpop.f32.mrb[0].mxu0
    %3745 = vdwg.mxu0
    %3746 = vmatprep.subr.bf16.mxu0 %v2829
    %3747 = vmatpush1.bf16.xpose.msra.mxu0 %v2828
    %3748 = vmatprep.subr.bf16.mxu0 0
    %3749 = vmatpush1.bf16.xpose.msra.mxu0 0
    %3750 = vmatprep.subr.bf16.mxu0 0
    %3751 = vmatpush1.bf16.xpose.msra.mxu0 0
    %3752 = vmatprep.subr.bf16.mxu0 0
    %3753 = vmatpush1.bf16.xpose.msra.mxu0 0
    %3754 = vmatprep.subr.bf16.mxu0 0
    %3755 = vmatpush1.bf16.xpose.msra.mxu0 0
    %3756 = vmatprep.subr.bf16.mxu0 0
    %3757 = vmatpush1.bf16.xpose.msra.mxu0 0
    %3758 = vmatprep.subr.bf16.mxu0 0
    %3759 = vmatpush1.bf16.xpose.msra.mxu0 0
    %3760 = vmatprep.subr.bf16.mxu0 0
    %3761 = vmatpush1.bf16.xpose.msra.mxu0 0
    %3762 = vmatprep.subr.bf16.mxu0 0
    %3763 = vmatpush1.bf16.xpose.msra.mxu0 0
    %3764 = vmatprep.subr.bf16.mxu0 0
    %3765 = vmatpush1.bf16.xpose.msra.mxu0 0
    %3766 = vmatprep.subr.bf16.mxu0 0
    %3767 = vmatpush1.bf16.xpose.msra.mxu0 0
    %3768 = vmatprep.subr.bf16.mxu0 0
    %3769 = vmatpush1.bf16.xpose.msra.mxu0 0
    %3770 = vmatprep.subr.bf16.mxu0 0
    %3771 = vmatpush1.bf16.xpose.msra.mxu0 0
    %3772 = vmatprep.subr.bf16.mxu0 0
    %3773 = vmatpush1.bf16.xpose.msra.mxu0 0
    %3774 = vmatprep.subr.bf16.mxu0 0
    %3775 = vmatpush1.bf16.xpose.msra.mxu0 0
    %3776 = vmatprep.subr.bf16.mxu0 0
    %3777 = vmatpush1.bf16.xpose.msra.mxu0 0
    %3778 = vmatprep.mubr.bf16.mxu0 %v1972
    %3779 = vmatmul.mubr.bf16.gmra.mrb[0].mxu0 %v1971
    %v3780 = vpop.f32.mrb[0].mxu0
    %v3781 = vadd.f32 %v3741, %v3780
    %v3782 = vpop.f32.mrb[0].mxu0
    %v3783 = vpop.f32.mrb[0].mxu0
    %v3784 = vpop.f32.mrb[0].mxu0
    %3785 = vdwg.mxu0
    %3786 = vmatprep.subr.bf16.mxu0 %v2831
    %3787 = vmatpush1.bf16.xpose.msra.mxu0 %v2830
    %3788 = vmatprep.subr.bf16.mxu0 0
    %3789 = vmatpush1.bf16.xpose.msra.mxu0 0
    %3790 = vmatprep.subr.bf16.mxu0 0
    %3791 = vmatpush1.bf16.xpose.msra.mxu0 0
    %3792 = vmatprep.subr.bf16.mxu0 0
    %3793 = vmatpush1.bf16.xpose.msra.mxu0 0
    %3794 = vmatprep.subr.bf16.mxu0 0
    %3795 = vmatpush1.bf16.xpose.msra.mxu0 0
    %3796 = vmatprep.subr.bf16.mxu0 0
    %3797 = vmatpush1.bf16.xpose.msra.mxu0 0
    %3798 = vmatprep.subr.bf16.mxu0 0
    %3799 = vmatpush1.bf16.xpose.msra.mxu0 0
    %3800 = vmatprep.subr.bf16.mxu0 0
    %3801 = vmatpush1.bf16.xpose.msra.mxu0 0
    %3802 = vmatprep.subr.bf16.mxu0 0
    %3803 = vmatpush1.bf16.xpose.msra.mxu0 0
    %3804 = vmatprep.subr.bf16.mxu0 0
    %3805 = vmatpush1.bf16.xpose.msra.mxu0 0
    %3806 = vmatprep.subr.bf16.mxu0 0
    %3807 = vmatpush1.bf16.xpose.msra.mxu0 0
    %3808 = vmatprep.subr.bf16.mxu0 0
    %3809 = vmatpush1.bf16.xpose.msra.mxu0 0
    %3810 = vmatprep.subr.bf16.mxu0 0
    %3811 = vmatpush1.bf16.xpose.msra.mxu0 0
    %3812 = vmatprep.subr.bf16.mxu0 0
    %3813 = vmatpush1.bf16.xpose.msra.mxu0 0
    %3814 = vmatprep.subr.bf16.mxu0 0
    %3815 = vmatpush1.bf16.xpose.msra.mxu0 0
    %3816 = vmatprep.subr.bf16.mxu0 0
    %3817 = vmatpush1.bf16.xpose.msra.mxu0 0
    %3818 = vmatprep.mubr.bf16.mxu0 %v1974
    %3819 = vmatmul.mubr.bf16.gmra.mrb[0].mxu0 %v1973
    %v3820 = vpop.f32.mrb[0].mxu0
    %v3821 = vadd.f32 %v3781, %v3820
    %v3822 = vpop.f32.mrb[0].mxu0
    %v3823 = vpop.f32.mrb[0].mxu0
    %v3824 = vpop.f32.mrb[0].mxu0
    %3825 = vdwg.mxu0
    %3826 = vmatprep.subr.bf16.mxu0 %v2833
    %3827 = vmatpush1.bf16.xpose.msra.mxu0 %v2832
    %3828 = vmatprep.subr.bf16.mxu0 0
    %3829 = vmatpush1.bf16.xpose.msra.mxu0 0
    %3830 = vmatprep.subr.bf16.mxu0 0
    %3831 = vmatpush1.bf16.xpose.msra.mxu0 0
    %3832 = vmatprep.subr.bf16.mxu0 0
    %3833 = vmatpush1.bf16.xpose.msra.mxu0 0
    %3834 = vmatprep.subr.bf16.mxu0 0
    %3835 = vmatpush1.bf16.xpose.msra.mxu0 0
    %3836 = vmatprep.subr.bf16.mxu0 0
    %3837 = vmatpush1.bf16.xpose.msra.mxu0 0
    %3838 = vmatprep.subr.bf16.mxu0 0
    %3839 = vmatpush1.bf16.xpose.msra.mxu0 0
    %3840 = vmatprep.subr.bf16.mxu0 0
    %3841 = vmatpush1.bf16.xpose.msra.mxu0 0
    %3842 = vmatprep.subr.bf16.mxu0 0
    %3843 = vmatpush1.bf16.xpose.msra.mxu0 0
    %3844 = vmatprep.subr.bf16.mxu0 0
    %3845 = vmatpush1.bf16.xpose.msra.mxu0 0
    %3846 = vmatprep.subr.bf16.mxu0 0
    %3847 = vmatpush1.bf16.xpose.msra.mxu0 0
    %3848 = vmatprep.subr.bf16.mxu0 0
    %3849 = vmatpush1.bf16.xpose.msra.mxu0 0
    %3850 = vmatprep.subr.bf16.mxu0 0
    %3851 = vmatpush1.bf16.xpose.msra.mxu0 0
    %3852 = vmatprep.subr.bf16.mxu0 0
    %3853 = vmatpush1.bf16.xpose.msra.mxu0 0
    %3854 = vmatprep.subr.bf16.mxu0 0
    %3855 = vmatpush1.bf16.xpose.msra.mxu0 0
    %3856 = vmatprep.subr.bf16.mxu0 0
    %3857 = vmatpush1.bf16.xpose.msra.mxu0 0
    %3858 = vmatprep.mubr.bf16.mxu0 %v1976
    %3859 = vmatmul.mubr.bf16.gmra.mrb[0].mxu0 %v1975
    %v3860 = vpop.f32.mrb[0].mxu0
    %v3861 = vadd.f32 %v3821, %v3860
    %v3862 = vpop.f32.mrb[0].mxu0
    %v3863 = vpop.f32.mrb[0].mxu0
    %v3864 = vpop.f32.mrb[0].mxu0
    %3865 = vdwg.mxu0
    %3866 = vmatprep.subr.bf16.mxu0 %v2835
    %3867 = vmatpush1.bf16.xpose.msra.mxu0 %v2834
    %3868 = vmatprep.subr.bf16.mxu0 0
    %3869 = vmatpush1.bf16.xpose.msra.mxu0 0
    %3870 = vmatprep.subr.bf16.mxu0 0
    %3871 = vmatpush1.bf16.xpose.msra.mxu0 0
    %3872 = vmatprep.subr.bf16.mxu0 0
    %3873 = vmatpush1.bf16.xpose.msra.mxu0 0
    %3874 = vmatprep.subr.bf16.mxu0 0
    %3875 = vmatpush1.bf16.xpose.msra.mxu0 0
    %3876 = vmatprep.subr.bf16.mxu0 0
    %3877 = vmatpush1.bf16.xpose.msra.mxu0 0
    %3878 = vmatprep.subr.bf16.mxu0 0
    %3879 = vmatpush1.bf16.xpose.msra.mxu0 0
    %3880 = vmatprep.subr.bf16.mxu0 0
    %3881 = vmatpush1.bf16.xpose.msra.mxu0 0
    %3882 = vmatprep.subr.bf16.mxu0 0
    %3883 = vmatpush1.bf16.xpose.msra.mxu0 0
    %3884 = vmatprep.subr.bf16.mxu0 0
    %3885 = vmatpush1.bf16.xpose.msra.mxu0 0
    %3886 = vmatprep.subr.bf16.mxu0 0
    %3887 = vmatpush1.bf16.xpose.msra.mxu0 0
    %3888 = vmatprep.subr.bf16.mxu0 0
    %3889 = vmatpush1.bf16.xpose.msra.mxu0 0
    %3890 = vmatprep.subr.bf16.mxu0 0
    %3891 = vmatpush1.bf16.xpose.msra.mxu0 0
    %3892 = vmatprep.subr.bf16.mxu0 0
    %3893 = vmatpush1.bf16.xpose.msra.mxu0 0
    %3894 = vmatprep.subr.bf16.mxu0 0
    %3895 = vmatpush1.bf16.xpose.msra.mxu0 0
    %3896 = vmatprep.subr.bf16.mxu0 0
    %3897 = vmatpush1.bf16.xpose.msra.mxu0 0
    %3898 = vmatprep.mubr.bf16.mxu0 %v1978
    %3899 = vmatmul.mubr.bf16.gmra.mrb[0].mxu0 %v1977
    %v3900 = vpop.f32.mrb[0].mxu0
    %v3901 = vadd.f32 %v3861, %v3900
    %v3902 = vpop.f32.mrb[0].mxu0
    %v3903 = vpop.f32.mrb[0].mxu0
    %v3904 = vpop.f32.mrb[0].mxu0
    %3905 = vdwg.mxu0
    %3906 = vmatprep.subr.bf16.mxu0 %v2837
    %3907 = vmatpush1.bf16.xpose.msra.mxu0 %v2836
    %3908 = vmatprep.subr.bf16.mxu0 0
    %3909 = vmatpush1.bf16.xpose.msra.mxu0 0
    %3910 = vmatprep.subr.bf16.mxu0 0
    %3911 = vmatpush1.bf16.xpose.msra.mxu0 0
    %3912 = vmatprep.subr.bf16.mxu0 0
    %3913 = vmatpush1.bf16.xpose.msra.mxu0 0
    %3914 = vmatprep.subr.bf16.mxu0 0
    %3915 = vmatpush1.bf16.xpose.msra.mxu0 0
    %3916 = vmatprep.subr.bf16.mxu0 0
    %3917 = vmatpush1.bf16.xpose.msra.mxu0 0
    %3918 = vmatprep.subr.bf16.mxu0 0
    %3919 = vmatpush1.bf16.xpose.msra.mxu0 0
    %3920 = vmatprep.subr.bf16.mxu0 0
    %3921 = vmatpush1.bf16.xpose.msra.mxu0 0
    %3922 = vmatprep.subr.bf16.mxu0 0
    %3923 = vmatpush1.bf16.xpose.msra.mxu0 0
    %3924 = vmatprep.subr.bf16.mxu0 0
    %3925 = vmatpush1.bf16.xpose.msra.mxu0 0
    %3926 = vmatprep.subr.bf16.mxu0 0
    %3927 = vmatpush1.bf16.xpose.msra.mxu0 0
    %3928 = vmatprep.subr.bf16.mxu0 0
    %3929 = vmatpush1.bf16.xpose.msra.mxu0 0
    %3930 = vmatprep.subr.bf16.mxu0 0
    %3931 = vmatpush1.bf16.xpose.msra.mxu0 0
    %3932 = vmatprep.subr.bf16.mxu0 0
    %3933 = vmatpush1.bf16.xpose.msra.mxu0 0
    %3934 = vmatprep.subr.bf16.mxu0 0
    %3935 = vmatpush1.bf16.xpose.msra.mxu0 0
    %3936 = vmatprep.subr.bf16.mxu0 0
    %3937 = vmatpush1.bf16.xpose.msra.mxu0 0
    %3938 = vmatprep.mubr.bf16.mxu0 %v1980
    %3939 = vmatmul.mubr.bf16.gmra.mrb[0].mxu0 %v1979
    %v3940 = vpop.f32.mrb[0].mxu0
    %v3941 = vadd.f32 %v3901, %v3940
    %v3942 = vpop.f32.mrb[0].mxu0
    %v3943 = vpop.f32.mrb[0].mxu0
    %v3944 = vpop.f32.mrb[0].mxu0
    %3945 = vdwg.mxu0
    %3946 = vmatprep.subr.bf16.mxu0 %v2839
    %3947 = vmatpush1.bf16.xpose.msra.mxu0 %v2838
    %3948 = vmatprep.subr.bf16.mxu0 0
    %3949 = vmatpush1.bf16.xpose.msra.mxu0 0
    %3950 = vmatprep.subr.bf16.mxu0 0
    %3951 = vmatpush1.bf16.xpose.msra.mxu0 0
    %3952 = vmatprep.subr.bf16.mxu0 0
    %3953 = vmatpush1.bf16.xpose.msra.mxu0 0
    %3954 = vmatprep.subr.bf16.mxu0 0
    %3955 = vmatpush1.bf16.xpose.msra.mxu0 0
    %3956 = vmatprep.subr.bf16.mxu0 0
    %3957 = vmatpush1.bf16.xpose.msra.mxu0 0
    %3958 = vmatprep.subr.bf16.mxu0 0
    %3959 = vmatpush1.bf16.xpose.msra.mxu0 0
    %3960 = vmatprep.subr.bf16.mxu0 0
    %3961 = vmatpush1.bf16.xpose.msra.mxu0 0
    %3962 = vmatprep.subr.bf16.mxu0 0
    %3963 = vmatpush1.bf16.xpose.msra.mxu0 0
    %3964 = vmatprep.subr.bf16.mxu0 0
    %3965 = vmatpush1.bf16.xpose.msra.mxu0 0
    %3966 = vmatprep.subr.bf16.mxu0 0
    %3967 = vmatpush1.bf16.xpose.msra.mxu0 0
    %3968 = vmatprep.subr.bf16.mxu0 0
    %3969 = vmatpush1.bf16.xpose.msra.mxu0 0
    %3970 = vmatprep.subr.bf16.mxu0 0
    %3971 = vmatpush1.bf16.xpose.msra.mxu0 0
    %3972 = vmatprep.subr.bf16.mxu0 0
    %3973 = vmatpush1.bf16.xpose.msra.mxu0 0
    %3974 = vmatprep.subr.bf16.mxu0 0
    %3975 = vmatpush1.bf16.xpose.msra.mxu0 0
    %3976 = vmatprep.subr.bf16.mxu0 0
    %3977 = vmatpush1.bf16.xpose.msra.mxu0 0
    %3978 = vmatprep.mubr.bf16.mxu0 %v1982
    %3979 = vmatmul.mubr.bf16.gmra.mrb[0].mxu0 %v1981
    %v3980 = vpop.f32.mrb[0].mxu0
    %v3981 = vadd.f32 %v3941, %v3980
    %v3982 = vpop.f32.mrb[0].mxu0
    %v3983 = vpop.f32.mrb[0].mxu0
    %v3984 = vpop.f32.mrb[0].mxu0
    %3985 = vdwg.mxu0
    %3986 = vmatprep.subr.bf16.mxu0 %v2841
    %3987 = vmatpush1.bf16.xpose.msra.mxu0 %v2840
    %3988 = vmatprep.subr.bf16.mxu0 0
    %3989 = vmatpush1.bf16.xpose.msra.mxu0 0
    %3990 = vmatprep.subr.bf16.mxu0 0
    %3991 = vmatpush1.bf16.xpose.msra.mxu0 0
    %3992 = vmatprep.subr.bf16.mxu0 0
    %3993 = vmatpush1.bf16.xpose.msra.mxu0 0
    %3994 = vmatprep.subr.bf16.mxu0 0
    %3995 = vmatpush1.bf16.xpose.msra.mxu0 0
    %3996 = vmatprep.subr.bf16.mxu0 0
    %3997 = vmatpush1.bf16.xpose.msra.mxu0 0
    %3998 = vmatprep.subr.bf16.mxu0 0
    %3999 = vmatpush1.bf16.xpose.msra.mxu0 0
    %4000 = vmatprep.subr.bf16.mxu0 0
    %4001 = vmatpush1.bf16.xpose.msra.mxu0 0
    %4002 = vmatprep.subr.bf16.mxu0 0
    %4003 = vmatpush1.bf16.xpose.msra.mxu0 0
    %4004 = vmatprep.subr.bf16.mxu0 0
    %4005 = vmatpush1.bf16.xpose.msra.mxu0 0
    %4006 = vmatprep.subr.bf16.mxu0 0
    %4007 = vmatpush1.bf16.xpose.msra.mxu0 0
    %4008 = vmatprep.subr.bf16.mxu0 0
    %4009 = vmatpush1.bf16.xpose.msra.mxu0 0
    %4010 = vmatprep.subr.bf16.mxu0 0
    %4011 = vmatpush1.bf16.xpose.msra.mxu0 0
    %4012 = vmatprep.subr.bf16.mxu0 0
    %4013 = vmatpush1.bf16.xpose.msra.mxu0 0
    %4014 = vmatprep.subr.bf16.mxu0 0
    %4015 = vmatpush1.bf16.xpose.msra.mxu0 0
    %4016 = vmatprep.subr.bf16.mxu0 0
    %4017 = vmatpush1.bf16.xpose.msra.mxu0 0
    %4018 = vmatprep.mubr.bf16.mxu0 %v1984
    %4019 = vmatmul.mubr.bf16.gmra.mrb[0].mxu0 %v1983
    %v4020 = vpop.f32.mrb[0].mxu0
    %v4021 = vadd.f32 %v3981, %v4020
    %v4022 = vpop.f32.mrb[0].mxu0
    %v4023 = vpop.f32.mrb[0].mxu0
    %v4024 = vpop.f32.mrb[0].mxu0
    %4025 = vdwg.mxu0
    %4026 = vmatprep.subr.bf16.mxu0 %v2843
    %4027 = vmatpush1.bf16.xpose.msra.mxu0 %v2842
    %4028 = vmatprep.subr.bf16.mxu0 0
    %4029 = vmatpush1.bf16.xpose.msra.mxu0 0
    %4030 = vmatprep.subr.bf16.mxu0 0
    %4031 = vmatpush1.bf16.xpose.msra.mxu0 0
    %4032 = vmatprep.subr.bf16.mxu0 0
    %4033 = vmatpush1.bf16.xpose.msra.mxu0 0
    %4034 = vmatprep.subr.bf16.mxu0 0
    %4035 = vmatpush1.bf16.xpose.msra.mxu0 0
    %4036 = vmatprep.subr.bf16.mxu0 0
    %4037 = vmatpush1.bf16.xpose.msra.mxu0 0
    %4038 = vmatprep.subr.bf16.mxu0 0
    %4039 = vmatpush1.bf16.xpose.msra.mxu0 0
    %4040 = vmatprep.subr.bf16.mxu0 0
    %4041 = vmatpush1.bf16.xpose.msra.mxu0 0
    %4042 = vmatprep.subr.bf16.mxu0 0
    %4043 = vmatpush1.bf16.xpose.msra.mxu0 0
    %4044 = vmatprep.subr.bf16.mxu0 0
    %4045 = vmatpush1.bf16.xpose.msra.mxu0 0
    %4046 = vmatprep.subr.bf16.mxu0 0
    %4047 = vmatpush1.bf16.xpose.msra.mxu0 0
    %4048 = vmatprep.subr.bf16.mxu0 0
    %4049 = vmatpush1.bf16.xpose.msra.mxu0 0
    %4050 = vmatprep.subr.bf16.mxu0 0
    %4051 = vmatpush1.bf16.xpose.msra.mxu0 0
    %4052 = vmatprep.subr.bf16.mxu0 0
    %4053 = vmatpush1.bf16.xpose.msra.mxu0 0
    %4054 = vmatprep.subr.bf16.mxu0 0
    %4055 = vmatpush1.bf16.xpose.msra.mxu0 0
    %4056 = vmatprep.subr.bf16.mxu0 0
    %4057 = vmatpush1.bf16.xpose.msra.mxu0 0
    %4058 = vmatprep.mubr.bf16.mxu0 %v1986
    %4059 = vmatmul.mubr.bf16.gmra.mrb[0].mxu0 %v1985
    %v4060 = vpop.f32.mrb[0].mxu0
    %v4061 = vadd.f32 %v4021, %v4060
    %v4062 = vpop.f32.mrb[0].mxu0
    %v4063 = vpop.f32.mrb[0].mxu0
    %v4064 = vpop.f32.mrb[0].mxu0
    %4065 = vdwg.mxu0
    %4066 = vmatprep.subr.bf16.mxu0 %v2845
    %4067 = vmatpush1.bf16.xpose.msra.mxu0 %v2844
    %4068 = vmatprep.subr.bf16.mxu0 0
    %4069 = vmatpush1.bf16.xpose.msra.mxu0 0
    %4070 = vmatprep.subr.bf16.mxu0 0
    %4071 = vmatpush1.bf16.xpose.msra.mxu0 0
    %4072 = vmatprep.subr.bf16.mxu0 0
    %4073 = vmatpush1.bf16.xpose.msra.mxu0 0
    %4074 = vmatprep.subr.bf16.mxu0 0
    %4075 = vmatpush1.bf16.xpose.msra.mxu0 0
    %4076 = vmatprep.subr.bf16.mxu0 0
    %4077 = vmatpush1.bf16.xpose.msra.mxu0 0
    %4078 = vmatprep.subr.bf16.mxu0 0
    %4079 = vmatpush1.bf16.xpose.msra.mxu0 0
    %4080 = vmatprep.subr.bf16.mxu0 0
    %4081 = vmatpush1.bf16.xpose.msra.mxu0 0
    %4082 = vmatprep.subr.bf16.mxu0 0
    %4083 = vmatpush1.bf16.xpose.msra.mxu0 0
    %4084 = vmatprep.subr.bf16.mxu0 0
    %4085 = vmatpush1.bf16.xpose.msra.mxu0 0
    %4086 = vmatprep.subr.bf16.mxu0 0
    %4087 = vmatpush1.bf16.xpose.msra.mxu0 0
    %4088 = vmatprep.subr.bf16.mxu0 0
    %4089 = vmatpush1.bf16.xpose.msra.mxu0 0
    %4090 = vmatprep.subr.bf16.mxu0 0
    %4091 = vmatpush1.bf16.xpose.msra.mxu0 0
    %4092 = vmatprep.subr.bf16.mxu0 0
    %4093 = vmatpush1.bf16.xpose.msra.mxu0 0
    %4094 = vmatprep.subr.bf16.mxu0 0
    %4095 = vmatpush1.bf16.xpose.msra.mxu0 0
    %4096 = vmatprep.subr.bf16.mxu0 0
    %4097 = vmatpush1.bf16.xpose.msra.mxu0 0
    %4098 = vmatprep.mubr.bf16.mxu0 %v1988
    %4099 = vmatmul.mubr.bf16.gmra.mrb[0].mxu0 %v1987
    %v4100 = vpop.f32.mrb[0].mxu0
    %v4101 = vadd.f32 %v4061, %v4100
    %v4102 = vpop.f32.mrb[0].mxu0
    %v4103 = vpop.f32.mrb[0].mxu0
    %v4104 = vpop.f32.mrb[0].mxu0
    %4105 = vdwg.mxu0
    %4106 = vmatprep.subr.bf16.mxu0 %v2847
    %4107 = vmatpush1.bf16.xpose.msra.mxu0 %v2846
    %4108 = vmatprep.subr.bf16.mxu0 0
    %4109 = vmatpush1.bf16.xpose.msra.mxu0 0
    %4110 = vmatprep.subr.bf16.mxu0 0
    %4111 = vmatpush1.bf16.xpose.msra.mxu0 0
    %4112 = vmatprep.subr.bf16.mxu0 0
    %4113 = vmatpush1.bf16.xpose.msra.mxu0 0
    %4114 = vmatprep.subr.bf16.mxu0 0
    %4115 = vmatpush1.bf16.xpose.msra.mxu0 0
    %4116 = vmatprep.subr.bf16.mxu0 0
    %4117 = vmatpush1.bf16.xpose.msra.mxu0 0
    %4118 = vmatprep.subr.bf16.mxu0 0
    %4119 = vmatpush1.bf16.xpose.msra.mxu0 0
    %4120 = vmatprep.subr.bf16.mxu0 0
    %4121 = vmatpush1.bf16.xpose.msra.mxu0 0
    %4122 = vmatprep.subr.bf16.mxu0 0
    %4123 = vmatpush1.bf16.xpose.msra.mxu0 0
    %4124 = vmatprep.subr.bf16.mxu0 0
    %4125 = vmatpush1.bf16.xpose.msra.mxu0 0
    %4126 = vmatprep.subr.bf16.mxu0 0
    %4127 = vmatpush1.bf16.xpose.msra.mxu0 0
    %4128 = vmatprep.subr.bf16.mxu0 0
    %4129 = vmatpush1.bf16.xpose.msra.mxu0 0
    %4130 = vmatprep.subr.bf16.mxu0 0
    %4131 = vmatpush1.bf16.xpose.msra.mxu0 0
    %4132 = vmatprep.subr.bf16.mxu0 0
    %4133 = vmatpush1.bf16.xpose.msra.mxu0 0
    %4134 = vmatprep.subr.bf16.mxu0 0
    %4135 = vmatpush1.bf16.xpose.msra.mxu0 0
    %4136 = vmatprep.subr.bf16.mxu0 0
    %4137 = vmatpush1.bf16.xpose.msra.mxu0 0
    %4138 = vmatprep.mubr.bf16.mxu0 %v1990
    %4139 = vmatmul.mubr.bf16.gmra.mrb[0].mxu0 %v1989
    %v4140 = vpop.f32.mrb[0].mxu0
    %v4141 = vadd.f32 %v4101, %v4140
    %v4142 = vpop.f32.mrb[0].mxu0
    %v4143 = vpop.f32.mrb[0].mxu0
    %v4144 = vpop.f32.mrb[0].mxu0
    %4145 = vdwg.mxu0
    %4146 = vmatprep.subr.bf16.mxu0 %v2849
    %4147 = vmatpush1.bf16.xpose.msra.mxu0 %v2848
    %4148 = vmatprep.subr.bf16.mxu0 0
    %4149 = vmatpush1.bf16.xpose.msra.mxu0 0
    %4150 = vmatprep.subr.bf16.mxu0 0
    %4151 = vmatpush1.bf16.xpose.msra.mxu0 0
    %4152 = vmatprep.subr.bf16.mxu0 0
    %4153 = vmatpush1.bf16.xpose.msra.mxu0 0
    %4154 = vmatprep.subr.bf16.mxu0 0
    %4155 = vmatpush1.bf16.xpose.msra.mxu0 0
    %4156 = vmatprep.subr.bf16.mxu0 0
    %4157 = vmatpush1.bf16.xpose.msra.mxu0 0
    %4158 = vmatprep.subr.bf16.mxu0 0
    %4159 = vmatpush1.bf16.xpose.msra.mxu0 0
    %4160 = vmatprep.subr.bf16.mxu0 0
    %4161 = vmatpush1.bf16.xpose.msra.mxu0 0
    %4162 = vmatprep.subr.bf16.mxu0 0
    %4163 = vmatpush1.bf16.xpose.msra.mxu0 0
    %4164 = vmatprep.subr.bf16.mxu0 0
    %4165 = vmatpush1.bf16.xpose.msra.mxu0 0
    %4166 = vmatprep.subr.bf16.mxu0 0
    %4167 = vmatpush1.bf16.xpose.msra.mxu0 0
    %4168 = vmatprep.subr.bf16.mxu0 0
    %4169 = vmatpush1.bf16.xpose.msra.mxu0 0
    %4170 = vmatprep.subr.bf16.mxu0 0
    %4171 = vmatpush1.bf16.xpose.msra.mxu0 0
    %4172 = vmatprep.subr.bf16.mxu0 0
    %4173 = vmatpush1.bf16.xpose.msra.mxu0 0
    %4174 = vmatprep.subr.bf16.mxu0 0
    %4175 = vmatpush1.bf16.xpose.msra.mxu0 0
    %4176 = vmatprep.subr.bf16.mxu0 0
    %4177 = vmatpush1.bf16.xpose.msra.mxu0 0
    %4178 = vmatprep.mubr.bf16.mxu0 %v1992
    %4179 = vmatmul.mubr.bf16.gmra.mrb[0].mxu0 %v1991
    %v4180 = vpop.f32.mrb[0].mxu0
    %v4181 = vadd.f32 %v4141, %v4180
    %v4182 = vpop.f32.mrb[0].mxu0
    %v4183 = vpop.f32.mrb[0].mxu0
    %v4184 = vpop.f32.mrb[0].mxu0
    %4185 = vdwg.mxu0
    %4186 = vmatprep.subr.bf16.mxu0 %v2851
    %4187 = vmatpush1.bf16.xpose.msra.mxu0 %v2850
    %4188 = vmatprep.subr.bf16.mxu0 0
    %4189 = vmatpush1.bf16.xpose.msra.mxu0 0
    %4190 = vmatprep.subr.bf16.mxu0 0
    %4191 = vmatpush1.bf16.xpose.msra.mxu0 0
    %4192 = vmatprep.subr.bf16.mxu0 0
    %4193 = vmatpush1.bf16.xpose.msra.mxu0 0
    %4194 = vmatprep.subr.bf16.mxu0 0
    %4195 = vmatpush1.bf16.xpose.msra.mxu0 0
    %4196 = vmatprep.subr.bf16.mxu0 0
    %4197 = vmatpush1.bf16.xpose.msra.mxu0 0
    %4198 = vmatprep.subr.bf16.mxu0 0
    %4199 = vmatpush1.bf16.xpose.msra.mxu0 0
    %4200 = vmatprep.subr.bf16.mxu0 0
    %4201 = vmatpush1.bf16.xpose.msra.mxu0 0
    %4202 = vmatprep.subr.bf16.mxu0 0
    %4203 = vmatpush1.bf16.xpose.msra.mxu0 0
    %4204 = vmatprep.subr.bf16.mxu0 0
    %4205 = vmatpush1.bf16.xpose.msra.mxu0 0
    %4206 = vmatprep.subr.bf16.mxu0 0
    %4207 = vmatpush1.bf16.xpose.msra.mxu0 0
    %4208 = vmatprep.subr.bf16.mxu0 0
    %4209 = vmatpush1.bf16.xpose.msra.mxu0 0
    %4210 = vmatprep.subr.bf16.mxu0 0
    %4211 = vmatpush1.bf16.xpose.msra.mxu0 0
    %4212 = vmatprep.subr.bf16.mxu0 0
    %4213 = vmatpush1.bf16.xpose.msra.mxu0 0
    %4214 = vmatprep.subr.bf16.mxu0 0
    %4215 = vmatpush1.bf16.xpose.msra.mxu0 0
    %4216 = vmatprep.subr.bf16.mxu0 0
    %4217 = vmatpush1.bf16.xpose.msra.mxu0 0
    %4218 = vmatprep.mubr.bf16.mxu0 %v1994
    %4219 = vmatmul.mubr.bf16.gmra.mrb[0].mxu0 %v1993
    %v4220 = vpop.f32.mrb[0].mxu0
    %v4221 = vadd.f32 %v4181, %v4220
    %v4222 = vpop.f32.mrb[0].mxu0
    %v4223 = vpop.f32.mrb[0].mxu0
    %v4224 = vpop.f32.mrb[0].mxu0
    %4225 = vdwg.mxu0
    %4226 = vmatprep.subr.bf16.mxu0 %v2853
    %4227 = vmatpush1.bf16.xpose.msra.mxu0 %v2852
    %4228 = vmatprep.subr.bf16.mxu0 0
    %4229 = vmatpush1.bf16.xpose.msra.mxu0 0
    %4230 = vmatprep.subr.bf16.mxu0 0
    %4231 = vmatpush1.bf16.xpose.msra.mxu0 0
    %4232 = vmatprep.subr.bf16.mxu0 0
    %4233 = vmatpush1.bf16.xpose.msra.mxu0 0
    %4234 = vmatprep.subr.bf16.mxu0 0
    %4235 = vmatpush1.bf16.xpose.msra.mxu0 0
    %4236 = vmatprep.subr.bf16.mxu0 0
    %4237 = vmatpush1.bf16.xpose.msra.mxu0 0
    %4238 = vmatprep.subr.bf16.mxu0 0
    %4239 = vmatpush1.bf16.xpose.msra.mxu0 0
    %4240 = vmatprep.subr.bf16.mxu0 0
    %4241 = vmatpush1.bf16.xpose.msra.mxu0 0
    %4242 = vmatprep.subr.bf16.mxu0 0
    %4243 = vmatpush1.bf16.xpose.msra.mxu0 0
    %4244 = vmatprep.subr.bf16.mxu0 0
    %4245 = vmatpush1.bf16.xpose.msra.mxu0 0
    %4246 = vmatprep.subr.bf16.mxu0 0
    %4247 = vmatpush1.bf16.xpose.msra.mxu0 0
    %4248 = vmatprep.subr.bf16.mxu0 0
    %4249 = vmatpush1.bf16.xpose.msra.mxu0 0
    %4250 = vmatprep.subr.bf16.mxu0 0
    %4251 = vmatpush1.bf16.xpose.msra.mxu0 0
    %4252 = vmatprep.subr.bf16.mxu0 0
    %4253 = vmatpush1.bf16.xpose.msra.mxu0 0
    %4254 = vmatprep.subr.bf16.mxu0 0
    %4255 = vmatpush1.bf16.xpose.msra.mxu0 0
    %4256 = vmatprep.subr.bf16.mxu0 0
    %4257 = vmatpush1.bf16.xpose.msra.mxu0 0
    %4258 = vmatprep.mubr.bf16.mxu0 %v1996
    %4259 = vmatmul.mubr.bf16.gmra.mrb[0].mxu0 %v1995
    %v4260 = vpop.f32.mrb[0].mxu0
    %v4261 = vadd.f32 %v4221, %v4260
    %v4262 = vpop.f32.mrb[0].mxu0
    %v4263 = vpop.f32.mrb[0].mxu0
    %v4264 = vpop.f32.mrb[0].mxu0
    %4265 = vdwg.mxu0
    %4266 = vmatprep.subr.bf16.mxu0 %v2855
    %4267 = vmatpush1.bf16.xpose.msra.mxu0 %v2854
    %4268 = vmatprep.subr.bf16.mxu0 0
    %4269 = vmatpush1.bf16.xpose.msra.mxu0 0
    %4270 = vmatprep.subr.bf16.mxu0 0
    %4271 = vmatpush1.bf16.xpose.msra.mxu0 0
    %4272 = vmatprep.subr.bf16.mxu0 0
    %4273 = vmatpush1.bf16.xpose.msra.mxu0 0
    %4274 = vmatprep.subr.bf16.mxu0 0
    %4275 = vmatpush1.bf16.xpose.msra.mxu0 0
    %4276 = vmatprep.subr.bf16.mxu0 0
    %4277 = vmatpush1.bf16.xpose.msra.mxu0 0
    %4278 = vmatprep.subr.bf16.mxu0 0
    %4279 = vmatpush1.bf16.xpose.msra.mxu0 0
    %4280 = vmatprep.subr.bf16.mxu0 0
    %4281 = vmatpush1.bf16.xpose.msra.mxu0 0
    %4282 = vmatprep.subr.bf16.mxu0 0
    %4283 = vmatpush1.bf16.xpose.msra.mxu0 0
    %4284 = vmatprep.subr.bf16.mxu0 0
    %4285 = vmatpush1.bf16.xpose.msra.mxu0 0
    %4286 = vmatprep.subr.bf16.mxu0 0
    %4287 = vmatpush1.bf16.xpose.msra.mxu0 0
    %4288 = vmatprep.subr.bf16.mxu0 0
    %4289 = vmatpush1.bf16.xpose.msra.mxu0 0
    %4290 = vmatprep.subr.bf16.mxu0 0
    %4291 = vmatpush1.bf16.xpose.msra.mxu0 0
    %4292 = vmatprep.subr.bf16.mxu0 0
    %4293 = vmatpush1.bf16.xpose.msra.mxu0 0
    %4294 = vmatprep.subr.bf16.mxu0 0
    %4295 = vmatpush1.bf16.xpose.msra.mxu0 0
    %4296 = vmatprep.subr.bf16.mxu0 0
    %4297 = vmatpush1.bf16.xpose.msra.mxu0 0
    %4298 = vmatprep.mubr.bf16.mxu0 %v1998
    %4299 = vmatmul.mubr.bf16.gmra.mrb[0].mxu0 %v1997
    %v4300 = vpop.f32.mrb[0].mxu0
    %v4301 = vadd.f32 %v4261, %v4300
    %v4302 = vpop.f32.mrb[0].mxu0
    %v4303 = vpop.f32.mrb[0].mxu0
    %v4304 = vpop.f32.mrb[0].mxu0
    %4305 = vdwg.mxu0
    %4306 = vmatprep.subr.bf16.mxu0 %v2857
    %4307 = vmatpush1.bf16.xpose.msra.mxu0 %v2856
    %4308 = vmatprep.subr.bf16.mxu0 0
    %4309 = vmatpush1.bf16.xpose.msra.mxu0 0
    %4310 = vmatprep.subr.bf16.mxu0 0
    %4311 = vmatpush1.bf16.xpose.msra.mxu0 0
    %4312 = vmatprep.subr.bf16.mxu0 0
    %4313 = vmatpush1.bf16.xpose.msra.mxu0 0
    %4314 = vmatprep.subr.bf16.mxu0 0
    %4315 = vmatpush1.bf16.xpose.msra.mxu0 0
    %4316 = vmatprep.subr.bf16.mxu0 0
    %4317 = vmatpush1.bf16.xpose.msra.mxu0 0
    %4318 = vmatprep.subr.bf16.mxu0 0
    %4319 = vmatpush1.bf16.xpose.msra.mxu0 0
    %4320 = vmatprep.subr.bf16.mxu0 0
    %4321 = vmatpush1.bf16.xpose.msra.mxu0 0
    %4322 = vmatprep.subr.bf16.mxu0 0
    %4323 = vmatpush1.bf16.xpose.msra.mxu0 0
    %4324 = vmatprep.subr.bf16.mxu0 0
    %4325 = vmatpush1.bf16.xpose.msra.mxu0 0
    %4326 = vmatprep.subr.bf16.mxu0 0
    %4327 = vmatpush1.bf16.xpose.msra.mxu0 0
    %4328 = vmatprep.subr.bf16.mxu0 0
    %4329 = vmatpush1.bf16.xpose.msra.mxu0 0
    %4330 = vmatprep.subr.bf16.mxu0 0
    %4331 = vmatpush1.bf16.xpose.msra.mxu0 0
    %4332 = vmatprep.subr.bf16.mxu0 0
    %4333 = vmatpush1.bf16.xpose.msra.mxu0 0
    %4334 = vmatprep.subr.bf16.mxu0 0
    %4335 = vmatpush1.bf16.xpose.msra.mxu0 0
    %4336 = vmatprep.subr.bf16.mxu0 0
    %4337 = vmatpush1.bf16.xpose.msra.mxu0 0
    %4338 = vmatprep.mubr.bf16.mxu0 %v2000
    %4339 = vmatmul.mubr.bf16.gmra.mrb[0].mxu0 %v1999
    %v4340 = vpop.f32.mrb[0].mxu0
    %v4341 = vadd.f32 %v4301, %v4340
    %v4342 = vpop.f32.mrb[0].mxu0
    %v4343 = vpop.f32.mrb[0].mxu0
    %v4344 = vpop.f32.mrb[0].mxu0
    %4345 = vdwg.mxu0
    %4346 = vmatprep.subr.bf16.mxu0 %v2859
    %4347 = vmatpush1.bf16.xpose.msra.mxu0 %v2858
    %4348 = vmatprep.subr.bf16.mxu0 0
    %4349 = vmatpush1.bf16.xpose.msra.mxu0 0
    %4350 = vmatprep.subr.bf16.mxu0 0
    %4351 = vmatpush1.bf16.xpose.msra.mxu0 0
    %4352 = vmatprep.subr.bf16.mxu0 0
    %4353 = vmatpush1.bf16.xpose.msra.mxu0 0
    %4354 = vmatprep.subr.bf16.mxu0 0
    %4355 = vmatpush1.bf16.xpose.msra.mxu0 0
    %4356 = vmatprep.subr.bf16.mxu0 0
    %4357 = vmatpush1.bf16.xpose.msra.mxu0 0
    %4358 = vmatprep.subr.bf16.mxu0 0
    %4359 = vmatpush1.bf16.xpose.msra.mxu0 0
    %4360 = vmatprep.subr.bf16.mxu0 0
    %4361 = vmatpush1.bf16.xpose.msra.mxu0 0
    %4362 = vmatprep.subr.bf16.mxu0 0
    %4363 = vmatpush1.bf16.xpose.msra.mxu0 0
    %4364 = vmatprep.subr.bf16.mxu0 0
    %4365 = vmatpush1.bf16.xpose.msra.mxu0 0
    %4366 = vmatprep.subr.bf16.mxu0 0
    %4367 = vmatpush1.bf16.xpose.msra.mxu0 0
    %4368 = vmatprep.subr.bf16.mxu0 0
    %4369 = vmatpush1.bf16.xpose.msra.mxu0 0
    %4370 = vmatprep.subr.bf16.mxu0 0
    %4371 = vmatpush1.bf16.xpose.msra.mxu0 0
    %4372 = vmatprep.subr.bf16.mxu0 0
    %4373 = vmatpush1.bf16.xpose.msra.mxu0 0
    %4374 = vmatprep.subr.bf16.mxu0 0
    %4375 = vmatpush1.bf16.xpose.msra.mxu0 0
    %4376 = vmatprep.subr.bf16.mxu0 0
    %4377 = vmatpush1.bf16.xpose.msra.mxu0 0
    %4378 = vmatprep.mubr.bf16.mxu0 %v2002
    %4379 = vmatmul.mubr.bf16.gmra.mrb[0].mxu0 %v2001
    %v4380 = vpop.f32.mrb[0].mxu0
    %v4381 = vadd.f32 %v4341, %v4380
    %v4382 = vpop.f32.mrb[0].mxu0
    %v4383 = vpop.f32.mrb[0].mxu0
    %v4384 = vpop.f32.mrb[0].mxu0
    %4385 = vdwg.mxu0
    %4386 = vmatprep.subr.bf16.mxu0 %v2861
    %4387 = vmatpush1.bf16.xpose.msra.mxu0 %v2860
    %4388 = vmatprep.subr.bf16.mxu0 0
    %4389 = vmatpush1.bf16.xpose.msra.mxu0 0
    %4390 = vmatprep.subr.bf16.mxu0 0
    %4391 = vmatpush1.bf16.xpose.msra.mxu0 0
    %4392 = vmatprep.subr.bf16.mxu0 0
    %4393 = vmatpush1.bf16.xpose.msra.mxu0 0
    %4394 = vmatprep.subr.bf16.mxu0 0
    %4395 = vmatpush1.bf16.xpose.msra.mxu0 0
    %4396 = vmatprep.subr.bf16.mxu0 0
    %4397 = vmatpush1.bf16.xpose.msra.mxu0 0
    %4398 = vmatprep.subr.bf16.mxu0 0
    %4399 = vmatpush1.bf16.xpose.msra.mxu0 0
    %4400 = vmatprep.subr.bf16.mxu0 0
    %4401 = vmatpush1.bf16.xpose.msra.mxu0 0
    %4402 = vmatprep.subr.bf16.mxu0 0
    %4403 = vmatpush1.bf16.xpose.msra.mxu0 0
    %4404 = vmatprep.subr.bf16.mxu0 0
    %4405 = vmatpush1.bf16.xpose.msra.mxu0 0
    %4406 = vmatprep.subr.bf16.mxu0 0
    %4407 = vmatpush1.bf16.xpose.msra.mxu0 0
    %4408 = vmatprep.subr.bf16.mxu0 0
    %4409 = vmatpush1.bf16.xpose.msra.mxu0 0
    %4410 = vmatprep.subr.bf16.mxu0 0
    %4411 = vmatpush1.bf16.xpose.msra.mxu0 0
    %4412 = vmatprep.subr.bf16.mxu0 0
    %4413 = vmatpush1.bf16.xpose.msra.mxu0 0
    %4414 = vmatprep.subr.bf16.mxu0 0
    %4415 = vmatpush1.bf16.xpose.msra.mxu0 0
    %4416 = vmatprep.subr.bf16.mxu0 0
    %4417 = vmatpush1.bf16.xpose.msra.mxu0 0
    %4418 = vmatprep.mubr.bf16.mxu0 %v2004
    %4419 = vmatmul.mubr.bf16.gmra.mrb[0].mxu0 %v2003
    %v4420 = vpop.f32.mrb[0].mxu0
    %v4421 = vadd.f32 %v4381, %v4420
    %v4422 = vpop.f32.mrb[0].mxu0
    %v4423 = vpop.f32.mrb[0].mxu0
    %v4424 = vpop.f32.mrb[0].mxu0
    %4425 = vdwg.mxu0
    %4426 = vmatprep.subr.bf16.mxu0 %v2863
    %4427 = vmatpush1.bf16.xpose.msra.mxu0 %v2862
    %4428 = vmatprep.subr.bf16.mxu0 0
    %4429 = vmatpush1.bf16.xpose.msra.mxu0 0
    %4430 = vmatprep.subr.bf16.mxu0 0
    %4431 = vmatpush1.bf16.xpose.msra.mxu0 0
    %4432 = vmatprep.subr.bf16.mxu0 0
    %4433 = vmatpush1.bf16.xpose.msra.mxu0 0
    %4434 = vmatprep.subr.bf16.mxu0 0
    %4435 = vmatpush1.bf16.xpose.msra.mxu0 0
    %4436 = vmatprep.subr.bf16.mxu0 0
    %4437 = vmatpush1.bf16.xpose.msra.mxu0 0
    %4438 = vmatprep.subr.bf16.mxu0 0
    %4439 = vmatpush1.bf16.xpose.msra.mxu0 0
    %4440 = vmatprep.subr.bf16.mxu0 0
    %4441 = vmatpush1.bf16.xpose.msra.mxu0 0
    %4442 = vmatprep.subr.bf16.mxu0 0
    %4443 = vmatpush1.bf16.xpose.msra.mxu0 0
    %4444 = vmatprep.subr.bf16.mxu0 0
    %4445 = vmatpush1.bf16.xpose.msra.mxu0 0
    %4446 = vmatprep.subr.bf16.mxu0 0
    %4447 = vmatpush1.bf16.xpose.msra.mxu0 0
    %4448 = vmatprep.subr.bf16.mxu0 0
    %4449 = vmatpush1.bf16.xpose.msra.mxu0 0
    %4450 = vmatprep.subr.bf16.mxu0 0
    %4451 = vmatpush1.bf16.xpose.msra.mxu0 0
    %4452 = vmatprep.subr.bf16.mxu0 0
    %4453 = vmatpush1.bf16.xpose.msra.mxu0 0
    %4454 = vmatprep.subr.bf16.mxu0 0
    %4455 = vmatpush1.bf16.xpose.msra.mxu0 0
    %4456 = vmatprep.subr.bf16.mxu0 0
    %4457 = vmatpush1.bf16.xpose.msra.mxu0 0
    %4458 = vmatprep.mubr.bf16.mxu0 %v2006
    %4459 = vmatmul.mubr.bf16.gmra.mrb[0].mxu0 %v2005
    %v4460 = vpop.f32.mrb[0].mxu0
    %v4461 = vadd.f32 %v4421, %v4460
    %v4462 = vpop.f32.mrb[0].mxu0
    %v4463 = vpop.f32.mrb[0].mxu0
    %v4464 = vpop.f32.mrb[0].mxu0
    %4465 = vdwg.mxu0
    %4466 = vmatprep.subr.bf16.mxu0 %v2865
    %4467 = vmatpush1.bf16.xpose.msra.mxu0 %v2864
    %4468 = vmatprep.subr.bf16.mxu0 0
    %4469 = vmatpush1.bf16.xpose.msra.mxu0 0
    %4470 = vmatprep.subr.bf16.mxu0 0
    %4471 = vmatpush1.bf16.xpose.msra.mxu0 0
    %4472 = vmatprep.subr.bf16.mxu0 0
    %4473 = vmatpush1.bf16.xpose.msra.mxu0 0
    %4474 = vmatprep.subr.bf16.mxu0 0
    %4475 = vmatpush1.bf16.xpose.msra.mxu0 0
    %4476 = vmatprep.subr.bf16.mxu0 0
    %4477 = vmatpush1.bf16.xpose.msra.mxu0 0
    %4478 = vmatprep.subr.bf16.mxu0 0
    %4479 = vmatpush1.bf16.xpose.msra.mxu0 0
    %4480 = vmatprep.subr.bf16.mxu0 0
    %4481 = vmatpush1.bf16.xpose.msra.mxu0 0
    %4482 = vmatprep.subr.bf16.mxu0 0
    %4483 = vmatpush1.bf16.xpose.msra.mxu0 0
    %4484 = vmatprep.subr.bf16.mxu0 0
    %4485 = vmatpush1.bf16.xpose.msra.mxu0 0
    %4486 = vmatprep.subr.bf16.mxu0 0
    %4487 = vmatpush1.bf16.xpose.msra.mxu0 0
    %4488 = vmatprep.subr.bf16.mxu0 0
    %4489 = vmatpush1.bf16.xpose.msra.mxu0 0
    %4490 = vmatprep.subr.bf16.mxu0 0
    %4491 = vmatpush1.bf16.xpose.msra.mxu0 0
    %4492 = vmatprep.subr.bf16.mxu0 0
    %4493 = vmatpush1.bf16.xpose.msra.mxu0 0
    %4494 = vmatprep.subr.bf16.mxu0 0
    %4495 = vmatpush1.bf16.xpose.msra.mxu0 0
    %4496 = vmatprep.subr.bf16.mxu0 0
    %4497 = vmatpush1.bf16.xpose.msra.mxu0 0
    %4498 = vmatprep.mubr.bf16.mxu0 %v2008
    %4499 = vmatmul.mubr.bf16.gmra.mrb[0].mxu0 %v2007
    %v4500 = vpop.f32.mrb[0].mxu0
    %v4501 = vadd.f32 %v4461, %v4500
    %v4502 = vpop.f32.mrb[0].mxu0
    %v4503 = vpop.f32.mrb[0].mxu0
    %v4504 = vpop.f32.mrb[0].mxu0
    %4505 = vdwg.mxu0
    %4506 = vmatprep.subr.bf16.mxu0 %v2867
    %4507 = vmatpush1.bf16.xpose.msra.mxu0 %v2866
    %4508 = vmatprep.subr.bf16.mxu0 0
    %4509 = vmatpush1.bf16.xpose.msra.mxu0 0
    %4510 = vmatprep.subr.bf16.mxu0 0
    %4511 = vmatpush1.bf16.xpose.msra.mxu0 0
    %4512 = vmatprep.subr.bf16.mxu0 0
    %4513 = vmatpush1.bf16.xpose.msra.mxu0 0
    %4514 = vmatprep.subr.bf16.mxu0 0
    %4515 = vmatpush1.bf16.xpose.msra.mxu0 0
    %4516 = vmatprep.subr.bf16.mxu0 0
    %4517 = vmatpush1.bf16.xpose.msra.mxu0 0
    %4518 = vmatprep.subr.bf16.mxu0 0
    %4519 = vmatpush1.bf16.xpose.msra.mxu0 0
    %4520 = vmatprep.subr.bf16.mxu0 0
    %4521 = vmatpush1.bf16.xpose.msra.mxu0 0
    %4522 = vmatprep.subr.bf16.mxu0 0
    %4523 = vmatpush1.bf16.xpose.msra.mxu0 0
    %4524 = vmatprep.subr.bf16.mxu0 0
    %4525 = vmatpush1.bf16.xpose.msra.mxu0 0
    %4526 = vmatprep.subr.bf16.mxu0 0
    %4527 = vmatpush1.bf16.xpose.msra.mxu0 0
    %4528 = vmatprep.subr.bf16.mxu0 0
    %4529 = vmatpush1.bf16.xpose.msra.mxu0 0
    %4530 = vmatprep.subr.bf16.mxu0 0
    %4531 = vmatpush1.bf16.xpose.msra.mxu0 0
    %4532 = vmatprep.subr.bf16.mxu0 0
    %4533 = vmatpush1.bf16.xpose.msra.mxu0 0
    %4534 = vmatprep.subr.bf16.mxu0 0
    %4535 = vmatpush1.bf16.xpose.msra.mxu0 0
    %4536 = vmatprep.subr.bf16.mxu0 0
    %4537 = vmatpush1.bf16.xpose.msra.mxu0 0
    %4538 = vmatprep.mubr.bf16.mxu0 %v2010
    %4539 = vmatmul.mubr.bf16.gmra.mrb[0].mxu0 %v2009
    %v4540 = vpop.f32.mrb[0].mxu0
    %v4541 = vadd.f32 %v4501, %v4540
    %v4542 = vpop.f32.mrb[0].mxu0
    %v4543 = vpop.f32.mrb[0].mxu0
    %v4544 = vpop.f32.mrb[0].mxu0
    %4545 = vdwg.mxu0
    %4546 = vmatprep.subr.bf16.mxu0 %v2869
    %4547 = vmatpush1.bf16.xpose.msra.mxu0 %v2868
    %4548 = vmatprep.subr.bf16.mxu0 0
    %4549 = vmatpush1.bf16.xpose.msra.mxu0 0
    %4550 = vmatprep.subr.bf16.mxu0 0
    %4551 = vmatpush1.bf16.xpose.msra.mxu0 0
    %4552 = vmatprep.subr.bf16.mxu0 0
    %4553 = vmatpush1.bf16.xpose.msra.mxu0 0
    %4554 = vmatprep.subr.bf16.mxu0 0
    %4555 = vmatpush1.bf16.xpose.msra.mxu0 0
    %4556 = vmatprep.subr.bf16.mxu0 0
    %4557 = vmatpush1.bf16.xpose.msra.mxu0 0
    %4558 = vmatprep.subr.bf16.mxu0 0
    %4559 = vmatpush1.bf16.xpose.msra.mxu0 0
    %4560 = vmatprep.subr.bf16.mxu0 0
    %4561 = vmatpush1.bf16.xpose.msra.mxu0 0
    %4562 = vmatprep.subr.bf16.mxu0 0
    %4563 = vmatpush1.bf16.xpose.msra.mxu0 0
    %4564 = vmatprep.subr.bf16.mxu0 0
    %4565 = vmatpush1.bf16.xpose.msra.mxu0 0
    %4566 = vmatprep.subr.bf16.mxu0 0
    %4567 = vmatpush1.bf16.xpose.msra.mxu0 0
    %4568 = vmatprep.subr.bf16.mxu0 0
    %4569 = vmatpush1.bf16.xpose.msra.mxu0 0
    %4570 = vmatprep.subr.bf16.mxu0 0
    %4571 = vmatpush1.bf16.xpose.msra.mxu0 0
    %4572 = vmatprep.subr.bf16.mxu0 0
    %4573 = vmatpush1.bf16.xpose.msra.mxu0 0
    %4574 = vmatprep.subr.bf16.mxu0 0
    %4575 = vmatpush1.bf16.xpose.msra.mxu0 0
    %4576 = vmatprep.subr.bf16.mxu0 0
    %4577 = vmatpush1.bf16.xpose.msra.mxu0 0
    %4578 = vmatprep.mubr.bf16.mxu0 %v2012
    %4579 = vmatmul.mubr.bf16.gmra.mrb[0].mxu0 %v2011
    %v4580 = vpop.f32.mrb[0].mxu0
    %v4581 = vadd.f32 %v4541, %v4580
    %v4582 = vpop.f32.mrb[0].mxu0
    %v4583 = vpop.f32.mrb[0].mxu0
    %v4584 = vpop.f32.mrb[0].mxu0
    %4585 = vdwg.mxu0
    %4586 = vmatprep.subr.bf16.mxu0 %v2871
    %4587 = vmatpush1.bf16.xpose.msra.mxu0 %v2870
    %4588 = vmatprep.subr.bf16.mxu0 0
    %4589 = vmatpush1.bf16.xpose.msra.mxu0 0
    %4590 = vmatprep.subr.bf16.mxu0 0
    %4591 = vmatpush1.bf16.xpose.msra.mxu0 0
    %4592 = vmatprep.subr.bf16.mxu0 0
    %4593 = vmatpush1.bf16.xpose.msra.mxu0 0
    %4594 = vmatprep.subr.bf16.mxu0 0
    %4595 = vmatpush1.bf16.xpose.msra.mxu0 0
    %4596 = vmatprep.subr.bf16.mxu0 0
    %4597 = vmatpush1.bf16.xpose.msra.mxu0 0
    %4598 = vmatprep.subr.bf16.mxu0 0
    %4599 = vmatpush1.bf16.xpose.msra.mxu0 0
    %4600 = vmatprep.subr.bf16.mxu0 0
    %4601 = vmatpush1.bf16.xpose.msra.mxu0 0
    %4602 = vmatprep.subr.bf16.mxu0 0
    %4603 = vmatpush1.bf16.xpose.msra.mxu0 0
    %4604 = vmatprep.subr.bf16.mxu0 0
    %4605 = vmatpush1.bf16.xpose.msra.mxu0 0
    %4606 = vmatprep.subr.bf16.mxu0 0
    %4607 = vmatpush1.bf16.xpose.msra.mxu0 0
    %4608 = vmatprep.subr.bf16.mxu0 0
    %4609 = vmatpush1.bf16.xpose.msra.mxu0 0
    %4610 = vmatprep.subr.bf16.mxu0 0
    %4611 = vmatpush1.bf16.xpose.msra.mxu0 0
    %4612 = vmatprep.subr.bf16.mxu0 0
    %4613 = vmatpush1.bf16.xpose.msra.mxu0 0
    %4614 = vmatprep.subr.bf16.mxu0 0
    %4615 = vmatpush1.bf16.xpose.msra.mxu0 0
    %4616 = vmatprep.subr.bf16.mxu0 0
    %4617 = vmatpush1.bf16.xpose.msra.mxu0 0
    %4618 = vmatprep.mubr.bf16.mxu0 %v2014
    %4619 = vmatmul.mubr.bf16.gmra.mrb[0].mxu0 %v2013
    %v4620 = vpop.f32.mrb[0].mxu0
    %v4621 = vadd.f32 %v4581, %v4620
    %v4622 = vpop.f32.mrb[0].mxu0
    %v4623 = vpop.f32.mrb[0].mxu0
    %v4624 = vpop.f32.mrb[0].mxu0
    %4625 = vdwg.mxu0
    %4626 = vmatprep.subr.bf16.mxu0 %v2873
    %4627 = vmatpush1.bf16.xpose.msra.mxu0 %v2872
    %4628 = vmatprep.subr.bf16.mxu0 0
    %4629 = vmatpush1.bf16.xpose.msra.mxu0 0
    %4630 = vmatprep.subr.bf16.mxu0 0
    %4631 = vmatpush1.bf16.xpose.msra.mxu0 0
    %4632 = vmatprep.subr.bf16.mxu0 0
    %4633 = vmatpush1.bf16.xpose.msra.mxu0 0
    %4634 = vmatprep.subr.bf16.mxu0 0
    %4635 = vmatpush1.bf16.xpose.msra.mxu0 0
    %4636 = vmatprep.subr.bf16.mxu0 0
    %4637 = vmatpush1.bf16.xpose.msra.mxu0 0
    %4638 = vmatprep.subr.bf16.mxu0 0
    %4639 = vmatpush1.bf16.xpose.msra.mxu0 0
    %4640 = vmatprep.subr.bf16.mxu0 0
    %4641 = vmatpush1.bf16.xpose.msra.mxu0 0
    %4642 = vmatprep.subr.bf16.mxu0 0
    %4643 = vmatpush1.bf16.xpose.msra.mxu0 0
    %4644 = vmatprep.subr.bf16.mxu0 0
    %4645 = vmatpush1.bf16.xpose.msra.mxu0 0
    %4646 = vmatprep.subr.bf16.mxu0 0
    %4647 = vmatpush1.bf16.xpose.msra.mxu0 0
    %4648 = vmatprep.subr.bf16.mxu0 0
    %4649 = vmatpush1.bf16.xpose.msra.mxu0 0
    %4650 = vmatprep.subr.bf16.mxu0 0
    %4651 = vmatpush1.bf16.xpose.msra.mxu0 0
    %4652 = vmatprep.subr.bf16.mxu0 0
    %4653 = vmatpush1.bf16.xpose.msra.mxu0 0
    %4654 = vmatprep.subr.bf16.mxu0 0
    %4655 = vmatpush1.bf16.xpose.msra.mxu0 0
    %4656 = vmatprep.subr.bf16.mxu0 0
    %4657 = vmatpush1.bf16.xpose.msra.mxu0 0
    %4658 = vmatprep.mubr.bf16.mxu0 %v2016
    %4659 = vmatmul.mubr.bf16.gmra.mrb[0].mxu0 %v2015
    %v4660 = vpop.f32.mrb[0].mxu0
    %v4661 = vadd.f32 %v4621, %v4660
    %v4662 = vpop.f32.mrb[0].mxu0
    %v4663 = vpop.f32.mrb[0].mxu0
    %v4664 = vpop.f32.mrb[0].mxu0
    %4665 = vdwg.mxu0
    %4666 = vmatprep.subr.bf16.mxu0 %v2875
    %4667 = vmatpush1.bf16.xpose.msra.mxu0 %v2874
    %4668 = vmatprep.subr.bf16.mxu0 0
    %4669 = vmatpush1.bf16.xpose.msra.mxu0 0
    %4670 = vmatprep.subr.bf16.mxu0 0
    %4671 = vmatpush1.bf16.xpose.msra.mxu0 0
    %4672 = vmatprep.subr.bf16.mxu0 0
    %4673 = vmatpush1.bf16.xpose.msra.mxu0 0
    %4674 = vmatprep.subr.bf16.mxu0 0
    %4675 = vmatpush1.bf16.xpose.msra.mxu0 0
    %4676 = vmatprep.subr.bf16.mxu0 0
    %4677 = vmatpush1.bf16.xpose.msra.mxu0 0
    %4678 = vmatprep.subr.bf16.mxu0 0
    %4679 = vmatpush1.bf16.xpose.msra.mxu0 0
    %4680 = vmatprep.subr.bf16.mxu0 0
    %4681 = vmatpush1.bf16.xpose.msra.mxu0 0
    %4682 = vmatprep.subr.bf16.mxu0 0
    %4683 = vmatpush1.bf16.xpose.msra.mxu0 0
    %4684 = vmatprep.subr.bf16.mxu0 0
    %4685 = vmatpush1.bf16.xpose.msra.mxu0 0
    %4686 = vmatprep.subr.bf16.mxu0 0
    %4687 = vmatpush1.bf16.xpose.msra.mxu0 0
    %4688 = vmatprep.subr.bf16.mxu0 0
    %4689 = vmatpush1.bf16.xpose.msra.mxu0 0
    %4690 = vmatprep.subr.bf16.mxu0 0
    %4691 = vmatpush1.bf16.xpose.msra.mxu0 0
    %4692 = vmatprep.subr.bf16.mxu0 0
    %4693 = vmatpush1.bf16.xpose.msra.mxu0 0
    %4694 = vmatprep.subr.bf16.mxu0 0
    %4695 = vmatpush1.bf16.xpose.msra.mxu0 0
    %4696 = vmatprep.subr.bf16.mxu0 0
    %4697 = vmatpush1.bf16.xpose.msra.mxu0 0
    %4698 = vmatprep.mubr.bf16.mxu0 %v2018
    %4699 = vmatmul.mubr.bf16.gmra.mrb[0].mxu0 %v2017
    %v4700 = vpop.f32.mrb[0].mxu0
    %v4701 = vadd.f32 %v4661, %v4700
    %v4702 = vpop.f32.mrb[0].mxu0
    %v4703 = vpop.f32.mrb[0].mxu0
    %v4704 = vpop.f32.mrb[0].mxu0
    %4705 = vdwg.mxu0
    %4706 = vmatprep.subr.bf16.mxu0 %v2877
    %4707 = vmatpush1.bf16.xpose.msra.mxu0 %v2876
    %4708 = vmatprep.subr.bf16.mxu0 0
    %4709 = vmatpush1.bf16.xpose.msra.mxu0 0
    %4710 = vmatprep.subr.bf16.mxu0 0
    %4711 = vmatpush1.bf16.xpose.msra.mxu0 0
    %4712 = vmatprep.subr.bf16.mxu0 0
    %4713 = vmatpush1.bf16.xpose.msra.mxu0 0
    %4714 = vmatprep.subr.bf16.mxu0 0
    %4715 = vmatpush1.bf16.xpose.msra.mxu0 0
    %4716 = vmatprep.subr.bf16.mxu0 0
    %4717 = vmatpush1.bf16.xpose.msra.mxu0 0
    %4718 = vmatprep.subr.bf16.mxu0 0
    %4719 = vmatpush1.bf16.xpose.msra.mxu0 0
    %4720 = vmatprep.subr.bf16.mxu0 0
    %4721 = vmatpush1.bf16.xpose.msra.mxu0 0
    %4722 = vmatprep.subr.bf16.mxu0 0
    %4723 = vmatpush1.bf16.xpose.msra.mxu0 0
    %4724 = vmatprep.subr.bf16.mxu0 0
    %4725 = vmatpush1.bf16.xpose.msra.mxu0 0
    %4726 = vmatprep.subr.bf16.mxu0 0
    %4727 = vmatpush1.bf16.xpose.msra.mxu0 0
    %4728 = vmatprep.subr.bf16.mxu0 0
    %4729 = vmatpush1.bf16.xpose.msra.mxu0 0
    %4730 = vmatprep.subr.bf16.mxu0 0
    %4731 = vmatpush1.bf16.xpose.msra.mxu0 0
    %4732 = vmatprep.subr.bf16.mxu0 0
    %4733 = vmatpush1.bf16.xpose.msra.mxu0 0
    %4734 = vmatprep.subr.bf16.mxu0 0
    %4735 = vmatpush1.bf16.xpose.msra.mxu0 0
    %4736 = vmatprep.subr.bf16.mxu0 0
    %4737 = vmatpush1.bf16.xpose.msra.mxu0 0
    %4738 = vmatprep.mubr.bf16.mxu0 %v2020
    %4739 = vmatmul.mubr.bf16.gmra.mrb[0].mxu0 %v2019
    %v4740 = vpop.f32.mrb[0].mxu0
    %v4741 = vadd.f32 %v4701, %v4740
    %v4742 = vpop.f32.mrb[0].mxu0
    %v4743 = vpop.f32.mrb[0].mxu0
    %v4744 = vpop.f32.mrb[0].mxu0
    %4745 = vdwg.mxu0
    %4746 = vmatprep.subr.bf16.mxu0 %v2879
    %4747 = vmatpush1.bf16.xpose.msra.mxu0 %v2878
    %4748 = vmatprep.subr.bf16.mxu0 0
    %4749 = vmatpush1.bf16.xpose.msra.mxu0 0
    %4750 = vmatprep.subr.bf16.mxu0 0
    %4751 = vmatpush1.bf16.xpose.msra.mxu0 0
    %4752 = vmatprep.subr.bf16.mxu0 0
    %4753 = vmatpush1.bf16.xpose.msra.mxu0 0
    %4754 = vmatprep.subr.bf16.mxu0 0
    %4755 = vmatpush1.bf16.xpose.msra.mxu0 0
    %4756 = vmatprep.subr.bf16.mxu0 0
    %4757 = vmatpush1.bf16.xpose.msra.mxu0 0
    %4758 = vmatprep.subr.bf16.mxu0 0
    %4759 = vmatpush1.bf16.xpose.msra.mxu0 0
    %4760 = vmatprep.subr.bf16.mxu0 0
    %4761 = vmatpush1.bf16.xpose.msra.mxu0 0
    %4762 = vmatprep.subr.bf16.mxu0 0
    %4763 = vmatpush1.bf16.xpose.msra.mxu0 0
    %4764 = vmatprep.subr.bf16.mxu0 0
    %4765 = vmatpush1.bf16.xpose.msra.mxu0 0
    %4766 = vmatprep.subr.bf16.mxu0 0
    %4767 = vmatpush1.bf16.xpose.msra.mxu0 0
    %4768 = vmatprep.subr.bf16.mxu0 0
    %4769 = vmatpush1.bf16.xpose.msra.mxu0 0
    %4770 = vmatprep.subr.bf16.mxu0 0
    %4771 = vmatpush1.bf16.xpose.msra.mxu0 0
    %4772 = vmatprep.subr.bf16.mxu0 0
    %4773 = vmatpush1.bf16.xpose.msra.mxu0 0
    %4774 = vmatprep.subr.bf16.mxu0 0
    %4775 = vmatpush1.bf16.xpose.msra.mxu0 0
    %4776 = vmatprep.subr.bf16.mxu0 0
    %4777 = vmatpush1.bf16.xpose.msra.mxu0 0
    %4778 = vmatprep.mubr.bf16.mxu0 %v2022
    %4779 = vmatmul.mubr.bf16.gmra.mrb[0].mxu0 %v2021
    %v4780 = vpop.f32.mrb[0].mxu0
    %v4781 = vadd.f32 %v4741, %v4780
    %v4782 = vpop.f32.mrb[0].mxu0
    %v4783 = vpop.f32.mrb[0].mxu0
    %v4784 = vpop.f32.mrb[0].mxu0
    %4785 = vdwg.mxu0
    %4786 = vmatprep.subr.bf16.mxu0 %v2881
    %4787 = vmatpush1.bf16.xpose.msra.mxu0 %v2880
    %4788 = vmatprep.subr.bf16.mxu0 0
    %4789 = vmatpush1.bf16.xpose.msra.mxu0 0
    %4790 = vmatprep.subr.bf16.mxu0 0
    %4791 = vmatpush1.bf16.xpose.msra.mxu0 0
    %4792 = vmatprep.subr.bf16.mxu0 0
    %4793 = vmatpush1.bf16.xpose.msra.mxu0 0
    %4794 = vmatprep.subr.bf16.mxu0 0
    %4795 = vmatpush1.bf16.xpose.msra.mxu0 0
    %4796 = vmatprep.subr.bf16.mxu0 0
    %4797 = vmatpush1.bf16.xpose.msra.mxu0 0
    %4798 = vmatprep.subr.bf16.mxu0 0
    %4799 = vmatpush1.bf16.xpose.msra.mxu0 0
    %4800 = vmatprep.subr.bf16.mxu0 0
    %4801 = vmatpush1.bf16.xpose.msra.mxu0 0
    %4802 = vmatprep.subr.bf16.mxu0 0
    %4803 = vmatpush1.bf16.xpose.msra.mxu0 0
    %4804 = vmatprep.subr.bf16.mxu0 0
    %4805 = vmatpush1.bf16.xpose.msra.mxu0 0
    %4806 = vmatprep.subr.bf16.mxu0 0
    %4807 = vmatpush1.bf16.xpose.msra.mxu0 0
    %4808 = vmatprep.subr.bf16.mxu0 0
    %4809 = vmatpush1.bf16.xpose.msra.mxu0 0
    %4810 = vmatprep.subr.bf16.mxu0 0
    %4811 = vmatpush1.bf16.xpose.msra.mxu0 0
    %4812 = vmatprep.subr.bf16.mxu0 0
    %4813 = vmatpush1.bf16.xpose.msra.mxu0 0
    %4814 = vmatprep.subr.bf16.mxu0 0
    %4815 = vmatpush1.bf16.xpose.msra.mxu0 0
    %4816 = vmatprep.subr.bf16.mxu0 0
    %4817 = vmatpush1.bf16.xpose.msra.mxu0 0
    %4818 = vmatprep.mubr.bf16.mxu0 %v2024
    %4819 = vmatmul.mubr.bf16.gmra.mrb[0].mxu0 %v2023
    %v4820 = vpop.f32.mrb[0].mxu0
    %v4821 = vadd.f32 %v4781, %v4820
    %v4822 = vpop.f32.mrb[0].mxu0
    %v4823 = vpop.f32.mrb[0].mxu0
    %v4824 = vpop.f32.mrb[0].mxu0
    %4825 = vdwg.mxu0
    %4826 = vmatprep.subr.bf16.mxu0 %v2883
    %4827 = vmatpush1.bf16.xpose.msra.mxu0 %v2882
    %4828 = vmatprep.subr.bf16.mxu0 0
    %4829 = vmatpush1.bf16.xpose.msra.mxu0 0
    %4830 = vmatprep.subr.bf16.mxu0 0
    %4831 = vmatpush1.bf16.xpose.msra.mxu0 0
    %4832 = vmatprep.subr.bf16.mxu0 0
    %4833 = vmatpush1.bf16.xpose.msra.mxu0 0
    %4834 = vmatprep.subr.bf16.mxu0 0
    %4835 = vmatpush1.bf16.xpose.msra.mxu0 0
    %4836 = vmatprep.subr.bf16.mxu0 0
    %4837 = vmatpush1.bf16.xpose.msra.mxu0 0
    %4838 = vmatprep.subr.bf16.mxu0 0
    %4839 = vmatpush1.bf16.xpose.msra.mxu0 0
    %4840 = vmatprep.subr.bf16.mxu0 0
    %4841 = vmatpush1.bf16.xpose.msra.mxu0 0
    %4842 = vmatprep.subr.bf16.mxu0 0
    %4843 = vmatpush1.bf16.xpose.msra.mxu0 0
    %4844 = vmatprep.subr.bf16.mxu0 0
    %4845 = vmatpush1.bf16.xpose.msra.mxu0 0
    %4846 = vmatprep.subr.bf16.mxu0 0
    %4847 = vmatpush1.bf16.xpose.msra.mxu0 0
    %4848 = vmatprep.subr.bf16.mxu0 0
    %4849 = vmatpush1.bf16.xpose.msra.mxu0 0
    %4850 = vmatprep.subr.bf16.mxu0 0
    %4851 = vmatpush1.bf16.xpose.msra.mxu0 0
    %4852 = vmatprep.subr.bf16.mxu0 0
    %4853 = vmatpush1.bf16.xpose.msra.mxu0 0
    %4854 = vmatprep.subr.bf16.mxu0 0
    %4855 = vmatpush1.bf16.xpose.msra.mxu0 0
    %4856 = vmatprep.subr.bf16.mxu0 0
    %4857 = vmatpush1.bf16.xpose.msra.mxu0 0
    %4858 = vmatprep.mubr.bf16.mxu0 %v2026
    %4859 = vmatmul.mubr.bf16.gmra.mrb[0].mxu0 %v2025
    %v4860 = vpop.f32.mrb[0].mxu0
    %v4861 = vadd.f32 %v4821, %v4860
    %v4862 = vpop.f32.mrb[0].mxu0
    %v4863 = vpop.f32.mrb[0].mxu0
    %v4864 = vpop.f32.mrb[0].mxu0
    %4865 = vdwg.mxu0
    %4866 = vmatprep.subr.bf16.mxu0 %v2885
    %4867 = vmatpush1.bf16.xpose.msra.mxu0 %v2884
    %4868 = vmatprep.subr.bf16.mxu0 0
    %4869 = vmatpush1.bf16.xpose.msra.mxu0 0
    %4870 = vmatprep.subr.bf16.mxu0 0
    %4871 = vmatpush1.bf16.xpose.msra.mxu0 0
    %4872 = vmatprep.subr.bf16.mxu0 0
    %4873 = vmatpush1.bf16.xpose.msra.mxu0 0
    %4874 = vmatprep.subr.bf16.mxu0 0
    %4875 = vmatpush1.bf16.xpose.msra.mxu0 0
    %4876 = vmatprep.subr.bf16.mxu0 0
    %4877 = vmatpush1.bf16.xpose.msra.mxu0 0
    %4878 = vmatprep.subr.bf16.mxu0 0
    %4879 = vmatpush1.bf16.xpose.msra.mxu0 0
    %4880 = vmatprep.subr.bf16.mxu0 0
    %4881 = vmatpush1.bf16.xpose.msra.mxu0 0
    %4882 = vmatprep.subr.bf16.mxu0 0
    %4883 = vmatpush1.bf16.xpose.msra.mxu0 0
    %4884 = vmatprep.subr.bf16.mxu0 0
    %4885 = vmatpush1.bf16.xpose.msra.mxu0 0
    %4886 = vmatprep.subr.bf16.mxu0 0
    %4887 = vmatpush1.bf16.xpose.msra.mxu0 0
    %4888 = vmatprep.subr.bf16.mxu0 0
    %4889 = vmatpush1.bf16.xpose.msra.mxu0 0
    %4890 = vmatprep.subr.bf16.mxu0 0
    %4891 = vmatpush1.bf16.xpose.msra.mxu0 0
    %4892 = vmatprep.subr.bf16.mxu0 0
    %4893 = vmatpush1.bf16.xpose.msra.mxu0 0
    %4894 = vmatprep.subr.bf16.mxu0 0
    %4895 = vmatpush1.bf16.xpose.msra.mxu0 0
    %4896 = vmatprep.subr.bf16.mxu0 0
    %4897 = vmatpush1.bf16.xpose.msra.mxu0 0
    %4898 = vmatprep.mubr.bf16.mxu0 %v2028
    %4899 = vmatmul.mubr.bf16.gmra.mrb[0].mxu0 %v2027
    %v4900 = vpop.f32.mrb[0].mxu0
    %v4901 = vadd.f32 %v4861, %v4900
    %v4902 = vpop.f32.mrb[0].mxu0
    %v4903 = vpop.f32.mrb[0].mxu0
    %v4904 = vpop.f32.mrb[0].mxu0
    %4905 = vdwg.mxu0
    %4906 = vmatprep.subr.bf16.mxu0 %v2887
    %4907 = vmatpush1.bf16.xpose.msra.mxu0 %v2886
    %4908 = vmatprep.subr.bf16.mxu0 0
    %4909 = vmatpush1.bf16.xpose.msra.mxu0 0
    %4910 = vmatprep.subr.bf16.mxu0 0
    %4911 = vmatpush1.bf16.xpose.msra.mxu0 0
    %4912 = vmatprep.subr.bf16.mxu0 0
    %4913 = vmatpush1.bf16.xpose.msra.mxu0 0
    %4914 = vmatprep.subr.bf16.mxu0 0
    %4915 = vmatpush1.bf16.xpose.msra.mxu0 0
    %4916 = vmatprep.subr.bf16.mxu0 0
    %4917 = vmatpush1.bf16.xpose.msra.mxu0 0
    %4918 = vmatprep.subr.bf16.mxu0 0
    %4919 = vmatpush1.bf16.xpose.msra.mxu0 0
    %4920 = vmatprep.subr.bf16.mxu0 0
    %4921 = vmatpush1.bf16.xpose.msra.mxu0 0
    %4922 = vmatprep.subr.bf16.mxu0 0
    %4923 = vmatpush1.bf16.xpose.msra.mxu0 0
    %4924 = vmatprep.subr.bf16.mxu0 0
    %4925 = vmatpush1.bf16.xpose.msra.mxu0 0
    %4926 = vmatprep.subr.bf16.mxu0 0
    %4927 = vmatpush1.bf16.xpose.msra.mxu0 0
    %4928 = vmatprep.subr.bf16.mxu0 0
    %4929 = vmatpush1.bf16.xpose.msra.mxu0 0
    %4930 = vmatprep.subr.bf16.mxu0 0
    %4931 = vmatpush1.bf16.xpose.msra.mxu0 0
    %4932 = vmatprep.subr.bf16.mxu0 0
    %4933 = vmatpush1.bf16.xpose.msra.mxu0 0
    %4934 = vmatprep.subr.bf16.mxu0 0
    %4935 = vmatpush1.bf16.xpose.msra.mxu0 0
    %4936 = vmatprep.subr.bf16.mxu0 0
    %4937 = vmatpush1.bf16.xpose.msra.mxu0 0
    %4938 = vmatprep.mubr.bf16.mxu0 %v2030
    %4939 = vmatmul.mubr.bf16.gmra.mrb[0].mxu0 %v2029
    %v4940 = vpop.f32.mrb[0].mxu0
    %v4941 = vadd.f32 %v4901, %v4940
    %v4942 = vpop.f32.mrb[0].mxu0
    %v4943 = vpop.f32.mrb[0].mxu0
    %v4944 = vpop.f32.mrb[0].mxu0
    %4945 = vdwg.mxu0
    %4946 = vmatprep.subr.bf16.mxu0 %v2889
    %4947 = vmatpush1.bf16.xpose.msra.mxu0 %v2888
    %4948 = vmatprep.subr.bf16.mxu0 0
    %4949 = vmatpush1.bf16.xpose.msra.mxu0 0
    %4950 = vmatprep.subr.bf16.mxu0 0
    %4951 = vmatpush1.bf16.xpose.msra.mxu0 0
    %4952 = vmatprep.subr.bf16.mxu0 0
    %4953 = vmatpush1.bf16.xpose.msra.mxu0 0
    %4954 = vmatprep.subr.bf16.mxu0 0
    %4955 = vmatpush1.bf16.xpose.msra.mxu0 0
    %4956 = vmatprep.subr.bf16.mxu0 0
    %4957 = vmatpush1.bf16.xpose.msra.mxu0 0
    %4958 = vmatprep.subr.bf16.mxu0 0
    %4959 = vmatpush1.bf16.xpose.msra.mxu0 0
    %4960 = vmatprep.subr.bf16.mxu0 0
    %4961 = vmatpush1.bf16.xpose.msra.mxu0 0
    %4962 = vmatprep.subr.bf16.mxu0 0
    %4963 = vmatpush1.bf16.xpose.msra.mxu0 0
    %4964 = vmatprep.subr.bf16.mxu0 0
    %4965 = vmatpush1.bf16.xpose.msra.mxu0 0
    %4966 = vmatprep.subr.bf16.mxu0 0
    %4967 = vmatpush1.bf16.xpose.msra.mxu0 0
    %4968 = vmatprep.subr.bf16.mxu0 0
    %4969 = vmatpush1.bf16.xpose.msra.mxu0 0
    %4970 = vmatprep.subr.bf16.mxu0 0
    %4971 = vmatpush1.bf16.xpose.msra.mxu0 0
    %4972 = vmatprep.subr.bf16.mxu0 0
    %4973 = vmatpush1.bf16.xpose.msra.mxu0 0
    %4974 = vmatprep.subr.bf16.mxu0 0
    %4975 = vmatpush1.bf16.xpose.msra.mxu0 0
    %4976 = vmatprep.subr.bf16.mxu0 0
    %4977 = vmatpush1.bf16.xpose.msra.mxu0 0
    %4978 = vmatprep.mubr.bf16.mxu0 %v2032
    %4979 = vmatmul.mubr.bf16.gmra.mrb[0].mxu0 %v2031
    %v4980 = vpop.f32.mrb[0].mxu0
    %v4981 = vadd.f32 %v4941, %v4980
    %v4982 = vpop.f32.mrb[0].mxu0
    %v4983 = vpop.f32.mrb[0].mxu0
    %v4984 = vpop.f32.mrb[0].mxu0
    %4985 = vdwg.mxu0
    %4986 = vmatprep.subr.bf16.mxu0 %v2891
    %4987 = vmatpush1.bf16.xpose.msra.mxu0 %v2890
    %4988 = vmatprep.subr.bf16.mxu0 0
    %4989 = vmatpush1.bf16.xpose.msra.mxu0 0
    %4990 = vmatprep.subr.bf16.mxu0 0
    %4991 = vmatpush1.bf16.xpose.msra.mxu0 0
    %4992 = vmatprep.subr.bf16.mxu0 0
    %4993 = vmatpush1.bf16.xpose.msra.mxu0 0
    %4994 = vmatprep.subr.bf16.mxu0 0
    %4995 = vmatpush1.bf16.xpose.msra.mxu0 0
    %4996 = vmatprep.subr.bf16.mxu0 0
    %4997 = vmatpush1.bf16.xpose.msra.mxu0 0
    %4998 = vmatprep.subr.bf16.mxu0 0
    %4999 = vmatpush1.bf16.xpose.msra.mxu0 0
    %5000 = vmatprep.subr.bf16.mxu0 0
    %5001 = vmatpush1.bf16.xpose.msra.mxu0 0
    %5002 = vmatprep.subr.bf16.mxu0 0
    %5003 = vmatpush1.bf16.xpose.msra.mxu0 0
    %5004 = vmatprep.subr.bf16.mxu0 0
    %5005 = vmatpush1.bf16.xpose.msra.mxu0 0
    %5006 = vmatprep.subr.bf16.mxu0 0
    %5007 = vmatpush1.bf16.xpose.msra.mxu0 0
    %5008 = vmatprep.subr.bf16.mxu0 0
    %5009 = vmatpush1.bf16.xpose.msra.mxu0 0
    %5010 = vmatprep.subr.bf16.mxu0 0
    %5011 = vmatpush1.bf16.xpose.msra.mxu0 0
    %5012 = vmatprep.subr.bf16.mxu0 0
    %5013 = vmatpush1.bf16.xpose.msra.mxu0 0
    %5014 = vmatprep.subr.bf16.mxu0 0
    %5015 = vmatpush1.bf16.xpose.msra.mxu0 0
    %5016 = vmatprep.subr.bf16.mxu0 0
    %5017 = vmatpush1.bf16.xpose.msra.mxu0 0
    %5018 = vmatprep.mubr.bf16.mxu0 %v2034
    %5019 = vmatmul.mubr.bf16.gmra.mrb[0].mxu0 %v2033
    %v5020 = vpop.f32.mrb[0].mxu0
    %v5021 = vadd.f32 %v4981, %v5020
    %v5022 = vpop.f32.mrb[0].mxu0
    %v5023 = vpop.f32.mrb[0].mxu0
    %v5024 = vpop.f32.mrb[0].mxu0
    %5025 = vdwg.mxu0
    %5026 = vmatprep.subr.bf16.mxu0 %v2893
    %5027 = vmatpush1.bf16.xpose.msra.mxu0 %v2892
    %5028 = vmatprep.subr.bf16.mxu0 0
    %5029 = vmatpush1.bf16.xpose.msra.mxu0 0
    %5030 = vmatprep.subr.bf16.mxu0 0
    %5031 = vmatpush1.bf16.xpose.msra.mxu0 0
    %5032 = vmatprep.subr.bf16.mxu0 0
    %5033 = vmatpush1.bf16.xpose.msra.mxu0 0
    %5034 = vmatprep.subr.bf16.mxu0 0
    %5035 = vmatpush1.bf16.xpose.msra.mxu0 0
    %5036 = vmatprep.subr.bf16.mxu0 0
    %5037 = vmatpush1.bf16.xpose.msra.mxu0 0
    %5038 = vmatprep.subr.bf16.mxu0 0
    %5039 = vmatpush1.bf16.xpose.msra.mxu0 0
    %5040 = vmatprep.subr.bf16.mxu0 0
    %5041 = vmatpush1.bf16.xpose.msra.mxu0 0
    %5042 = vmatprep.subr.bf16.mxu0 0
    %5043 = vmatpush1.bf16.xpose.msra.mxu0 0
    %5044 = vmatprep.subr.bf16.mxu0 0
    %5045 = vmatpush1.bf16.xpose.msra.mxu0 0
    %5046 = vmatprep.subr.bf16.mxu0 0
    %5047 = vmatpush1.bf16.xpose.msra.mxu0 0
    %5048 = vmatprep.subr.bf16.mxu0 0
    %5049 = vmatpush1.bf16.xpose.msra.mxu0 0
    %5050 = vmatprep.subr.bf16.mxu0 0
    %5051 = vmatpush1.bf16.xpose.msra.mxu0 0
    %5052 = vmatprep.subr.bf16.mxu0 0
    %5053 = vmatpush1.bf16.xpose.msra.mxu0 0
    %5054 = vmatprep.subr.bf16.mxu0 0
    %5055 = vmatpush1.bf16.xpose.msra.mxu0 0
    %5056 = vmatprep.subr.bf16.mxu0 0
    %5057 = vmatpush1.bf16.xpose.msra.mxu0 0
    %5058 = vmatprep.mubr.bf16.mxu0 %v2036
    %5059 = vmatmul.mubr.bf16.gmra.mrb[0].mxu0 %v2035
    %v5060 = vpop.f32.mrb[0].mxu0
    %v5061 = vadd.f32 %v5021, %v5060
    %v5062 = vpop.f32.mrb[0].mxu0
    %v5063 = vpop.f32.mrb[0].mxu0
    %v5064 = vpop.f32.mrb[0].mxu0
    %5065 = vdwg.mxu0
    %5066 = vmatprep.subr.bf16.mxu0 %v2895
    %5067 = vmatpush1.bf16.xpose.msra.mxu0 %v2894
    %5068 = vmatprep.subr.bf16.mxu0 0
    %5069 = vmatpush1.bf16.xpose.msra.mxu0 0
    %5070 = vmatprep.subr.bf16.mxu0 0
    %5071 = vmatpush1.bf16.xpose.msra.mxu0 0
    %5072 = vmatprep.subr.bf16.mxu0 0
    %5073 = vmatpush1.bf16.xpose.msra.mxu0 0
    %5074 = vmatprep.subr.bf16.mxu0 0
    %5075 = vmatpush1.bf16.xpose.msra.mxu0 0
    %5076 = vmatprep.subr.bf16.mxu0 0
    %5077 = vmatpush1.bf16.xpose.msra.mxu0 0
    %5078 = vmatprep.subr.bf16.mxu0 0
    %5079 = vmatpush1.bf16.xpose.msra.mxu0 0
    %5080 = vmatprep.subr.bf16.mxu0 0
    %5081 = vmatpush1.bf16.xpose.msra.mxu0 0
    %5082 = vmatprep.subr.bf16.mxu0 0
    %5083 = vmatpush1.bf16.xpose.msra.mxu0 0
    %5084 = vmatprep.subr.bf16.mxu0 0
    %5085 = vmatpush1.bf16.xpose.msra.mxu0 0
    %5086 = vmatprep.subr.bf16.mxu0 0
    %5087 = vmatpush1.bf16.xpose.msra.mxu0 0
    %5088 = vmatprep.subr.bf16.mxu0 0
    %5089 = vmatpush1.bf16.xpose.msra.mxu0 0
    %5090 = vmatprep.subr.bf16.mxu0 0
    %5091 = vmatpush1.bf16.xpose.msra.mxu0 0
    %5092 = vmatprep.subr.bf16.mxu0 0
    %5093 = vmatpush1.bf16.xpose.msra.mxu0 0
    %5094 = vmatprep.subr.bf16.mxu0 0
    %5095 = vmatpush1.bf16.xpose.msra.mxu0 0
    %5096 = vmatprep.subr.bf16.mxu0 0
    %5097 = vmatpush1.bf16.xpose.msra.mxu0 0
    %5098 = vmatprep.mubr.bf16.mxu0 %v2038
    %5099 = vmatmul.mubr.bf16.gmra.mrb[0].mxu0 %v2037
    %v5100 = vpop.f32.mrb[0].mxu0
    %v5101 = vadd.f32 %v5061, %v5100
    %v5102 = vpop.f32.mrb[0].mxu0
    %v5103 = vpop.f32.mrb[0].mxu0
    %v5104 = vpop.f32.mrb[0].mxu0
    %5105 = vdwg.mxu0
    %5106 = vmatprep.subr.bf16.mxu0 %v2897
    %5107 = vmatpush1.bf16.xpose.msra.mxu0 %v2896
    %5108 = vmatprep.subr.bf16.mxu0 0
    %5109 = vmatpush1.bf16.xpose.msra.mxu0 0
    %5110 = vmatprep.subr.bf16.mxu0 0
    %5111 = vmatpush1.bf16.xpose.msra.mxu0 0
    %5112 = vmatprep.subr.bf16.mxu0 0
    %5113 = vmatpush1.bf16.xpose.msra.mxu0 0
    %5114 = vmatprep.subr.bf16.mxu0 0
    %5115 = vmatpush1.bf16.xpose.msra.mxu0 0
    %5116 = vmatprep.subr.bf16.mxu0 0
    %5117 = vmatpush1.bf16.xpose.msra.mxu0 0
    %5118 = vmatprep.subr.bf16.mxu0 0
    %5119 = vmatpush1.bf16.xpose.msra.mxu0 0
    %5120 = vmatprep.subr.bf16.mxu0 0
    %5121 = vmatpush1.bf16.xpose.msra.mxu0 0
    %5122 = vmatprep.subr.bf16.mxu0 0
    %5123 = vmatpush1.bf16.xpose.msra.mxu0 0
    %5124 = vmatprep.subr.bf16.mxu0 0
    %5125 = vmatpush1.bf16.xpose.msra.mxu0 0
    %5126 = vmatprep.subr.bf16.mxu0 0
    %5127 = vmatpush1.bf16.xpose.msra.mxu0 0
    %5128 = vmatprep.subr.bf16.mxu0 0
    %5129 = vmatpush1.bf16.xpose.msra.mxu0 0
    %5130 = vmatprep.subr.bf16.mxu0 0
    %5131 = vmatpush1.bf16.xpose.msra.mxu0 0
    %5132 = vmatprep.subr.bf16.mxu0 0
    %5133 = vmatpush1.bf16.xpose.msra.mxu0 0
    %5134 = vmatprep.subr.bf16.mxu0 0
    %5135 = vmatpush1.bf16.xpose.msra.mxu0 0
    %5136 = vmatprep.subr.bf16.mxu0 0
    %5137 = vmatpush1.bf16.xpose.msra.mxu0 0
    %5138 = vmatprep.mubr.bf16.mxu0 %v2040
    %5139 = vmatmul.mubr.bf16.gmra.mrb[0].mxu0 %v2039
    %v5140 = vpop.f32.mrb[0].mxu0
    %v5141 = vadd.f32 %v5101, %v5140
    %v5142 = vpop.f32.mrb[0].mxu0
    %v5143 = vpop.f32.mrb[0].mxu0
    %v5144 = vpop.f32.mrb[0].mxu0
    %5145 = vdwg.mxu0
    %5146 = vmatprep.subr.bf16.mxu0 %v2899
    %5147 = vmatpush1.bf16.xpose.msra.mxu0 %v2898
    %5148 = vmatprep.subr.bf16.mxu0 0
    %5149 = vmatpush1.bf16.xpose.msra.mxu0 0
    %5150 = vmatprep.subr.bf16.mxu0 0
    %5151 = vmatpush1.bf16.xpose.msra.mxu0 0
    %5152 = vmatprep.subr.bf16.mxu0 0
    %5153 = vmatpush1.bf16.xpose.msra.mxu0 0
    %5154 = vmatprep.subr.bf16.mxu0 0
    %5155 = vmatpush1.bf16.xpose.msra.mxu0 0
    %5156 = vmatprep.subr.bf16.mxu0 0
    %5157 = vmatpush1.bf16.xpose.msra.mxu0 0
    %5158 = vmatprep.subr.bf16.mxu0 0
    %5159 = vmatpush1.bf16.xpose.msra.mxu0 0
    %5160 = vmatprep.subr.bf16.mxu0 0
    %5161 = vmatpush1.bf16.xpose.msra.mxu0 0
    %5162 = vmatprep.subr.bf16.mxu0 0
    %5163 = vmatpush1.bf16.xpose.msra.mxu0 0
    %5164 = vmatprep.subr.bf16.mxu0 0
    %5165 = vmatpush1.bf16.xpose.msra.mxu0 0
    %5166 = vmatprep.subr.bf16.mxu0 0
    %5167 = vmatpush1.bf16.xpose.msra.mxu0 0
    %5168 = vmatprep.subr.bf16.mxu0 0
    %5169 = vmatpush1.bf16.xpose.msra.mxu0 0
    %5170 = vmatprep.subr.bf16.mxu0 0
    %5171 = vmatpush1.bf16.xpose.msra.mxu0 0
    %5172 = vmatprep.subr.bf16.mxu0 0
    %5173 = vmatpush1.bf16.xpose.msra.mxu0 0
    %5174 = vmatprep.subr.bf16.mxu0 0
    %5175 = vmatpush1.bf16.xpose.msra.mxu0 0
    %5176 = vmatprep.subr.bf16.mxu0 0
    %5177 = vmatpush1.bf16.xpose.msra.mxu0 0
    %5178 = vmatprep.mubr.bf16.mxu0 %v2042
    %5179 = vmatmul.mubr.bf16.gmra.mrb[0].mxu0 %v2041
    %v5180 = vpop.f32.mrb[0].mxu0
    %v5181 = vadd.f32 %v5141, %v5180
    %v5182 = vpop.f32.mrb[0].mxu0
    %v5183 = vpop.f32.mrb[0].mxu0
    %v5184 = vpop.f32.mrb[0].mxu0
    %5185 = vdwg.mxu0
    %5186 = vmatprep.subr.bf16.mxu0 %v2901
    %5187 = vmatpush1.bf16.xpose.msra.mxu0 %v2900
    %5188 = vmatprep.subr.bf16.mxu0 0
    %5189 = vmatpush1.bf16.xpose.msra.mxu0 0
    %5190 = vmatprep.subr.bf16.mxu0 0
    %5191 = vmatpush1.bf16.xpose.msra.mxu0 0
    %5192 = vmatprep.subr.bf16.mxu0 0
    %5193 = vmatpush1.bf16.xpose.msra.mxu0 0
    %5194 = vmatprep.subr.bf16.mxu0 0
    %5195 = vmatpush1.bf16.xpose.msra.mxu0 0
    %5196 = vmatprep.subr.bf16.mxu0 0
    %5197 = vmatpush1.bf16.xpose.msra.mxu0 0
    %5198 = vmatprep.subr.bf16.mxu0 0
    %5199 = vmatpush1.bf16.xpose.msra.mxu0 0
    %5200 = vmatprep.subr.bf16.mxu0 0
    %5201 = vmatpush1.bf16.xpose.msra.mxu0 0
    %5202 = vmatprep.subr.bf16.mxu0 0
    %5203 = vmatpush1.bf16.xpose.msra.mxu0 0
    %5204 = vmatprep.subr.bf16.mxu0 0
    %5205 = vmatpush1.bf16.xpose.msra.mxu0 0
    %5206 = vmatprep.subr.bf16.mxu0 0
    %5207 = vmatpush1.bf16.xpose.msra.mxu0 0
    %5208 = vmatprep.subr.bf16.mxu0 0
    %5209 = vmatpush1.bf16.xpose.msra.mxu0 0
    %5210 = vmatprep.subr.bf16.mxu0 0
    %5211 = vmatpush1.bf16.xpose.msra.mxu0 0
    %5212 = vmatprep.subr.bf16.mxu0 0
    %5213 = vmatpush1.bf16.xpose.msra.mxu0 0
    %5214 = vmatprep.subr.bf16.mxu0 0
    %5215 = vmatpush1.bf16.xpose.msra.mxu0 0
    %5216 = vmatprep.subr.bf16.mxu0 0
    %5217 = vmatpush1.bf16.xpose.msra.mxu0 0
    %5218 = vmatprep.mubr.bf16.mxu0 %v2044
    %5219 = vmatmul.mubr.bf16.gmra.mrb[0].mxu0 %v2043
    %v5220 = vpop.f32.mrb[0].mxu0
    %v5221 = vadd.f32 %v5181, %v5220
    %v5222 = vpop.f32.mrb[0].mxu0
    %v5223 = vpop.f32.mrb[0].mxu0
    %v5224 = vpop.f32.mrb[0].mxu0
    %5225 = vdwg.mxu0
    %5226 = vmatprep.subr.bf16.mxu0 %v2903
    %5227 = vmatpush1.bf16.xpose.msra.mxu0 %v2902
    %5228 = vmatprep.subr.bf16.mxu0 0
    %5229 = vmatpush1.bf16.xpose.msra.mxu0 0
    %5230 = vmatprep.subr.bf16.mxu0 0
    %5231 = vmatpush1.bf16.xpose.msra.mxu0 0
    %5232 = vmatprep.subr.bf16.mxu0 0
    %5233 = vmatpush1.bf16.xpose.msra.mxu0 0
    %5234 = vmatprep.subr.bf16.mxu0 0
    %5235 = vmatpush1.bf16.xpose.msra.mxu0 0
    %5236 = vmatprep.subr.bf16.mxu0 0
    %5237 = vmatpush1.bf16.xpose.msra.mxu0 0
    %5238 = vmatprep.subr.bf16.mxu0 0
    %5239 = vmatpush1.bf16.xpose.msra.mxu0 0
    %5240 = vmatprep.subr.bf16.mxu0 0
    %5241 = vmatpush1.bf16.xpose.msra.mxu0 0
    %5242 = vmatprep.subr.bf16.mxu0 0
    %5243 = vmatpush1.bf16.xpose.msra.mxu0 0
    %5244 = vmatprep.subr.bf16.mxu0 0
    %5245 = vmatpush1.bf16.xpose.msra.mxu0 0
    %5246 = vmatprep.subr.bf16.mxu0 0
    %5247 = vmatpush1.bf16.xpose.msra.mxu0 0
    %5248 = vmatprep.subr.bf16.mxu0 0
    %5249 = vmatpush1.bf16.xpose.msra.mxu0 0
    %5250 = vmatprep.subr.bf16.mxu0 0
    %5251 = vmatpush1.bf16.xpose.msra.mxu0 0
    %5252 = vmatprep.subr.bf16.mxu0 0
    %5253 = vmatpush1.bf16.xpose.msra.mxu0 0
    %5254 = vmatprep.subr.bf16.mxu0 0
    %5255 = vmatpush1.bf16.xpose.msra.mxu0 0
    %5256 = vmatprep.subr.bf16.mxu0 0
    %5257 = vmatpush1.bf16.xpose.msra.mxu0 0
    %5258 = vmatprep.mubr.bf16.mxu0 %v2046
    %5259 = vmatmul.mubr.bf16.gmra.mrb[0].mxu0 %v2045
    %v5260 = vpop.f32.mrb[0].mxu0
    %v5261 = vadd.f32 %v5221, %v5260
    %v5262 = vpop.f32.mrb[0].mxu0
    %v5263 = vpop.f32.mrb[0].mxu0
    %v5264 = vpop.f32.mrb[0].mxu0
    %5265 = vdwg.mxu0
    %5266 = vmatprep.subr.bf16.mxu0 %v2905
    %5267 = vmatpush1.bf16.xpose.msra.mxu0 %v2904
    %5268 = vmatprep.subr.bf16.mxu0 0
    %5269 = vmatpush1.bf16.xpose.msra.mxu0 0
    %5270 = vmatprep.subr.bf16.mxu0 0
    %5271 = vmatpush1.bf16.xpose.msra.mxu0 0
    %5272 = vmatprep.subr.bf16.mxu0 0
    %5273 = vmatpush1.bf16.xpose.msra.mxu0 0
    %5274 = vmatprep.subr.bf16.mxu0 0
    %5275 = vmatpush1.bf16.xpose.msra.mxu0 0
    %5276 = vmatprep.subr.bf16.mxu0 0
    %5277 = vmatpush1.bf16.xpose.msra.mxu0 0
    %5278 = vmatprep.subr.bf16.mxu0 0
    %5279 = vmatpush1.bf16.xpose.msra.mxu0 0
    %5280 = vmatprep.subr.bf16.mxu0 0
    %5281 = vmatpush1.bf16.xpose.msra.mxu0 0
    %5282 = vmatprep.subr.bf16.mxu0 0
    %5283 = vmatpush1.bf16.xpose.msra.mxu0 0
    %5284 = vmatprep.subr.bf16.mxu0 0
    %5285 = vmatpush1.bf16.xpose.msra.mxu0 0
    %5286 = vmatprep.subr.bf16.mxu0 0
    %5287 = vmatpush1.bf16.xpose.msra.mxu0 0
    %5288 = vmatprep.subr.bf16.mxu0 0
    %5289 = vmatpush1.bf16.xpose.msra.mxu0 0
    %5290 = vmatprep.subr.bf16.mxu0 0
    %5291 = vmatpush1.bf16.xpose.msra.mxu0 0
    %5292 = vmatprep.subr.bf16.mxu0 0
    %5293 = vmatpush1.bf16.xpose.msra.mxu0 0
    %5294 = vmatprep.subr.bf16.mxu0 0
    %5295 = vmatpush1.bf16.xpose.msra.mxu0 0
    %5296 = vmatprep.subr.bf16.mxu0 0
    %5297 = vmatpush1.bf16.xpose.msra.mxu0 0
    %5298 = vmatprep.mubr.bf16.mxu0 %v2048
    %5299 = vmatmul.mubr.bf16.gmra.mrb[0].mxu0 %v2047
    %v5300 = vpop.f32.mrb[0].mxu0
    %v5301 = vadd.f32 %v5261, %v5300
    %v5302 = vpop.f32.mrb[0].mxu0
    %v5303 = vpop.f32.mrb[0].mxu0
    %v5304 = vpop.f32.mrb[0].mxu0
    %5305 = vdwg.mxu0
    %5306 = vmatprep.subr.bf16.mxu0 %v2907
    %5307 = vmatpush1.bf16.xpose.msra.mxu0 %v2906
    %5308 = vmatprep.subr.bf16.mxu0 0
    %5309 = vmatpush1.bf16.xpose.msra.mxu0 0
    %5310 = vmatprep.subr.bf16.mxu0 0
    %5311 = vmatpush1.bf16.xpose.msra.mxu0 0
    %5312 = vmatprep.subr.bf16.mxu0 0
    %5313 = vmatpush1.bf16.xpose.msra.mxu0 0
    %5314 = vmatprep.subr.bf16.mxu0 0
    %5315 = vmatpush1.bf16.xpose.msra.mxu0 0
    %5316 = vmatprep.subr.bf16.mxu0 0
    %5317 = vmatpush1.bf16.xpose.msra.mxu0 0
    %5318 = vmatprep.subr.bf16.mxu0 0
    %5319 = vmatpush1.bf16.xpose.msra.mxu0 0
    %5320 = vmatprep.subr.bf16.mxu0 0
    %5321 = vmatpush1.bf16.xpose.msra.mxu0 0
    %5322 = vmatprep.subr.bf16.mxu0 0
    %5323 = vmatpush1.bf16.xpose.msra.mxu0 0
    %5324 = vmatprep.subr.bf16.mxu0 0
    %5325 = vmatpush1.bf16.xpose.msra.mxu0 0
    %5326 = vmatprep.subr.bf16.mxu0 0
    %5327 = vmatpush1.bf16.xpose.msra.mxu0 0
    %5328 = vmatprep.subr.bf16.mxu0 0
    %5329 = vmatpush1.bf16.xpose.msra.mxu0 0
    %5330 = vmatprep.subr.bf16.mxu0 0
    %5331 = vmatpush1.bf16.xpose.msra.mxu0 0
    %5332 = vmatprep.subr.bf16.mxu0 0
    %5333 = vmatpush1.bf16.xpose.msra.mxu0 0
    %5334 = vmatprep.subr.bf16.mxu0 0
    %5335 = vmatpush1.bf16.xpose.msra.mxu0 0
    %5336 = vmatprep.subr.bf16.mxu0 0
    %5337 = vmatpush1.bf16.xpose.msra.mxu0 0
    %5338 = vmatprep.mubr.bf16.mxu0 %v2050
    %5339 = vmatmul.mubr.bf16.gmra.mrb[0].mxu0 %v2049
    %v5340 = vpop.f32.mrb[0].mxu0
    %v5341 = vadd.f32 %v5301, %v5340
    %v5342 = vpop.f32.mrb[0].mxu0
    %v5343 = vpop.f32.mrb[0].mxu0
    %v5344 = vpop.f32.mrb[0].mxu0
    %5345 = vdwg.mxu0
    %5346 = vmatprep.subr.bf16.mxu0 %v2909
    %5347 = vmatpush1.bf16.xpose.msra.mxu0 %v2908
    %5348 = vmatprep.subr.bf16.mxu0 0
    %5349 = vmatpush1.bf16.xpose.msra.mxu0 0
    %5350 = vmatprep.subr.bf16.mxu0 0
    %5351 = vmatpush1.bf16.xpose.msra.mxu0 0
    %5352 = vmatprep.subr.bf16.mxu0 0
    %5353 = vmatpush1.bf16.xpose.msra.mxu0 0
    %5354 = vmatprep.subr.bf16.mxu0 0
    %5355 = vmatpush1.bf16.xpose.msra.mxu0 0
    %5356 = vmatprep.subr.bf16.mxu0 0
    %5357 = vmatpush1.bf16.xpose.msra.mxu0 0
    %5358 = vmatprep.subr.bf16.mxu0 0
    %5359 = vmatpush1.bf16.xpose.msra.mxu0 0
    %5360 = vmatprep.subr.bf16.mxu0 0
    %5361 = vmatpush1.bf16.xpose.msra.mxu0 0
    %5362 = vmatprep.subr.bf16.mxu0 0
    %5363 = vmatpush1.bf16.xpose.msra.mxu0 0
    %5364 = vmatprep.subr.bf16.mxu0 0
    %5365 = vmatpush1.bf16.xpose.msra.mxu0 0
    %5366 = vmatprep.subr.bf16.mxu0 0
    %5367 = vmatpush1.bf16.xpose.msra.mxu0 0
    %5368 = vmatprep.subr.bf16.mxu0 0
    %5369 = vmatpush1.bf16.xpose.msra.mxu0 0
    %5370 = vmatprep.subr.bf16.mxu0 0
    %5371 = vmatpush1.bf16.xpose.msra.mxu0 0
    %5372 = vmatprep.subr.bf16.mxu0 0
    %5373 = vmatpush1.bf16.xpose.msra.mxu0 0
    %5374 = vmatprep.subr.bf16.mxu0 0
    %5375 = vmatpush1.bf16.xpose.msra.mxu0 0
    %5376 = vmatprep.subr.bf16.mxu0 0
    %5377 = vmatpush1.bf16.xpose.msra.mxu0 0
    %5378 = vmatprep.mubr.bf16.mxu0 %v2052
    %5379 = vmatmul.mubr.bf16.gmra.mrb[0].mxu0 %v2051
    %v5380 = vpop.f32.mrb[0].mxu0
    %v5381 = vadd.f32 %v5341, %v5380
    %v5382 = vpop.f32.mrb[0].mxu0
    %v5383 = vpop.f32.mrb[0].mxu0
    %v5384 = vpop.f32.mrb[0].mxu0
    %5385 = vdwg.mxu0
    %5386 = vmatprep.subr.bf16.mxu0 %v2911
    %5387 = vmatpush1.bf16.xpose.msra.mxu0 %v2910
    %5388 = vmatprep.subr.bf16.mxu0 0
    %5389 = vmatpush1.bf16.xpose.msra.mxu0 0
    %5390 = vmatprep.subr.bf16.mxu0 0
    %5391 = vmatpush1.bf16.xpose.msra.mxu0 0
    %5392 = vmatprep.subr.bf16.mxu0 0
    %5393 = vmatpush1.bf16.xpose.msra.mxu0 0
    %5394 = vmatprep.subr.bf16.mxu0 0
    %5395 = vmatpush1.bf16.xpose.msra.mxu0 0
    %5396 = vmatprep.subr.bf16.mxu0 0
    %5397 = vmatpush1.bf16.xpose.msra.mxu0 0
    %5398 = vmatprep.subr.bf16.mxu0 0
    %5399 = vmatpush1.bf16.xpose.msra.mxu0 0
    %5400 = vmatprep.subr.bf16.mxu0 0
    %5401 = vmatpush1.bf16.xpose.msra.mxu0 0
    %5402 = vmatprep.subr.bf16.mxu0 0
    %5403 = vmatpush1.bf16.xpose.msra.mxu0 0
    %5404 = vmatprep.subr.bf16.mxu0 0
    %5405 = vmatpush1.bf16.xpose.msra.mxu0 0
    %5406 = vmatprep.subr.bf16.mxu0 0
    %5407 = vmatpush1.bf16.xpose.msra.mxu0 0
    %5408 = vmatprep.subr.bf16.mxu0 0
    %5409 = vmatpush1.bf16.xpose.msra.mxu0 0
    %5410 = vmatprep.subr.bf16.mxu0 0
    %5411 = vmatpush1.bf16.xpose.msra.mxu0 0
    %5412 = vmatprep.subr.bf16.mxu0 0
    %5413 = vmatpush1.bf16.xpose.msra.mxu0 0
    %5414 = vmatprep.subr.bf16.mxu0 0
    %5415 = vmatpush1.bf16.xpose.msra.mxu0 0
    %5416 = vmatprep.subr.bf16.mxu0 0
    %5417 = vmatpush1.bf16.xpose.msra.mxu0 0
    %5418 = vmatprep.mubr.bf16.mxu0 %v2054
    %5419 = vmatmul.mubr.bf16.gmra.mrb[0].mxu0 %v2053
    %v5420 = vpop.f32.mrb[0].mxu0
    %v5421 = vadd.f32 %v5381, %v5420
    %v5422 = vpop.f32.mrb[0].mxu0
    %v5423 = vpop.f32.mrb[0].mxu0
    %v5424 = vpop.f32.mrb[0].mxu0
    %5425 = vdwg.mxu0
    %5426 = vmatprep.subr.bf16.mxu0 %v2913
    %5427 = vmatpush1.bf16.xpose.msra.mxu0 %v2912
    %5428 = vmatprep.subr.bf16.mxu0 0
    %5429 = vmatpush1.bf16.xpose.msra.mxu0 0
    %5430 = vmatprep.subr.bf16.mxu0 0
    %5431 = vmatpush1.bf16.xpose.msra.mxu0 0
    %5432 = vmatprep.subr.bf16.mxu0 0
    %5433 = vmatpush1.bf16.xpose.msra.mxu0 0
    %5434 = vmatprep.subr.bf16.mxu0 0
    %5435 = vmatpush1.bf16.xpose.msra.mxu0 0
    %5436 = vmatprep.subr.bf16.mxu0 0
    %5437 = vmatpush1.bf16.xpose.msra.mxu0 0
    %5438 = vmatprep.subr.bf16.mxu0 0
    %5439 = vmatpush1.bf16.xpose.msra.mxu0 0
    %5440 = vmatprep.subr.bf16.mxu0 0
    %5441 = vmatpush1.bf16.xpose.msra.mxu0 0
    %5442 = vmatprep.subr.bf16.mxu0 0
    %5443 = vmatpush1.bf16.xpose.msra.mxu0 0
    %5444 = vmatprep.subr.bf16.mxu0 0
    %5445 = vmatpush1.bf16.xpose.msra.mxu0 0
    %5446 = vmatprep.subr.bf16.mxu0 0
    %5447 = vmatpush1.bf16.xpose.msra.mxu0 0
    %5448 = vmatprep.subr.bf16.mxu0 0
    %5449 = vmatpush1.bf16.xpose.msra.mxu0 0
    %5450 = vmatprep.subr.bf16.mxu0 0
    %5451 = vmatpush1.bf16.xpose.msra.mxu0 0
    %5452 = vmatprep.subr.bf16.mxu0 0
    %5453 = vmatpush1.bf16.xpose.msra.mxu0 0
    %5454 = vmatprep.subr.bf16.mxu0 0
    %5455 = vmatpush1.bf16.xpose.msra.mxu0 0
    %5456 = vmatprep.subr.bf16.mxu0 0
    %5457 = vmatpush1.bf16.xpose.msra.mxu0 0
    %5458 = vmatprep.mubr.bf16.mxu0 %v2056
    %5459 = vmatmul.mubr.bf16.gmra.mrb[0].mxu0 %v2055
    %v5460 = vpop.f32.mrb[0].mxu0
    %v5461 = vadd.f32 %v5421, %v5460
    %v5462 = vpop.f32.mrb[0].mxu0
    %v5463 = vpop.f32.mrb[0].mxu0
    %v5464 = vpop.f32.mrb[0].mxu0
    %5465 = vdwg.mxu0
    %5466 = vmatprep.subr.bf16.mxu0 %v2915
    %5467 = vmatpush1.bf16.xpose.msra.mxu0 %v2914
    %5468 = vmatprep.subr.bf16.mxu0 0
    %5469 = vmatpush1.bf16.xpose.msra.mxu0 0
    %5470 = vmatprep.subr.bf16.mxu0 0
    %5471 = vmatpush1.bf16.xpose.msra.mxu0 0
    %5472 = vmatprep.subr.bf16.mxu0 0
    %5473 = vmatpush1.bf16.xpose.msra.mxu0 0
    %5474 = vmatprep.subr.bf16.mxu0 0
    %5475 = vmatpush1.bf16.xpose.msra.mxu0 0
    %5476 = vmatprep.subr.bf16.mxu0 0
    %5477 = vmatpush1.bf16.xpose.msra.mxu0 0
    %5478 = vmatprep.subr.bf16.mxu0 0
    %5479 = vmatpush1.bf16.xpose.msra.mxu0 0
    %5480 = vmatprep.subr.bf16.mxu0 0
    %5481 = vmatpush1.bf16.xpose.msra.mxu0 0
    %5482 = vmatprep.subr.bf16.mxu0 0
    %5483 = vmatpush1.bf16.xpose.msra.mxu0 0
    %5484 = vmatprep.subr.bf16.mxu0 0
    %5485 = vmatpush1.bf16.xpose.msra.mxu0 0
    %5486 = vmatprep.subr.bf16.mxu0 0
    %5487 = vmatpush1.bf16.xpose.msra.mxu0 0
    %5488 = vmatprep.subr.bf16.mxu0 0
    %5489 = vmatpush1.bf16.xpose.msra.mxu0 0
    %5490 = vmatprep.subr.bf16.mxu0 0
    %5491 = vmatpush1.bf16.xpose.msra.mxu0 0
    %5492 = vmatprep.subr.bf16.mxu0 0
    %5493 = vmatpush1.bf16.xpose.msra.mxu0 0
    %5494 = vmatprep.subr.bf16.mxu0 0
    %5495 = vmatpush1.bf16.xpose.msra.mxu0 0
    %5496 = vmatprep.subr.bf16.mxu0 0
    %5497 = vmatpush1.bf16.xpose.msra.mxu0 0
    %5498 = vmatprep.mubr.bf16.mxu0 %v2058
    %5499 = vmatmul.mubr.bf16.gmra.mrb[0].mxu0 %v2057
    %v5500 = vpop.f32.mrb[0].mxu0
    %v5501 = vadd.f32 %v5461, %v5500
    %v5502 = vpop.f32.mrb[0].mxu0
    %v5503 = vpop.f32.mrb[0].mxu0
    %v5504 = vpop.f32.mrb[0].mxu0
    %5505 = vdwg.mxu0
    %5506 = vmatprep.subr.bf16.mxu0 %v2917
    %5507 = vmatpush1.bf16.xpose.msra.mxu0 %v2916
    %5508 = vmatprep.subr.bf16.mxu0 0
    %5509 = vmatpush1.bf16.xpose.msra.mxu0 0
    %5510 = vmatprep.subr.bf16.mxu0 0
    %5511 = vmatpush1.bf16.xpose.msra.mxu0 0
    %5512 = vmatprep.subr.bf16.mxu0 0
    %5513 = vmatpush1.bf16.xpose.msra.mxu0 0
    %5514 = vmatprep.subr.bf16.mxu0 0
    %5515 = vmatpush1.bf16.xpose.msra.mxu0 0
    %5516 = vmatprep.subr.bf16.mxu0 0
    %5517 = vmatpush1.bf16.xpose.msra.mxu0 0
    %5518 = vmatprep.subr.bf16.mxu0 0
    %5519 = vmatpush1.bf16.xpose.msra.mxu0 0
    %5520 = vmatprep.subr.bf16.mxu0 0
    %5521 = vmatpush1.bf16.xpose.msra.mxu0 0
    %5522 = vmatprep.subr.bf16.mxu0 0
    %5523 = vmatpush1.bf16.xpose.msra.mxu0 0
    %5524 = vmatprep.subr.bf16.mxu0 0
    %5525 = vmatpush1.bf16.xpose.msra.mxu0 0
    %5526 = vmatprep.subr.bf16.mxu0 0
    %5527 = vmatpush1.bf16.xpose.msra.mxu0 0
    %5528 = vmatprep.subr.bf16.mxu0 0
    %5529 = vmatpush1.bf16.xpose.msra.mxu0 0
    %5530 = vmatprep.subr.bf16.mxu0 0
    %5531 = vmatpush1.bf16.xpose.msra.mxu0 0
    %5532 = vmatprep.subr.bf16.mxu0 0
    %5533 = vmatpush1.bf16.xpose.msra.mxu0 0
    %5534 = vmatprep.subr.bf16.mxu0 0
    %5535 = vmatpush1.bf16.xpose.msra.mxu0 0
    %5536 = vmatprep.subr.bf16.mxu0 0
    %5537 = vmatpush1.bf16.xpose.msra.mxu0 0
    %5538 = vmatprep.mubr.bf16.mxu0 %v2060
    %5539 = vmatmul.mubr.bf16.gmra.mrb[0].mxu0 %v2059
    %v5540 = vpop.f32.mrb[0].mxu0
    %v5541 = vadd.f32 %v5501, %v5540
    %v5542 = vpop.f32.mrb[0].mxu0
    %v5543 = vpop.f32.mrb[0].mxu0
    %v5544 = vpop.f32.mrb[0].mxu0
    %5545 = vdwg.mxu0
    %5546 = vmatprep.subr.bf16.mxu0 %v2919
    %5547 = vmatpush1.bf16.xpose.msra.mxu0 %v2918
    %5548 = vmatprep.subr.bf16.mxu0 0
    %5549 = vmatpush1.bf16.xpose.msra.mxu0 0
    %5550 = vmatprep.subr.bf16.mxu0 0
    %5551 = vmatpush1.bf16.xpose.msra.mxu0 0
    %5552 = vmatprep.subr.bf16.mxu0 0
    %5553 = vmatpush1.bf16.xpose.msra.mxu0 0
    %5554 = vmatprep.subr.bf16.mxu0 0
    %5555 = vmatpush1.bf16.xpose.msra.mxu0 0
    %5556 = vmatprep.subr.bf16.mxu0 0
    %5557 = vmatpush1.bf16.xpose.msra.mxu0 0
    %5558 = vmatprep.subr.bf16.mxu0 0
    %5559 = vmatpush1.bf16.xpose.msra.mxu0 0
    %5560 = vmatprep.subr.bf16.mxu0 0
    %5561 = vmatpush1.bf16.xpose.msra.mxu0 0
    %5562 = vmatprep.subr.bf16.mxu0 0
    %5563 = vmatpush1.bf16.xpose.msra.mxu0 0
    %5564 = vmatprep.subr.bf16.mxu0 0
    %5565 = vmatpush1.bf16.xpose.msra.mxu0 0
    %5566 = vmatprep.subr.bf16.mxu0 0
    %5567 = vmatpush1.bf16.xpose.msra.mxu0 0
    %5568 = vmatprep.subr.bf16.mxu0 0
    %5569 = vmatpush1.bf16.xpose.msra.mxu0 0
    %5570 = vmatprep.subr.bf16.mxu0 0
    %5571 = vmatpush1.bf16.xpose.msra.mxu0 0
    %5572 = vmatprep.subr.bf16.mxu0 0
    %5573 = vmatpush1.bf16.xpose.msra.mxu0 0
    %5574 = vmatprep.subr.bf16.mxu0 0
    %5575 = vmatpush1.bf16.xpose.msra.mxu0 0
    %5576 = vmatprep.subr.bf16.mxu0 0
    %5577 = vmatpush1.bf16.xpose.msra.mxu0 0
    %5578 = vmatprep.mubr.bf16.mxu0 %v2062
    %5579 = vmatmul.mubr.bf16.gmra.mrb[0].mxu0 %v2061
    %v5580 = vpop.f32.mrb[0].mxu0
    %v5581 = vadd.f32 %v5541, %v5580
    %v5582 = vpop.f32.mrb[0].mxu0
    %v5583 = vpop.f32.mrb[0].mxu0
    %v5584 = vpop.f32.mrb[0].mxu0
    %5585 = vdwg.mxu0
    %5586 = vmatprep.subr.bf16.mxu0 %v2921
    %5587 = vmatpush1.bf16.xpose.msra.mxu0 %v2920
    %5588 = vmatprep.subr.bf16.mxu0 0
    %5589 = vmatpush1.bf16.xpose.msra.mxu0 0
    %5590 = vmatprep.subr.bf16.mxu0 0
    %5591 = vmatpush1.bf16.xpose.msra.mxu0 0
    %5592 = vmatprep.subr.bf16.mxu0 0
    %5593 = vmatpush1.bf16.xpose.msra.mxu0 0
    %5594 = vmatprep.subr.bf16.mxu0 0
    %5595 = vmatpush1.bf16.xpose.msra.mxu0 0
    %5596 = vmatprep.subr.bf16.mxu0 0
    %5597 = vmatpush1.bf16.xpose.msra.mxu0 0
    %5598 = vmatprep.subr.bf16.mxu0 0
    %5599 = vmatpush1.bf16.xpose.msra.mxu0 0
    %5600 = vmatprep.subr.bf16.mxu0 0
    %5601 = vmatpush1.bf16.xpose.msra.mxu0 0
    %5602 = vmatprep.subr.bf16.mxu0 0
    %5603 = vmatpush1.bf16.xpose.msra.mxu0 0
    %5604 = vmatprep.subr.bf16.mxu0 0
    %5605 = vmatpush1.bf16.xpose.msra.mxu0 0
    %5606 = vmatprep.subr.bf16.mxu0 0
    %5607 = vmatpush1.bf16.xpose.msra.mxu0 0
    %5608 = vmatprep.subr.bf16.mxu0 0
    %5609 = vmatpush1.bf16.xpose.msra.mxu0 0
    %5610 = vmatprep.subr.bf16.mxu0 0
    %5611 = vmatpush1.bf16.xpose.msra.mxu0 0
    %5612 = vmatprep.subr.bf16.mxu0 0
    %5613 = vmatpush1.bf16.xpose.msra.mxu0 0
    %5614 = vmatprep.subr.bf16.mxu0 0
    %5615 = vmatpush1.bf16.xpose.msra.mxu0 0
    %5616 = vmatprep.subr.bf16.mxu0 0
    %5617 = vmatpush1.bf16.xpose.msra.mxu0 0
    %5618 = vmatprep.mubr.bf16.mxu0 %v2064
    %5619 = vmatmul.mubr.bf16.gmra.mrb[0].mxu0 %v2063
    %v5620 = vpop.f32.mrb[0].mxu0
    %v5621 = vadd.f32 %v5581, %v5620
    %v5622 = vpop.f32.mrb[0].mxu0
    %v5623 = vpop.f32.mrb[0].mxu0
    %v5624 = vpop.f32.mrb[0].mxu0
    %5625 = vdwg.mxu0
    %5626 = vmatprep.subr.bf16.mxu0 %v2923
    %5627 = vmatpush1.bf16.xpose.msra.mxu0 %v2922
    %5628 = vmatprep.subr.bf16.mxu0 0
    %5629 = vmatpush1.bf16.xpose.msra.mxu0 0
    %5630 = vmatprep.subr.bf16.mxu0 0
    %5631 = vmatpush1.bf16.xpose.msra.mxu0 0
    %5632 = vmatprep.subr.bf16.mxu0 0
    %5633 = vmatpush1.bf16.xpose.msra.mxu0 0
    %5634 = vmatprep.subr.bf16.mxu0 0
    %5635 = vmatpush1.bf16.xpose.msra.mxu0 0
    %5636 = vmatprep.subr.bf16.mxu0 0
    %5637 = vmatpush1.bf16.xpose.msra.mxu0 0
    %5638 = vmatprep.subr.bf16.mxu0 0
    %5639 = vmatpush1.bf16.xpose.msra.mxu0 0
    %5640 = vmatprep.subr.bf16.mxu0 0
    %5641 = vmatpush1.bf16.xpose.msra.mxu0 0
    %5642 = vmatprep.subr.bf16.mxu0 0
    %5643 = vmatpush1.bf16.xpose.msra.mxu0 0
    %5644 = vmatprep.subr.bf16.mxu0 0
    %5645 = vmatpush1.bf16.xpose.msra.mxu0 0
    %5646 = vmatprep.subr.bf16.mxu0 0
    %5647 = vmatpush1.bf16.xpose.msra.mxu0 0
    %5648 = vmatprep.subr.bf16.mxu0 0
    %5649 = vmatpush1.bf16.xpose.msra.mxu0 0
    %5650 = vmatprep.subr.bf16.mxu0 0
    %5651 = vmatpush1.bf16.xpose.msra.mxu0 0
    %5652 = vmatprep.subr.bf16.mxu0 0
    %5653 = vmatpush1.bf16.xpose.msra.mxu0 0
    %5654 = vmatprep.subr.bf16.mxu0 0
    %5655 = vmatpush1.bf16.xpose.msra.mxu0 0
    %5656 = vmatprep.subr.bf16.mxu0 0
    %5657 = vmatpush1.bf16.xpose.msra.mxu0 0
    %5658 = vmatprep.mubr.bf16.mxu0 %v2066
    %5659 = vmatmul.mubr.bf16.gmra.mrb[0].mxu0 %v2065
    %v5660 = vpop.f32.mrb[0].mxu0
    %v5661 = vadd.f32 %v5621, %v5660
    %v5662 = vpop.f32.mrb[0].mxu0
    %v5663 = vpop.f32.mrb[0].mxu0
    %v5664 = vpop.f32.mrb[0].mxu0
    %5665 = vdwg.mxu0
    %5666 = vmatprep.subr.bf16.mxu0 %v2925
    %5667 = vmatpush1.bf16.xpose.msra.mxu0 %v2924
    %5668 = vmatprep.subr.bf16.mxu0 0
    %5669 = vmatpush1.bf16.xpose.msra.mxu0 0
    %5670 = vmatprep.subr.bf16.mxu0 0
    %5671 = vmatpush1.bf16.xpose.msra.mxu0 0
    %5672 = vmatprep.subr.bf16.mxu0 0
    %5673 = vmatpush1.bf16.xpose.msra.mxu0 0
    %5674 = vmatprep.subr.bf16.mxu0 0
    %5675 = vmatpush1.bf16.xpose.msra.mxu0 0
    %5676 = vmatprep.subr.bf16.mxu0 0
    %5677 = vmatpush1.bf16.xpose.msra.mxu0 0
    %5678 = vmatprep.subr.bf16.mxu0 0
    %5679 = vmatpush1.bf16.xpose.msra.mxu0 0
    %5680 = vmatprep.subr.bf16.mxu0 0
    %5681 = vmatpush1.bf16.xpose.msra.mxu0 0
    %5682 = vmatprep.subr.bf16.mxu0 0
    %5683 = vmatpush1.bf16.xpose.msra.mxu0 0
    %5684 = vmatprep.subr.bf16.mxu0 0
    %5685 = vmatpush1.bf16.xpose.msra.mxu0 0
    %5686 = vmatprep.subr.bf16.mxu0 0
    %5687 = vmatpush1.bf16.xpose.msra.mxu0 0
    %5688 = vmatprep.subr.bf16.mxu0 0
    %5689 = vmatpush1.bf16.xpose.msra.mxu0 0
    %5690 = vmatprep.subr.bf16.mxu0 0
    %5691 = vmatpush1.bf16.xpose.msra.mxu0 0
    %5692 = vmatprep.subr.bf16.mxu0 0
    %5693 = vmatpush1.bf16.xpose.msra.mxu0 0
    %5694 = vmatprep.subr.bf16.mxu0 0
    %5695 = vmatpush1.bf16.xpose.msra.mxu0 0
    %5696 = vmatprep.subr.bf16.mxu0 0
    %5697 = vmatpush1.bf16.xpose.msra.mxu0 0
    %5698 = vmatprep.mubr.bf16.mxu0 %v2068
    %5699 = vmatmul.mubr.bf16.gmra.mrb[0].mxu0 %v2067
    %v5700 = vpop.f32.mrb[0].mxu0
    %v5701 = vadd.f32 %v5661, %v5700
    %v5702 = vpop.f32.mrb[0].mxu0
    %v5703 = vpop.f32.mrb[0].mxu0
    %v5704 = vpop.f32.mrb[0].mxu0
    %5705 = vdwg.mxu0
    %5706 = vmatprep.subr.bf16.mxu0 %v2927
    %5707 = vmatpush1.bf16.xpose.msra.mxu0 %v2926
    %5708 = vmatprep.subr.bf16.mxu0 0
    %5709 = vmatpush1.bf16.xpose.msra.mxu0 0
    %5710 = vmatprep.subr.bf16.mxu0 0
    %5711 = vmatpush1.bf16.xpose.msra.mxu0 0
    %5712 = vmatprep.subr.bf16.mxu0 0
    %5713 = vmatpush1.bf16.xpose.msra.mxu0 0
    %5714 = vmatprep.subr.bf16.mxu0 0
    %5715 = vmatpush1.bf16.xpose.msra.mxu0 0
    %5716 = vmatprep.subr.bf16.mxu0 0
    %5717 = vmatpush1.bf16.xpose.msra.mxu0 0
    %5718 = vmatprep.subr.bf16.mxu0 0
    %5719 = vmatpush1.bf16.xpose.msra.mxu0 0
    %5720 = vmatprep.subr.bf16.mxu0 0
    %5721 = vmatpush1.bf16.xpose.msra.mxu0 0
    %5722 = vmatprep.subr.bf16.mxu0 0
    %5723 = vmatpush1.bf16.xpose.msra.mxu0 0
    %5724 = vmatprep.subr.bf16.mxu0 0
    %5725 = vmatpush1.bf16.xpose.msra.mxu0 0
    %5726 = vmatprep.subr.bf16.mxu0 0
    %5727 = vmatpush1.bf16.xpose.msra.mxu0 0
    %5728 = vmatprep.subr.bf16.mxu0 0
    %5729 = vmatpush1.bf16.xpose.msra.mxu0 0
    %5730 = vmatprep.subr.bf16.mxu0 0
    %5731 = vmatpush1.bf16.xpose.msra.mxu0 0
    %5732 = vmatprep.subr.bf16.mxu0 0
    %5733 = vmatpush1.bf16.xpose.msra.mxu0 0
    %5734 = vmatprep.subr.bf16.mxu0 0
    %5735 = vmatpush1.bf16.xpose.msra.mxu0 0
    %5736 = vmatprep.subr.bf16.mxu0 0
    %5737 = vmatpush1.bf16.xpose.msra.mxu0 0
    %5738 = vmatprep.mubr.bf16.mxu0 %v2070
    %5739 = vmatmul.mubr.bf16.gmra.mrb[0].mxu0 %v2069
    %v5740 = vpop.f32.mrb[0].mxu0
    %v5741 = vadd.f32 %v5701, %v5740
    %v5742 = vpop.f32.mrb[0].mxu0
    %v5743 = vpop.f32.mrb[0].mxu0
    %v5744 = vpop.f32.mrb[0].mxu0
    %5745 = vdwg.mxu0
    %5746 = vmatprep.subr.bf16.mxu0 %v2929
    %5747 = vmatpush1.bf16.xpose.msra.mxu0 %v2928
    %5748 = vmatprep.subr.bf16.mxu0 0
    %5749 = vmatpush1.bf16.xpose.msra.mxu0 0
    %5750 = vmatprep.subr.bf16.mxu0 0
    %5751 = vmatpush1.bf16.xpose.msra.mxu0 0
    %5752 = vmatprep.subr.bf16.mxu0 0
    %5753 = vmatpush1.bf16.xpose.msra.mxu0 0
    %5754 = vmatprep.subr.bf16.mxu0 0
    %5755 = vmatpush1.bf16.xpose.msra.mxu0 0
    %5756 = vmatprep.subr.bf16.mxu0 0
    %5757 = vmatpush1.bf16.xpose.msra.mxu0 0
    %5758 = vmatprep.subr.bf16.mxu0 0
    %5759 = vmatpush1.bf16.xpose.msra.mxu0 0
    %5760 = vmatprep.subr.bf16.mxu0 0
    %5761 = vmatpush1.bf16.xpose.msra.mxu0 0
    %5762 = vmatprep.subr.bf16.mxu0 0
    %5763 = vmatpush1.bf16.xpose.msra.mxu0 0
    %5764 = vmatprep.subr.bf16.mxu0 0
    %5765 = vmatpush1.bf16.xpose.msra.mxu0 0
    %5766 = vmatprep.subr.bf16.mxu0 0
    %5767 = vmatpush1.bf16.xpose.msra.mxu0 0
    %5768 = vmatprep.subr.bf16.mxu0 0
    %5769 = vmatpush1.bf16.xpose.msra.mxu0 0
    %5770 = vmatprep.subr.bf16.mxu0 0
    %5771 = vmatpush1.bf16.xpose.msra.mxu0 0
    %5772 = vmatprep.subr.bf16.mxu0 0
    %5773 = vmatpush1.bf16.xpose.msra.mxu0 0
    %5774 = vmatprep.subr.bf16.mxu0 0
    %5775 = vmatpush1.bf16.xpose.msra.mxu0 0
    %5776 = vmatprep.subr.bf16.mxu0 0
    %5777 = vmatpush1.bf16.xpose.msra.mxu0 0
    %5778 = vmatprep.mubr.bf16.mxu0 %v2072
    %5779 = vmatmul.mubr.bf16.gmra.mrb[0].mxu0 %v2071
    %v5780 = vpop.f32.mrb[0].mxu0
    %v5781 = vadd.f32 %v5741, %v5780
    %v5782 = vpop.f32.mrb[0].mxu0
    %v5783 = vpop.f32.mrb[0].mxu0
    %v5784 = vpop.f32.mrb[0].mxu0
    %5785 = vdwg.mxu0
    %5786 = vmatprep.subr.bf16.mxu0 %v2931
    %5787 = vmatpush1.bf16.xpose.msra.mxu0 %v2930
    %5788 = vmatprep.subr.bf16.mxu0 0
    %5789 = vmatpush1.bf16.xpose.msra.mxu0 0
    %5790 = vmatprep.subr.bf16.mxu0 0
    %5791 = vmatpush1.bf16.xpose.msra.mxu0 0
    %5792 = vmatprep.subr.bf16.mxu0 0
    %5793 = vmatpush1.bf16.xpose.msra.mxu0 0
    %5794 = vmatprep.subr.bf16.mxu0 0
    %5795 = vmatpush1.bf16.xpose.msra.mxu0 0
    %5796 = vmatprep.subr.bf16.mxu0 0
    %5797 = vmatpush1.bf16.xpose.msra.mxu0 0
    %5798 = vmatprep.subr.bf16.mxu0 0
    %5799 = vmatpush1.bf16.xpose.msra.mxu0 0
    %5800 = vmatprep.subr.bf16.mxu0 0
    %5801 = vmatpush1.bf16.xpose.msra.mxu0 0
    %5802 = vmatprep.subr.bf16.mxu0 0
    %5803 = vmatpush1.bf16.xpose.msra.mxu0 0
    %5804 = vmatprep.subr.bf16.mxu0 0
    %5805 = vmatpush1.bf16.xpose.msra.mxu0 0
    %5806 = vmatprep.subr.bf16.mxu0 0
    %5807 = vmatpush1.bf16.xpose.msra.mxu0 0
    %5808 = vmatprep.subr.bf16.mxu0 0
    %5809 = vmatpush1.bf16.xpose.msra.mxu0 0
    %5810 = vmatprep.subr.bf16.mxu0 0
    %5811 = vmatpush1.bf16.xpose.msra.mxu0 0
    %5812 = vmatprep.subr.bf16.mxu0 0
    %5813 = vmatpush1.bf16.xpose.msra.mxu0 0
    %5814 = vmatprep.subr.bf16.mxu0 0
    %5815 = vmatpush1.bf16.xpose.msra.mxu0 0
    %5816 = vmatprep.subr.bf16.mxu0 0
    %5817 = vmatpush1.bf16.xpose.msra.mxu0 0
    %5818 = vmatprep.mubr.bf16.mxu0 %v2074
    %5819 = vmatmul.mubr.bf16.gmra.mrb[0].mxu0 %v2073
    %v5820 = vpop.f32.mrb[0].mxu0
    %v5821 = vadd.f32 %v5781, %v5820
    %v5822 = vpop.f32.mrb[0].mxu0
    %v5823 = vpop.f32.mrb[0].mxu0
    %v5824 = vpop.f32.mrb[0].mxu0
    %5825 = vdwg.mxu0
    %5826 = vmatprep.subr.bf16.mxu0 %v2933
    %5827 = vmatpush1.bf16.xpose.msra.mxu0 %v2932
    %5828 = vmatprep.subr.bf16.mxu0 0
    %5829 = vmatpush1.bf16.xpose.msra.mxu0 0
    %5830 = vmatprep.subr.bf16.mxu0 0
    %5831 = vmatpush1.bf16.xpose.msra.mxu0 0
    %5832 = vmatprep.subr.bf16.mxu0 0
    %5833 = vmatpush1.bf16.xpose.msra.mxu0 0
    %5834 = vmatprep.subr.bf16.mxu0 0
    %5835 = vmatpush1.bf16.xpose.msra.mxu0 0
    %5836 = vmatprep.subr.bf16.mxu0 0
    %5837 = vmatpush1.bf16.xpose.msra.mxu0 0
    %5838 = vmatprep.subr.bf16.mxu0 0
    %5839 = vmatpush1.bf16.xpose.msra.mxu0 0
    %5840 = vmatprep.subr.bf16.mxu0 0
    %5841 = vmatpush1.bf16.xpose.msra.mxu0 0
    %5842 = vmatprep.subr.bf16.mxu0 0
    %5843 = vmatpush1.bf16.xpose.msra.mxu0 0
    %5844 = vmatprep.subr.bf16.mxu0 0
    %5845 = vmatpush1.bf16.xpose.msra.mxu0 0
    %5846 = vmatprep.subr.bf16.mxu0 0
    %5847 = vmatpush1.bf16.xpose.msra.mxu0 0
    %5848 = vmatprep.subr.bf16.mxu0 0
    %5849 = vmatpush1.bf16.xpose.msra.mxu0 0
    %5850 = vmatprep.subr.bf16.mxu0 0
    %5851 = vmatpush1.bf16.xpose.msra.mxu0 0
    %5852 = vmatprep.subr.bf16.mxu0 0
    %5853 = vmatpush1.bf16.xpose.msra.mxu0 0
    %5854 = vmatprep.subr.bf16.mxu0 0
    %5855 = vmatpush1.bf16.xpose.msra.mxu0 0
    %5856 = vmatprep.subr.bf16.mxu0 0
    %5857 = vmatpush1.bf16.xpose.msra.mxu0 0
    %5858 = vmatprep.mubr.bf16.mxu0 %v2076
    %5859 = vmatmul.mubr.bf16.gmra.mrb[0].mxu0 %v2075
    %v5860 = vpop.f32.mrb[0].mxu0
    %v5861 = vadd.f32 %v5821, %v5860
    %v5862 = vpop.f32.mrb[0].mxu0
    %v5863 = vpop.f32.mrb[0].mxu0
    %v5864 = vpop.f32.mrb[0].mxu0
    %5865 = vdwg.mxu0
    %5866 = vmatprep.subr.bf16.mxu0 %v2935
    %5867 = vmatpush1.bf16.xpose.msra.mxu0 %v2934
    %5868 = vmatprep.subr.bf16.mxu0 0
    %5869 = vmatpush1.bf16.xpose.msra.mxu0 0
    %5870 = vmatprep.subr.bf16.mxu0 0
    %5871 = vmatpush1.bf16.xpose.msra.mxu0 0
    %5872 = vmatprep.subr.bf16.mxu0 0
    %5873 = vmatpush1.bf16.xpose.msra.mxu0 0
    %5874 = vmatprep.subr.bf16.mxu0 0
    %5875 = vmatpush1.bf16.xpose.msra.mxu0 0
    %5876 = vmatprep.subr.bf16.mxu0 0
    %5877 = vmatpush1.bf16.xpose.msra.mxu0 0
    %5878 = vmatprep.subr.bf16.mxu0 0
    %5879 = vmatpush1.bf16.xpose.msra.mxu0 0
    %5880 = vmatprep.subr.bf16.mxu0 0
    %5881 = vmatpush1.bf16.xpose.msra.mxu0 0
    %5882 = vmatprep.subr.bf16.mxu0 0
    %5883 = vmatpush1.bf16.xpose.msra.mxu0 0
    %5884 = vmatprep.subr.bf16.mxu0 0
    %5885 = vmatpush1.bf16.xpose.msra.mxu0 0
    %5886 = vmatprep.subr.bf16.mxu0 0
    %5887 = vmatpush1.bf16.xpose.msra.mxu0 0
    %5888 = vmatprep.subr.bf16.mxu0 0
    %5889 = vmatpush1.bf16.xpose.msra.mxu0 0
    %5890 = vmatprep.subr.bf16.mxu0 0
    %5891 = vmatpush1.bf16.xpose.msra.mxu0 0
    %5892 = vmatprep.subr.bf16.mxu0 0
    %5893 = vmatpush1.bf16.xpose.msra.mxu0 0
    %5894 = vmatprep.subr.bf16.mxu0 0
    %5895 = vmatpush1.bf16.xpose.msra.mxu0 0
    %5896 = vmatprep.subr.bf16.mxu0 0
    %5897 = vmatpush1.bf16.xpose.msra.mxu0 0
    %5898 = vmatprep.mubr.bf16.mxu0 %v2078
    %5899 = vmatmul.mubr.bf16.gmra.mrb[0].mxu0 %v2077
    %v5900 = vpop.f32.mrb[0].mxu0
    %v5901 = vadd.f32 %v5861, %v5900
    %v5902 = vpop.f32.mrb[0].mxu0
    %v5903 = vpop.f32.mrb[0].mxu0
    %v5904 = vpop.f32.mrb[0].mxu0
    %5905 = vdwg.mxu0
    %5906 = vmatprep.subr.bf16.mxu0 %v2937
    %5907 = vmatpush1.bf16.xpose.msra.mxu0 %v2936
    %5908 = vmatprep.subr.bf16.mxu0 0
    %5909 = vmatpush1.bf16.xpose.msra.mxu0 0
    %5910 = vmatprep.subr.bf16.mxu0 0
    %5911 = vmatpush1.bf16.xpose.msra.mxu0 0
    %5912 = vmatprep.subr.bf16.mxu0 0
    %5913 = vmatpush1.bf16.xpose.msra.mxu0 0
    %5914 = vmatprep.subr.bf16.mxu0 0
    %5915 = vmatpush1.bf16.xpose.msra.mxu0 0
    %5916 = vmatprep.subr.bf16.mxu0 0
    %5917 = vmatpush1.bf16.xpose.msra.mxu0 0
    %5918 = vmatprep.subr.bf16.mxu0 0
    %5919 = vmatpush1.bf16.xpose.msra.mxu0 0
    %5920 = vmatprep.subr.bf16.mxu0 0
    %5921 = vmatpush1.bf16.xpose.msra.mxu0 0
    %5922 = vmatprep.subr.bf16.mxu0 0
    %5923 = vmatpush1.bf16.xpose.msra.mxu0 0
    %5924 = vmatprep.subr.bf16.mxu0 0
    %5925 = vmatpush1.bf16.xpose.msra.mxu0 0
    %5926 = vmatprep.subr.bf16.mxu0 0
    %5927 = vmatpush1.bf16.xpose.msra.mxu0 0
    %5928 = vmatprep.subr.bf16.mxu0 0
    %5929 = vmatpush1.bf16.xpose.msra.mxu0 0
    %5930 = vmatprep.subr.bf16.mxu0 0
    %5931 = vmatpush1.bf16.xpose.msra.mxu0 0
    %5932 = vmatprep.subr.bf16.mxu0 0
    %5933 = vmatpush1.bf16.xpose.msra.mxu0 0
    %5934 = vmatprep.subr.bf16.mxu0 0
    %5935 = vmatpush1.bf16.xpose.msra.mxu0 0
    %5936 = vmatprep.subr.bf16.mxu0 0
    %5937 = vmatpush1.bf16.xpose.msra.mxu0 0
    %5938 = vmatprep.mubr.bf16.mxu0 %v2080
    %5939 = vmatmul.mubr.bf16.gmra.mrb[0].mxu0 %v2079
    %v5940 = vpop.f32.mrb[0].mxu0
    %v5941 = vadd.f32 %v5901, %v5940
    %v5942 = vpop.f32.mrb[0].mxu0
    %v5943 = vpop.f32.mrb[0].mxu0
    %v5944 = vpop.f32.mrb[0].mxu0
    %5945 = vdwg.mxu0
    %5946 = vmatprep.subr.bf16.mxu0 %v2939
    %5947 = vmatpush1.bf16.xpose.msra.mxu0 %v2938
    %5948 = vmatprep.subr.bf16.mxu0 0
    %5949 = vmatpush1.bf16.xpose.msra.mxu0 0
    %5950 = vmatprep.subr.bf16.mxu0 0
    %5951 = vmatpush1.bf16.xpose.msra.mxu0 0
    %5952 = vmatprep.subr.bf16.mxu0 0
    %5953 = vmatpush1.bf16.xpose.msra.mxu0 0
    %5954 = vmatprep.subr.bf16.mxu0 0
    %5955 = vmatpush1.bf16.xpose.msra.mxu0 0
    %5956 = vmatprep.subr.bf16.mxu0 0
    %5957 = vmatpush1.bf16.xpose.msra.mxu0 0
    %5958 = vmatprep.subr.bf16.mxu0 0
    %5959 = vmatpush1.bf16.xpose.msra.mxu0 0
    %5960 = vmatprep.subr.bf16.mxu0 0
    %5961 = vmatpush1.bf16.xpose.msra.mxu0 0
    %5962 = vmatprep.subr.bf16.mxu0 0
    %5963 = vmatpush1.bf16.xpose.msra.mxu0 0
    %5964 = vmatprep.subr.bf16.mxu0 0
    %5965 = vmatpush1.bf16.xpose.msra.mxu0 0
    %5966 = vmatprep.subr.bf16.mxu0 0
    %5967 = vmatpush1.bf16.xpose.msra.mxu0 0
    %5968 = vmatprep.subr.bf16.mxu0 0
    %5969 = vmatpush1.bf16.xpose.msra.mxu0 0
    %5970 = vmatprep.subr.bf16.mxu0 0
    %5971 = vmatpush1.bf16.xpose.msra.mxu0 0
    %5972 = vmatprep.subr.bf16.mxu0 0
    %5973 = vmatpush1.bf16.xpose.msra.mxu0 0
    %5974 = vmatprep.subr.bf16.mxu0 0
    %5975 = vmatpush1.bf16.xpose.msra.mxu0 0
    %5976 = vmatprep.subr.bf16.mxu0 0
    %5977 = vmatpush1.bf16.xpose.msra.mxu0 0
    %5978 = vmatprep.mubr.bf16.mxu0 %v2082
    %5979 = vmatmul.mubr.bf16.gmra.mrb[0].mxu0 %v2081
    %v5980 = vpop.f32.mrb[0].mxu0
    %v5981 = vadd.f32 %v5941, %v5980
    %v5982 = vpop.f32.mrb[0].mxu0
    %v5983 = vpop.f32.mrb[0].mxu0
    %v5984 = vpop.f32.mrb[0].mxu0
    %5985 = vdwg.mxu0
    %5986 = vmatprep.subr.bf16.mxu0 %v2941
    %5987 = vmatpush1.bf16.xpose.msra.mxu0 %v2940
    %5988 = vmatprep.subr.bf16.mxu0 0
    %5989 = vmatpush1.bf16.xpose.msra.mxu0 0
    %5990 = vmatprep.subr.bf16.mxu0 0
    %5991 = vmatpush1.bf16.xpose.msra.mxu0 0
    %5992 = vmatprep.subr.bf16.mxu0 0
    %5993 = vmatpush1.bf16.xpose.msra.mxu0 0
    %5994 = vmatprep.subr.bf16.mxu0 0
    %5995 = vmatpush1.bf16.xpose.msra.mxu0 0
    %5996 = vmatprep.subr.bf16.mxu0 0
    %5997 = vmatpush1.bf16.xpose.msra.mxu0 0
    %5998 = vmatprep.subr.bf16.mxu0 0
    %5999 = vmatpush1.bf16.xpose.msra.mxu0 0
    %6000 = vmatprep.subr.bf16.mxu0 0
    %6001 = vmatpush1.bf16.xpose.msra.mxu0 0
    %6002 = vmatprep.subr.bf16.mxu0 0
    %6003 = vmatpush1.bf16.xpose.msra.mxu0 0
    %6004 = vmatprep.subr.bf16.mxu0 0
    %6005 = vmatpush1.bf16.xpose.msra.mxu0 0
    %6006 = vmatprep.subr.bf16.mxu0 0
    %6007 = vmatpush1.bf16.xpose.msra.mxu0 0
    %6008 = vmatprep.subr.bf16.mxu0 0
    %6009 = vmatpush1.bf16.xpose.msra.mxu0 0
    %6010 = vmatprep.subr.bf16.mxu0 0
    %6011 = vmatpush1.bf16.xpose.msra.mxu0 0
    %6012 = vmatprep.subr.bf16.mxu0 0
    %6013 = vmatpush1.bf16.xpose.msra.mxu0 0
    %6014 = vmatprep.subr.bf16.mxu0 0
    %6015 = vmatpush1.bf16.xpose.msra.mxu0 0
    %6016 = vmatprep.subr.bf16.mxu0 0
    %6017 = vmatpush1.bf16.xpose.msra.mxu0 0
    %6018 = vmatprep.mubr.bf16.mxu0 %v2084
    %6019 = vmatmul.mubr.bf16.gmra.mrb[0].mxu0 %v2083
    %v6020 = vpop.f32.mrb[0].mxu0
    %v6021 = vadd.f32 %v5981, %v6020
    %v6022 = vpop.f32.mrb[0].mxu0
    %v6023 = vpop.f32.mrb[0].mxu0
    %v6024 = vpop.f32.mrb[0].mxu0
    %6025 = vdwg.mxu0
    %6026 = vmatprep.subr.bf16.mxu0 %v2943
    %6027 = vmatpush1.bf16.xpose.msra.mxu0 %v2942
    %6028 = vmatprep.subr.bf16.mxu0 0
    %6029 = vmatpush1.bf16.xpose.msra.mxu0 0
    %6030 = vmatprep.subr.bf16.mxu0 0
    %6031 = vmatpush1.bf16.xpose.msra.mxu0 0
    %6032 = vmatprep.subr.bf16.mxu0 0
    %6033 = vmatpush1.bf16.xpose.msra.mxu0 0
    %6034 = vmatprep.subr.bf16.mxu0 0
    %6035 = vmatpush1.bf16.xpose.msra.mxu0 0
    %6036 = vmatprep.subr.bf16.mxu0 0
    %6037 = vmatpush1.bf16.xpose.msra.mxu0 0
    %6038 = vmatprep.subr.bf16.mxu0 0
    %6039 = vmatpush1.bf16.xpose.msra.mxu0 0
    %6040 = vmatprep.subr.bf16.mxu0 0
    %6041 = vmatpush1.bf16.xpose.msra.mxu0 0
    %6042 = vmatprep.subr.bf16.mxu0 0
    %6043 = vmatpush1.bf16.xpose.msra.mxu0 0
    %6044 = vmatprep.subr.bf16.mxu0 0
    %6045 = vmatpush1.bf16.xpose.msra.mxu0 0
    %6046 = vmatprep.subr.bf16.mxu0 0
    %6047 = vmatpush1.bf16.xpose.msra.mxu0 0
    %6048 = vmatprep.subr.bf16.mxu0 0
    %6049 = vmatpush1.bf16.xpose.msra.mxu0 0
    %6050 = vmatprep.subr.bf16.mxu0 0
    %6051 = vmatpush1.bf16.xpose.msra.mxu0 0
    %6052 = vmatprep.subr.bf16.mxu0 0
    %6053 = vmatpush1.bf16.xpose.msra.mxu0 0
    %6054 = vmatprep.subr.bf16.mxu0 0
    %6055 = vmatpush1.bf16.xpose.msra.mxu0 0
    %6056 = vmatprep.subr.bf16.mxu0 0
    %6057 = vmatpush1.bf16.xpose.msra.mxu0 0
    %6058 = vmatprep.mubr.bf16.mxu0 %v2086
    %6059 = vmatmul.mubr.bf16.gmra.mrb[0].mxu0 %v2085
    %v6060 = vpop.f32.mrb[0].mxu0
    %v6061 = vadd.f32 %v6021, %v6060
    %v6062 = vpop.f32.mrb[0].mxu0
    %v6063 = vpop.f32.mrb[0].mxu0
    %v6064 = vpop.f32.mrb[0].mxu0
    %6065 = vdwg.mxu0
    %6066 = vmatprep.subr.bf16.mxu0 %v2945
    %6067 = vmatpush1.bf16.xpose.msra.mxu0 %v2944
    %6068 = vmatprep.subr.bf16.mxu0 0
    %6069 = vmatpush1.bf16.xpose.msra.mxu0 0
    %6070 = vmatprep.subr.bf16.mxu0 0
    %6071 = vmatpush1.bf16.xpose.msra.mxu0 0
    %6072 = vmatprep.subr.bf16.mxu0 0
    %6073 = vmatpush1.bf16.xpose.msra.mxu0 0
    %6074 = vmatprep.subr.bf16.mxu0 0
    %6075 = vmatpush1.bf16.xpose.msra.mxu0 0
    %6076 = vmatprep.subr.bf16.mxu0 0
    %6077 = vmatpush1.bf16.xpose.msra.mxu0 0
    %6078 = vmatprep.subr.bf16.mxu0 0
    %6079 = vmatpush1.bf16.xpose.msra.mxu0 0
    %6080 = vmatprep.subr.bf16.mxu0 0
    %6081 = vmatpush1.bf16.xpose.msra.mxu0 0
    %6082 = vmatprep.subr.bf16.mxu0 0
    %6083 = vmatpush1.bf16.xpose.msra.mxu0 0
    %6084 = vmatprep.subr.bf16.mxu0 0
    %6085 = vmatpush1.bf16.xpose.msra.mxu0 0
    %6086 = vmatprep.subr.bf16.mxu0 0
    %6087 = vmatpush1.bf16.xpose.msra.mxu0 0
    %6088 = vmatprep.subr.bf16.mxu0 0
    %6089 = vmatpush1.bf16.xpose.msra.mxu0 0
    %6090 = vmatprep.subr.bf16.mxu0 0
    %6091 = vmatpush1.bf16.xpose.msra.mxu0 0
    %6092 = vmatprep.subr.bf16.mxu0 0
    %6093 = vmatpush1.bf16.xpose.msra.mxu0 0
    %6094 = vmatprep.subr.bf16.mxu0 0
    %6095 = vmatpush1.bf16.xpose.msra.mxu0 0
    %6096 = vmatprep.subr.bf16.mxu0 0
    %6097 = vmatpush1.bf16.xpose.msra.mxu0 0
    %6098 = vmatprep.mubr.bf16.mxu0 %v2088
    %6099 = vmatmul.mubr.bf16.gmra.mrb[0].mxu0 %v2087
    %v6100 = vpop.f32.mrb[0].mxu0
    %v6101 = vadd.f32 %v6061, %v6100
    %v6102 = vpop.f32.mrb[0].mxu0
    %v6103 = vpop.f32.mrb[0].mxu0
    %v6104 = vpop.f32.mrb[0].mxu0
    %6105 = vdwg.mxu0
    %6106 = vmatprep.subr.bf16.mxu0 %v2947
    %6107 = vmatpush1.bf16.xpose.msra.mxu0 %v2946
    %6108 = vmatprep.subr.bf16.mxu0 0
    %6109 = vmatpush1.bf16.xpose.msra.mxu0 0
    %6110 = vmatprep.subr.bf16.mxu0 0
    %6111 = vmatpush1.bf16.xpose.msra.mxu0 0
    %6112 = vmatprep.subr.bf16.mxu0 0
    %6113 = vmatpush1.bf16.xpose.msra.mxu0 0
    %6114 = vmatprep.subr.bf16.mxu0 0
    %6115 = vmatpush1.bf16.xpose.msra.mxu0 0
    %6116 = vmatprep.subr.bf16.mxu0 0
    %6117 = vmatpush1.bf16.xpose.msra.mxu0 0
    %6118 = vmatprep.subr.bf16.mxu0 0
    %6119 = vmatpush1.bf16.xpose.msra.mxu0 0
    %6120 = vmatprep.subr.bf16.mxu0 0
    %6121 = vmatpush1.bf16.xpose.msra.mxu0 0
    %6122 = vmatprep.subr.bf16.mxu0 0
    %6123 = vmatpush1.bf16.xpose.msra.mxu0 0
    %6124 = vmatprep.subr.bf16.mxu0 0
    %6125 = vmatpush1.bf16.xpose.msra.mxu0 0
    %6126 = vmatprep.subr.bf16.mxu0 0
    %6127 = vmatpush1.bf16.xpose.msra.mxu0 0
    %6128 = vmatprep.subr.bf16.mxu0 0
    %6129 = vmatpush1.bf16.xpose.msra.mxu0 0
    %6130 = vmatprep.subr.bf16.mxu0 0
    %6131 = vmatpush1.bf16.xpose.msra.mxu0 0
    %6132 = vmatprep.subr.bf16.mxu0 0
    %6133 = vmatpush1.bf16.xpose.msra.mxu0 0
    %6134 = vmatprep.subr.bf16.mxu0 0
    %6135 = vmatpush1.bf16.xpose.msra.mxu0 0
    %6136 = vmatprep.subr.bf16.mxu0 0
    %6137 = vmatpush1.bf16.xpose.msra.mxu0 0
    %6138 = vmatprep.mubr.bf16.mxu0 %v2090
    %6139 = vmatmul.mubr.bf16.gmra.mrb[0].mxu0 %v2089
    %v6140 = vpop.f32.mrb[0].mxu0
    %v6141 = vadd.f32 %v6101, %v6140
    %v6142 = vpop.f32.mrb[0].mxu0
    %v6143 = vpop.f32.mrb[0].mxu0
    %v6144 = vpop.f32.mrb[0].mxu0
    %6145 = vdwg.mxu0
    %6146 = vmatprep.subr.bf16.mxu0 %v2949
    %6147 = vmatpush1.bf16.xpose.msra.mxu0 %v2948
    %6148 = vmatprep.subr.bf16.mxu0 0
    %6149 = vmatpush1.bf16.xpose.msra.mxu0 0
    %6150 = vmatprep.subr.bf16.mxu0 0
    %6151 = vmatpush1.bf16.xpose.msra.mxu0 0
    %6152 = vmatprep.subr.bf16.mxu0 0
    %6153 = vmatpush1.bf16.xpose.msra.mxu0 0
    %6154 = vmatprep.subr.bf16.mxu0 0
    %6155 = vmatpush1.bf16.xpose.msra.mxu0 0
    %6156 = vmatprep.subr.bf16.mxu0 0
    %6157 = vmatpush1.bf16.xpose.msra.mxu0 0
    %6158 = vmatprep.subr.bf16.mxu0 0
    %6159 = vmatpush1.bf16.xpose.msra.mxu0 0
    %6160 = vmatprep.subr.bf16.mxu0 0
    %6161 = vmatpush1.bf16.xpose.msra.mxu0 0
    %6162 = vmatprep.subr.bf16.mxu0 0
    %6163 = vmatpush1.bf16.xpose.msra.mxu0 0
    %6164 = vmatprep.subr.bf16.mxu0 0
    %6165 = vmatpush1.bf16.xpose.msra.mxu0 0
    %6166 = vmatprep.subr.bf16.mxu0 0
    %6167 = vmatpush1.bf16.xpose.msra.mxu0 0
    %6168 = vmatprep.subr.bf16.mxu0 0
    %6169 = vmatpush1.bf16.xpose.msra.mxu0 0
    %6170 = vmatprep.subr.bf16.mxu0 0
    %6171 = vmatpush1.bf16.xpose.msra.mxu0 0
    %6172 = vmatprep.subr.bf16.mxu0 0
    %6173 = vmatpush1.bf16.xpose.msra.mxu0 0
    %6174 = vmatprep.subr.bf16.mxu0 0
    %6175 = vmatpush1.bf16.xpose.msra.mxu0 0
    %6176 = vmatprep.subr.bf16.mxu0 0
    %6177 = vmatpush1.bf16.xpose.msra.mxu0 0
    %6178 = vmatprep.mubr.bf16.mxu0 %v2092
    %6179 = vmatmul.mubr.bf16.gmra.mrb[0].mxu0 %v2091
    %v6180 = vpop.f32.mrb[0].mxu0
    %v6181 = vadd.f32 %v6141, %v6180
    %v6182 = vpop.f32.mrb[0].mxu0
    %v6183 = vpop.f32.mrb[0].mxu0
    %v6184 = vpop.f32.mrb[0].mxu0
    %6185 = vdwg.mxu0
    %6186 = vmatprep.subr.bf16.mxu0 %v2951
    %6187 = vmatpush1.bf16.xpose.msra.mxu0 %v2950
    %6188 = vmatprep.subr.bf16.mxu0 0
    %6189 = vmatpush1.bf16.xpose.msra.mxu0 0
    %6190 = vmatprep.subr.bf16.mxu0 0
    %6191 = vmatpush1.bf16.xpose.msra.mxu0 0
    %6192 = vmatprep.subr.bf16.mxu0 0
    %6193 = vmatpush1.bf16.xpose.msra.mxu0 0
    %6194 = vmatprep.subr.bf16.mxu0 0
    %6195 = vmatpush1.bf16.xpose.msra.mxu0 0
    %6196 = vmatprep.subr.bf16.mxu0 0
    %6197 = vmatpush1.bf16.xpose.msra.mxu0 0
    %6198 = vmatprep.subr.bf16.mxu0 0
    %6199 = vmatpush1.bf16.xpose.msra.mxu0 0
    %6200 = vmatprep.subr.bf16.mxu0 0
    %6201 = vmatpush1.bf16.xpose.msra.mxu0 0
    %6202 = vmatprep.subr.bf16.mxu0 0
    %6203 = vmatpush1.bf16.xpose.msra.mxu0 0
    %6204 = vmatprep.subr.bf16.mxu0 0
    %6205 = vmatpush1.bf16.xpose.msra.mxu0 0
    %6206 = vmatprep.subr.bf16.mxu0 0
    %6207 = vmatpush1.bf16.xpose.msra.mxu0 0
    %6208 = vmatprep.subr.bf16.mxu0 0
    %6209 = vmatpush1.bf16.xpose.msra.mxu0 0
    %6210 = vmatprep.subr.bf16.mxu0 0
    %6211 = vmatpush1.bf16.xpose.msra.mxu0 0
    %6212 = vmatprep.subr.bf16.mxu0 0
    %6213 = vmatpush1.bf16.xpose.msra.mxu0 0
    %6214 = vmatprep.subr.bf16.mxu0 0
    %6215 = vmatpush1.bf16.xpose.msra.mxu0 0
    %6216 = vmatprep.subr.bf16.mxu0 0
    %6217 = vmatpush1.bf16.xpose.msra.mxu0 0
    %6218 = vmatprep.mubr.bf16.mxu0 %v2094
    %6219 = vmatmul.mubr.bf16.gmra.mrb[0].mxu0 %v2093
    %v6220 = vpop.f32.mrb[0].mxu0
    %v6221 = vadd.f32 %v6181, %v6220
    %v6222 = vpop.f32.mrb[0].mxu0
    %v6223 = vpop.f32.mrb[0].mxu0
    %v6224 = vpop.f32.mrb[0].mxu0
    %6225 = vdwg.mxu0
    %6226 = vmatprep.subr.bf16.mxu0 %v2953
    %6227 = vmatpush1.bf16.xpose.msra.mxu0 %v2952
    %6228 = vmatprep.subr.bf16.mxu0 0
    %6229 = vmatpush1.bf16.xpose.msra.mxu0 0
    %6230 = vmatprep.subr.bf16.mxu0 0
    %6231 = vmatpush1.bf16.xpose.msra.mxu0 0
    %6232 = vmatprep.subr.bf16.mxu0 0
    %6233 = vmatpush1.bf16.xpose.msra.mxu0 0
    %6234 = vmatprep.subr.bf16.mxu0 0
    %6235 = vmatpush1.bf16.xpose.msra.mxu0 0
    %6236 = vmatprep.subr.bf16.mxu0 0
    %6237 = vmatpush1.bf16.xpose.msra.mxu0 0
    %6238 = vmatprep.subr.bf16.mxu0 0
    %6239 = vmatpush1.bf16.xpose.msra.mxu0 0
    %6240 = vmatprep.subr.bf16.mxu0 0
    %6241 = vmatpush1.bf16.xpose.msra.mxu0 0
    %6242 = vmatprep.subr.bf16.mxu0 0
    %6243 = vmatpush1.bf16.xpose.msra.mxu0 0
    %6244 = vmatprep.subr.bf16.mxu0 0
    %6245 = vmatpush1.bf16.xpose.msra.mxu0 0
    %6246 = vmatprep.subr.bf16.mxu0 0
    %6247 = vmatpush1.bf16.xpose.msra.mxu0 0
    %6248 = vmatprep.subr.bf16.mxu0 0
    %6249 = vmatpush1.bf16.xpose.msra.mxu0 0
    %6250 = vmatprep.subr.bf16.mxu0 0
    %6251 = vmatpush1.bf16.xpose.msra.mxu0 0
    %6252 = vmatprep.subr.bf16.mxu0 0
    %6253 = vmatpush1.bf16.xpose.msra.mxu0 0
    %6254 = vmatprep.subr.bf16.mxu0 0
    %6255 = vmatpush1.bf16.xpose.msra.mxu0 0
    %6256 = vmatprep.subr.bf16.mxu0 0
    %6257 = vmatpush1.bf16.xpose.msra.mxu0 0
    %6258 = vmatprep.mubr.bf16.mxu0 %v2096
    %6259 = vmatmul.mubr.bf16.gmra.mrb[0].mxu0 %v2095
    %v6260 = vpop.f32.mrb[0].mxu0
    %v6261 = vadd.f32 %v6221, %v6260
    %v6262 = vpop.f32.mrb[0].mxu0
    %v6263 = vpop.f32.mrb[0].mxu0
    %v6264 = vpop.f32.mrb[0].mxu0
    %6265 = vdwg.mxu0
    %6266 = vmatprep.subr.bf16.mxu0 %v2955
    %6267 = vmatpush1.bf16.xpose.msra.mxu0 %v2954
    %6268 = vmatprep.subr.bf16.mxu0 0
    %6269 = vmatpush1.bf16.xpose.msra.mxu0 0
    %6270 = vmatprep.subr.bf16.mxu0 0
    %6271 = vmatpush1.bf16.xpose.msra.mxu0 0
    %6272 = vmatprep.subr.bf16.mxu0 0
    %6273 = vmatpush1.bf16.xpose.msra.mxu0 0
    %6274 = vmatprep.subr.bf16.mxu0 0
    %6275 = vmatpush1.bf16.xpose.msra.mxu0 0
    %6276 = vmatprep.subr.bf16.mxu0 0
    %6277 = vmatpush1.bf16.xpose.msra.mxu0 0
    %6278 = vmatprep.subr.bf16.mxu0 0
    %6279 = vmatpush1.bf16.xpose.msra.mxu0 0
    %6280 = vmatprep.subr.bf16.mxu0 0
    %6281 = vmatpush1.bf16.xpose.msra.mxu0 0
    %6282 = vmatprep.subr.bf16.mxu0 0
    %6283 = vmatpush1.bf16.xpose.msra.mxu0 0
    %6284 = vmatprep.subr.bf16.mxu0 0
    %6285 = vmatpush1.bf16.xpose.msra.mxu0 0
    %6286 = vmatprep.subr.bf16.mxu0 0
    %6287 = vmatpush1.bf16.xpose.msra.mxu0 0
    %6288 = vmatprep.subr.bf16.mxu0 0
    %6289 = vmatpush1.bf16.xpose.msra.mxu0 0
    %6290 = vmatprep.subr.bf16.mxu0 0
    %6291 = vmatpush1.bf16.xpose.msra.mxu0 0
    %6292 = vmatprep.subr.bf16.mxu0 0
    %6293 = vmatpush1.bf16.xpose.msra.mxu0 0
    %6294 = vmatprep.subr.bf16.mxu0 0
    %6295 = vmatpush1.bf16.xpose.msra.mxu0 0
    %6296 = vmatprep.subr.bf16.mxu0 0
    %6297 = vmatpush1.bf16.xpose.msra.mxu0 0
    %6298 = vmatprep.mubr.bf16.mxu0 %v2098
    %6299 = vmatmul.mubr.bf16.gmra.mrb[0].mxu0 %v2097
    %v6300 = vpop.f32.mrb[0].mxu0
    %v6301 = vadd.f32 %v6261, %v6300
    %v6302 = vpop.f32.mrb[0].mxu0
    %v6303 = vpop.f32.mrb[0].mxu0
    %v6304 = vpop.f32.mrb[0].mxu0
    %6305 = vdwg.mxu0
    %6306 = vmatprep.subr.bf16.mxu0 %v2957
    %6307 = vmatpush1.bf16.xpose.msra.mxu0 %v2956
    %6308 = vmatprep.subr.bf16.mxu0 0
    %6309 = vmatpush1.bf16.xpose.msra.mxu0 0
    %6310 = vmatprep.subr.bf16.mxu0 0
    %6311 = vmatpush1.bf16.xpose.msra.mxu0 0
    %6312 = vmatprep.subr.bf16.mxu0 0
    %6313 = vmatpush1.bf16.xpose.msra.mxu0 0
    %6314 = vmatprep.subr.bf16.mxu0 0
    %6315 = vmatpush1.bf16.xpose.msra.mxu0 0
    %6316 = vmatprep.subr.bf16.mxu0 0
    %6317 = vmatpush1.bf16.xpose.msra.mxu0 0
    %6318 = vmatprep.subr.bf16.mxu0 0
    %6319 = vmatpush1.bf16.xpose.msra.mxu0 0
    %6320 = vmatprep.subr.bf16.mxu0 0
    %6321 = vmatpush1.bf16.xpose.msra.mxu0 0
    %6322 = vmatprep.subr.bf16.mxu0 0
    %6323 = vmatpush1.bf16.xpose.msra.mxu0 0
    %6324 = vmatprep.subr.bf16.mxu0 0
    %6325 = vmatpush1.bf16.xpose.msra.mxu0 0
    %6326 = vmatprep.subr.bf16.mxu0 0
    %6327 = vmatpush1.bf16.xpose.msra.mxu0 0
    %6328 = vmatprep.subr.bf16.mxu0 0
    %6329 = vmatpush1.bf16.xpose.msra.mxu0 0
    %6330 = vmatprep.subr.bf16.mxu0 0
    %6331 = vmatpush1.bf16.xpose.msra.mxu0 0
    %6332 = vmatprep.subr.bf16.mxu0 0
    %6333 = vmatpush1.bf16.xpose.msra.mxu0 0
    %6334 = vmatprep.subr.bf16.mxu0 0
    %6335 = vmatpush1.bf16.xpose.msra.mxu0 0
    %6336 = vmatprep.subr.bf16.mxu0 0
    %6337 = vmatpush1.bf16.xpose.msra.mxu0 0
    %6338 = vmatprep.mubr.bf16.mxu0 %v2100
    %6339 = vmatmul.mubr.bf16.gmra.mrb[0].mxu0 %v2099
    %v6340 = vpop.f32.mrb[0].mxu0
    %v6341 = vadd.f32 %v6301, %v6340
    %v6342 = vpop.f32.mrb[0].mxu0
    %v6343 = vpop.f32.mrb[0].mxu0
    %v6344 = vpop.f32.mrb[0].mxu0
    %6345 = vdwg.mxu0
    %6346 = vmatprep.subr.bf16.mxu0 %v2959
    %6347 = vmatpush1.bf16.xpose.msra.mxu0 %v2958
    %6348 = vmatprep.subr.bf16.mxu0 0
    %6349 = vmatpush1.bf16.xpose.msra.mxu0 0
    %6350 = vmatprep.subr.bf16.mxu0 0
    %6351 = vmatpush1.bf16.xpose.msra.mxu0 0
    %6352 = vmatprep.subr.bf16.mxu0 0
    %6353 = vmatpush1.bf16.xpose.msra.mxu0 0
    %6354 = vmatprep.subr.bf16.mxu0 0
    %6355 = vmatpush1.bf16.xpose.msra.mxu0 0
    %6356 = vmatprep.subr.bf16.mxu0 0
    %6357 = vmatpush1.bf16.xpose.msra.mxu0 0
    %6358 = vmatprep.subr.bf16.mxu0 0
    %6359 = vmatpush1.bf16.xpose.msra.mxu0 0
    %6360 = vmatprep.subr.bf16.mxu0 0
    %6361 = vmatpush1.bf16.xpose.msra.mxu0 0
    %6362 = vmatprep.subr.bf16.mxu0 0
    %6363 = vmatpush1.bf16.xpose.msra.mxu0 0
    %6364 = vmatprep.subr.bf16.mxu0 0
    %6365 = vmatpush1.bf16.xpose.msra.mxu0 0
    %6366 = vmatprep.subr.bf16.mxu0 0
    %6367 = vmatpush1.bf16.xpose.msra.mxu0 0
    %6368 = vmatprep.subr.bf16.mxu0 0
    %6369 = vmatpush1.bf16.xpose.msra.mxu0 0
    %6370 = vmatprep.subr.bf16.mxu0 0
    %6371 = vmatpush1.bf16.xpose.msra.mxu0 0
    %6372 = vmatprep.subr.bf16.mxu0 0
    %6373 = vmatpush1.bf16.xpose.msra.mxu0 0
    %6374 = vmatprep.subr.bf16.mxu0 0
    %6375 = vmatpush1.bf16.xpose.msra.mxu0 0
    %6376 = vmatprep.subr.bf16.mxu0 0
    %6377 = vmatpush1.bf16.xpose.msra.mxu0 0
    %6378 = vmatprep.mubr.bf16.mxu0 %v2102
    %6379 = vmatmul.mubr.bf16.gmra.mrb[0].mxu0 %v2101
    %v6380 = vpop.f32.mrb[0].mxu0
    %v6381 = vadd.f32 %v6341, %v6380
    %v6382 = vpop.f32.mrb[0].mxu0
    %v6383 = vpop.f32.mrb[0].mxu0
    %v6384 = vpop.f32.mrb[0].mxu0
    %6385 = vdwg.mxu0
    %6386 = vmatprep.subr.bf16.mxu0 %v2961
    %6387 = vmatpush1.bf16.xpose.msra.mxu0 %v2960
    %6388 = vmatprep.subr.bf16.mxu0 0
    %6389 = vmatpush1.bf16.xpose.msra.mxu0 0
    %6390 = vmatprep.subr.bf16.mxu0 0
    %6391 = vmatpush1.bf16.xpose.msra.mxu0 0
    %6392 = vmatprep.subr.bf16.mxu0 0
    %6393 = vmatpush1.bf16.xpose.msra.mxu0 0
    %6394 = vmatprep.subr.bf16.mxu0 0
    %6395 = vmatpush1.bf16.xpose.msra.mxu0 0
    %6396 = vmatprep.subr.bf16.mxu0 0
    %6397 = vmatpush1.bf16.xpose.msra.mxu0 0
    %6398 = vmatprep.subr.bf16.mxu0 0
    %6399 = vmatpush1.bf16.xpose.msra.mxu0 0
    %6400 = vmatprep.subr.bf16.mxu0 0
    %6401 = vmatpush1.bf16.xpose.msra.mxu0 0
    %6402 = vmatprep.subr.bf16.mxu0 0
    %6403 = vmatpush1.bf16.xpose.msra.mxu0 0
    %6404 = vmatprep.subr.bf16.mxu0 0
    %6405 = vmatpush1.bf16.xpose.msra.mxu0 0
    %6406 = vmatprep.subr.bf16.mxu0 0
    %6407 = vmatpush1.bf16.xpose.msra.mxu0 0
    %6408 = vmatprep.subr.bf16.mxu0 0
    %6409 = vmatpush1.bf16.xpose.msra.mxu0 0
    %6410 = vmatprep.subr.bf16.mxu0 0
    %6411 = vmatpush1.bf16.xpose.msra.mxu0 0
    %6412 = vmatprep.subr.bf16.mxu0 0
    %6413 = vmatpush1.bf16.xpose.msra.mxu0 0
    %6414 = vmatprep.subr.bf16.mxu0 0
    %6415 = vmatpush1.bf16.xpose.msra.mxu0 0
    %6416 = vmatprep.subr.bf16.mxu0 0
    %6417 = vmatpush1.bf16.xpose.msra.mxu0 0
    %6418 = vmatprep.mubr.bf16.mxu0 %v2104
    %6419 = vmatmul.mubr.bf16.gmra.mrb[0].mxu0 %v2103
    %v6420 = vpop.f32.mrb[0].mxu0
    %v6421 = vadd.f32 %v6381, %v6420
    %v6422 = vpop.f32.mrb[0].mxu0
    %v6423 = vpop.f32.mrb[0].mxu0
    %v6424 = vpop.f32.mrb[0].mxu0
    %6425 = vdwg.mxu0
    %6426 = vmatprep.subr.bf16.mxu0 %v2963
    %6427 = vmatpush1.bf16.xpose.msra.mxu0 %v2962
    %6428 = vmatprep.subr.bf16.mxu0 0
    %6429 = vmatpush1.bf16.xpose.msra.mxu0 0
    %6430 = vmatprep.subr.bf16.mxu0 0
    %6431 = vmatpush1.bf16.xpose.msra.mxu0 0
    %6432 = vmatprep.subr.bf16.mxu0 0
    %6433 = vmatpush1.bf16.xpose.msra.mxu0 0
    %6434 = vmatprep.subr.bf16.mxu0 0
    %6435 = vmatpush1.bf16.xpose.msra.mxu0 0
    %6436 = vmatprep.subr.bf16.mxu0 0
    %6437 = vmatpush1.bf16.xpose.msra.mxu0 0
    %6438 = vmatprep.subr.bf16.mxu0 0
    %6439 = vmatpush1.bf16.xpose.msra.mxu0 0
    %6440 = vmatprep.subr.bf16.mxu0 0
    %6441 = vmatpush1.bf16.xpose.msra.mxu0 0
    %6442 = vmatprep.subr.bf16.mxu0 0
    %6443 = vmatpush1.bf16.xpose.msra.mxu0 0
    %6444 = vmatprep.subr.bf16.mxu0 0
    %6445 = vmatpush1.bf16.xpose.msra.mxu0 0
    %6446 = vmatprep.subr.bf16.mxu0 0
    %6447 = vmatpush1.bf16.xpose.msra.mxu0 0
    %6448 = vmatprep.subr.bf16.mxu0 0
    %6449 = vmatpush1.bf16.xpose.msra.mxu0 0
    %6450 = vmatprep.subr.bf16.mxu0 0
    %6451 = vmatpush1.bf16.xpose.msra.mxu0 0
    %6452 = vmatprep.subr.bf16.mxu0 0
    %6453 = vmatpush1.bf16.xpose.msra.mxu0 0
    %6454 = vmatprep.subr.bf16.mxu0 0
    %6455 = vmatpush1.bf16.xpose.msra.mxu0 0
    %6456 = vmatprep.subr.bf16.mxu0 0
    %6457 = vmatpush1.bf16.xpose.msra.mxu0 0
    %6458 = vmatprep.mubr.bf16.mxu0 %v2106
    %6459 = vmatmul.mubr.bf16.gmra.mrb[0].mxu0 %v2105
    %v6460 = vpop.f32.mrb[0].mxu0
    %v6461 = vadd.f32 %v6421, %v6460
    %v6462 = vpop.f32.mrb[0].mxu0
    %v6463 = vpop.f32.mrb[0].mxu0
    %v6464 = vpop.f32.mrb[0].mxu0
    %6465 = vdwg.mxu0
    %6466 = vmatprep.subr.bf16.mxu0 %v2965
    %6467 = vmatpush1.bf16.xpose.msra.mxu0 %v2964
    %6468 = vmatprep.subr.bf16.mxu0 0
    %6469 = vmatpush1.bf16.xpose.msra.mxu0 0
    %6470 = vmatprep.subr.bf16.mxu0 0
    %6471 = vmatpush1.bf16.xpose.msra.mxu0 0
    %6472 = vmatprep.subr.bf16.mxu0 0
    %6473 = vmatpush1.bf16.xpose.msra.mxu0 0
    %6474 = vmatprep.subr.bf16.mxu0 0
    %6475 = vmatpush1.bf16.xpose.msra.mxu0 0
    %6476 = vmatprep.subr.bf16.mxu0 0
    %6477 = vmatpush1.bf16.xpose.msra.mxu0 0
    %6478 = vmatprep.subr.bf16.mxu0 0
    %6479 = vmatpush1.bf16.xpose.msra.mxu0 0
    %6480 = vmatprep.subr.bf16.mxu0 0
    %6481 = vmatpush1.bf16.xpose.msra.mxu0 0
    %6482 = vmatprep.subr.bf16.mxu0 0
    %6483 = vmatpush1.bf16.xpose.msra.mxu0 0
    %6484 = vmatprep.subr.bf16.mxu0 0
    %6485 = vmatpush1.bf16.xpose.msra.mxu0 0
    %6486 = vmatprep.subr.bf16.mxu0 0
    %6487 = vmatpush1.bf16.xpose.msra.mxu0 0
    %6488 = vmatprep.subr.bf16.mxu0 0
    %6489 = vmatpush1.bf16.xpose.msra.mxu0 0
    %6490 = vmatprep.subr.bf16.mxu0 0
    %6491 = vmatpush1.bf16.xpose.msra.mxu0 0
    %6492 = vmatprep.subr.bf16.mxu0 0
    %6493 = vmatpush1.bf16.xpose.msra.mxu0 0
    %6494 = vmatprep.subr.bf16.mxu0 0
    %6495 = vmatpush1.bf16.xpose.msra.mxu0 0
    %6496 = vmatprep.subr.bf16.mxu0 0
    %6497 = vmatpush1.bf16.xpose.msra.mxu0 0
    %6498 = vmatprep.mubr.bf16.mxu0 %v2108
    %6499 = vmatmul.mubr.bf16.gmra.mrb[0].mxu0 %v2107
    %v6500 = vpop.f32.mrb[0].mxu0
    %v6501 = vadd.f32 %v6461, %v6500
    %v6502 = vpop.f32.mrb[0].mxu0
    %v6503 = vpop.f32.mrb[0].mxu0
    %v6504 = vpop.f32.mrb[0].mxu0
    %6505 = vdwg.mxu0
    %6506 = vmatprep.subr.bf16.mxu0 %v2967
    %6507 = vmatpush1.bf16.xpose.msra.mxu0 %v2966
    %6508 = vmatprep.subr.bf16.mxu0 0
    %6509 = vmatpush1.bf16.xpose.msra.mxu0 0
    %6510 = vmatprep.subr.bf16.mxu0 0
    %6511 = vmatpush1.bf16.xpose.msra.mxu0 0
    %6512 = vmatprep.subr.bf16.mxu0 0
    %6513 = vmatpush1.bf16.xpose.msra.mxu0 0
    %6514 = vmatprep.subr.bf16.mxu0 0
    %6515 = vmatpush1.bf16.xpose.msra.mxu0 0
    %6516 = vmatprep.subr.bf16.mxu0 0
    %6517 = vmatpush1.bf16.xpose.msra.mxu0 0
    %6518 = vmatprep.subr.bf16.mxu0 0
    %6519 = vmatpush1.bf16.xpose.msra.mxu0 0
    %6520 = vmatprep.subr.bf16.mxu0 0
    %6521 = vmatpush1.bf16.xpose.msra.mxu0 0
    %6522 = vmatprep.subr.bf16.mxu0 0
    %6523 = vmatpush1.bf16.xpose.msra.mxu0 0
    %6524 = vmatprep.subr.bf16.mxu0 0
    %6525 = vmatpush1.bf16.xpose.msra.mxu0 0
    %6526 = vmatprep.subr.bf16.mxu0 0
    %6527 = vmatpush1.bf16.xpose.msra.mxu0 0
    %6528 = vmatprep.subr.bf16.mxu0 0
    %6529 = vmatpush1.bf16.xpose.msra.mxu0 0
    %6530 = vmatprep.subr.bf16.mxu0 0
    %6531 = vmatpush1.bf16.xpose.msra.mxu0 0
    %6532 = vmatprep.subr.bf16.mxu0 0
    %6533 = vmatpush1.bf16.xpose.msra.mxu0 0
    %6534 = vmatprep.subr.bf16.mxu0 0
    %6535 = vmatpush1.bf16.xpose.msra.mxu0 0
    %6536 = vmatprep.subr.bf16.mxu0 0
    %6537 = vmatpush1.bf16.xpose.msra.mxu0 0
    %6538 = vmatprep.mubr.bf16.mxu0 %v2110
    %6539 = vmatmul.mubr.bf16.gmra.mrb[0].mxu0 %v2109
    %v6540 = vpop.f32.mrb[0].mxu0
    %v6541 = vadd.f32 %v6501, %v6540
    %v6542 = vpop.f32.mrb[0].mxu0
    %v6543 = vpop.f32.mrb[0].mxu0
    %v6544 = vpop.f32.mrb[0].mxu0
    %6545 = vdwg.mxu0
    %6546 = vmatprep.subr.bf16.mxu0 0
    %6547 = vmatpush1.bf16.xpose.msra.mxu0 %v3144
    %6548 = vmatprep.subr.bf16.mxu0 0
    %6549 = vmatpush1.bf16.xpose.msra.mxu0 0
    %6550 = vmatprep.subr.bf16.mxu0 0
    %6551 = vmatpush1.bf16.xpose.msra.mxu0 0
    %6552 = vmatprep.subr.bf16.mxu0 0
    %6553 = vmatpush1.bf16.xpose.msra.mxu0 0
    %6554 = vmatprep.subr.bf16.mxu0 0
    %6555 = vmatpush1.bf16.xpose.msra.mxu0 0
    %6556 = vmatprep.subr.bf16.mxu0 0
    %6557 = vmatpush1.bf16.xpose.msra.mxu0 0
    %6558 = vmatprep.subr.bf16.mxu0 0
    %6559 = vmatpush1.bf16.xpose.msra.mxu0 0
    %6560 = vmatprep.subr.bf16.mxu0 0
    %6561 = vmatpush1.bf16.xpose.msra.mxu0 0
    %6562 = vmatprep.subr.bf16.mxu0 0
    %6563 = vmatpush1.bf16.xpose.msra.mxu0 0
    %6564 = vmatprep.subr.bf16.mxu0 0
    %6565 = vmatpush1.bf16.xpose.msra.mxu0 0
    %6566 = vmatprep.subr.bf16.mxu0 0
    %6567 = vmatpush1.bf16.xpose.msra.mxu0 0
    %6568 = vmatprep.subr.bf16.mxu0 0
    %6569 = vmatpush1.bf16.xpose.msra.mxu0 0
    %6570 = vmatprep.subr.bf16.mxu0 0
    %6571 = vmatpush1.bf16.xpose.msra.mxu0 0
    %6572 = vmatprep.subr.bf16.mxu0 0
    %6573 = vmatpush1.bf16.xpose.msra.mxu0 0
    %6574 = vmatprep.subr.bf16.mxu0 0
    %6575 = vmatpush1.bf16.xpose.msra.mxu0 0
    %6576 = vmatprep.subr.bf16.mxu0 0
    %6577 = vmatpush1.bf16.xpose.msra.mxu0 0
    %6578 = vmatprep.mubr.bf16.mxu0 0
    %6579 = vmatmul.mubr.bf16.gmra.mrb[0].mxu0 %v3141
    %v6580 = vpop.f32.mrb[0].mxu0
    %v6581 = vadd.f32 %v6541, %v6580
    %v6582 = vpop.f32.mrb[0].mxu0
    %v6583 = vpop.f32.mrb[0].mxu0
    %v6584 = vpop.f32.mrb[0].mxu0
    %6585 = vdwg.mxu0
    %v6586 = vadd.f32 %v1767, %v6581
    %vm6587 = vcmask 130048
    %6588 = vst.msk [vmem:[#allocation14] sm:$0xff] %vm6587, %v6586
    // Predicated region
    $region66: #{lstm22k_decoder_forward.1} parent=1 // pred_check
      _
    $region67: #{lstm22k_decoder_forward.1} parent=1 // pred_check_branch
      %6590 = sbr.rel (0) target = $region69
    $region68: #{lstm22k_decoder_forward.1} parent=1 // pred_region
      %s6592 = ssub.s32 128, 128
      %6593 = vsyncadd [#allocation5], %s6592
      %s6595 = sshll.u32 [#allocation14], 4
      %s6596 = int_to_ptr.vmem [resolvable:$true] %s6595
      %6598 = dma.vmem_to_hbm [thread:$0]  %s6596, 128, %s10, [#allocation5]
    $region69: #{lstm22k_decoder_forward.1} parent=1 // pred_fallthru
      _
    // Predicated region
    $region70: #{lstm22k_decoder_forward.1} parent=1 // pred_check
      _
    $region71: #{lstm22k_decoder_forward.1} parent=1 // pred_check_branch
      %6600 = sbr.rel (0) target = $region73
    $region72: #{lstm22k_decoder_forward.1} parent=1 // pred_region
      %6601 = dma.done [#allocation5], 128
    $region73: #{lstm22k_decoder_forward.1} parent=1 // pred_fallthru
      _
    %6602 = vsyncpa [#allocation4], 1
    %6603 = vsyncpa [#allocation7], 1
    %6604 = vsyncpa [#allocation10], 1
    %6605 = vsyncpa [#allocation13], 1
    %6606 = vsyncpa [#allocation5], 1

</llo_original>
